<compile_context>
chip_gen: v5e
topology: v5e:2x2
jax: 0.10.0
libtpu: 0.0.40
codegen_flags: <defaults>
</compile_context>

<pallas_src>
import functools

import jax
import jax.numpy as jnp
from jax import lax
from jax.experimental import pallas as pl
from jax.experimental.pallas import tpu as pltpu

EPS = 1e-5
SLOPE = 0.2


# ----------------------------------------------------------------------------
# Pallas kernels
# ----------------------------------------------------------------------------
def _phase_matmul_bn_lrelu_kernel(cols_ref, w_ref, g_ref, b_ref, o_ref, *,
                                  eps, slope):
    """Per-phase matmuls + fused BatchNorm (full-batch stats) + LeakyReLU.

    cols_ref : (P, K, M)   bf16   per-phase patch matrices (M on lanes)
    w_ref    : (P, Cout, K) bf16  per-phase weight matrices
    g_ref    : (Cout, 1)   f32    BN gamma
    b_ref    : (Cout, 1)   f32    BN beta
    o_ref    : (P, Cout, M) bf16  normalized + LeakyReLU'd output

    Stats for an output channel are reduced over all P phases and all M lane
    positions == the full N*H_out*W_out batch (PyTorch training-mode BN).
    """
    P = cols_ref.shape[0]
    M = cols_ref.shape[2]
    # MXU matmuls, f32 accumulation.  P is a small static Python constant,
    # so this unrolls at trace time (LLO sees straight-line code).
    ys = [jnp.dot(w_ref[p], cols_ref[p], preferred_element_type=jnp.float32)
          for p in range(P)]                                   # P x (Cout, M)
    tot = ys[0]
    for y in ys[1:]:
        tot = tot + y
    cnt = float(P * M)
    mean = jnp.sum(tot, axis=-1, keepdims=True) / cnt           # (Cout, 1)
    ssq = None
    for y in ys:
        d = y - mean
        ssq = d * d if ssq is None else ssq + d * d
    var = jnp.sum(ssq, axis=-1, keepdims=True) / cnt            # biased var
    scale = g_ref[...] * lax.rsqrt(var + eps)                   # EUP rsqrt
    shift = b_ref[...] - mean * scale
    for p in range(P):
        z = ys[p] * scale + shift
        # LeakyReLU(0.2) as a single VPU max.
        o_ref[p] = jnp.maximum(z, slope * z).astype(o_ref.dtype)


def _phase_matmul_tanh_kernel(cols_ref, w_ref, o_ref):
    """Final layer: per-phase matmuls + fused tanh (no BN), tiled over lanes."""
    for p in range(cols_ref.shape[0]):
        y = jnp.dot(w_ref[p], cols_ref[p], preferred_element_type=jnp.float32)
        o_ref[p] = jnp.tanh(y)                                   # EUP tanh


# ----------------------------------------------------------------------------
# Pallas wrappers
# ----------------------------------------------------------------------------
def _phase_matmul_bn_lrelu(cols, wp, gamma, beta):
    """cols: (P, K, M) bf16, wp: (P, Cout, K) bf16 -> (P, Cout, M) bf16."""
    P, K, M = cols.shape
    Cout = wp.shape[1]
    g = gamma.reshape(Cout, 1).astype(jnp.float32)
    b = beta.reshape(Cout, 1).astype(jnp.float32)
    return pl.pallas_call(
        functools.partial(_phase_matmul_bn_lrelu_kernel, eps=EPS, slope=SLOPE),
        out_shape=jax.ShapeDtypeStruct((P, Cout, M), jnp.bfloat16),
        grid=(1,),
        in_specs=[
            pl.BlockSpec((P, K, M), lambda i: (0, 0, 0)),
            pl.BlockSpec((P, Cout, K), lambda i: (0, 0, 0)),
            pl.BlockSpec((Cout, 1), lambda i: (0, 0)),
            pl.BlockSpec((Cout, 1), lambda i: (0, 0)),
        ],
        out_specs=pl.BlockSpec((P, Cout, M), lambda i: (0, 0, 0)),
        compiler_params=pltpu.CompilerParams(
            dimension_semantics=("arbitrary",)),
    )(cols, wp, g, b)


def _phase_matmul_tanh(cols, wp):
    """cols: (4, K, M) bf16, wp: (4, 1, K) bf16 -> (4, 1, M) f32, tanh'd."""
    P, K, M = cols.shape
    Cout = wp.shape[1]
    # Tile the lane axis; "parallel" lets v7x shard steps across both TCs.
    bm = 1024 if (M > 1024 and M % 1024 == 0) else M
    return pl.pallas_call(
        _phase_matmul_tanh_kernel,
        out_shape=jax.ShapeDtypeStruct((P, Cout, M), jnp.float32),
        grid=(M // bm,),
        in_specs=[
            pl.BlockSpec((P, K, bm), lambda i: (0, 0, i)),
            pl.BlockSpec((P, Cout, K), lambda i: (0, 0, 0)),
        ],
        out_specs=pl.BlockSpec((P, Cout, bm), lambda i: (0, 0, i)),
        compiler_params=pltpu.CompilerParams(
            dimension_semantics=("parallel",)),
    )(cols, wp)


# ----------------------------------------------------------------------------
# ConvTranspose2d(k=4, s=2, p=1) sub-pixel decomposition (XLA glue)
# ----------------------------------------------------------------------------
# Output pixel (2m+py, 2k+px) of the transposed conv is a dense 2x2 conv of
# the 1-padded input with kernel taps (ky, kx) = (3 - py - 2*dy, 3 - px - 2*dx),
# dy, dx in {0, 1}.  Phase index p = py*2 + px; contraction order (tap, cin).
def _phase_weights(w):
    """(Cin, Cout, 4, 4) torch ConvTranspose2d weight -> (4, Cout, 4*Cin) bf16."""
    Cin, Cout = w.shape[0], w.shape[1]
    phases = []
    for py in range(2):
        for px in range(2):
            taps = [w[:, :, 3 - py - 2 * dy, 3 - px - 2 * dx]
                    for dy in range(2) for dx in range(2)]      # 4 x (Cin, Cout)
            wp = jnp.stack(taps, axis=0)                        # (4, Cin, Cout)
            phases.append(wp.transpose(2, 0, 1).reshape(Cout, 4 * Cin))
    return jnp.stack(phases, axis=0).astype(jnp.bfloat16)       # (4, Cout, 4*Cin)


def _phase_cols(act):
    """(Cin, N, H, W) activation -> per-phase patch matrices (4, 4*Cin, N*H*W)."""
    Cin, N, H, W = act.shape
    xp = jnp.pad(act, ((0, 0), (0, 0), (1, 1), (1, 1)))
    phases = []
    for py in range(2):
        for px in range(2):
            taps = [xp[:, :, py + dy:py + dy + H, px + dx:px + dx + W]
                    for dy in range(2) for dx in range(2)]      # 4 x (Cin,N,H,W)
            phases.append(jnp.stack(taps, axis=0).reshape(4 * Cin, N * H * W))
    return jnp.stack(phases, axis=0).astype(jnp.bfloat16)       # (4, 4*Cin, M)


def _conv_bn_lrelu_layer(act, w, gamma, beta):
    """One ConvTranspose2d(4,2,1)+BN+LeakyReLU. act: (Cin, N, H, W) bf16."""
    Cin, N, H, W = act.shape
    Cout = w.shape[1]
    out = _phase_matmul_bn_lrelu(_phase_cols(act), _phase_weights(w),
                                 gamma, beta)                   # (4, Cout, M)
    # Interleave the 4 phases back into (Cout, N, 2H, 2W).
    y = out.reshape(2, 2, Cout, N, H, W).transpose(2, 3, 4, 0, 5, 1)
    return y.reshape(Cout, N, 2 * H, 2 * W)


def _conv_tanh_layer(act, w):
    """Final ConvTranspose2d(4,2,1) (Cout=1) + tanh. Returns (N, 2H, 2W) f32."""
    Cin, N, H, W = act.shape
    out = _phase_matmul_tanh(_phase_cols(act), _phase_weights(w))  # (4, 1, M)
    y = out.reshape(2, 2, N, H, W).transpose(2, 3, 0, 4, 1)
    return y.reshape(N, 2 * H, 2 * W)


def _input_layer(gin, w1, gamma, beta):
    """ConvTranspose2d(Z, C, 4, 1, 0) on the 1x1 latent + BN + LeakyReLU.

    Reuses the phase kernel with P=16 "phases" (one per output pixel of the
    4x4 map); stats then span all 16 positions x batch, as BatchNorm2d needs.
    """
    N, Z = gin.shape
    C = w1.shape[1]
    x = gin.T.astype(jnp.bfloat16)                              # (Z, N)
    cols = jnp.broadcast_to(x[None], (16, Z, N))                # (16, Z, N)
    wp = w1.transpose(2, 3, 1, 0).reshape(16, C, Z).astype(jnp.bfloat16)
    out = _phase_matmul_bn_lrelu(cols, wp, gamma, beta)         # (16, C, N)
    return out.transpose(1, 2, 0).reshape(C, N, 4, 4)           # (C, N, 4, 4)


# ----------------------------------------------------------------------------
# Generator_64 forward
# ----------------------------------------------------------------------------
def generator_64_forward(gin, params):
    """gin: (N, Z_DIM) f32 -> (N, 64, 64) f32 (matches .squeeze(1))."""
    w1, bn1, w2, bn2, w3, bn3, w4, bn4, w5 = params
    x = _input_layer(gin, w1, *bn1)        # (8H, N,  4,  4)
    x = _conv_bn_lrelu_layer(x, w2, *bn2)  # (4H, N,  8,  8)
    x = _conv_bn_lrelu_layer(x, w3, *bn3)  # (2H, N, 16, 16)
    x = _conv_bn_lrelu_layer(x, w4, *bn4)  # ( H, N, 32, 32)
    return _conv_tanh_layer(x, w5)         # (N, 64, 64) f32


# ----------------------------------------------------------------------------
# Deterministic parameter init (shapes from Generator_64.__init__)
# ----------------------------------------------------------------------------
def init_params(key, z_dim, g_hidden):
    H = g_hidden
    ks = jax.random.split(key, 13)

    def w(k, shape):
        return (0.05 * jax.random.normal(k, shape)).astype(jnp.float32)

    def bn(kg, kb, c):
        gamma = (1.0 + 0.1 * jax.random.normal(kg, (c,))).astype(jnp.float32)
        beta = (0.1 * jax.random.normal(kb, (c,))).astype(jnp.float32)
        return gamma, beta

    w1 = w(ks[0], (z_dim, H * 8, 4, 4))
    w2 = w(ks[1], (H * 8, H * 4, 4, 4))
    w3 = w(ks[2], (H * 4, H * 2, 4, 4))
    w4 = w(ks[3], (H * 2, H, 4, 4))
    w5 = w(ks[4], (H, 1, 4, 4))
    bn1 = bn(ks[5], ks[6], H * 8)
    bn2 = bn(ks[7], ks[8], H * 4)
    bn3 = bn(ks[9], ks[10], H * 2)
    bn4 = bn(ks[11], ks[12], H)
    return (w1, bn1, w2, bn2, w3, bn3, w4, bn4, w5)


if __name__ == "__main__":
    Z_DIM, G_HIDDEN, BATCH = 16, 8, 2

    key = jax.random.PRNGKey(0)
    kp, kx = jax.random.split(key)
    params = init_params(kp, Z_DIM, G_HIDDEN)
    gin = jax.random.normal(kx, (BATCH, Z_DIM), dtype=jnp.float32)

    out = jax.jit(generator_64_forward)(gin, params)
    out = jax.block_until_ready(out)

    assert out.shape == (BATCH, 64, 64), out.shape
    assert out.dtype == jnp.float32
    assert bool(jnp.all(jnp.isfinite(out)))
    assert bool(jnp.all(jnp.abs(out) <= 1.0))  # tanh range
    print("KERNEL_OK")
</pallas_src>

<mosaic_0001>
module attributes {stable_mosaic.version = 11 : i64} {
  func.func @_phase_matmul_bn_lrelu_kernel(%arg0: i32, %arg1: memref<16x16x2xbf16, #tpu.memory_space<vmem>>, %arg2: memref<16x64x16xbf16, #tpu.memory_space<vmem>>, %arg3: memref<64x1xf32, #tpu.memory_space<vmem>>, %arg4: memref<64x1xf32, #tpu.memory_space<vmem>>, %arg5: memref<16x64x2xbf16, #tpu.memory_space<vmem>>) attributes {dimension_semantics = [#tpu.dimension_semantics<arbitrary>], iteration_bounds = array<i64: 1>, scalar_prefetch = 0 : i64, scratch_operands = 0 : i64, tpu.core_type = #tpu.core_type<tc>, window_params = [{pipeline_mode = #tpu.pipeline_mode<synchronous>, transform_indices = @transform_0, window_bounds = array<i64: 16, 16, 2>}, {pipeline_mode = #tpu.pipeline_mode<synchronous>, transform_indices = @transform_1, window_bounds = array<i64: 16, 64, 16>}, {pipeline_mode = #tpu.pipeline_mode<synchronous>, transform_indices = @transform_2, window_bounds = array<i64: 64, 1>}, {pipeline_mode = #tpu.pipeline_mode<synchronous>, transform_indices = @transform_3, window_bounds = array<i64: 64, 1>}, {pipeline_mode = #tpu.pipeline_mode<synchronous>, transform_indices = @transform_4, window_bounds = array<i64: 16, 64, 2>}]} {
    %c0 = arith.constant 0 : index
    %c0_0 = arith.constant 0 : index
    %c0_1 = arith.constant 0 : index
    %0 = vector.load %arg2[%c0, %c0_0, %c0_1] : memref<16x64x16xbf16, #tpu.memory_space<vmem>>, vector<1x64x16xbf16>
    %1 = vector.shape_cast %0 : vector<1x64x16xbf16> to vector<64x16xbf16>
    %c0_2 = arith.constant 0 : index
    %c0_3 = arith.constant 0 : index
    %c0_4 = arith.constant 0 : index
    %2 = vector.load %arg1[%c0_2, %c0_3, %c0_4] : memref<16x16x2xbf16, #tpu.memory_space<vmem>>, vector<1x16x2xbf16>
    %3 = vector.shape_cast %2 : vector<1x16x2xbf16> to vector<16x2xbf16>
    %cst = arith.constant dense<0.000000e+00> : vector<64x2xf32>
    %4 = tpu.matmul %1, %3, %cst {dimension_numbers = #tpu.dot_dimension_numbers<[1], [0], [0], [1], [0, 0, 1, 1], [], []>} : vector<64x16xbf16>, vector<16x2xbf16>, vector<64x2xf32> -> vector<64x2xf32>
    %c1 = arith.constant 1 : index
    %c0_5 = arith.constant 0 : index
    %c0_6 = arith.constant 0 : index
    %5 = vector.load %arg2[%c1, %c0_5, %c0_6] : memref<16x64x16xbf16, #tpu.memory_space<vmem>>, vector<1x64x16xbf16>
    %6 = vector.shape_cast %5 : vector<1x64x16xbf16> to vector<64x16xbf16>
    %c1_7 = arith.constant 1 : index
    %c0_8 = arith.constant 0 : index
    %c0_9 = arith.constant 0 : index
    %7 = vector.load %arg1[%c1_7, %c0_8, %c0_9] : memref<16x16x2xbf16, #tpu.memory_space<vmem>>, vector<1x16x2xbf16>
    %8 = vector.shape_cast %7 : vector<1x16x2xbf16> to vector<16x2xbf16>
    %cst_10 = arith.constant dense<0.000000e+00> : vector<64x2xf32>
    %9 = tpu.matmul %6, %8, %cst_10 {dimension_numbers = #tpu.dot_dimension_numbers<[1], [0], [0], [1], [0, 0, 1, 1], [], []>} : vector<64x16xbf16>, vector<16x2xbf16>, vector<64x2xf32> -> vector<64x2xf32>
    %c2 = arith.constant 2 : index
    %c0_11 = arith.constant 0 : index
    %c0_12 = arith.constant 0 : index
    %10 = vector.load %arg2[%c2, %c0_11, %c0_12] : memref<16x64x16xbf16, #tpu.memory_space<vmem>>, vector<1x64x16xbf16>
    %11 = vector.shape_cast %10 : vector<1x64x16xbf16> to vector<64x16xbf16>
    %c2_13 = arith.constant 2 : index
    %c0_14 = arith.constant 0 : index
    %c0_15 = arith.constant 0 : index
    %12 = vector.load %arg1[%c2_13, %c0_14, %c0_15] : memref<16x16x2xbf16, #tpu.memory_space<vmem>>, vector<1x16x2xbf16>
    %13 = vector.shape_cast %12 : vector<1x16x2xbf16> to vector<16x2xbf16>
    %cst_16 = arith.constant dense<0.000000e+00> : vector<64x2xf32>
    %14 = tpu.matmul %11, %13, %cst_16 {dimension_numbers = #tpu.dot_dimension_numbers<[1], [0], [0], [1], [0, 0, 1, 1], [], []>} : vector<64x16xbf16>, vector<16x2xbf16>, vector<64x2xf32> -> vector<64x2xf32>
    %c3 = arith.constant 3 : index
    %c0_17 = arith.constant 0 : index
    %c0_18 = arith.constant 0 : index
    %15 = vector.load %arg2[%c3, %c0_17, %c0_18] : memref<16x64x16xbf16, #tpu.memory_space<vmem>>, vector<1x64x16xbf16>
    %16 = vector.shape_cast %15 : vector<1x64x16xbf16> to vector<64x16xbf16>
    %c3_19 = arith.constant 3 : index
    %c0_20 = arith.constant 0 : index
    %c0_21 = arith.constant 0 : index
    %17 = vector.load %arg1[%c3_19, %c0_20, %c0_21] : memref<16x16x2xbf16, #tpu.memory_space<vmem>>, vector<1x16x2xbf16>
    %18 = vector.shape_cast %17 : vector<1x16x2xbf16> to vector<16x2xbf16>
    %cst_22 = arith.constant dense<0.000000e+00> : vector<64x2xf32>
    %19 = tpu.matmul %16, %18, %cst_22 {dimension_numbers = #tpu.dot_dimension_numbers<[1], [0], [0], [1], [0, 0, 1, 1], [], []>} : vector<64x16xbf16>, vector<16x2xbf16>, vector<64x2xf32> -> vector<64x2xf32>
    %c4 = arith.constant 4 : index
    %c0_23 = arith.constant 0 : index
    %c0_24 = arith.constant 0 : index
    %20 = vector.load %arg2[%c4, %c0_23, %c0_24] : memref<16x64x16xbf16, #tpu.memory_space<vmem>>, vector<1x64x16xbf16>
    %21 = vector.shape_cast %20 : vector<1x64x16xbf16> to vector<64x16xbf16>
    %c4_25 = arith.constant 4 : index
    %c0_26 = arith.constant 0 : index
    %c0_27 = arith.constant 0 : index
    %22 = vector.load %arg1[%c4_25, %c0_26, %c0_27] : memref<16x16x2xbf16, #tpu.memory_space<vmem>>, vector<1x16x2xbf16>
    %23 = vector.shape_cast %22 : vector<1x16x2xbf16> to vector<16x2xbf16>
    %cst_28 = arith.constant dense<0.000000e+00> : vector<64x2xf32>
    %24 = tpu.matmul %21, %23, %cst_28 {dimension_numbers = #tpu.dot_dimension_numbers<[1], [0], [0], [1], [0, 0, 1, 1], [], []>} : vector<64x16xbf16>, vector<16x2xbf16>, vector<64x2xf32> -> vector<64x2xf32>
    %c5 = arith.constant 5 : index
    %c0_29 = arith.constant 0 : index
    %c0_30 = arith.constant 0 : index
    %25 = vector.load %arg2[%c5, %c0_29, %c0_30] : memref<16x64x16xbf16, #tpu.memory_space<vmem>>, vector<1x64x16xbf16>
    %26 = vector.shape_cast %25 : vector<1x64x16xbf16> to vector<64x16xbf16>
    %c5_31 = arith.constant 5 : index
    %c0_32 = arith.constant 0 : index
    %c0_33 = arith.constant 0 : index
    %27 = vector.load %arg1[%c5_31, %c0_32, %c0_33] : memref<16x16x2xbf16, #tpu.memory_space<vmem>>, vector<1x16x2xbf16>
    %28 = vector.shape_cast %27 : vector<1x16x2xbf16> to vector<16x2xbf16>
    %cst_34 = arith.constant dense<0.000000e+00> : vector<64x2xf32>
    %29 = tpu.matmul %26, %28, %cst_34 {dimension_numbers = #tpu.dot_dimension_numbers<[1], [0], [0], [1], [0, 0, 1, 1], [], []>} : vector<64x16xbf16>, vector<16x2xbf16>, vector<64x2xf32> -> vector<64x2xf32>
    %c6 = arith.constant 6 : index
    %c0_35 = arith.constant 0 : index
    %c0_36 = arith.constant 0 : index
    %30 = vector.load %arg2[%c6, %c0_35, %c0_36] : memref<16x64x16xbf16, #tpu.memory_space<vmem>>, vector<1x64x16xbf16>
    %31 = vector.shape_cast %30 : vector<1x64x16xbf16> to vector<64x16xbf16>
    %c6_37 = arith.constant 6 : index
    %c0_38 = arith.constant 0 : index
    %c0_39 = arith.constant 0 : index
    %32 = vector.load %arg1[%c6_37, %c0_38, %c0_39] : memref<16x16x2xbf16, #tpu.memory_space<vmem>>, vector<1x16x2xbf16>
    %33 = vector.shape_cast %32 : vector<1x16x2xbf16> to vector<16x2xbf16>
    %cst_40 = arith.constant dense<0.000000e+00> : vector<64x2xf32>
    %34 = tpu.matmul %31, %33, %cst_40 {dimension_numbers = #tpu.dot_dimension_numbers<[1], [0], [0], [1], [0, 0, 1, 1], [], []>} : vector<64x16xbf16>, vector<16x2xbf16>, vector<64x2xf32> -> vector<64x2xf32>
    %c7 = arith.constant 7 : index
    %c0_41 = arith.constant 0 : index
    %c0_42 = arith.constant 0 : index
    %35 = vector.load %arg2[%c7, %c0_41, %c0_42] : memref<16x64x16xbf16, #tpu.memory_space<vmem>>, vector<1x64x16xbf16>
    %36 = vector.shape_cast %35 : vector<1x64x16xbf16> to vector<64x16xbf16>
    %c7_43 = arith.constant 7 : index
    %c0_44 = arith.constant 0 : index
    %c0_45 = arith.constant 0 : index
    %37 = vector.load %arg1[%c7_43, %c0_44, %c0_45] : memref<16x16x2xbf16, #tpu.memory_space<vmem>>, vector<1x16x2xbf16>
    %38 = vector.shape_cast %37 : vector<1x16x2xbf16> to vector<16x2xbf16>
    %cst_46 = arith.constant dense<0.000000e+00> : vector<64x2xf32>
    %39 = tpu.matmul %36, %38, %cst_46 {dimension_numbers = #tpu.dot_dimension_numbers<[1], [0], [0], [1], [0, 0, 1, 1], [], []>} : vector<64x16xbf16>, vector<16x2xbf16>, vector<64x2xf32> -> vector<64x2xf32>
    %c8 = arith.constant 8 : index
    %c0_47 = arith.constant 0 : index
    %c0_48 = arith.constant 0 : index
    %40 = vector.load %arg2[%c8, %c0_47, %c0_48] : memref<16x64x16xbf16, #tpu.memory_space<vmem>>, vector<1x64x16xbf16>
    %41 = vector.shape_cast %40 : vector<1x64x16xbf16> to vector<64x16xbf16>
    %c8_49 = arith.constant 8 : index
    %c0_50 = arith.constant 0 : index
    %c0_51 = arith.constant 0 : index
    %42 = vector.load %arg1[%c8_49, %c0_50, %c0_51] : memref<16x16x2xbf16, #tpu.memory_space<vmem>>, vector<1x16x2xbf16>
    %43 = vector.shape_cast %42 : vector<1x16x2xbf16> to vector<16x2xbf16>
    %cst_52 = arith.constant dense<0.000000e+00> : vector<64x2xf32>
    %44 = tpu.matmul %41, %43, %cst_52 {dimension_numbers = #tpu.dot_dimension_numbers<[1], [0], [0], [1], [0, 0, 1, 1], [], []>} : vector<64x16xbf16>, vector<16x2xbf16>, vector<64x2xf32> -> vector<64x2xf32>
    %c9 = arith.constant 9 : index
    %c0_53 = arith.constant 0 : index
    %c0_54 = arith.constant 0 : index
    %45 = vector.load %arg2[%c9, %c0_53, %c0_54] : memref<16x64x16xbf16, #tpu.memory_space<vmem>>, vector<1x64x16xbf16>
    %46 = vector.shape_cast %45 : vector<1x64x16xbf16> to vector<64x16xbf16>
    %c9_55 = arith.constant 9 : index
    %c0_56 = arith.constant 0 : index
    %c0_57 = arith.constant 0 : index
    %47 = vector.load %arg1[%c9_55, %c0_56, %c0_57] : memref<16x16x2xbf16, #tpu.memory_space<vmem>>, vector<1x16x2xbf16>
    %48 = vector.shape_cast %47 : vector<1x16x2xbf16> to vector<16x2xbf16>
    %cst_58 = arith.constant dense<0.000000e+00> : vector<64x2xf32>
    %49 = tpu.matmul %46, %48, %cst_58 {dimension_numbers = #tpu.dot_dimension_numbers<[1], [0], [0], [1], [0, 0, 1, 1], [], []>} : vector<64x16xbf16>, vector<16x2xbf16>, vector<64x2xf32> -> vector<64x2xf32>
    %c10 = arith.constant 10 : index
    %c0_59 = arith.constant 0 : index
    %c0_60 = arith.constant 0 : index
    %50 = vector.load %arg2[%c10, %c0_59, %c0_60] : memref<16x64x16xbf16, #tpu.memory_space<vmem>>, vector<1x64x16xbf16>
    %51 = vector.shape_cast %50 : vector<1x64x16xbf16> to vector<64x16xbf16>
    %c10_61 = arith.constant 10 : index
    %c0_62 = arith.constant 0 : index
    %c0_63 = arith.constant 0 : index
    %52 = vector.load %arg1[%c10_61, %c0_62, %c0_63] : memref<16x16x2xbf16, #tpu.memory_space<vmem>>, vector<1x16x2xbf16>
    %53 = vector.shape_cast %52 : vector<1x16x2xbf16> to vector<16x2xbf16>
    %cst_64 = arith.constant dense<0.000000e+00> : vector<64x2xf32>
    %54 = tpu.matmul %51, %53, %cst_64 {dimension_numbers = #tpu.dot_dimension_numbers<[1], [0], [0], [1], [0, 0, 1, 1], [], []>} : vector<64x16xbf16>, vector<16x2xbf16>, vector<64x2xf32> -> vector<64x2xf32>
    %c11 = arith.constant 11 : index
    %c0_65 = arith.constant 0 : index
    %c0_66 = arith.constant 0 : index
    %55 = vector.load %arg2[%c11, %c0_65, %c0_66] : memref<16x64x16xbf16, #tpu.memory_space<vmem>>, vector<1x64x16xbf16>
    %56 = vector.shape_cast %55 : vector<1x64x16xbf16> to vector<64x16xbf16>
    %c11_67 = arith.constant 11 : index
    %c0_68 = arith.constant 0 : index
    %c0_69 = arith.constant 0 : index
    %57 = vector.load %arg1[%c11_67, %c0_68, %c0_69] : memref<16x16x2xbf16, #tpu.memory_space<vmem>>, vector<1x16x2xbf16>
    %58 = vector.shape_cast %57 : vector<1x16x2xbf16> to vector<16x2xbf16>
    %cst_70 = arith.constant dense<0.000000e+00> : vector<64x2xf32>
    %59 = tpu.matmul %56, %58, %cst_70 {dimension_numbers = #tpu.dot_dimension_numbers<[1], [0], [0], [1], [0, 0, 1, 1], [], []>} : vector<64x16xbf16>, vector<16x2xbf16>, vector<64x2xf32> -> vector<64x2xf32>
    %c12 = arith.constant 12 : index
    %c0_71 = arith.constant 0 : index
    %c0_72 = arith.constant 0 : index
    %60 = vector.load %arg2[%c12, %c0_71, %c0_72] : memref<16x64x16xbf16, #tpu.memory_space<vmem>>, vector<1x64x16xbf16>
    %61 = vector.shape_cast %60 : vector<1x64x16xbf16> to vector<64x16xbf16>
    %c12_73 = arith.constant 12 : index
    %c0_74 = arith.constant 0 : index
    %c0_75 = arith.constant 0 : index
    %62 = vector.load %arg1[%c12_73, %c0_74, %c0_75] : memref<16x16x2xbf16, #tpu.memory_space<vmem>>, vector<1x16x2xbf16>
    %63 = vector.shape_cast %62 : vector<1x16x2xbf16> to vector<16x2xbf16>
    %cst_76 = arith.constant dense<0.000000e+00> : vector<64x2xf32>
    %64 = tpu.matmul %61, %63, %cst_76 {dimension_numbers = #tpu.dot_dimension_numbers<[1], [0], [0], [1], [0, 0, 1, 1], [], []>} : vector<64x16xbf16>, vector<16x2xbf16>, vector<64x2xf32> -> vector<64x2xf32>
    %c13 = arith.constant 13 : index
    %c0_77 = arith.constant 0 : index
    %c0_78 = arith.constant 0 : index
    %65 = vector.load %arg2[%c13, %c0_77, %c0_78] : memref<16x64x16xbf16, #tpu.memory_space<vmem>>, vector<1x64x16xbf16>
    %66 = vector.shape_cast %65 : vector<1x64x16xbf16> to vector<64x16xbf16>
    %c13_79 = arith.constant 13 : index
    %c0_80 = arith.constant 0 : index
    %c0_81 = arith.constant 0 : index
    %67 = vector.load %arg1[%c13_79, %c0_80, %c0_81] : memref<16x16x2xbf16, #tpu.memory_space<vmem>>, vector<1x16x2xbf16>
    %68 = vector.shape_cast %67 : vector<1x16x2xbf16> to vector<16x2xbf16>
    %cst_82 = arith.constant dense<0.000000e+00> : vector<64x2xf32>
    %69 = tpu.matmul %66, %68, %cst_82 {dimension_numbers = #tpu.dot_dimension_numbers<[1], [0], [0], [1], [0, 0, 1, 1], [], []>} : vector<64x16xbf16>, vector<16x2xbf16>, vector<64x2xf32> -> vector<64x2xf32>
    %c14 = arith.constant 14 : index
    %c0_83 = arith.constant 0 : index
    %c0_84 = arith.constant 0 : index
    %70 = vector.load %arg2[%c14, %c0_83, %c0_84] : memref<16x64x16xbf16, #tpu.memory_space<vmem>>, vector<1x64x16xbf16>
    %71 = vector.shape_cast %70 : vector<1x64x16xbf16> to vector<64x16xbf16>
    %c14_85 = arith.constant 14 : index
    %c0_86 = arith.constant 0 : index
    %c0_87 = arith.constant 0 : index
    %72 = vector.load %arg1[%c14_85, %c0_86, %c0_87] : memref<16x16x2xbf16, #tpu.memory_space<vmem>>, vector<1x16x2xbf16>
    %73 = vector.shape_cast %72 : vector<1x16x2xbf16> to vector<16x2xbf16>
    %cst_88 = arith.constant dense<0.000000e+00> : vector<64x2xf32>
    %74 = tpu.matmul %71, %73, %cst_88 {dimension_numbers = #tpu.dot_dimension_numbers<[1], [0], [0], [1], [0, 0, 1, 1], [], []>} : vector<64x16xbf16>, vector<16x2xbf16>, vector<64x2xf32> -> vector<64x2xf32>
    %c15 = arith.constant 15 : index
    %c0_89 = arith.constant 0 : index
    %c0_90 = arith.constant 0 : index
    %75 = vector.load %arg2[%c15, %c0_89, %c0_90] : memref<16x64x16xbf16, #tpu.memory_space<vmem>>, vector<1x64x16xbf16>
    %76 = vector.shape_cast %75 : vector<1x64x16xbf16> to vector<64x16xbf16>
    %c15_91 = arith.constant 15 : index
    %c0_92 = arith.constant 0 : index
    %c0_93 = arith.constant 0 : index
    %77 = vector.load %arg1[%c15_91, %c0_92, %c0_93] : memref<16x16x2xbf16, #tpu.memory_space<vmem>>, vector<1x16x2xbf16>
    %78 = vector.shape_cast %77 : vector<1x16x2xbf16> to vector<16x2xbf16>
    %cst_94 = arith.constant dense<0.000000e+00> : vector<64x2xf32>
    %79 = tpu.matmul %76, %78, %cst_94 {dimension_numbers = #tpu.dot_dimension_numbers<[1], [0], [0], [1], [0, 0, 1, 1], [], []>} : vector<64x16xbf16>, vector<16x2xbf16>, vector<64x2xf32> -> vector<64x2xf32>
    %80 = arith.addf %4, %9 : vector<64x2xf32>
    %81 = arith.addf %80, %14 : vector<64x2xf32>
    %82 = arith.addf %81, %19 : vector<64x2xf32>
    %83 = arith.addf %82, %24 : vector<64x2xf32>
    %84 = arith.addf %83, %29 : vector<64x2xf32>
    %85 = arith.addf %84, %34 : vector<64x2xf32>
    %86 = arith.addf %85, %39 : vector<64x2xf32>
    %87 = arith.addf %86, %44 : vector<64x2xf32>
    %88 = arith.addf %87, %49 : vector<64x2xf32>
    %89 = arith.addf %88, %54 : vector<64x2xf32>
    %90 = arith.addf %89, %59 : vector<64x2xf32>
    %91 = arith.addf %90, %64 : vector<64x2xf32>
    %92 = arith.addf %91, %69 : vector<64x2xf32>
    %93 = arith.addf %92, %74 : vector<64x2xf32>
    %94 = arith.addf %93, %79 : vector<64x2xf32>
    %cst_95 = arith.constant dense<0.000000e+00> : vector<64xf32>
    %95 = vector.multi_reduction <add>, %94, %cst_95 [1] : vector<64x2xf32> to vector<64xf32>
    %96 = vector.shape_cast %95 : vector<64xf32> to vector<64x1xf32>
    %cst_96 = arith.constant 3.200000e+01 : f32
    %97 = vector.broadcast %cst_96 : f32 to vector<64x1xf32>
    %98 = arith.divf %96, %97 : vector<64x1xf32>
    %99 = vector.broadcast %98 : vector<64x1xf32> to vector<64x2xf32>
    %100 = arith.subf %4, %99 : vector<64x2xf32>
    %101 = arith.mulf %100, %100 : vector<64x2xf32>
    %102 = vector.broadcast %98 : vector<64x1xf32> to vector<64x2xf32>
    %103 = arith.subf %9, %102 : vector<64x2xf32>
    %104 = arith.mulf %103, %103 : vector<64x2xf32>
    %105 = arith.addf %101, %104 : vector<64x2xf32>
    %106 = vector.broadcast %98 : vector<64x1xf32> to vector<64x2xf32>
    %107 = arith.subf %14, %106 : vector<64x2xf32>
    %108 = arith.mulf %107, %107 : vector<64x2xf32>
    %109 = arith.addf %105, %108 : vector<64x2xf32>
    %110 = vector.broadcast %98 : vector<64x1xf32> to vector<64x2xf32>
    %111 = arith.subf %19, %110 : vector<64x2xf32>
    %112 = arith.mulf %111, %111 : vector<64x2xf32>
    %113 = arith.addf %109, %112 : vector<64x2xf32>
    %114 = vector.broadcast %98 : vector<64x1xf32> to vector<64x2xf32>
    %115 = arith.subf %24, %114 : vector<64x2xf32>
    %116 = arith.mulf %115, %115 : vector<64x2xf32>
    %117 = arith.addf %113, %116 : vector<64x2xf32>
    %118 = vector.broadcast %98 : vector<64x1xf32> to vector<64x2xf32>
    %119 = arith.subf %29, %118 : vector<64x2xf32>
    %120 = arith.mulf %119, %119 : vector<64x2xf32>
    %121 = arith.addf %117, %120 : vector<64x2xf32>
    %122 = vector.broadcast %98 : vector<64x1xf32> to vector<64x2xf32>
    %123 = arith.subf %34, %122 : vector<64x2xf32>
    %124 = arith.mulf %123, %123 : vector<64x2xf32>
    %125 = arith.addf %121, %124 : vector<64x2xf32>
    %126 = vector.broadcast %98 : vector<64x1xf32> to vector<64x2xf32>
    %127 = arith.subf %39, %126 : vector<64x2xf32>
    %128 = arith.mulf %127, %127 : vector<64x2xf32>
    %129 = arith.addf %125, %128 : vector<64x2xf32>
    %130 = vector.broadcast %98 : vector<64x1xf32> to vector<64x2xf32>
    %131 = arith.subf %44, %130 : vector<64x2xf32>
    %132 = arith.mulf %131, %131 : vector<64x2xf32>
    %133 = arith.addf %129, %132 : vector<64x2xf32>
    %134 = vector.broadcast %98 : vector<64x1xf32> to vector<64x2xf32>
    %135 = arith.subf %49, %134 : vector<64x2xf32>
    %136 = arith.mulf %135, %135 : vector<64x2xf32>
    %137 = arith.addf %133, %136 : vector<64x2xf32>
    %138 = vector.broadcast %98 : vector<64x1xf32> to vector<64x2xf32>
    %139 = arith.subf %54, %138 : vector<64x2xf32>
    %140 = arith.mulf %139, %139 : vector<64x2xf32>
    %141 = arith.addf %137, %140 : vector<64x2xf32>
    %142 = vector.broadcast %98 : vector<64x1xf32> to vector<64x2xf32>
    %143 = arith.subf %59, %142 : vector<64x2xf32>
    %144 = arith.mulf %143, %143 : vector<64x2xf32>
    %145 = arith.addf %141, %144 : vector<64x2xf32>
    %146 = vector.broadcast %98 : vector<64x1xf32> to vector<64x2xf32>
    %147 = arith.subf %64, %146 : vector<64x2xf32>
    %148 = arith.mulf %147, %147 : vector<64x2xf32>
    %149 = arith.addf %145, %148 : vector<64x2xf32>
    %150 = vector.broadcast %98 : vector<64x1xf32> to vector<64x2xf32>
    %151 = arith.subf %69, %150 : vector<64x2xf32>
    %152 = arith.mulf %151, %151 : vector<64x2xf32>
    %153 = arith.addf %149, %152 : vector<64x2xf32>
    %154 = vector.broadcast %98 : vector<64x1xf32> to vector<64x2xf32>
    %155 = arith.subf %74, %154 : vector<64x2xf32>
    %156 = arith.mulf %155, %155 : vector<64x2xf32>
    %157 = arith.addf %153, %156 : vector<64x2xf32>
    %158 = vector.broadcast %98 : vector<64x1xf32> to vector<64x2xf32>
    %159 = arith.subf %79, %158 : vector<64x2xf32>
    %160 = arith.mulf %159, %159 : vector<64x2xf32>
    %161 = arith.addf %157, %160 : vector<64x2xf32>
    %cst_97 = arith.constant dense<0.000000e+00> : vector<64xf32>
    %162 = vector.multi_reduction <add>, %161, %cst_97 [1] : vector<64x2xf32> to vector<64xf32>
    %163 = vector.shape_cast %162 : vector<64xf32> to vector<64x1xf32>
    %cst_98 = arith.constant 3.200000e+01 : f32
    %164 = vector.broadcast %cst_98 : f32 to vector<64x1xf32>
    %165 = arith.divf %163, %164 : vector<64x1xf32>
    %c0_99 = arith.constant 0 : index
    %c0_100 = arith.constant 0 : index
    %166 = vector.load %arg3[%c0_99, %c0_100] : memref<64x1xf32, #tpu.memory_space<vmem>>, vector<64x1xf32>
    %cst_101 = arith.constant 9.99999974E-6 : f32
    %167 = vector.broadcast %cst_101 : f32 to vector<64x1xf32>
    %168 = arith.addf %165, %167 : vector<64x1xf32>
    %169 = math.rsqrt %168 : vector<64x1xf32>
    %170 = arith.mulf %166, %169 : vector<64x1xf32>
    %c0_102 = arith.constant 0 : index
    %c0_103 = arith.constant 0 : index
    %171 = vector.load %arg4[%c0_102, %c0_103] : memref<64x1xf32, #tpu.memory_space<vmem>>, vector<64x1xf32>
    %172 = arith.mulf %98, %170 : vector<64x1xf32>
    %173 = arith.subf %171, %172 : vector<64x1xf32>
    %174 = vector.broadcast %170 : vector<64x1xf32> to vector<64x2xf32>
    %175 = arith.mulf %4, %174 : vector<64x2xf32>
    %176 = vector.broadcast %173 : vector<64x1xf32> to vector<64x2xf32>
    %177 = arith.addf %175, %176 : vector<64x2xf32>
    %cst_104 = arith.constant 2.000000e-01 : f32
    %178 = vector.broadcast %cst_104 : f32 to vector<64x2xf32>
    %179 = arith.mulf %178, %177 : vector<64x2xf32>
    %180 = arith.maximumf %177, %179 : vector<64x2xf32>
    %181 = arith.truncf %180 : vector<64x2xf32> to vector<64x2xbf16>
    %c0_105 = arith.constant 0 : index
    %c0_106 = arith.constant 0 : index
    %c0_107 = arith.constant 0 : index
    %182 = vector.load %arg5[%c0_105, %c0_106, %c0_107] : memref<16x64x2xbf16, #tpu.memory_space<vmem>>, vector<1x64x2xbf16>
    %183 = vector.shape_cast %182 : vector<1x64x2xbf16> to vector<64x2xbf16>
    %184 = vector.shape_cast %181 : vector<64x2xbf16> to vector<1x64x2xbf16>
    tpu.vector_store %arg5[%c0_105, %c0_106, %c0_107], %184 {strides = array<i32>} : memref<16x64x2xbf16, #tpu.memory_space<vmem>>, vector<1x64x2xbf16>,
    %185 = vector.broadcast %170 : vector<64x1xf32> to vector<64x2xf32>
    %186 = arith.mulf %9, %185 : vector<64x2xf32>
    %187 = vector.broadcast %173 : vector<64x1xf32> to vector<64x2xf32>
    %188 = arith.addf %186, %187 : vector<64x2xf32>
    %cst_108 = arith.constant 2.000000e-01 : f32
    %189 = vector.broadcast %cst_108 : f32 to vector<64x2xf32>
    %190 = arith.mulf %189, %188 : vector<64x2xf32>
    %191 = arith.maximumf %188, %190 : vector<64x2xf32>
    %192 = arith.truncf %191 : vector<64x2xf32> to vector<64x2xbf16>
    %c1_109 = arith.constant 1 : index
    %c0_110 = arith.constant 0 : index
    %c0_111 = arith.constant 0 : index
    %193 = vector.load %arg5[%c1_109, %c0_110, %c0_111] : memref<16x64x2xbf16, #tpu.memory_space<vmem>>, vector<1x64x2xbf16>
    %194 = vector.shape_cast %193 : vector<1x64x2xbf16> to vector<64x2xbf16>
    %195 = vector.shape_cast %192 : vector<64x2xbf16> to vector<1x64x2xbf16>
    tpu.vector_store %arg5[%c1_109, %c0_110, %c0_111], %195 {strides = array<i32>} : memref<16x64x2xbf16, #tpu.memory_space<vmem>>, vector<1x64x2xbf16>,
    %196 = vector.broadcast %170 : vector<64x1xf32> to vector<64x2xf32>
    %197 = arith.mulf %14, %196 : vector<64x2xf32>
    %198 = vector.broadcast %173 : vector<64x1xf32> to vector<64x2xf32>
    %199 = arith.addf %197, %198 : vector<64x2xf32>
    %cst_112 = arith.constant 2.000000e-01 : f32
    %200 = vector.broadcast %cst_112 : f32 to vector<64x2xf32>
    %201 = arith.mulf %200, %199 : vector<64x2xf32>
    %202 = arith.maximumf %199, %201 : vector<64x2xf32>
    %203 = arith.truncf %202 : vector<64x2xf32> to vector<64x2xbf16>
    %c2_113 = arith.constant 2 : index
    %c0_114 = arith.constant 0 : index
    %c0_115 = arith.constant 0 : index
    %204 = vector.load %arg5[%c2_113, %c0_114, %c0_115] : memref<16x64x2xbf16, #tpu.memory_space<vmem>>, vector<1x64x2xbf16>
    %205 = vector.shape_cast %204 : vector<1x64x2xbf16> to vector<64x2xbf16>
    %206 = vector.shape_cast %203 : vector<64x2xbf16> to vector<1x64x2xbf16>
    tpu.vector_store %arg5[%c2_113, %c0_114, %c0_115], %206 {strides = array<i32>} : memref<16x64x2xbf16, #tpu.memory_space<vmem>>, vector<1x64x2xbf16>,
    %207 = vector.broadcast %170 : vector<64x1xf32> to vector<64x2xf32>
    %208 = arith.mulf %19, %207 : vector<64x2xf32>
    %209 = vector.broadcast %173 : vector<64x1xf32> to vector<64x2xf32>
    %210 = arith.addf %208, %209 : vector<64x2xf32>
    %cst_116 = arith.constant 2.000000e-01 : f32
    %211 = vector.broadcast %cst_116 : f32 to vector<64x2xf32>
    %212 = arith.mulf %211, %210 : vector<64x2xf32>
    %213 = arith.maximumf %210, %212 : vector<64x2xf32>
    %214 = arith.truncf %213 : vector<64x2xf32> to vector<64x2xbf16>
    %c3_117 = arith.constant 3 : index
    %c0_118 = arith.constant 0 : index
    %c0_119 = arith.constant 0 : index
    %215 = vector.load %arg5[%c3_117, %c0_118, %c0_119] : memref<16x64x2xbf16, #tpu.memory_space<vmem>>, vector<1x64x2xbf16>
    %216 = vector.shape_cast %215 : vector<1x64x2xbf16> to vector<64x2xbf16>
    %217 = vector.shape_cast %214 : vector<64x2xbf16> to vector<1x64x2xbf16>
    tpu.vector_store %arg5[%c3_117, %c0_118, %c0_119], %217 {strides = array<i32>} : memref<16x64x2xbf16, #tpu.memory_space<vmem>>, vector<1x64x2xbf16>,
    %218 = vector.broadcast %170 : vector<64x1xf32> to vector<64x2xf32>
    %219 = arith.mulf %24, %218 : vector<64x2xf32>
    %220 = vector.broadcast %173 : vector<64x1xf32> to vector<64x2xf32>
    %221 = arith.addf %219, %220 : vector<64x2xf32>
    %cst_120 = arith.constant 2.000000e-01 : f32
    %222 = vector.broadcast %cst_120 : f32 to vector<64x2xf32>
    %223 = arith.mulf %222, %221 : vector<64x2xf32>
    %224 = arith.maximumf %221, %223 : vector<64x2xf32>
    %225 = arith.truncf %224 : vector<64x2xf32> to vector<64x2xbf16>
    %c4_121 = arith.constant 4 : index
    %c0_122 = arith.constant 0 : index
    %c0_123 = arith.constant 0 : index
    %226 = vector.load %arg5[%c4_121, %c0_122, %c0_123] : memref<16x64x2xbf16, #tpu.memory_space<vmem>>, vector<1x64x2xbf16>
    %227 = vector.shape_cast %226 : vector<1x64x2xbf16> to vector<64x2xbf16>
    %228 = vector.shape_cast %225 : vector<64x2xbf16> to vector<1x64x2xbf16>
    tpu.vector_store %arg5[%c4_121, %c0_122, %c0_123], %228 {strides = array<i32>} : memref<16x64x2xbf16, #tpu.memory_space<vmem>>, vector<1x64x2xbf16>,
    %229 = vector.broadcast %170 : vector<64x1xf32> to vector<64x2xf32>
    %230 = arith.mulf %29, %229 : vector<64x2xf32>
    %231 = vector.broadcast %173 : vector<64x1xf32> to vector<64x2xf32>
    %232 = arith.addf %230, %231 : vector<64x2xf32>
    %cst_124 = arith.constant 2.000000e-01 : f32
    %233 = vector.broadcast %cst_124 : f32 to vector<64x2xf32>
    %234 = arith.mulf %233, %232 : vector<64x2xf32>
    %235 = arith.maximumf %232, %234 : vector<64x2xf32>
    %236 = arith.truncf %235 : vector<64x2xf32> to vector<64x2xbf16>
    %c5_125 = arith.constant 5 : index
    %c0_126 = arith.constant 0 : index
    %c0_127 = arith.constant 0 : index
    %237 = vector.load %arg5[%c5_125, %c0_126, %c0_127] : memref<16x64x2xbf16, #tpu.memory_space<vmem>>, vector<1x64x2xbf16>
    %238 = vector.shape_cast %237 : vector<1x64x2xbf16> to vector<64x2xbf16>
    %239 = vector.shape_cast %236 : vector<64x2xbf16> to vector<1x64x2xbf16>
    tpu.vector_store %arg5[%c5_125, %c0_126, %c0_127], %239 {strides = array<i32>} : memref<16x64x2xbf16, #tpu.memory_space<vmem>>, vector<1x64x2xbf16>,
    %240 = vector.broadcast %170 : vector<64x1xf32> to vector<64x2xf32>
    %241 = arith.mulf %34, %240 : vector<64x2xf32>
    %242 = vector.broadcast %173 : vector<64x1xf32> to vector<64x2xf32>
    %243 = arith.addf %241, %242 : vector<64x2xf32>
    %cst_128 = arith.constant 2.000000e-01 : f32
    %244 = vector.broadcast %cst_128 : f32 to vector<64x2xf32>
    %245 = arith.mulf %244, %243 : vector<64x2xf32>
    %246 = arith.maximumf %243, %245 : vector<64x2xf32>
    %247 = arith.truncf %246 : vector<64x2xf32> to vector<64x2xbf16>
    %c6_129 = arith.constant 6 : index
    %c0_130 = arith.constant 0 : index
    %c0_131 = arith.constant 0 : index
    %248 = vector.load %arg5[%c6_129, %c0_130, %c0_131] : memref<16x64x2xbf16, #tpu.memory_space<vmem>>, vector<1x64x2xbf16>
    %249 = vector.shape_cast %248 : vector<1x64x2xbf16> to vector<64x2xbf16>
    %250 = vector.shape_cast %247 : vector<64x2xbf16> to vector<1x64x2xbf16>
    tpu.vector_store %arg5[%c6_129, %c0_130, %c0_131], %250 {strides = array<i32>} : memref<16x64x2xbf16, #tpu.memory_space<vmem>>, vector<1x64x2xbf16>,
    %251 = vector.broadcast %170 : vector<64x1xf32> to vector<64x2xf32>
    %252 = arith.mulf %39, %251 : vector<64x2xf32>
    %253 = vector.broadcast %173 : vector<64x1xf32> to vector<64x2xf32>
    %254 = arith.addf %252, %253 : vector<64x2xf32>
    %cst_132 = arith.constant 2.000000e-01 : f32
    %255 = vector.broadcast %cst_132 : f32 to vector<64x2xf32>
    %256 = arith.mulf %255, %254 : vector<64x2xf32>
    %257 = arith.maximumf %254, %256 : vector<64x2xf32>
    %258 = arith.truncf %257 : vector<64x2xf32> to vector<64x2xbf16>
    %c7_133 = arith.constant 7 : index
    %c0_134 = arith.constant 0 : index
    %c0_135 = arith.constant 0 : index
    %259 = vector.load %arg5[%c7_133, %c0_134, %c0_135] : memref<16x64x2xbf16, #tpu.memory_space<vmem>>, vector<1x64x2xbf16>
    %260 = vector.shape_cast %259 : vector<1x64x2xbf16> to vector<64x2xbf16>
    %261 = vector.shape_cast %258 : vector<64x2xbf16> to vector<1x64x2xbf16>
    tpu.vector_store %arg5[%c7_133, %c0_134, %c0_135], %261 {strides = array<i32>} : memref<16x64x2xbf16, #tpu.memory_space<vmem>>, vector<1x64x2xbf16>,
    %262 = vector.broadcast %170 : vector<64x1xf32> to vector<64x2xf32>
    %263 = arith.mulf %44, %262 : vector<64x2xf32>
    %264 = vector.broadcast %173 : vector<64x1xf32> to vector<64x2xf32>
    %265 = arith.addf %263, %264 : vector<64x2xf32>
    %cst_136 = arith.constant 2.000000e-01 : f32
    %266 = vector.broadcast %cst_136 : f32 to vector<64x2xf32>
    %267 = arith.mulf %266, %265 : vector<64x2xf32>
    %268 = arith.maximumf %265, %267 : vector<64x2xf32>
    %269 = arith.truncf %268 : vector<64x2xf32> to vector<64x2xbf16>
    %c8_137 = arith.constant 8 : index
    %c0_138 = arith.constant 0 : index
    %c0_139 = arith.constant 0 : index
    %270 = vector.load %arg5[%c8_137, %c0_138, %c0_139] : memref<16x64x2xbf16, #tpu.memory_space<vmem>>, vector<1x64x2xbf16>
    %271 = vector.shape_cast %270 : vector<1x64x2xbf16> to vector<64x2xbf16>
    %272 = vector.shape_cast %269 : vector<64x2xbf16> to vector<1x64x2xbf16>
    tpu.vector_store %arg5[%c8_137, %c0_138, %c0_139], %272 {strides = array<i32>} : memref<16x64x2xbf16, #tpu.memory_space<vmem>>, vector<1x64x2xbf16>,
    %273 = vector.broadcast %170 : vector<64x1xf32> to vector<64x2xf32>
    %274 = arith.mulf %49, %273 : vector<64x2xf32>
    %275 = vector.broadcast %173 : vector<64x1xf32> to vector<64x2xf32>
    %276 = arith.addf %274, %275 : vector<64x2xf32>
    %cst_140 = arith.constant 2.000000e-01 : f32
    %277 = vector.broadcast %cst_140 : f32 to vector<64x2xf32>
    %278 = arith.mulf %277, %276 : vector<64x2xf32>
    %279 = arith.maximumf %276, %278 : vector<64x2xf32>
    %280 = arith.truncf %279 : vector<64x2xf32> to vector<64x2xbf16>
    %c9_141 = arith.constant 9 : index
    %c0_142 = arith.constant 0 : index
    %c0_143 = arith.constant 0 : index
    %281 = vector.load %arg5[%c9_141, %c0_142, %c0_143] : memref<16x64x2xbf16, #tpu.memory_space<vmem>>, vector<1x64x2xbf16>
    %282 = vector.shape_cast %281 : vector<1x64x2xbf16> to vector<64x2xbf16>
    %283 = vector.shape_cast %280 : vector<64x2xbf16> to vector<1x64x2xbf16>
    tpu.vector_store %arg5[%c9_141, %c0_142, %c0_143], %283 {strides = array<i32>} : memref<16x64x2xbf16, #tpu.memory_space<vmem>>, vector<1x64x2xbf16>,
    %284 = vector.broadcast %170 : vector<64x1xf32> to vector<64x2xf32>
    %285 = arith.mulf %54, %284 : vector<64x2xf32>
    %286 = vector.broadcast %173 : vector<64x1xf32> to vector<64x2xf32>
    %287 = arith.addf %285, %286 : vector<64x2xf32>
    %cst_144 = arith.constant 2.000000e-01 : f32
    %288 = vector.broadcast %cst_144 : f32 to vector<64x2xf32>
    %289 = arith.mulf %288, %287 : vector<64x2xf32>
    %290 = arith.maximumf %287, %289 : vector<64x2xf32>
    %291 = arith.truncf %290 : vector<64x2xf32> to vector<64x2xbf16>
    %c10_145 = arith.constant 10 : index
    %c0_146 = arith.constant 0 : index
    %c0_147 = arith.constant 0 : index
    %292 = vector.load %arg5[%c10_145, %c0_146, %c0_147] : memref<16x64x2xbf16, #tpu.memory_space<vmem>>, vector<1x64x2xbf16>
    %293 = vector.shape_cast %292 : vector<1x64x2xbf16> to vector<64x2xbf16>
    %294 = vector.shape_cast %291 : vector<64x2xbf16> to vector<1x64x2xbf16>
    tpu.vector_store %arg5[%c10_145, %c0_146, %c0_147], %294 {strides = array<i32>} : memref<16x64x2xbf16, #tpu.memory_space<vmem>>, vector<1x64x2xbf16>,
    %295 = vector.broadcast %170 : vector<64x1xf32> to vector<64x2xf32>
    %296 = arith.mulf %59, %295 : vector<64x2xf32>
    %297 = vector.broadcast %173 : vector<64x1xf32> to vector<64x2xf32>
    %298 = arith.addf %296, %297 : vector<64x2xf32>
    %cst_148 = arith.constant 2.000000e-01 : f32
    %299 = vector.broadcast %cst_148 : f32 to vector<64x2xf32>
    %300 = arith.mulf %299, %298 : vector<64x2xf32>
    %301 = arith.maximumf %298, %300 : vector<64x2xf32>
    %302 = arith.truncf %301 : vector<64x2xf32> to vector<64x2xbf16>
    %c11_149 = arith.constant 11 : index
    %c0_150 = arith.constant 0 : index
    %c0_151 = arith.constant 0 : index
    %303 = vector.load %arg5[%c11_149, %c0_150, %c0_151] : memref<16x64x2xbf16, #tpu.memory_space<vmem>>, vector<1x64x2xbf16>
    %304 = vector.shape_cast %303 : vector<1x64x2xbf16> to vector<64x2xbf16>
    %305 = vector.shape_cast %302 : vector<64x2xbf16> to vector<1x64x2xbf16>
    tpu.vector_store %arg5[%c11_149, %c0_150, %c0_151], %305 {strides = array<i32>} : memref<16x64x2xbf16, #tpu.memory_space<vmem>>, vector<1x64x2xbf16>,
    %306 = vector.broadcast %170 : vector<64x1xf32> to vector<64x2xf32>
    %307 = arith.mulf %64, %306 : vector<64x2xf32>
    %308 = vector.broadcast %173 : vector<64x1xf32> to vector<64x2xf32>
    %309 = arith.addf %307, %308 : vector<64x2xf32>
    %cst_152 = arith.constant 2.000000e-01 : f32
    %310 = vector.broadcast %cst_152 : f32 to vector<64x2xf32>
    %311 = arith.mulf %310, %309 : vector<64x2xf32>
    %312 = arith.maximumf %309, %311 : vector<64x2xf32>
    %313 = arith.truncf %312 : vector<64x2xf32> to vector<64x2xbf16>
    %c12_153 = arith.constant 12 : index
    %c0_154 = arith.constant 0 : index
    %c0_155 = arith.constant 0 : index
    %314 = vector.load %arg5[%c12_153, %c0_154, %c0_155] : memref<16x64x2xbf16, #tpu.memory_space<vmem>>, vector<1x64x2xbf16>
    %315 = vector.shape_cast %314 : vector<1x64x2xbf16> to vector<64x2xbf16>
    %316 = vector.shape_cast %313 : vector<64x2xbf16> to vector<1x64x2xbf16>
    tpu.vector_store %arg5[%c12_153, %c0_154, %c0_155], %316 {strides = array<i32>} : memref<16x64x2xbf16, #tpu.memory_space<vmem>>, vector<1x64x2xbf16>,
    %317 = vector.broadcast %170 : vector<64x1xf32> to vector<64x2xf32>
    %318 = arith.mulf %69, %317 : vector<64x2xf32>
    %319 = vector.broadcast %173 : vector<64x1xf32> to vector<64x2xf32>
    %320 = arith.addf %318, %319 : vector<64x2xf32>
    %cst_156 = arith.constant 2.000000e-01 : f32
    %321 = vector.broadcast %cst_156 : f32 to vector<64x2xf32>
    %322 = arith.mulf %321, %320 : vector<64x2xf32>
    %323 = arith.maximumf %320, %322 : vector<64x2xf32>
    %324 = arith.truncf %323 : vector<64x2xf32> to vector<64x2xbf16>
    %c13_157 = arith.constant 13 : index
    %c0_158 = arith.constant 0 : index
    %c0_159 = arith.constant 0 : index
    %325 = vector.load %arg5[%c13_157, %c0_158, %c0_159] : memref<16x64x2xbf16, #tpu.memory_space<vmem>>, vector<1x64x2xbf16>
    %326 = vector.shape_cast %325 : vector<1x64x2xbf16> to vector<64x2xbf16>
    %327 = vector.shape_cast %324 : vector<64x2xbf16> to vector<1x64x2xbf16>
    tpu.vector_store %arg5[%c13_157, %c0_158, %c0_159], %327 {strides = array<i32>} : memref<16x64x2xbf16, #tpu.memory_space<vmem>>, vector<1x64x2xbf16>,
    %328 = vector.broadcast %170 : vector<64x1xf32> to vector<64x2xf32>
    %329 = arith.mulf %74, %328 : vector<64x2xf32>
    %330 = vector.broadcast %173 : vector<64x1xf32> to vector<64x2xf32>
    %331 = arith.addf %329, %330 : vector<64x2xf32>
    %cst_160 = arith.constant 2.000000e-01 : f32
    %332 = vector.broadcast %cst_160 : f32 to vector<64x2xf32>
    %333 = arith.mulf %332, %331 : vector<64x2xf32>
    %334 = arith.maximumf %331, %333 : vector<64x2xf32>
    %335 = arith.truncf %334 : vector<64x2xf32> to vector<64x2xbf16>
    %c14_161 = arith.constant 14 : index
    %c0_162 = arith.constant 0 : index
    %c0_163 = arith.constant 0 : index
    %336 = vector.load %arg5[%c14_161, %c0_162, %c0_163] : memref<16x64x2xbf16, #tpu.memory_space<vmem>>, vector<1x64x2xbf16>
    %337 = vector.shape_cast %336 : vector<1x64x2xbf16> to vector<64x2xbf16>
    %338 = vector.shape_cast %335 : vector<64x2xbf16> to vector<1x64x2xbf16>
    tpu.vector_store %arg5[%c14_161, %c0_162, %c0_163], %338 {strides = array<i32>} : memref<16x64x2xbf16, #tpu.memory_space<vmem>>, vector<1x64x2xbf16>,
    %339 = vector.broadcast %170 : vector<64x1xf32> to vector<64x2xf32>
    %340 = arith.mulf %79, %339 : vector<64x2xf32>
    %341 = vector.broadcast %173 : vector<64x1xf32> to vector<64x2xf32>
    %342 = arith.addf %340, %341 : vector<64x2xf32>
    %cst_164 = arith.constant 2.000000e-01 : f32
    %343 = vector.broadcast %cst_164 : f32 to vector<64x2xf32>
    %344 = arith.mulf %343, %342 : vector<64x2xf32>
    %345 = arith.maximumf %342, %344 : vector<64x2xf32>
    %346 = arith.truncf %345 : vector<64x2xf32> to vector<64x2xbf16>
    %c15_165 = arith.constant 15 : index
    %c0_166 = arith.constant 0 : index
    %c0_167 = arith.constant 0 : index
    %347 = vector.load %arg5[%c15_165, %c0_166, %c0_167] : memref<16x64x2xbf16, #tpu.memory_space<vmem>>, vector<1x64x2xbf16>
    %348 = vector.shape_cast %347 : vector<1x64x2xbf16> to vector<64x2xbf16>
    %349 = vector.shape_cast %346 : vector<64x2xbf16> to vector<1x64x2xbf16>
    tpu.vector_store %arg5[%c15_165, %c0_166, %c0_167], %349 {strides = array<i32>} : memref<16x64x2xbf16, #tpu.memory_space<vmem>>, vector<1x64x2xbf16>,
    return
  }
  func.func @transform_0(%arg0: i32) -> (i32, i32, i32) {
    %c0_i32 = arith.constant 0 : i32
    %c0_i32_0 = arith.constant 0 : i32
    %c0_i32_1 = arith.constant 0 : i32
    %c0_i32_2 = arith.constant 0 : i32
    return %c0_i32, %c0_i32_0, %c0_i32_1 : i32, i32, i32
  }
  func.func @transform_1(%arg0: i32) -> (i32, i32, i32) {
    %c0_i32 = arith.constant 0 : i32
    %c0_i32_0 = arith.constant 0 : i32
    %c0_i32_1 = arith.constant 0 : i32
    %c0_i32_2 = arith.constant 0 : i32
    return %c0_i32, %c0_i32_0, %c0_i32_1 : i32, i32, i32
  }
  func.func @transform_2(%arg0: i32) -> (i32, i32) {
    %c0_i32 = arith.constant 0 : i32
    %c0_i32_0 = arith.constant 0 : i32
    %c0_i32_1 = arith.constant 0 : i32
    return %c0_i32, %c0_i32_0 : i32, i32
  }
  func.func @transform_3(%arg0: i32) -> (i32, i32) {
    %c0_i32 = arith.constant 0 : i32
    %c0_i32_0 = arith.constant 0 : i32
    %c0_i32_1 = arith.constant 0 : i32
    return %c0_i32, %c0_i32_0 : i32, i32
  }
  func.func @transform_4(%arg0: i32) -> (i32, i32, i32) {
    %c0_i32 = arith.constant 0 : i32
    %c0_i32_0 = arith.constant 0 : i32
    %c0_i32_1 = arith.constant 0 : i32
    %c0_i32_2 = arith.constant 0 : i32
    return %c0_i32, %c0_i32_0, %c0_i32_1 : i32, i32, i32
  }
}

module attributes {stable_mosaic.version = 11 : i64} {
  func.func @_phase_matmul_bn_lrelu_kernel(%arg0: i32, %arg1: memref<4x256x32xbf16, #tpu.memory_space<vmem>>, %arg2: memref<4x32x256xbf16, #tpu.memory_space<vmem>>, %arg3: memref<32x1xf32, #tpu.memory_space<vmem>>, %arg4: memref<32x1xf32, #tpu.memory_space<vmem>>, %arg5: memref<4x32x32xbf16, #tpu.memory_space<vmem>>) attributes {dimension_semantics = [#tpu.dimension_semantics<arbitrary>], iteration_bounds = array<i64: 1>, scalar_prefetch = 0 : i64, scratch_operands = 0 : i64, tpu.core_type = #tpu.core_type<tc>, window_params = [{pipeline_mode = #tpu.pipeline_mode<synchronous>, transform_indices = @transform_0, window_bounds = array<i64: 4, 256, 32>}, {pipeline_mode = #tpu.pipeline_mode<synchronous>, transform_indices = @transform_1, window_bounds = array<i64: 4, 32, 256>}, {pipeline_mode = #tpu.pipeline_mode<synchronous>, transform_indices = @transform_2, window_bounds = array<i64: 32, 1>}, {pipeline_mode = #tpu.pipeline_mode<synchronous>, transform_indices = @transform_3, window_bounds = array<i64: 32, 1>}, {pipeline_mode = #tpu.pipeline_mode<synchronous>, transform_indices = @transform_4, window_bounds = array<i64: 4, 32, 32>}]} {
    %c0 = arith.constant 0 : index
    %c0_0 = arith.constant 0 : index
    %c0_1 = arith.constant 0 : index
    %0 = vector.load %arg2[%c0, %c0_0, %c0_1] : memref<4x32x256xbf16, #tpu.memory_space<vmem>>, vector<1x32x256xbf16>
    %1 = vector.shape_cast %0 : vector<1x32x256xbf16> to vector<32x256xbf16>
    %c0_2 = arith.constant 0 : index
    %c0_3 = arith.constant 0 : index
    %c0_4 = arith.constant 0 : index
    %2 = vector.load %arg1[%c0_2, %c0_3, %c0_4] : memref<4x256x32xbf16, #tpu.memory_space<vmem>>, vector<1x256x32xbf16>
    %3 = vector.shape_cast %2 : vector<1x256x32xbf16> to vector<256x32xbf16>
    %cst = arith.constant dense<0.000000e+00> : vector<32x32xf32>
    %4 = tpu.matmul %1, %3, %cst {dimension_numbers = #tpu.dot_dimension_numbers<[1], [0], [0], [1], [0, 0, 1, 1], [], []>} : vector<32x256xbf16>, vector<256x32xbf16>, vector<32x32xf32> -> vector<32x32xf32>
    %c1 = arith.constant 1 : index
    %c0_5 = arith.constant 0 : index
    %c0_6 = arith.constant 0 : index
    %5 = vector.load %arg2[%c1, %c0_5, %c0_6] : memref<4x32x256xbf16, #tpu.memory_space<vmem>>, vector<1x32x256xbf16>
    %6 = vector.shape_cast %5 : vector<1x32x256xbf16> to vector<32x256xbf16>
    %c1_7 = arith.constant 1 : index
    %c0_8 = arith.constant 0 : index
    %c0_9 = arith.constant 0 : index
    %7 = vector.load %arg1[%c1_7, %c0_8, %c0_9] : memref<4x256x32xbf16, #tpu.memory_space<vmem>>, vector<1x256x32xbf16>
    %8 = vector.shape_cast %7 : vector<1x256x32xbf16> to vector<256x32xbf16>
    %cst_10 = arith.constant dense<0.000000e+00> : vector<32x32xf32>
    %9 = tpu.matmul %6, %8, %cst_10 {dimension_numbers = #tpu.dot_dimension_numbers<[1], [0], [0], [1], [0, 0, 1, 1], [], []>} : vector<32x256xbf16>, vector<256x32xbf16>, vector<32x32xf32> -> vector<32x32xf32>
    %c2 = arith.constant 2 : index
    %c0_11 = arith.constant 0 : index
    %c0_12 = arith.constant 0 : index
    %10 = vector.load %arg2[%c2, %c0_11, %c0_12] : memref<4x32x256xbf16, #tpu.memory_space<vmem>>, vector<1x32x256xbf16>
    %11 = vector.shape_cast %10 : vector<1x32x256xbf16> to vector<32x256xbf16>
    %c2_13 = arith.constant 2 : index
    %c0_14 = arith.constant 0 : index
    %c0_15 = arith.constant 0 : index
    %12 = vector.load %arg1[%c2_13, %c0_14, %c0_15] : memref<4x256x32xbf16, #tpu.memory_space<vmem>>, vector<1x256x32xbf16>
    %13 = vector.shape_cast %12 : vector<1x256x32xbf16> to vector<256x32xbf16>
    %cst_16 = arith.constant dense<0.000000e+00> : vector<32x32xf32>
    %14 = tpu.matmul %11, %13, %cst_16 {dimension_numbers = #tpu.dot_dimension_numbers<[1], [0], [0], [1], [0, 0, 1, 1], [], []>} : vector<32x256xbf16>, vector<256x32xbf16>, vector<32x32xf32> -> vector<32x32xf32>
    %c3 = arith.constant 3 : index
    %c0_17 = arith.constant 0 : index
    %c0_18 = arith.constant 0 : index
    %15 = vector.load %arg2[%c3, %c0_17, %c0_18] : memref<4x32x256xbf16, #tpu.memory_space<vmem>>, vector<1x32x256xbf16>
    %16 = vector.shape_cast %15 : vector<1x32x256xbf16> to vector<32x256xbf16>
    %c3_19 = arith.constant 3 : index
    %c0_20 = arith.constant 0 : index
    %c0_21 = arith.constant 0 : index
    %17 = vector.load %arg1[%c3_19, %c0_20, %c0_21] : memref<4x256x32xbf16, #tpu.memory_space<vmem>>, vector<1x256x32xbf16>
    %18 = vector.shape_cast %17 : vector<1x256x32xbf16> to vector<256x32xbf16>
    %cst_22 = arith.constant dense<0.000000e+00> : vector<32x32xf32>
    %19 = tpu.matmul %16, %18, %cst_22 {dimension_numbers = #tpu.dot_dimension_numbers<[1], [0], [0], [1], [0, 0, 1, 1], [], []>} : vector<32x256xbf16>, vector<256x32xbf16>, vector<32x32xf32> -> vector<32x32xf32>
    %20 = arith.addf %4, %9 : vector<32x32xf32>
    %21 = arith.addf %20, %14 : vector<32x32xf32>
    %22 = arith.addf %21, %19 : vector<32x32xf32>
    %cst_23 = arith.constant dense<0.000000e+00> : vector<32xf32>
    %23 = vector.multi_reduction <add>, %22, %cst_23 [1] : vector<32x32xf32> to vector<32xf32>
    %24 = vector.shape_cast %23 : vector<32xf32> to vector<32x1xf32>
    %cst_24 = arith.constant 1.280000e+02 : f32
    %25 = vector.broadcast %cst_24 : f32 to vector<32x1xf32>
    %26 = arith.divf %24, %25 : vector<32x1xf32>
    %27 = vector.broadcast %26 : vector<32x1xf32> to vector<32x32xf32>
    %28 = arith.subf %4, %27 : vector<32x32xf32>
    %29 = arith.mulf %28, %28 : vector<32x32xf32>
    %30 = vector.broadcast %26 : vector<32x1xf32> to vector<32x32xf32>
    %31 = arith.subf %9, %30 : vector<32x32xf32>
    %32 = arith.mulf %31, %31 : vector<32x32xf32>
    %33 = arith.addf %29, %32 : vector<32x32xf32>
    %34 = vector.broadcast %26 : vector<32x1xf32> to vector<32x32xf32>
    %35 = arith.subf %14, %34 : vector<32x32xf32>
    %36 = arith.mulf %35, %35 : vector<32x32xf32>
    %37 = arith.addf %33, %36 : vector<32x32xf32>
    %38 = vector.broadcast %26 : vector<32x1xf32> to vector<32x32xf32>
    %39 = arith.subf %19, %38 : vector<32x32xf32>
    %40 = arith.mulf %39, %39 : vector<32x32xf32>
    %41 = arith.addf %37, %40 : vector<32x32xf32>
    %cst_25 = arith.constant dense<0.000000e+00> : vector<32xf32>
    %42 = vector.multi_reduction <add>, %41, %cst_25 [1] : vector<32x32xf32> to vector<32xf32>
    %43 = vector.shape_cast %42 : vector<32xf32> to vector<32x1xf32>
    %cst_26 = arith.constant 1.280000e+02 : f32
    %44 = vector.broadcast %cst_26 : f32 to vector<32x1xf32>
    %45 = arith.divf %43, %44 : vector<32x1xf32>
    %c0_27 = arith.constant 0 : index
    %c0_28 = arith.constant 0 : index
    %46 = vector.load %arg3[%c0_27, %c0_28] : memref<32x1xf32, #tpu.memory_space<vmem>>, vector<32x1xf32>
    %cst_29 = arith.constant 9.99999974E-6 : f32
    %47 = vector.broadcast %cst_29 : f32 to vector<32x1xf32>
    %48 = arith.addf %45, %47 : vector<32x1xf32>
    %49 = math.rsqrt %48 : vector<32x1xf32>
    %50 = arith.mulf %46, %49 : vector<32x1xf32>
    %c0_30 = arith.constant 0 : index
    %c0_31 = arith.constant 0 : index
    %51 = vector.load %arg4[%c0_30, %c0_31] : memref<32x1xf32, #tpu.memory_space<vmem>>, vector<32x1xf32>
    %52 = arith.mulf %26, %50 : vector<32x1xf32>
    %53 = arith.subf %51, %52 : vector<32x1xf32>
    %54 = vector.broadcast %50 : vector<32x1xf32> to vector<32x32xf32>
    %55 = arith.mulf %4, %54 : vector<32x32xf32>
    %56 = vector.broadcast %53 : vector<32x1xf32> to vector<32x32xf32>
    %57 = arith.addf %55, %56 : vector<32x32xf32>
    %cst_32 = arith.constant 2.000000e-01 : f32
    %58 = vector.broadcast %cst_32 : f32 to vector<32x32xf32>
    %59 = arith.mulf %58, %57 : vector<32x32xf32>
    %60 = arith.maximumf %57, %59 : vector<32x32xf32>
    %61 = arith.truncf %60 : vector<32x32xf32> to vector<32x32xbf16>
    %c0_33 = arith.constant 0 : index
    %c0_34 = arith.constant 0 : index
    %c0_35 = arith.constant 0 : index
    %62 = vector.load %arg5[%c0_33, %c0_34, %c0_35] : memref<4x32x32xbf16, #tpu.memory_space<vmem>>, vector<1x32x32xbf16>
    %63 = vector.shape_cast %62 : vector<1x32x32xbf16> to vector<32x32xbf16>
    %64 = vector.shape_cast %61 : vector<32x32xbf16> to vector<1x32x32xbf16>
    tpu.vector_store %arg5[%c0_33, %c0_34, %c0_35], %64 {strides = array<i32>} : memref<4x32x32xbf16, #tpu.memory_space<vmem>>, vector<1x32x32xbf16>,
    %65 = vector.broadcast %50 : vector<32x1xf32> to vector<32x32xf32>
    %66 = arith.mulf %9, %65 : vector<32x32xf32>
    %67 = vector.broadcast %53 : vector<32x1xf32> to vector<32x32xf32>
    %68 = arith.addf %66, %67 : vector<32x32xf32>
    %cst_36 = arith.constant 2.000000e-01 : f32
    %69 = vector.broadcast %cst_36 : f32 to vector<32x32xf32>
    %70 = arith.mulf %69, %68 : vector<32x32xf32>
    %71 = arith.maximumf %68, %70 : vector<32x32xf32>
    %72 = arith.truncf %71 : vector<32x32xf32> to vector<32x32xbf16>
    %c1_37 = arith.constant 1 : index
    %c0_38 = arith.constant 0 : index
    %c0_39 = arith.constant 0 : index
    %73 = vector.load %arg5[%c1_37, %c0_38, %c0_39] : memref<4x32x32xbf16, #tpu.memory_space<vmem>>, vector<1x32x32xbf16>
    %74 = vector.shape_cast %73 : vector<1x32x32xbf16> to vector<32x32xbf16>
    %75 = vector.shape_cast %72 : vector<32x32xbf16> to vector<1x32x32xbf16>
    tpu.vector_store %arg5[%c1_37, %c0_38, %c0_39], %75 {strides = array<i32>} : memref<4x32x32xbf16, #tpu.memory_space<vmem>>, vector<1x32x32xbf16>,
    %76 = vector.broadcast %50 : vector<32x1xf32> to vector<32x32xf32>
    %77 = arith.mulf %14, %76 : vector<32x32xf32>
    %78 = vector.broadcast %53 : vector<32x1xf32> to vector<32x32xf32>
    %79 = arith.addf %77, %78 : vector<32x32xf32>
    %cst_40 = arith.constant 2.000000e-01 : f32
    %80 = vector.broadcast %cst_40 : f32 to vector<32x32xf32>
    %81 = arith.mulf %80, %79 : vector<32x32xf32>
    %82 = arith.maximumf %79, %81 : vector<32x32xf32>
    %83 = arith.truncf %82 : vector<32x32xf32> to vector<32x32xbf16>
    %c2_41 = arith.constant 2 : index
    %c0_42 = arith.constant 0 : index
    %c0_43 = arith.constant 0 : index
    %84 = vector.load %arg5[%c2_41, %c0_42, %c0_43] : memref<4x32x32xbf16, #tpu.memory_space<vmem>>, vector<1x32x32xbf16>
    %85 = vector.shape_cast %84 : vector<1x32x32xbf16> to vector<32x32xbf16>
    %86 = vector.shape_cast %83 : vector<32x32xbf16> to vector<1x32x32xbf16>
    tpu.vector_store %arg5[%c2_41, %c0_42, %c0_43], %86 {strides = array<i32>} : memref<4x32x32xbf16, #tpu.memory_space<vmem>>, vector<1x32x32xbf16>,
    %87 = vector.broadcast %50 : vector<32x1xf32> to vector<32x32xf32>
    %88 = arith.mulf %19, %87 : vector<32x32xf32>
    %89 = vector.broadcast %53 : vector<32x1xf32> to vector<32x32xf32>
    %90 = arith.addf %88, %89 : vector<32x32xf32>
    %cst_44 = arith.constant 2.000000e-01 : f32
    %91 = vector.broadcast %cst_44 : f32 to vector<32x32xf32>
    %92 = arith.mulf %91, %90 : vector<32x32xf32>
    %93 = arith.maximumf %90, %92 : vector<32x32xf32>
    %94 = arith.truncf %93 : vector<32x32xf32> to vector<32x32xbf16>
    %c3_45 = arith.constant 3 : index
    %c0_46 = arith.constant 0 : index
    %c0_47 = arith.constant 0 : index
    %95 = vector.load %arg5[%c3_45, %c0_46, %c0_47] : memref<4x32x32xbf16, #tpu.memory_space<vmem>>, vector<1x32x32xbf16>
    %96 = vector.shape_cast %95 : vector<1x32x32xbf16> to vector<32x32xbf16>
    %97 = vector.shape_cast %94 : vector<32x32xbf16> to vector<1x32x32xbf16>
    tpu.vector_store %arg5[%c3_45, %c0_46, %c0_47], %97 {strides = array<i32>} : memref<4x32x32xbf16, #tpu.memory_space<vmem>>, vector<1x32x32xbf16>,
    return
  }
  func.func @transform_0(%arg0: i32) -> (i32, i32, i32) {
    %c0_i32 = arith.constant 0 : i32
    %c0_i32_0 = arith.constant 0 : i32
    %c0_i32_1 = arith.constant 0 : i32
    %c0_i32_2 = arith.constant 0 : i32
    return %c0_i32, %c0_i32_0, %c0_i32_1 : i32, i32, i32
  }
  func.func @transform_1(%arg0: i32) -> (i32, i32, i32) {
    %c0_i32 = arith.constant 0 : i32
    %c0_i32_0 = arith.constant 0 : i32
    %c0_i32_1 = arith.constant 0 : i32
    %c0_i32_2 = arith.constant 0 : i32
    return %c0_i32, %c0_i32_0, %c0_i32_1 : i32, i32, i32
  }
  func.func @transform_2(%arg0: i32) -> (i32, i32) {
    %c0_i32 = arith.constant 0 : i32
    %c0_i32_0 = arith.constant 0 : i32
    %c0_i32_1 = arith.constant 0 : i32
    return %c0_i32, %c0_i32_0 : i32, i32
  }
  func.func @transform_3(%arg0: i32) -> (i32, i32) {
    %c0_i32 = arith.constant 0 : i32
    %c0_i32_0 = arith.constant 0 : i32
    %c0_i32_1 = arith.constant 0 : i32
    return %c0_i32, %c0_i32_0 : i32, i32
  }
  func.func @transform_4(%arg0: i32) -> (i32, i32, i32) {
    %c0_i32 = arith.constant 0 : i32
    %c0_i32_0 = arith.constant 0 : i32
    %c0_i32_1 = arith.constant 0 : i32
    %c0_i32_2 = arith.constant 0 : i32
    return %c0_i32, %c0_i32_0, %c0_i32_1 : i32, i32, i32
  }
}

module attributes {stable_mosaic.version = 11 : i64} {
  func.func @_phase_matmul_bn_lrelu_kernel(%arg0: i32, %arg1: memref<4x128x128xbf16, #tpu.memory_space<vmem>>, %arg2: memref<4x16x128xbf16, #tpu.memory_space<vmem>>, %arg3: memref<16x1xf32, #tpu.memory_space<vmem>>, %arg4: memref<16x1xf32, #tpu.memory_space<vmem>>, %arg5: memref<4x16x128xbf16, #tpu.memory_space<vmem>>) attributes {dimension_semantics = [#tpu.dimension_semantics<arbitrary>], iteration_bounds = array<i64: 1>, scalar_prefetch = 0 : i64, scratch_operands = 0 : i64, tpu.core_type = #tpu.core_type<tc>, window_params = [{pipeline_mode = #tpu.pipeline_mode<synchronous>, transform_indices = @transform_0, window_bounds = array<i64: 4, 128, 128>}, {pipeline_mode = #tpu.pipeline_mode<synchronous>, transform_indices = @transform_1, window_bounds = array<i64: 4, 16, 128>}, {pipeline_mode = #tpu.pipeline_mode<synchronous>, transform_indices = @transform_2, window_bounds = array<i64: 16, 1>}, {pipeline_mode = #tpu.pipeline_mode<synchronous>, transform_indices = @transform_3, window_bounds = array<i64: 16, 1>}, {pipeline_mode = #tpu.pipeline_mode<synchronous>, transform_indices = @transform_4, window_bounds = array<i64: 4, 16, 128>}]} {
    %c0 = arith.constant 0 : index
    %c0_0 = arith.constant 0 : index
    %c0_1 = arith.constant 0 : index
    %0 = vector.load %arg2[%c0, %c0_0, %c0_1] : memref<4x16x128xbf16, #tpu.memory_space<vmem>>, vector<1x16x128xbf16>
    %1 = vector.shape_cast %0 : vector<1x16x128xbf16> to vector<16x128xbf16>
    %c0_2 = arith.constant 0 : index
    %c0_3 = arith.constant 0 : index
    %c0_4 = arith.constant 0 : index
    %2 = vector.load %arg1[%c0_2, %c0_3, %c0_4] : memref<4x128x128xbf16, #tpu.memory_space<vmem>>, vector<1x128x128xbf16>
    %3 = vector.shape_cast %2 : vector<1x128x128xbf16> to vector<128x128xbf16>
    %cst = arith.constant dense<0.000000e+00> : vector<16x128xf32>
    %4 = tpu.matmul %1, %3, %cst {dimension_numbers = #tpu.dot_dimension_numbers<[1], [0], [0], [1], [0, 0, 1, 1], [], []>} : vector<16x128xbf16>, vector<128x128xbf16>, vector<16x128xf32> -> vector<16x128xf32>
    %c1 = arith.constant 1 : index
    %c0_5 = arith.constant 0 : index
    %c0_6 = arith.constant 0 : index
    %5 = vector.load %arg2[%c1, %c0_5, %c0_6] : memref<4x16x128xbf16, #tpu.memory_space<vmem>>, vector<1x16x128xbf16>
    %6 = vector.shape_cast %5 : vector<1x16x128xbf16> to vector<16x128xbf16>
    %c1_7 = arith.constant 1 : index
    %c0_8 = arith.constant 0 : index
    %c0_9 = arith.constant 0 : index
    %7 = vector.load %arg1[%c1_7, %c0_8, %c0_9] : memref<4x128x128xbf16, #tpu.memory_space<vmem>>, vector<1x128x128xbf16>
    %8 = vector.shape_cast %7 : vector<1x128x128xbf16> to vector<128x128xbf16>
    %cst_10 = arith.constant dense<0.000000e+00> : vector<16x128xf32>
    %9 = tpu.matmul %6, %8, %cst_10 {dimension_numbers = #tpu.dot_dimension_numbers<[1], [0], [0], [1], [0, 0, 1, 1], [], []>} : vector<16x128xbf16>, vector<128x128xbf16>, vector<16x128xf32> -> vector<16x128xf32>
    %c2 = arith.constant 2 : index
    %c0_11 = arith.constant 0 : index
    %c0_12 = arith.constant 0 : index
    %10 = vector.load %arg2[%c2, %c0_11, %c0_12] : memref<4x16x128xbf16, #tpu.memory_space<vmem>>, vector<1x16x128xbf16>
    %11 = vector.shape_cast %10 : vector<1x16x128xbf16> to vector<16x128xbf16>
    %c2_13 = arith.constant 2 : index
    %c0_14 = arith.constant 0 : index
    %c0_15 = arith.constant 0 : index
    %12 = vector.load %arg1[%c2_13, %c0_14, %c0_15] : memref<4x128x128xbf16, #tpu.memory_space<vmem>>, vector<1x128x128xbf16>
    %13 = vector.shape_cast %12 : vector<1x128x128xbf16> to vector<128x128xbf16>
    %cst_16 = arith.constant dense<0.000000e+00> : vector<16x128xf32>
    %14 = tpu.matmul %11, %13, %cst_16 {dimension_numbers = #tpu.dot_dimension_numbers<[1], [0], [0], [1], [0, 0, 1, 1], [], []>} : vector<16x128xbf16>, vector<128x128xbf16>, vector<16x128xf32> -> vector<16x128xf32>
    %c3 = arith.constant 3 : index
    %c0_17 = arith.constant 0 : index
    %c0_18 = arith.constant 0 : index
    %15 = vector.load %arg2[%c3, %c0_17, %c0_18] : memref<4x16x128xbf16, #tpu.memory_space<vmem>>, vector<1x16x128xbf16>
    %16 = vector.shape_cast %15 : vector<1x16x128xbf16> to vector<16x128xbf16>
    %c3_19 = arith.constant 3 : index
    %c0_20 = arith.constant 0 : index
    %c0_21 = arith.constant 0 : index
    %17 = vector.load %arg1[%c3_19, %c0_20, %c0_21] : memref<4x128x128xbf16, #tpu.memory_space<vmem>>, vector<1x128x128xbf16>
    %18 = vector.shape_cast %17 : vector<1x128x128xbf16> to vector<128x128xbf16>
    %cst_22 = arith.constant dense<0.000000e+00> : vector<16x128xf32>
    %19 = tpu.matmul %16, %18, %cst_22 {dimension_numbers = #tpu.dot_dimension_numbers<[1], [0], [0], [1], [0, 0, 1, 1], [], []>} : vector<16x128xbf16>, vector<128x128xbf16>, vector<16x128xf32> -> vector<16x128xf32>
    %20 = arith.addf %4, %9 : vector<16x128xf32>
    %21 = arith.addf %20, %14 : vector<16x128xf32>
    %22 = arith.addf %21, %19 : vector<16x128xf32>
    %cst_23 = arith.constant dense<0.000000e+00> : vector<16xf32>
    %23 = vector.multi_reduction <add>, %22, %cst_23 [1] : vector<16x128xf32> to vector<16xf32>
    %24 = vector.shape_cast %23 : vector<16xf32> to vector<16x1xf32>
    %cst_24 = arith.constant 5.120000e+02 : f32
    %25 = vector.broadcast %cst_24 : f32 to vector<16x1xf32>
    %26 = arith.divf %24, %25 : vector<16x1xf32>
    %27 = vector.broadcast %26 : vector<16x1xf32> to vector<16x128xf32>
    %28 = arith.subf %4, %27 : vector<16x128xf32>
    %29 = arith.mulf %28, %28 : vector<16x128xf32>
    %30 = vector.broadcast %26 : vector<16x1xf32> to vector<16x128xf32>
    %31 = arith.subf %9, %30 : vector<16x128xf32>
    %32 = arith.mulf %31, %31 : vector<16x128xf32>
    %33 = arith.addf %29, %32 : vector<16x128xf32>
    %34 = vector.broadcast %26 : vector<16x1xf32> to vector<16x128xf32>
    %35 = arith.subf %14, %34 : vector<16x128xf32>
    %36 = arith.mulf %35, %35 : vector<16x128xf32>
    %37 = arith.addf %33, %36 : vector<16x128xf32>
    %38 = vector.broadcast %26 : vector<16x1xf32> to vector<16x128xf32>
    %39 = arith.subf %19, %38 : vector<16x128xf32>
    %40 = arith.mulf %39, %39 : vector<16x128xf32>
    %41 = arith.addf %37, %40 : vector<16x128xf32>
    %cst_25 = arith.constant dense<0.000000e+00> : vector<16xf32>
    %42 = vector.multi_reduction <add>, %41, %cst_25 [1] : vector<16x128xf32> to vector<16xf32>
    %43 = vector.shape_cast %42 : vector<16xf32> to vector<16x1xf32>
    %cst_26 = arith.constant 5.120000e+02 : f32
    %44 = vector.broadcast %cst_26 : f32 to vector<16x1xf32>
    %45 = arith.divf %43, %44 : vector<16x1xf32>
    %c0_27 = arith.constant 0 : index
    %c0_28 = arith.constant 0 : index
    %46 = vector.load %arg3[%c0_27, %c0_28] : memref<16x1xf32, #tpu.memory_space<vmem>>, vector<16x1xf32>
    %cst_29 = arith.constant 9.99999974E-6 : f32
    %47 = vector.broadcast %cst_29 : f32 to vector<16x1xf32>
    %48 = arith.addf %45, %47 : vector<16x1xf32>
    %49 = math.rsqrt %48 : vector<16x1xf32>
    %50 = arith.mulf %46, %49 : vector<16x1xf32>
    %c0_30 = arith.constant 0 : index
    %c0_31 = arith.constant 0 : index
    %51 = vector.load %arg4[%c0_30, %c0_31] : memref<16x1xf32, #tpu.memory_space<vmem>>, vector<16x1xf32>
    %52 = arith.mulf %26, %50 : vector<16x1xf32>
    %53 = arith.subf %51, %52 : vector<16x1xf32>
    %54 = vector.broadcast %50 : vector<16x1xf32> to vector<16x128xf32>
    %55 = arith.mulf %4, %54 : vector<16x128xf32>
    %56 = vector.broadcast %53 : vector<16x1xf32> to vector<16x128xf32>
    %57 = arith.addf %55, %56 : vector<16x128xf32>
    %cst_32 = arith.constant 2.000000e-01 : f32
    %58 = vector.broadcast %cst_32 : f32 to vector<16x128xf32>
    %59 = arith.mulf %58, %57 : vector<16x128xf32>
    %60 = arith.maximumf %57, %59 : vector<16x128xf32>
    %61 = arith.truncf %60 : vector<16x128xf32> to vector<16x128xbf16>
    %c0_33 = arith.constant 0 : index
    %c0_34 = arith.constant 0 : index
    %c0_35 = arith.constant 0 : index
    %62 = vector.load %arg5[%c0_33, %c0_34, %c0_35] : memref<4x16x128xbf16, #tpu.memory_space<vmem>>, vector<1x16x128xbf16>
    %63 = vector.shape_cast %62 : vector<1x16x128xbf16> to vector<16x128xbf16>
    %64 = vector.shape_cast %61 : vector<16x128xbf16> to vector<1x16x128xbf16>
    tpu.vector_store %arg5[%c0_33, %c0_34, %c0_35], %64 {strides = array<i32>} : memref<4x16x128xbf16, #tpu.memory_space<vmem>>, vector<1x16x128xbf16>,
    %65 = vector.broadcast %50 : vector<16x1xf32> to vector<16x128xf32>
    %66 = arith.mulf %9, %65 : vector<16x128xf32>
    %67 = vector.broadcast %53 : vector<16x1xf32> to vector<16x128xf32>
    %68 = arith.addf %66, %67 : vector<16x128xf32>
    %cst_36 = arith.constant 2.000000e-01 : f32
    %69 = vector.broadcast %cst_36 : f32 to vector<16x128xf32>
    %70 = arith.mulf %69, %68 : vector<16x128xf32>
    %71 = arith.maximumf %68, %70 : vector<16x128xf32>
    %72 = arith.truncf %71 : vector<16x128xf32> to vector<16x128xbf16>
    %c1_37 = arith.constant 1 : index
    %c0_38 = arith.constant 0 : index
    %c0_39 = arith.constant 0 : index
    %73 = vector.load %arg5[%c1_37, %c0_38, %c0_39] : memref<4x16x128xbf16, #tpu.memory_space<vmem>>, vector<1x16x128xbf16>
    %74 = vector.shape_cast %73 : vector<1x16x128xbf16> to vector<16x128xbf16>
    %75 = vector.shape_cast %72 : vector<16x128xbf16> to vector<1x16x128xbf16>
    tpu.vector_store %arg5[%c1_37, %c0_38, %c0_39], %75 {strides = array<i32>} : memref<4x16x128xbf16, #tpu.memory_space<vmem>>, vector<1x16x128xbf16>,
    %76 = vector.broadcast %50 : vector<16x1xf32> to vector<16x128xf32>
    %77 = arith.mulf %14, %76 : vector<16x128xf32>
    %78 = vector.broadcast %53 : vector<16x1xf32> to vector<16x128xf32>
    %79 = arith.addf %77, %78 : vector<16x128xf32>
    %cst_40 = arith.constant 2.000000e-01 : f32
    %80 = vector.broadcast %cst_40 : f32 to vector<16x128xf32>
    %81 = arith.mulf %80, %79 : vector<16x128xf32>
    %82 = arith.maximumf %79, %81 : vector<16x128xf32>
    %83 = arith.truncf %82 : vector<16x128xf32> to vector<16x128xbf16>
    %c2_41 = arith.constant 2 : index
    %c0_42 = arith.constant 0 : index
    %c0_43 = arith.constant 0 : index
    %84 = vector.load %arg5[%c2_41, %c0_42, %c0_43] : memref<4x16x128xbf16, #tpu.memory_space<vmem>>, vector<1x16x128xbf16>
    %85 = vector.shape_cast %84 : vector<1x16x128xbf16> to vector<16x128xbf16>
    %86 = vector.shape_cast %83 : vector<16x128xbf16> to vector<1x16x128xbf16>
    tpu.vector_store %arg5[%c2_41, %c0_42, %c0_43], %86 {strides = array<i32>} : memref<4x16x128xbf16, #tpu.memory_space<vmem>>, vector<1x16x128xbf16>,
    %87 = vector.broadcast %50 : vector<16x1xf32> to vector<16x128xf32>
    %88 = arith.mulf %19, %87 : vector<16x128xf32>
    %89 = vector.broadcast %53 : vector<16x1xf32> to vector<16x128xf32>
    %90 = arith.addf %88, %89 : vector<16x128xf32>
    %cst_44 = arith.constant 2.000000e-01 : f32
    %91 = vector.broadcast %cst_44 : f32 to vector<16x128xf32>
    %92 = arith.mulf %91, %90 : vector<16x128xf32>
    %93 = arith.maximumf %90, %92 : vector<16x128xf32>
    %94 = arith.truncf %93 : vector<16x128xf32> to vector<16x128xbf16>
    %c3_45 = arith.constant 3 : index
    %c0_46 = arith.constant 0 : index
    %c0_47 = arith.constant 0 : index
    %95 = vector.load %arg5[%c3_45, %c0_46, %c0_47] : memref<4x16x128xbf16, #tpu.memory_space<vmem>>, vector<1x16x128xbf16>
    %96 = vector.shape_cast %95 : vector<1x16x128xbf16> to vector<16x128xbf16>
    %97 = vector.shape_cast %94 : vector<16x128xbf16> to vector<1x16x128xbf16>
    tpu.vector_store %arg5[%c3_45, %c0_46, %c0_47], %97 {strides = array<i32>} : memref<4x16x128xbf16, #tpu.memory_space<vmem>>, vector<1x16x128xbf16>,
    return
  }
  func.func @transform_0(%arg0: i32) -> (i32, i32, i32) {
    %c0_i32 = arith.constant 0 : i32
    %c0_i32_0 = arith.constant 0 : i32
    %c0_i32_1 = arith.constant 0 : i32
    %c0_i32_2 = arith.constant 0 : i32
    return %c0_i32, %c0_i32_0, %c0_i32_1 : i32, i32, i32
  }
  func.func @transform_1(%arg0: i32) -> (i32, i32, i32) {
    %c0_i32 = arith.constant 0 : i32
    %c0_i32_0 = arith.constant 0 : i32
    %c0_i32_1 = arith.constant 0 : i32
    %c0_i32_2 = arith.constant 0 : i32
    return %c0_i32, %c0_i32_0, %c0_i32_1 : i32, i32, i32
  }
  func.func @transform_2(%arg0: i32) -> (i32, i32) {
    %c0_i32 = arith.constant 0 : i32
    %c0_i32_0 = arith.constant 0 : i32
    %c0_i32_1 = arith.constant 0 : i32
    return %c0_i32, %c0_i32_0 : i32, i32
  }
  func.func @transform_3(%arg0: i32) -> (i32, i32) {
    %c0_i32 = arith.constant 0 : i32
    %c0_i32_0 = arith.constant 0 : i32
    %c0_i32_1 = arith.constant 0 : i32
    return %c0_i32, %c0_i32_0 : i32, i32
  }
  func.func @transform_4(%arg0: i32) -> (i32, i32, i32) {
    %c0_i32 = arith.constant 0 : i32
    %c0_i32_0 = arith.constant 0 : i32
    %c0_i32_1 = arith.constant 0 : i32
    %c0_i32_2 = arith.constant 0 : i32
    return %c0_i32, %c0_i32_0, %c0_i32_1 : i32, i32, i32
  }
}

module attributes {stable_mosaic.version = 11 : i64} {
  func.func @_phase_matmul_bn_lrelu_kernel(%arg0: i32, %arg1: memref<4x64x512xbf16, #tpu.memory_space<vmem>>, %arg2: memref<4x8x64xbf16, #tpu.memory_space<vmem>>, %arg3: memref<8x1xf32, #tpu.memory_space<vmem>>, %arg4: memref<8x1xf32, #tpu.memory_space<vmem>>, %arg5: memref<4x8x512xbf16, #tpu.memory_space<vmem>>) attributes {dimension_semantics = [#tpu.dimension_semantics<arbitrary>], iteration_bounds = array<i64: 1>, scalar_prefetch = 0 : i64, scratch_operands = 0 : i64, tpu.core_type = #tpu.core_type<tc>, window_params = [{pipeline_mode = #tpu.pipeline_mode<synchronous>, transform_indices = @transform_0, window_bounds = array<i64: 4, 64, 512>}, {pipeline_mode = #tpu.pipeline_mode<synchronous>, transform_indices = @transform_1, window_bounds = array<i64: 4, 8, 64>}, {pipeline_mode = #tpu.pipeline_mode<synchronous>, transform_indices = @transform_2, window_bounds = array<i64: 8, 1>}, {pipeline_mode = #tpu.pipeline_mode<synchronous>, transform_indices = @transform_3, window_bounds = array<i64: 8, 1>}, {pipeline_mode = #tpu.pipeline_mode<synchronous>, transform_indices = @transform_4, window_bounds = array<i64: 4, 8, 512>}]} {
    %c0 = arith.constant 0 : index
    %c0_0 = arith.constant 0 : index
    %c0_1 = arith.constant 0 : index
    %0 = vector.load %arg2[%c0, %c0_0, %c0_1] : memref<4x8x64xbf16, #tpu.memory_space<vmem>>, vector<1x8x64xbf16>
    %1 = vector.shape_cast %0 : vector<1x8x64xbf16> to vector<8x64xbf16>
    %c0_2 = arith.constant 0 : index
    %c0_3 = arith.constant 0 : index
    %c0_4 = arith.constant 0 : index
    %2 = vector.load %arg1[%c0_2, %c0_3, %c0_4] : memref<4x64x512xbf16, #tpu.memory_space<vmem>>, vector<1x64x512xbf16>
    %3 = vector.shape_cast %2 : vector<1x64x512xbf16> to vector<64x512xbf16>
    %cst = arith.constant dense<0.000000e+00> : vector<8x512xf32>
    %4 = tpu.matmul %1, %3, %cst {dimension_numbers = #tpu.dot_dimension_numbers<[1], [0], [0], [1], [0, 0, 1, 1], [], []>} : vector<8x64xbf16>, vector<64x512xbf16>, vector<8x512xf32> -> vector<8x512xf32>
    %c1 = arith.constant 1 : index
    %c0_5 = arith.constant 0 : index
    %c0_6 = arith.constant 0 : index
    %5 = vector.load %arg2[%c1, %c0_5, %c0_6] : memref<4x8x64xbf16, #tpu.memory_space<vmem>>, vector<1x8x64xbf16>
    %6 = vector.shape_cast %5 : vector<1x8x64xbf16> to vector<8x64xbf16>
    %c1_7 = arith.constant 1 : index
    %c0_8 = arith.constant 0 : index
    %c0_9 = arith.constant 0 : index
    %7 = vector.load %arg1[%c1_7, %c0_8, %c0_9] : memref<4x64x512xbf16, #tpu.memory_space<vmem>>, vector<1x64x512xbf16>
    %8 = vector.shape_cast %7 : vector<1x64x512xbf16> to vector<64x512xbf16>
    %cst_10 = arith.constant dense<0.000000e+00> : vector<8x512xf32>
    %9 = tpu.matmul %6, %8, %cst_10 {dimension_numbers = #tpu.dot_dimension_numbers<[1], [0], [0], [1], [0, 0, 1, 1], [], []>} : vector<8x64xbf16>, vector<64x512xbf16>, vector<8x512xf32> -> vector<8x512xf32>
    %c2 = arith.constant 2 : index
    %c0_11 = arith.constant 0 : index
    %c0_12 = arith.constant 0 : index
    %10 = vector.load %arg2[%c2, %c0_11, %c0_12] : memref<4x8x64xbf16, #tpu.memory_space<vmem>>, vector<1x8x64xbf16>
    %11 = vector.shape_cast %10 : vector<1x8x64xbf16> to vector<8x64xbf16>
    %c2_13 = arith.constant 2 : index
    %c0_14 = arith.constant 0 : index
    %c0_15 = arith.constant 0 : index
    %12 = vector.load %arg1[%c2_13, %c0_14, %c0_15] : memref<4x64x512xbf16, #tpu.memory_space<vmem>>, vector<1x64x512xbf16>
    %13 = vector.shape_cast %12 : vector<1x64x512xbf16> to vector<64x512xbf16>
    %cst_16 = arith.constant dense<0.000000e+00> : vector<8x512xf32>
    %14 = tpu.matmul %11, %13, %cst_16 {dimension_numbers = #tpu.dot_dimension_numbers<[1], [0], [0], [1], [0, 0, 1, 1], [], []>} : vector<8x64xbf16>, vector<64x512xbf16>, vector<8x512xf32> -> vector<8x512xf32>
    %c3 = arith.constant 3 : index
    %c0_17 = arith.constant 0 : index
    %c0_18 = arith.constant 0 : index
    %15 = vector.load %arg2[%c3, %c0_17, %c0_18] : memref<4x8x64xbf16, #tpu.memory_space<vmem>>, vector<1x8x64xbf16>
    %16 = vector.shape_cast %15 : vector<1x8x64xbf16> to vector<8x64xbf16>
    %c3_19 = arith.constant 3 : index
    %c0_20 = arith.constant 0 : index
    %c0_21 = arith.constant 0 : index
    %17 = vector.load %arg1[%c3_19, %c0_20, %c0_21] : memref<4x64x512xbf16, #tpu.memory_space<vmem>>, vector<1x64x512xbf16>
    %18 = vector.shape_cast %17 : vector<1x64x512xbf16> to vector<64x512xbf16>
    %cst_22 = arith.constant dense<0.000000e+00> : vector<8x512xf32>
    %19 = tpu.matmul %16, %18, %cst_22 {dimension_numbers = #tpu.dot_dimension_numbers<[1], [0], [0], [1], [0, 0, 1, 1], [], []>} : vector<8x64xbf16>, vector<64x512xbf16>, vector<8x512xf32> -> vector<8x512xf32>
    %20 = arith.addf %4, %9 : vector<8x512xf32>
    %21 = arith.addf %20, %14 : vector<8x512xf32>
    %22 = arith.addf %21, %19 : vector<8x512xf32>
    %cst_23 = arith.constant dense<0.000000e+00> : vector<8xf32>
    %23 = vector.multi_reduction <add>, %22, %cst_23 [1] : vector<8x512xf32> to vector<8xf32>
    %24 = vector.shape_cast %23 : vector<8xf32> to vector<8x1xf32>
    %cst_24 = arith.constant 2.048000e+03 : f32
    %25 = vector.broadcast %cst_24 : f32 to vector<8x1xf32>
    %26 = arith.divf %24, %25 : vector<8x1xf32>
    %27 = vector.broadcast %26 : vector<8x1xf32> to vector<8x512xf32>
    %28 = arith.subf %4, %27 : vector<8x512xf32>
    %29 = arith.mulf %28, %28 : vector<8x512xf32>
    %30 = vector.broadcast %26 : vector<8x1xf32> to vector<8x512xf32>
    %31 = arith.subf %9, %30 : vector<8x512xf32>
    %32 = arith.mulf %31, %31 : vector<8x512xf32>
    %33 = arith.addf %29, %32 : vector<8x512xf32>
    %34 = vector.broadcast %26 : vector<8x1xf32> to vector<8x512xf32>
    %35 = arith.subf %14, %34 : vector<8x512xf32>
    %36 = arith.mulf %35, %35 : vector<8x512xf32>
    %37 = arith.addf %33, %36 : vector<8x512xf32>
    %38 = vector.broadcast %26 : vector<8x1xf32> to vector<8x512xf32>
    %39 = arith.subf %19, %38 : vector<8x512xf32>
    %40 = arith.mulf %39, %39 : vector<8x512xf32>
    %41 = arith.addf %37, %40 : vector<8x512xf32>
    %cst_25 = arith.constant dense<0.000000e+00> : vector<8xf32>
    %42 = vector.multi_reduction <add>, %41, %cst_25 [1] : vector<8x512xf32> to vector<8xf32>
    %43 = vector.shape_cast %42 : vector<8xf32> to vector<8x1xf32>
    %cst_26 = arith.constant 2.048000e+03 : f32
    %44 = vector.broadcast %cst_26 : f32 to vector<8x1xf32>
    %45 = arith.divf %43, %44 : vector<8x1xf32>
    %c0_27 = arith.constant 0 : index
    %c0_28 = arith.constant 0 : index
    %46 = vector.load %arg3[%c0_27, %c0_28] : memref<8x1xf32, #tpu.memory_space<vmem>>, vector<8x1xf32>
    %cst_29 = arith.constant 9.99999974E-6 : f32
    %47 = vector.broadcast %cst_29 : f32 to vector<8x1xf32>
    %48 = arith.addf %45, %47 : vector<8x1xf32>
    %49 = math.rsqrt %48 : vector<8x1xf32>
    %50 = arith.mulf %46, %49 : vector<8x1xf32>
    %c0_30 = arith.constant 0 : index
    %c0_31 = arith.constant 0 : index
    %51 = vector.load %arg4[%c0_30, %c0_31] : memref<8x1xf32, #tpu.memory_space<vmem>>, vector<8x1xf32>
    %52 = arith.mulf %26, %50 : vector<8x1xf32>
    %53 = arith.subf %51, %52 : vector<8x1xf32>
    %54 = vector.broadcast %50 : vector<8x1xf32> to vector<8x512xf32>
    %55 = arith.mulf %4, %54 : vector<8x512xf32>
    %56 = vector.broadcast %53 : vector<8x1xf32> to vector<8x512xf32>
    %57 = arith.addf %55, %56 : vector<8x512xf32>
    %cst_32 = arith.constant 2.000000e-01 : f32
    %58 = vector.broadcast %cst_32 : f32 to vector<8x512xf32>
    %59 = arith.mulf %58, %57 : vector<8x512xf32>
    %60 = arith.maximumf %57, %59 : vector<8x512xf32>
    %61 = arith.truncf %60 : vector<8x512xf32> to vector<8x512xbf16>
    %c0_33 = arith.constant 0 : index
    %c0_34 = arith.constant 0 : index
    %c0_35 = arith.constant 0 : index
    %62 = vector.load %arg5[%c0_33, %c0_34, %c0_35] : memref<4x8x512xbf16, #tpu.memory_space<vmem>>, vector<1x8x512xbf16>
    %63 = vector.shape_cast %62 : vector<1x8x512xbf16> to vector<8x512xbf16>
    %64 = vector.shape_cast %61 : vector<8x512xbf16> to vector<1x8x512xbf16>
    tpu.vector_store %arg5[%c0_33, %c0_34, %c0_35], %64 {strides = array<i32>} : memref<4x8x512xbf16, #tpu.memory_space<vmem>>, vector<1x8x512xbf16>,
    %65 = vector.broadcast %50 : vector<8x1xf32> to vector<8x512xf32>
    %66 = arith.mulf %9, %65 : vector<8x512xf32>
    %67 = vector.broadcast %53 : vector<8x1xf32> to vector<8x512xf32>
    %68 = arith.addf %66, %67 : vector<8x512xf32>
    %cst_36 = arith.constant 2.000000e-01 : f32
    %69 = vector.broadcast %cst_36 : f32 to vector<8x512xf32>
    %70 = arith.mulf %69, %68 : vector<8x512xf32>
    %71 = arith.maximumf %68, %70 : vector<8x512xf32>
    %72 = arith.truncf %71 : vector<8x512xf32> to vector<8x512xbf16>
    %c1_37 = arith.constant 1 : index
    %c0_38 = arith.constant 0 : index
    %c0_39 = arith.constant 0 : index
    %73 = vector.load %arg5[%c1_37, %c0_38, %c0_39] : memref<4x8x512xbf16, #tpu.memory_space<vmem>>, vector<1x8x512xbf16>
    %74 = vector.shape_cast %73 : vector<1x8x512xbf16> to vector<8x512xbf16>
    %75 = vector.shape_cast %72 : vector<8x512xbf16> to vector<1x8x512xbf16>
    tpu.vector_store %arg5[%c1_37, %c0_38, %c0_39], %75 {strides = array<i32>} : memref<4x8x512xbf16, #tpu.memory_space<vmem>>, vector<1x8x512xbf16>,
    %76 = vector.broadcast %50 : vector<8x1xf32> to vector<8x512xf32>
    %77 = arith.mulf %14, %76 : vector<8x512xf32>
    %78 = vector.broadcast %53 : vector<8x1xf32> to vector<8x512xf32>
    %79 = arith.addf %77, %78 : vector<8x512xf32>
    %cst_40 = arith.constant 2.000000e-01 : f32
    %80 = vector.broadcast %cst_40 : f32 to vector<8x512xf32>
    %81 = arith.mulf %80, %79 : vector<8x512xf32>
    %82 = arith.maximumf %79, %81 : vector<8x512xf32>
    %83 = arith.truncf %82 : vector<8x512xf32> to vector<8x512xbf16>
    %c2_41 = arith.constant 2 : index
    %c0_42 = arith.constant 0 : index
    %c0_43 = arith.constant 0 : index
    %84 = vector.load %arg5[%c2_41, %c0_42, %c0_43] : memref<4x8x512xbf16, #tpu.memory_space<vmem>>, vector<1x8x512xbf16>
    %85 = vector.shape_cast %84 : vector<1x8x512xbf16> to vector<8x512xbf16>
    %86 = vector.shape_cast %83 : vector<8x512xbf16> to vector<1x8x512xbf16>
    tpu.vector_store %arg5[%c2_41, %c0_42, %c0_43], %86 {strides = array<i32>} : memref<4x8x512xbf16, #tpu.memory_space<vmem>>, vector<1x8x512xbf16>,
    %87 = vector.broadcast %50 : vector<8x1xf32> to vector<8x512xf32>
    %88 = arith.mulf %19, %87 : vector<8x512xf32>
    %89 = vector.broadcast %53 : vector<8x1xf32> to vector<8x512xf32>
    %90 = arith.addf %88, %89 : vector<8x512xf32>
    %cst_44 = arith.constant 2.000000e-01 : f32
    %91 = vector.broadcast %cst_44 : f32 to vector<8x512xf32>
    %92 = arith.mulf %91, %90 : vector<8x512xf32>
    %93 = arith.maximumf %90, %92 : vector<8x512xf32>
    %94 = arith.truncf %93 : vector<8x512xf32> to vector<8x512xbf16>
    %c3_45 = arith.constant 3 : index
    %c0_46 = arith.constant 0 : index
    %c0_47 = arith.constant 0 : index
    %95 = vector.load %arg5[%c3_45, %c0_46, %c0_47] : memref<4x8x512xbf16, #tpu.memory_space<vmem>>, vector<1x8x512xbf16>
    %96 = vector.shape_cast %95 : vector<1x8x512xbf16> to vector<8x512xbf16>
    %97 = vector.shape_cast %94 : vector<8x512xbf16> to vector<1x8x512xbf16>
    tpu.vector_store %arg5[%c3_45, %c0_46, %c0_47], %97 {strides = array<i32>} : memref<4x8x512xbf16, #tpu.memory_space<vmem>>, vector<1x8x512xbf16>,
    return
  }
  func.func @transform_0(%arg0: i32) -> (i32, i32, i32) {
    %c0_i32 = arith.constant 0 : i32
    %c0_i32_0 = arith.constant 0 : i32
    %c0_i32_1 = arith.constant 0 : i32
    %c0_i32_2 = arith.constant 0 : i32
    return %c0_i32, %c0_i32_0, %c0_i32_1 : i32, i32, i32
  }
  func.func @transform_1(%arg0: i32) -> (i32, i32, i32) {
    %c0_i32 = arith.constant 0 : i32
    %c0_i32_0 = arith.constant 0 : i32
    %c0_i32_1 = arith.constant 0 : i32
    %c0_i32_2 = arith.constant 0 : i32
    return %c0_i32, %c0_i32_0, %c0_i32_1 : i32, i32, i32
  }
  func.func @transform_2(%arg0: i32) -> (i32, i32) {
    %c0_i32 = arith.constant 0 : i32
    %c0_i32_0 = arith.constant 0 : i32
    %c0_i32_1 = arith.constant 0 : i32
    return %c0_i32, %c0_i32_0 : i32, i32
  }
  func.func @transform_3(%arg0: i32) -> (i32, i32) {
    %c0_i32 = arith.constant 0 : i32
    %c0_i32_0 = arith.constant 0 : i32
    %c0_i32_1 = arith.constant 0 : i32
    return %c0_i32, %c0_i32_0 : i32, i32
  }
  func.func @transform_4(%arg0: i32) -> (i32, i32, i32) {
    %c0_i32 = arith.constant 0 : i32
    %c0_i32_0 = arith.constant 0 : i32
    %c0_i32_1 = arith.constant 0 : i32
    %c0_i32_2 = arith.constant 0 : i32
    return %c0_i32, %c0_i32_0, %c0_i32_1 : i32, i32, i32
  }
}

module attributes {stable_mosaic.version = 11 : i64} {
  func.func @_phase_matmul_tanh_kernel(%arg0: i32, %arg1: memref<4x32x1024xbf16, #tpu.memory_space<vmem>>, %arg2: memref<4x1x32xbf16, #tpu.memory_space<vmem>>, %arg3: memref<4x1x1024xf32, #tpu.memory_space<vmem>>) attributes {dimension_semantics = [#tpu.dimension_semantics<parallel>], iteration_bounds = array<i64: 2>, scalar_prefetch = 0 : i64, scratch_operands = 0 : i64, tpu.core_type = #tpu.core_type<tc>, window_params = [{transform_indices = @transform_0, window_bounds = array<i64: 4, 32, 1024>}, {pipeline_mode = #tpu.pipeline_mode<synchronous>, transform_indices = @transform_1, window_bounds = array<i64: 4, 1, 32>}, {transform_indices = @transform_2, window_bounds = array<i64: 4, 1, 1024>}]} {
    %c0 = arith.constant 0 : index
    %c0_0 = arith.constant 0 : index
    %c0_1 = arith.constant 0 : index
    %0 = vector.load %arg2[%c0, %c0_0, %c0_1] : memref<4x1x32xbf16, #tpu.memory_space<vmem>>, vector<1x1x32xbf16>
    %1 = vector.shape_cast %0 : vector<1x1x32xbf16> to vector<1x32xbf16>
    %c0_2 = arith.constant 0 : index
    %c0_3 = arith.constant 0 : index
    %c0_4 = arith.constant 0 : index
    %2 = vector.load %arg1[%c0_2, %c0_3, %c0_4] : memref<4x32x1024xbf16, #tpu.memory_space<vmem>>, vector<1x32x1024xbf16>
    %3 = vector.shape_cast %2 : vector<1x32x1024xbf16> to vector<32x1024xbf16>
    %cst = arith.constant dense<0.000000e+00> : vector<1x1024xf32>
    %4 = tpu.matmul %1, %3, %cst {dimension_numbers = #tpu.dot_dimension_numbers<[1], [0], [0], [1], [0, 0, 1, 1], [], []>} : vector<1x32xbf16>, vector<32x1024xbf16>, vector<1x1024xf32> -> vector<1x1024xf32>
    %5 = math.tanh %4 : vector<1x1024xf32>
    %c0_5 = arith.constant 0 : index
    %c0_6 = arith.constant 0 : index
    %c0_7 = arith.constant 0 : index
    %6 = vector.load %arg3[%c0_5, %c0_6, %c0_7] : memref<4x1x1024xf32, #tpu.memory_space<vmem>>, vector<1x1x1024xf32>
    %7 = vector.shape_cast %6 : vector<1x1x1024xf32> to vector<1x1024xf32>
    %8 = vector.shape_cast %5 : vector<1x1024xf32> to vector<1x1x1024xf32>
    tpu.vector_store %arg3[%c0_5, %c0_6, %c0_7], %8 {strides = array<i32>} : memref<4x1x1024xf32, #tpu.memory_space<vmem>>, vector<1x1x1024xf32>,
    %c1 = arith.constant 1 : index
    %c0_8 = arith.constant 0 : index
    %c0_9 = arith.constant 0 : index
    %9 = vector.load %arg2[%c1, %c0_8, %c0_9] : memref<4x1x32xbf16, #tpu.memory_space<vmem>>, vector<1x1x32xbf16>
    %10 = vector.shape_cast %9 : vector<1x1x32xbf16> to vector<1x32xbf16>
    %c1_10 = arith.constant 1 : index
    %c0_11 = arith.constant 0 : index
    %c0_12 = arith.constant 0 : index
    %11 = vector.load %arg1[%c1_10, %c0_11, %c0_12] : memref<4x32x1024xbf16, #tpu.memory_space<vmem>>, vector<1x32x1024xbf16>
    %12 = vector.shape_cast %11 : vector<1x32x1024xbf16> to vector<32x1024xbf16>
    %cst_13 = arith.constant dense<0.000000e+00> : vector<1x1024xf32>
    %13 = tpu.matmul %10, %12, %cst_13 {dimension_numbers = #tpu.dot_dimension_numbers<[1], [0], [0], [1], [0, 0, 1, 1], [], []>} : vector<1x32xbf16>, vector<32x1024xbf16>, vector<1x1024xf32> -> vector<1x1024xf32>
    %14 = math.tanh %13 : vector<1x1024xf32>
    %c1_14 = arith.constant 1 : index
    %c0_15 = arith.constant 0 : index
    %c0_16 = arith.constant 0 : index
    %15 = vector.load %arg3[%c1_14, %c0_15, %c0_16] : memref<4x1x1024xf32, #tpu.memory_space<vmem>>, vector<1x1x1024xf32>
    %16 = vector.shape_cast %15 : vector<1x1x1024xf32> to vector<1x1024xf32>
    %17 = vector.shape_cast %14 : vector<1x1024xf32> to vector<1x1x1024xf32>
    tpu.vector_store %arg3[%c1_14, %c0_15, %c0_16], %17 {strides = array<i32>} : memref<4x1x1024xf32, #tpu.memory_space<vmem>>, vector<1x1x1024xf32>,
    %c2 = arith.constant 2 : index
    %c0_17 = arith.constant 0 : index
    %c0_18 = arith.constant 0 : index
    %18 = vector.load %arg2[%c2, %c0_17, %c0_18] : memref<4x1x32xbf16, #tpu.memory_space<vmem>>, vector<1x1x32xbf16>
    %19 = vector.shape_cast %18 : vector<1x1x32xbf16> to vector<1x32xbf16>
    %c2_19 = arith.constant 2 : index
    %c0_20 = arith.constant 0 : index
    %c0_21 = arith.constant 0 : index
    %20 = vector.load %arg1[%c2_19, %c0_20, %c0_21] : memref<4x32x1024xbf16, #tpu.memory_space<vmem>>, vector<1x32x1024xbf16>
    %21 = vector.shape_cast %20 : vector<1x32x1024xbf16> to vector<32x1024xbf16>
    %cst_22 = arith.constant dense<0.000000e+00> : vector<1x1024xf32>
    %22 = tpu.matmul %19, %21, %cst_22 {dimension_numbers = #tpu.dot_dimension_numbers<[1], [0], [0], [1], [0, 0, 1, 1], [], []>} : vector<1x32xbf16>, vector<32x1024xbf16>, vector<1x1024xf32> -> vector<1x1024xf32>
    %23 = math.tanh %22 : vector<1x1024xf32>
    %c2_23 = arith.constant 2 : index
    %c0_24 = arith.constant 0 : index
    %c0_25 = arith.constant 0 : index
    %24 = vector.load %arg3[%c2_23, %c0_24, %c0_25] : memref<4x1x1024xf32, #tpu.memory_space<vmem>>, vector<1x1x1024xf32>
    %25 = vector.shape_cast %24 : vector<1x1x1024xf32> to vector<1x1024xf32>
    %26 = vector.shape_cast %23 : vector<1x1024xf32> to vector<1x1x1024xf32>
    tpu.vector_store %arg3[%c2_23, %c0_24, %c0_25], %26 {strides = array<i32>} : memref<4x1x1024xf32, #tpu.memory_space<vmem>>, vector<1x1x1024xf32>,
    %c3 = arith.constant 3 : index
    %c0_26 = arith.constant 0 : index
    %c0_27 = arith.constant 0 : index
    %27 = vector.load %arg2[%c3, %c0_26, %c0_27] : memref<4x1x32xbf16, #tpu.memory_space<vmem>>, vector<1x1x32xbf16>
    %28 = vector.shape_cast %27 : vector<1x1x32xbf16> to vector<1x32xbf16>
    %c3_28 = arith.constant 3 : index
    %c0_29 = arith.constant 0 : index
    %c0_30 = arith.constant 0 : index
    %29 = vector.load %arg1[%c3_28, %c0_29, %c0_30] : memref<4x32x1024xbf16, #tpu.memory_space<vmem>>, vector<1x32x1024xbf16>
    %30 = vector.shape_cast %29 : vector<1x32x1024xbf16> to vector<32x1024xbf16>
    %cst_31 = arith.constant dense<0.000000e+00> : vector<1x1024xf32>
    %31 = tpu.matmul %28, %30, %cst_31 {dimension_numbers = #tpu.dot_dimension_numbers<[1], [0], [0], [1], [0, 0, 1, 1], [], []>} : vector<1x32xbf16>, vector<32x1024xbf16>, vector<1x1024xf32> -> vector<1x1024xf32>
    %32 = math.tanh %31 : vector<1x1024xf32>
    %c3_32 = arith.constant 3 : index
    %c0_33 = arith.constant 0 : index
    %c0_34 = arith.constant 0 : index
    %33 = vector.load %arg3[%c3_32, %c0_33, %c0_34] : memref<4x1x1024xf32, #tpu.memory_space<vmem>>, vector<1x1x1024xf32>
    %34 = vector.shape_cast %33 : vector<1x1x1024xf32> to vector<1x1024xf32>
    %35 = vector.shape_cast %32 : vector<1x1024xf32> to vector<1x1x1024xf32>
    tpu.vector_store %arg3[%c3_32, %c0_33, %c0_34], %35 {strides = array<i32>} : memref<4x1x1024xf32, #tpu.memory_space<vmem>>, vector<1x1x1024xf32>,
    return
  }
  func.func @transform_0(%arg0: i32) -> (i32, i32, i32) {
    %c0_i32 = arith.constant 0 : i32
    %c0_i32_0 = arith.constant 0 : i32
    %c0_i32_1 = arith.constant 0 : i32
    return %c0_i32, %c0_i32_0, %arg0 : i32, i32, i32
  }
  func.func @transform_1(%arg0: i32) -> (i32, i32, i32) {
    %c0_i32 = arith.constant 0 : i32
    %c0_i32_0 = arith.constant 0 : i32
    %c0_i32_1 = arith.constant 0 : i32
    %c0_i32_2 = arith.constant 0 : i32
    return %c0_i32, %c0_i32_0, %c0_i32_1 : i32, i32, i32
  }
  func.func @transform_2(%arg0: i32) -> (i32, i32, i32) {
    %c0_i32 = arith.constant 0 : i32
    %c0_i32_0 = arith.constant 0 : i32
    %c0_i32_1 = arith.constant 0 : i32
    return %c0_i32, %c0_i32_0, %arg0 : i32, i32, i32
  }
}

</mosaic_0001>

<llo_original>
// kernel: generator_64_forward.5
$region0: #{generator_64_forward.5}
  #allocation0 [shape = 'u32[]', space=smem, size = 0x4, offset = 0x4, fixed_abs, tag = 'smem constant byte address 0x4 - core index']
  #allocation1 [shape = 'u32[72,128]{1,0:T(1,128)}', space=vmem, size = 0x9000, scoped, tag = 'internal scratch']
  %s0 = inlined_call_operand.vmem [shape: bf16[16,16,2], index: 0, kind: input, shape index: {}]
  %s1 = inlined_call_operand.vmem [shape: bf16[16,64,16], index: 1, kind: input, shape index: {}]
  %s2 = inlined_call_operand.vmem [shape: f32[64,1], index: 2, kind: input, shape index: {}]
  %s3 = inlined_call_operand.vmem [shape: f32[64,1], index: 3, kind: input, shape index: {}]
  %s4 = inlined_call_operand.vmem [shape: bf16[16,64,2], index: 4, kind: output, shape index: {}]
  %s5 = sld [smem:[#allocation0]]
  $region26: #{generator_64_forward.5} parent=0
    _
  %s7 = ssub.s32 1, %s5
  %s8 = scalar_select 0, %s7, %s5
  // Predicated region
  $region2: #{generator_64_forward.5} parent=0 // pred_check
    _
  $region3: #{generator_64_forward.5} parent=0 // pred_check_branch
    %10 = sbr.rel (0) target = $region5
  $region4: #{generator_64_forward.5} parent=0 // pred_region
    _
  $region5: #{generator_64_forward.5} parent=0 // pred_fallthru
    _
  // Predicated region
  $region6: #{generator_64_forward.5} parent=0 // pred_check
    _
  $region7: #{generator_64_forward.5} parent=0 // pred_check_branch
    %12 = sbr.rel (0) target = $region9
  $region8: #{generator_64_forward.5} parent=0 // pred_region
    _
  $region9: #{generator_64_forward.5} parent=0 // pred_fallthru
    _
  // Predicated region
  $region10: #{generator_64_forward.5} parent=0 // pred_check
    _
  $region11: #{generator_64_forward.5} parent=0 // pred_check_branch
    %14 = sbr.rel (0) target = $region13
  $region12: #{generator_64_forward.5} parent=0 // pred_region
    _
  $region13: #{generator_64_forward.5} parent=0 // pred_fallthru
    _
  // Predicated region
  $region14: #{generator_64_forward.5} parent=0 // pred_check
    _
  $region15: #{generator_64_forward.5} parent=0 // pred_check_branch
    %16 = sbr.rel (0) target = $region17
  $region16: #{generator_64_forward.5} parent=0 // pred_region
    _
  $region17: #{generator_64_forward.5} parent=0 // pred_fallthru
    _
  %v18 = vld [vmem:[%s1] sm:$0xf]
  %v19 = vld [vmem:[%s1 + $0x4] sm:$0xf]
  %v20 = vld [vmem:[%s1 + $0x8] sm:$0xf]
  %v21 = vld [vmem:[%s1 + $0xc] sm:$0xf]
  %v22 = vld [vmem:[%s1 + $0x10] sm:$0xf]
  %v23 = vld [vmem:[%s1 + $0x14] sm:$0xf]
  %v24 = vld [vmem:[%s1 + $0x18] sm:$0xf]
  %v25 = vld [vmem:[%s1 + $0x1c] sm:$0xf]
  %v26 = vld [vmem:[%s0] sm:$0xf]
  %v27 = vld [vmem:[%s0 + $0x4] sm:$0xf]
  %v36 = vunpack.c.l.b16 %v18
  %v37 = vunpack.c.l.b16 %v19
  %v38 = vunpack.c.l.b16 %v20
  %v39 = vunpack.c.l.b16 %v21
  %v40 = vunpack.c.l.b16 %v22
  %v41 = vunpack.c.l.b16 %v23
  %v42 = vunpack.c.l.b16 %v24
  %v43 = vunpack.c.l.b16 %v25
  %v44 = vpack.c.b16 %v37, %v36
  %v45 = vpack.c.b16 %v39, %v38
  %v46 = vpack.c.b16 %v41, %v40
  %v47 = vpack.c.b16 %v43, %v42
  %v50 = vunpack.c.l.b16 %v26
  %v51 = vunpack.c.l.b16 %v27
  %v52 = vpack.c.b16 %v51, %v50
  %vm54 = vcmask 130048
  %v56 = vsel %vm54, %v44, 0
  %v59 = vsel %vm54, %v45, 0
  %v62 = vsel %vm54, %v46, 0
  %v65 = vsel %vm54, %v47, 0
  %67 = vmatpush.bf16.msra.mxu0 0
  %68 = vmatpush.bf16.msra.mxu0 0
  %69 = vmatpush.bf16.msra.mxu0 0
  %70 = vmatpush.bf16.msra.mxu0 0
  %71 = vmatpush.bf16.msra.mxu0 0
  %72 = vmatpush.bf16.msra.mxu0 0
  %73 = vmatpush.bf16.msra.mxu0 0
  %74 = vmatpush.bf16.msra.mxu0 %v52
  %75 = vmatmul.bf16.gmra.mxu0 %v56
  %v76 = vpop.f32.mrf.mxu0
  %v77 = vadd.f32 0.0, %v76
  %v78 = vpop.f32.mrf.mxu0
  %v79 = vadd.f32 0.0, %v78
  %80 = vmatmul.bf16.gmra.mxu0 %v59
  %v81 = vpop.f32.mrf.mxu0
  %v82 = vadd.f32 0.0, %v81
  %v83 = vpop.f32.mrf.mxu0
  %v84 = vadd.f32 0.0, %v83
  %85 = vmatmul.bf16.gmra.mxu0 %v62
  %v86 = vpop.f32.mrf.mxu0
  %v87 = vadd.f32 0.0, %v86
  %v88 = vpop.f32.mrf.mxu0
  %v89 = vadd.f32 0.0, %v88
  %90 = vmatmul.bf16.gmra.mxu0 %v65
  %v91 = vpop.f32.mrf.mxu0
  %v92 = vadd.f32 0.0, %v91
  %v93 = vpop.f32.mrf.mxu0
  %v94 = vadd.f32 0.0, %v93
  %95 = vdwg.mxu0
  %s96 = scalar_lea.vmem %s1, 32
  %v97 = vld [vmem:[%s96] sm:$0xf]
  %v98 = vld [vmem:[%s96 + $0x4] sm:$0xf]
  %v99 = vld [vmem:[%s96 + $0x8] sm:$0xf]
  %v100 = vld [vmem:[%s96 + $0xc] sm:$0xf]
  %v101 = vld [vmem:[%s96 + $0x10] sm:$0xf]
  %v102 = vld [vmem:[%s96 + $0x14] sm:$0xf]
  %v103 = vld [vmem:[%s96 + $0x18] sm:$0xf]
  %v104 = vld [vmem:[%s96 + $0x1c] sm:$0xf]
  %s105 = scalar_lea.vmem %s0, 8
  %v106 = vld [vmem:[%s105] sm:$0xf]
  %v107 = vld [vmem:[%s105 + $0x4] sm:$0xf]
  %v116 = vunpack.c.l.b16 %v97
  %v117 = vunpack.c.l.b16 %v98
  %v118 = vunpack.c.l.b16 %v99
  %v119 = vunpack.c.l.b16 %v100
  %v120 = vunpack.c.l.b16 %v101
  %v121 = vunpack.c.l.b16 %v102
  %v122 = vunpack.c.l.b16 %v103
  %v123 = vunpack.c.l.b16 %v104
  %v124 = vpack.c.b16 %v117, %v116
  %v125 = vpack.c.b16 %v119, %v118
  %v126 = vpack.c.b16 %v121, %v120
  %v127 = vpack.c.b16 %v123, %v122
  %v130 = vunpack.c.l.b16 %v106
  %v131 = vunpack.c.l.b16 %v107
  %v132 = vpack.c.b16 %v131, %v130
  %v135 = vsel %vm54, %v124, 0
  %v138 = vsel %vm54, %v125, 0
  %v141 = vsel %vm54, %v126, 0
  %v144 = vsel %vm54, %v127, 0
  %146 = vmatpush.bf16.msra.mxu0 0
  %147 = vmatpush.bf16.msra.mxu0 0
  %148 = vmatpush.bf16.msra.mxu0 0
  %149 = vmatpush.bf16.msra.mxu0 0
  %150 = vmatpush.bf16.msra.mxu0 0
  %151 = vmatpush.bf16.msra.mxu0 0
  %152 = vmatpush.bf16.msra.mxu0 0
  %153 = vmatpush.bf16.msra.mxu0 %v132
  %154 = vmatmul.bf16.gmra.mxu0 %v135
  %v155 = vpop.f32.mrf.mxu0
  %v156 = vadd.f32 0.0, %v155
  %v157 = vpop.f32.mrf.mxu0
  %v158 = vadd.f32 0.0, %v157
  %159 = vmatmul.bf16.gmra.mxu0 %v138
  %v160 = vpop.f32.mrf.mxu0
  %v161 = vadd.f32 0.0, %v160
  %v162 = vpop.f32.mrf.mxu0
  %v163 = vadd.f32 0.0, %v162
  %164 = vmatmul.bf16.gmra.mxu0 %v141
  %v165 = vpop.f32.mrf.mxu0
  %v166 = vadd.f32 0.0, %v165
  %v167 = vpop.f32.mrf.mxu0
  %v168 = vadd.f32 0.0, %v167
  %169 = vmatmul.bf16.gmra.mxu0 %v144
  %v170 = vpop.f32.mrf.mxu0
  %v171 = vadd.f32 0.0, %v170
  %v172 = vpop.f32.mrf.mxu0
  %v173 = vadd.f32 0.0, %v172
  %174 = vdwg.mxu0
  %s175 = scalar_lea.vmem %s1, 64
  %v176 = vld [vmem:[%s175] sm:$0xf]
  %v177 = vld [vmem:[%s175 + $0x4] sm:$0xf]
  %v178 = vld [vmem:[%s175 + $0x8] sm:$0xf]
  %v179 = vld [vmem:[%s175 + $0xc] sm:$0xf]
  %v180 = vld [vmem:[%s175 + $0x10] sm:$0xf]
  %v181 = vld [vmem:[%s175 + $0x14] sm:$0xf]
  %v182 = vld [vmem:[%s175 + $0x18] sm:$0xf]
  %v183 = vld [vmem:[%s175 + $0x1c] sm:$0xf]
  %s184 = scalar_lea.vmem %s0, 16
  %v185 = vld [vmem:[%s184] sm:$0xf]
  %v186 = vld [vmem:[%s184 + $0x4] sm:$0xf]
  %v195 = vunpack.c.l.b16 %v176
  %v196 = vunpack.c.l.b16 %v177
  %v197 = vunpack.c.l.b16 %v178
  %v198 = vunpack.c.l.b16 %v179
  %v199 = vunpack.c.l.b16 %v180
  %v200 = vunpack.c.l.b16 %v181
  %v201 = vunpack.c.l.b16 %v182
  %v202 = vunpack.c.l.b16 %v183
  %v203 = vpack.c.b16 %v196, %v195
  %v204 = vpack.c.b16 %v198, %v197
  %v205 = vpack.c.b16 %v200, %v199
  %v206 = vpack.c.b16 %v202, %v201
  %v209 = vunpack.c.l.b16 %v185
  %v210 = vunpack.c.l.b16 %v186
  %v211 = vpack.c.b16 %v210, %v209
  %v214 = vsel %vm54, %v203, 0
  %v217 = vsel %vm54, %v204, 0
  %v220 = vsel %vm54, %v205, 0
  %v223 = vsel %vm54, %v206, 0
  %225 = vmatpush.bf16.msra.mxu0 0
  %226 = vmatpush.bf16.msra.mxu0 0
  %227 = vmatpush.bf16.msra.mxu0 0
  %228 = vmatpush.bf16.msra.mxu0 0
  %229 = vmatpush.bf16.msra.mxu0 0
  %230 = vmatpush.bf16.msra.mxu0 0
  %231 = vmatpush.bf16.msra.mxu0 0
  %232 = vmatpush.bf16.msra.mxu0 %v211
  %233 = vmatmul.bf16.gmra.mxu0 %v214
  %v234 = vpop.f32.mrf.mxu0
  %v235 = vadd.f32 0.0, %v234
  %v236 = vpop.f32.mrf.mxu0
  %v237 = vadd.f32 0.0, %v236
  %238 = vmatmul.bf16.gmra.mxu0 %v217
  %v239 = vpop.f32.mrf.mxu0
  %v240 = vadd.f32 0.0, %v239
  %v241 = vpop.f32.mrf.mxu0
  %v242 = vadd.f32 0.0, %v241
  %243 = vmatmul.bf16.gmra.mxu0 %v220
  %v244 = vpop.f32.mrf.mxu0
  %v245 = vadd.f32 0.0, %v244
  %v246 = vpop.f32.mrf.mxu0
  %v247 = vadd.f32 0.0, %v246
  %248 = vmatmul.bf16.gmra.mxu0 %v223
  %v249 = vpop.f32.mrf.mxu0
  %v250 = vadd.f32 0.0, %v249
  %v251 = vpop.f32.mrf.mxu0
  %v252 = vadd.f32 0.0, %v251
  %253 = vdwg.mxu0
  %s254 = scalar_lea.vmem %s1, 96
  %v255 = vld [vmem:[%s254] sm:$0xf]
  %v256 = vld [vmem:[%s254 + $0x4] sm:$0xf]
  %v257 = vld [vmem:[%s254 + $0x8] sm:$0xf]
  %v258 = vld [vmem:[%s254 + $0xc] sm:$0xf]
  %v259 = vld [vmem:[%s254 + $0x10] sm:$0xf]
  %v260 = vld [vmem:[%s254 + $0x14] sm:$0xf]
  %v261 = vld [vmem:[%s254 + $0x18] sm:$0xf]
  %v262 = vld [vmem:[%s254 + $0x1c] sm:$0xf]
  %s263 = scalar_lea.vmem %s0, 24
  %v264 = vld [vmem:[%s263] sm:$0xf]
  %v265 = vld [vmem:[%s263 + $0x4] sm:$0xf]
  %v274 = vunpack.c.l.b16 %v255
  %v275 = vunpack.c.l.b16 %v256
  %v276 = vunpack.c.l.b16 %v257
  %v277 = vunpack.c.l.b16 %v258
  %v278 = vunpack.c.l.b16 %v259
  %v279 = vunpack.c.l.b16 %v260
  %v280 = vunpack.c.l.b16 %v261
  %v281 = vunpack.c.l.b16 %v262
  %v282 = vpack.c.b16 %v275, %v274
  %v283 = vpack.c.b16 %v277, %v276
  %v284 = vpack.c.b16 %v279, %v278
  %v285 = vpack.c.b16 %v281, %v280
  %v288 = vunpack.c.l.b16 %v264
  %v289 = vunpack.c.l.b16 %v265
  %v290 = vpack.c.b16 %v289, %v288
  %v293 = vsel %vm54, %v282, 0
  %v296 = vsel %vm54, %v283, 0
  %v299 = vsel %vm54, %v284, 0
  %v302 = vsel %vm54, %v285, 0
  %304 = vmatpush.bf16.msra.mxu0 0
  %305 = vmatpush.bf16.msra.mxu0 0
  %306 = vmatpush.bf16.msra.mxu0 0
  %307 = vmatpush.bf16.msra.mxu0 0
  %308 = vmatpush.bf16.msra.mxu0 0
  %309 = vmatpush.bf16.msra.mxu0 0
  %310 = vmatpush.bf16.msra.mxu0 0
  %311 = vmatpush.bf16.msra.mxu0 %v290
  %312 = vmatmul.bf16.gmra.mxu0 %v293
  %v313 = vpop.f32.mrf.mxu0
  %v314 = vadd.f32 0.0, %v313
  %v315 = vpop.f32.mrf.mxu0
  %v316 = vadd.f32 0.0, %v315
  %317 = vmatmul.bf16.gmra.mxu0 %v296
  %v318 = vpop.f32.mrf.mxu0
  %v319 = vadd.f32 0.0, %v318
  %v320 = vpop.f32.mrf.mxu0
  %v321 = vadd.f32 0.0, %v320
  %322 = vmatmul.bf16.gmra.mxu0 %v299
  %v323 = vpop.f32.mrf.mxu0
  %v324 = vadd.f32 0.0, %v323
  %v325 = vpop.f32.mrf.mxu0
  %v326 = vadd.f32 0.0, %v325
  %327 = vmatmul.bf16.gmra.mxu0 %v302
  %v328 = vpop.f32.mrf.mxu0
  %v329 = vadd.f32 0.0, %v328
  %v330 = vpop.f32.mrf.mxu0
  %v331 = vadd.f32 0.0, %v330
  %332 = vdwg.mxu0
  %s333 = scalar_lea.vmem %s1, 128
  %v334 = vld [vmem:[%s333] sm:$0xf]
  %v335 = vld [vmem:[%s333 + $0x4] sm:$0xf]
  %v336 = vld [vmem:[%s333 + $0x8] sm:$0xf]
  %v337 = vld [vmem:[%s333 + $0xc] sm:$0xf]
  %v338 = vld [vmem:[%s333 + $0x10] sm:$0xf]
  %v339 = vld [vmem:[%s333 + $0x14] sm:$0xf]
  %v340 = vld [vmem:[%s333 + $0x18] sm:$0xf]
  %v341 = vld [vmem:[%s333 + $0x1c] sm:$0xf]
  %s342 = scalar_lea.vmem %s0, 32
  %v343 = vld [vmem:[%s342] sm:$0xf]
  %v344 = vld [vmem:[%s342 + $0x4] sm:$0xf]
  %v353 = vunpack.c.l.b16 %v334
  %v354 = vunpack.c.l.b16 %v335
  %v355 = vunpack.c.l.b16 %v336
  %v356 = vunpack.c.l.b16 %v337
  %v357 = vunpack.c.l.b16 %v338
  %v358 = vunpack.c.l.b16 %v339
  %v359 = vunpack.c.l.b16 %v340
  %v360 = vunpack.c.l.b16 %v341
  %v361 = vpack.c.b16 %v354, %v353
  %v362 = vpack.c.b16 %v356, %v355
  %v363 = vpack.c.b16 %v358, %v357
  %v364 = vpack.c.b16 %v360, %v359
  %v367 = vunpack.c.l.b16 %v343
  %v368 = vunpack.c.l.b16 %v344
  %v369 = vpack.c.b16 %v368, %v367
  %v372 = vsel %vm54, %v361, 0
  %v375 = vsel %vm54, %v362, 0
  %v378 = vsel %vm54, %v363, 0
  %v381 = vsel %vm54, %v364, 0
  %383 = vmatpush.bf16.msra.mxu0 0
  %384 = vmatpush.bf16.msra.mxu0 0
  %385 = vmatpush.bf16.msra.mxu0 0
  %386 = vmatpush.bf16.msra.mxu0 0
  %387 = vmatpush.bf16.msra.mxu0 0
  %388 = vmatpush.bf16.msra.mxu0 0
  %389 = vmatpush.bf16.msra.mxu0 0
  %390 = vmatpush.bf16.msra.mxu0 %v369
  %391 = vmatmul.bf16.gmra.mxu0 %v372
  %v392 = vpop.f32.mrf.mxu0
  %v393 = vadd.f32 0.0, %v392
  %v394 = vpop.f32.mrf.mxu0
  %v395 = vadd.f32 0.0, %v394
  %396 = vmatmul.bf16.gmra.mxu0 %v375
  %v397 = vpop.f32.mrf.mxu0
  %v398 = vadd.f32 0.0, %v397
  %v399 = vpop.f32.mrf.mxu0
  %v400 = vadd.f32 0.0, %v399
  %401 = vmatmul.bf16.gmra.mxu0 %v378
  %v402 = vpop.f32.mrf.mxu0
  %v403 = vadd.f32 0.0, %v402
  %v404 = vpop.f32.mrf.mxu0
  %v405 = vadd.f32 0.0, %v404
  %406 = vmatmul.bf16.gmra.mxu0 %v381
  %v407 = vpop.f32.mrf.mxu0
  %v408 = vadd.f32 0.0, %v407
  %v409 = vpop.f32.mrf.mxu0
  %v410 = vadd.f32 0.0, %v409
  %411 = vdwg.mxu0
  %s412 = scalar_lea.vmem %s1, 160
  %v413 = vld [vmem:[%s412] sm:$0xf]
  %v414 = vld [vmem:[%s412 + $0x4] sm:$0xf]
  %v415 = vld [vmem:[%s412 + $0x8] sm:$0xf]
  %v416 = vld [vmem:[%s412 + $0xc] sm:$0xf]
  %v417 = vld [vmem:[%s412 + $0x10] sm:$0xf]
  %v418 = vld [vmem:[%s412 + $0x14] sm:$0xf]
  %v419 = vld [vmem:[%s412 + $0x18] sm:$0xf]
  %v420 = vld [vmem:[%s412 + $0x1c] sm:$0xf]
  %s421 = scalar_lea.vmem %s0, 40
  %v422 = vld [vmem:[%s421] sm:$0xf]
  %v423 = vld [vmem:[%s421 + $0x4] sm:$0xf]
  %v432 = vunpack.c.l.b16 %v413
  %v433 = vunpack.c.l.b16 %v414
  %v434 = vunpack.c.l.b16 %v415
  %v435 = vunpack.c.l.b16 %v416
  %v436 = vunpack.c.l.b16 %v417
  %v437 = vunpack.c.l.b16 %v418
  %v438 = vunpack.c.l.b16 %v419
  %v439 = vunpack.c.l.b16 %v420
  %v440 = vpack.c.b16 %v433, %v432
  %v441 = vpack.c.b16 %v435, %v434
  %v442 = vpack.c.b16 %v437, %v436
  %v443 = vpack.c.b16 %v439, %v438
  %v446 = vunpack.c.l.b16 %v422
  %v447 = vunpack.c.l.b16 %v423
  %v448 = vpack.c.b16 %v447, %v446
  %v451 = vsel %vm54, %v440, 0
  %v454 = vsel %vm54, %v441, 0
  %v457 = vsel %vm54, %v442, 0
  %v460 = vsel %vm54, %v443, 0
  %462 = vmatpush.bf16.msra.mxu0 0
  %463 = vmatpush.bf16.msra.mxu0 0
  %464 = vmatpush.bf16.msra.mxu0 0
  %465 = vmatpush.bf16.msra.mxu0 0
  %466 = vmatpush.bf16.msra.mxu0 0
  %467 = vmatpush.bf16.msra.mxu0 0
  %468 = vmatpush.bf16.msra.mxu0 0
  %469 = vmatpush.bf16.msra.mxu0 %v448
  %470 = vmatmul.bf16.gmra.mxu0 %v451
  %v471 = vpop.f32.mrf.mxu0
  %v472 = vadd.f32 0.0, %v471
  %v473 = vpop.f32.mrf.mxu0
  %v474 = vadd.f32 0.0, %v473
  %475 = vmatmul.bf16.gmra.mxu0 %v454
  %v476 = vpop.f32.mrf.mxu0
  %v477 = vadd.f32 0.0, %v476
  %v478 = vpop.f32.mrf.mxu0
  %v479 = vadd.f32 0.0, %v478
  %480 = vmatmul.bf16.gmra.mxu0 %v457
  %v481 = vpop.f32.mrf.mxu0
  %v482 = vadd.f32 0.0, %v481
  %v483 = vpop.f32.mrf.mxu0
  %v484 = vadd.f32 0.0, %v483
  %485 = vmatmul.bf16.gmra.mxu0 %v460
  %v486 = vpop.f32.mrf.mxu0
  %v487 = vadd.f32 0.0, %v486
  %v488 = vpop.f32.mrf.mxu0
  %v489 = vadd.f32 0.0, %v488
  %490 = vdwg.mxu0
  %s491 = scalar_lea.vmem %s1, 192
  %v492 = vld [vmem:[%s491] sm:$0xf]
  %v493 = vld [vmem:[%s491 + $0x4] sm:$0xf]
  %v494 = vld [vmem:[%s491 + $0x8] sm:$0xf]
  %v495 = vld [vmem:[%s491 + $0xc] sm:$0xf]
  %v496 = vld [vmem:[%s491 + $0x10] sm:$0xf]
  %v497 = vld [vmem:[%s491 + $0x14] sm:$0xf]
  %v498 = vld [vmem:[%s491 + $0x18] sm:$0xf]
  %v499 = vld [vmem:[%s491 + $0x1c] sm:$0xf]
  %s500 = scalar_lea.vmem %s0, 48
  %v501 = vld [vmem:[%s500] sm:$0xf]
  %v502 = vld [vmem:[%s500 + $0x4] sm:$0xf]
  %v511 = vunpack.c.l.b16 %v492
  %v512 = vunpack.c.l.b16 %v493
  %v513 = vunpack.c.l.b16 %v494
  %v514 = vunpack.c.l.b16 %v495
  %v515 = vunpack.c.l.b16 %v496
  %v516 = vunpack.c.l.b16 %v497
  %v517 = vunpack.c.l.b16 %v498
  %v518 = vunpack.c.l.b16 %v499
  %v519 = vpack.c.b16 %v512, %v511
  %v520 = vpack.c.b16 %v514, %v513
  %v521 = vpack.c.b16 %v516, %v515
  %v522 = vpack.c.b16 %v518, %v517
  %v525 = vunpack.c.l.b16 %v501
  %v526 = vunpack.c.l.b16 %v502
  %v527 = vpack.c.b16 %v526, %v525
  %v530 = vsel %vm54, %v519, 0
  %v533 = vsel %vm54, %v520, 0
  %v536 = vsel %vm54, %v521, 0
  %v539 = vsel %vm54, %v522, 0
  %541 = vmatpush.bf16.msra.mxu0 0
  %542 = vmatpush.bf16.msra.mxu0 0
  %543 = vmatpush.bf16.msra.mxu0 0
  %544 = vmatpush.bf16.msra.mxu0 0
  %545 = vmatpush.bf16.msra.mxu0 0
  %546 = vmatpush.bf16.msra.mxu0 0
  %547 = vmatpush.bf16.msra.mxu0 0
  %548 = vmatpush.bf16.msra.mxu0 %v527
  %549 = vmatmul.bf16.gmra.mxu0 %v530
  %v550 = vpop.f32.mrf.mxu0
  %v551 = vadd.f32 0.0, %v550
  %v552 = vpop.f32.mrf.mxu0
  %v553 = vadd.f32 0.0, %v552
  %554 = vmatmul.bf16.gmra.mxu0 %v533
  %v555 = vpop.f32.mrf.mxu0
  %v556 = vadd.f32 0.0, %v555
  %v557 = vpop.f32.mrf.mxu0
  %v558 = vadd.f32 0.0, %v557
  %559 = vmatmul.bf16.gmra.mxu0 %v536
  %v560 = vpop.f32.mrf.mxu0
  %v561 = vadd.f32 0.0, %v560
  %v562 = vpop.f32.mrf.mxu0
  %v563 = vadd.f32 0.0, %v562
  %564 = vmatmul.bf16.gmra.mxu0 %v539
  %v565 = vpop.f32.mrf.mxu0
  %v566 = vadd.f32 0.0, %v565
  %v567 = vpop.f32.mrf.mxu0
  %v568 = vadd.f32 0.0, %v567
  %569 = vdwg.mxu0
  %s570 = scalar_lea.vmem %s1, 224
  %v571 = vld [vmem:[%s570] sm:$0xf]
  %v572 = vld [vmem:[%s570 + $0x4] sm:$0xf]
  %v573 = vld [vmem:[%s570 + $0x8] sm:$0xf]
  %v574 = vld [vmem:[%s570 + $0xc] sm:$0xf]
  %v575 = vld [vmem:[%s570 + $0x10] sm:$0xf]
  %v576 = vld [vmem:[%s570 + $0x14] sm:$0xf]
  %v577 = vld [vmem:[%s570 + $0x18] sm:$0xf]
  %v578 = vld [vmem:[%s570 + $0x1c] sm:$0xf]
  %s579 = scalar_lea.vmem %s0, 56
  %v580 = vld [vmem:[%s579] sm:$0xf]
  %v581 = vld [vmem:[%s579 + $0x4] sm:$0xf]
  %v590 = vunpack.c.l.b16 %v571
  %v591 = vunpack.c.l.b16 %v572
  %v592 = vunpack.c.l.b16 %v573
  %v593 = vunpack.c.l.b16 %v574
  %v594 = vunpack.c.l.b16 %v575
  %v595 = vunpack.c.l.b16 %v576
  %v596 = vunpack.c.l.b16 %v577
  %v597 = vunpack.c.l.b16 %v578
  %v598 = vpack.c.b16 %v591, %v590
  %v599 = vpack.c.b16 %v593, %v592
  %v600 = vpack.c.b16 %v595, %v594
  %v601 = vpack.c.b16 %v597, %v596
  %v604 = vunpack.c.l.b16 %v580
  %v605 = vunpack.c.l.b16 %v581
  %v606 = vpack.c.b16 %v605, %v604
  %v609 = vsel %vm54, %v598, 0
  %v612 = vsel %vm54, %v599, 0
  %v615 = vsel %vm54, %v600, 0
  %v618 = vsel %vm54, %v601, 0
  %620 = vmatpush.bf16.msra.mxu0 0
  %621 = vmatpush.bf16.msra.mxu0 0
  %622 = vmatpush.bf16.msra.mxu0 0
  %623 = vmatpush.bf16.msra.mxu0 0
  %624 = vmatpush.bf16.msra.mxu0 0
  %625 = vmatpush.bf16.msra.mxu0 0
  %626 = vmatpush.bf16.msra.mxu0 0
  %627 = vmatpush.bf16.msra.mxu0 %v606
  %628 = vmatmul.bf16.gmra.mxu0 %v609
  %v629 = vpop.f32.mrf.mxu0
  %v630 = vadd.f32 0.0, %v629
  %v631 = vpop.f32.mrf.mxu0
  %v632 = vadd.f32 0.0, %v631
  %633 = vmatmul.bf16.gmra.mxu0 %v612
  %v634 = vpop.f32.mrf.mxu0
  %v635 = vadd.f32 0.0, %v634
  %v636 = vpop.f32.mrf.mxu0
  %v637 = vadd.f32 0.0, %v636
  %638 = vmatmul.bf16.gmra.mxu0 %v615
  %v639 = vpop.f32.mrf.mxu0
  %v640 = vadd.f32 0.0, %v639
  %v641 = vpop.f32.mrf.mxu0
  %v642 = vadd.f32 0.0, %v641
  %643 = vmatmul.bf16.gmra.mxu0 %v618
  %v644 = vpop.f32.mrf.mxu0
  %v645 = vadd.f32 0.0, %v644
  %v646 = vpop.f32.mrf.mxu0
  %v647 = vadd.f32 0.0, %v646
  %648 = vdwg.mxu0
  %s649 = scalar_lea.vmem %s1, 256
  %v650 = vld [vmem:[%s649] sm:$0xf]
  %v651 = vld [vmem:[%s649 + $0x4] sm:$0xf]
  %v652 = vld [vmem:[%s649 + $0x8] sm:$0xf]
  %v653 = vld [vmem:[%s649 + $0xc] sm:$0xf]
  %v654 = vld [vmem:[%s649 + $0x10] sm:$0xf]
  %v655 = vld [vmem:[%s649 + $0x14] sm:$0xf]
  %v656 = vld [vmem:[%s649 + $0x18] sm:$0xf]
  %v657 = vld [vmem:[%s649 + $0x1c] sm:$0xf]
  %s658 = scalar_lea.vmem %s0, 64
  %v659 = vld [vmem:[%s658] sm:$0xf]
  %v660 = vld [vmem:[%s658 + $0x4] sm:$0xf]
  %v669 = vunpack.c.l.b16 %v650
  %v670 = vunpack.c.l.b16 %v651
  %v671 = vunpack.c.l.b16 %v652
  %v672 = vunpack.c.l.b16 %v653
  %v673 = vunpack.c.l.b16 %v654
  %v674 = vunpack.c.l.b16 %v655
  %v675 = vunpack.c.l.b16 %v656
  %v676 = vunpack.c.l.b16 %v657
  %v677 = vpack.c.b16 %v670, %v669
  %v678 = vpack.c.b16 %v672, %v671
  %v679 = vpack.c.b16 %v674, %v673
  %v680 = vpack.c.b16 %v676, %v675
  %v683 = vunpack.c.l.b16 %v659
  %v684 = vunpack.c.l.b16 %v660
  %v685 = vpack.c.b16 %v684, %v683
  %v688 = vsel %vm54, %v677, 0
  %v691 = vsel %vm54, %v678, 0
  %v694 = vsel %vm54, %v679, 0
  %v697 = vsel %vm54, %v680, 0
  %699 = vmatpush.bf16.msra.mxu0 0
  %700 = vmatpush.bf16.msra.mxu0 0
  %701 = vmatpush.bf16.msra.mxu0 0
  %702 = vmatpush.bf16.msra.mxu0 0
  %703 = vmatpush.bf16.msra.mxu0 0
  %704 = vmatpush.bf16.msra.mxu0 0
  %705 = vmatpush.bf16.msra.mxu0 0
  %706 = vmatpush.bf16.msra.mxu0 %v685
  %707 = vmatmul.bf16.gmra.mxu0 %v688
  %v708 = vpop.f32.mrf.mxu0
  %v709 = vadd.f32 0.0, %v708
  %v710 = vpop.f32.mrf.mxu0
  %v711 = vadd.f32 0.0, %v710
  %712 = vmatmul.bf16.gmra.mxu0 %v691
  %v713 = vpop.f32.mrf.mxu0
  %v714 = vadd.f32 0.0, %v713
  %v715 = vpop.f32.mrf.mxu0
  %v716 = vadd.f32 0.0, %v715
  %717 = vmatmul.bf16.gmra.mxu0 %v694
  %v718 = vpop.f32.mrf.mxu0
  %v719 = vadd.f32 0.0, %v718
  %v720 = vpop.f32.mrf.mxu0
  %v721 = vadd.f32 0.0, %v720
  %722 = vmatmul.bf16.gmra.mxu0 %v697
  %v723 = vpop.f32.mrf.mxu0
  %v724 = vadd.f32 0.0, %v723
  %v725 = vpop.f32.mrf.mxu0
  %v726 = vadd.f32 0.0, %v725
  %727 = vdwg.mxu0
  %s728 = scalar_lea.vmem %s1, 288
  %v729 = vld [vmem:[%s728] sm:$0xf]
  %v730 = vld [vmem:[%s728 + $0x4] sm:$0xf]
  %v731 = vld [vmem:[%s728 + $0x8] sm:$0xf]
  %v732 = vld [vmem:[%s728 + $0xc] sm:$0xf]
  %v733 = vld [vmem:[%s728 + $0x10] sm:$0xf]
  %v734 = vld [vmem:[%s728 + $0x14] sm:$0xf]
  %v735 = vld [vmem:[%s728 + $0x18] sm:$0xf]
  %v736 = vld [vmem:[%s728 + $0x1c] sm:$0xf]
  %s737 = scalar_lea.vmem %s0, 72
  %v738 = vld [vmem:[%s737] sm:$0xf]
  %v739 = vld [vmem:[%s737 + $0x4] sm:$0xf]
  %v748 = vunpack.c.l.b16 %v729
  %v749 = vunpack.c.l.b16 %v730
  %v750 = vunpack.c.l.b16 %v731
  %v751 = vunpack.c.l.b16 %v732
  %v752 = vunpack.c.l.b16 %v733
  %v753 = vunpack.c.l.b16 %v734
  %v754 = vunpack.c.l.b16 %v735
  %v755 = vunpack.c.l.b16 %v736
  %v756 = vpack.c.b16 %v749, %v748
  %v757 = vpack.c.b16 %v751, %v750
  %v758 = vpack.c.b16 %v753, %v752
  %v759 = vpack.c.b16 %v755, %v754
  %v762 = vunpack.c.l.b16 %v738
  %v763 = vunpack.c.l.b16 %v739
  %v764 = vpack.c.b16 %v763, %v762
  %v767 = vsel %vm54, %v756, 0
  %v770 = vsel %vm54, %v757, 0
  %v773 = vsel %vm54, %v758, 0
  %v776 = vsel %vm54, %v759, 0
  %778 = vmatpush.bf16.msra.mxu0 0
  %779 = vmatpush.bf16.msra.mxu0 0
  %780 = vmatpush.bf16.msra.mxu0 0
  %781 = vmatpush.bf16.msra.mxu0 0
  %782 = vmatpush.bf16.msra.mxu0 0
  %783 = vmatpush.bf16.msra.mxu0 0
  %784 = vmatpush.bf16.msra.mxu0 0
  %785 = vmatpush.bf16.msra.mxu0 %v764
  %786 = vmatmul.bf16.gmra.mxu0 %v767
  %v787 = vpop.f32.mrf.mxu0
  %v788 = vadd.f32 0.0, %v787
  %v789 = vpop.f32.mrf.mxu0
  %v790 = vadd.f32 0.0, %v789
  %791 = vmatmul.bf16.gmra.mxu0 %v770
  %v792 = vpop.f32.mrf.mxu0
  %v793 = vadd.f32 0.0, %v792
  %v794 = vpop.f32.mrf.mxu0
  %v795 = vadd.f32 0.0, %v794
  %796 = vmatmul.bf16.gmra.mxu0 %v773
  %v797 = vpop.f32.mrf.mxu0
  %v798 = vadd.f32 0.0, %v797
  %v799 = vpop.f32.mrf.mxu0
  %v800 = vadd.f32 0.0, %v799
  %801 = vmatmul.bf16.gmra.mxu0 %v776
  %v802 = vpop.f32.mrf.mxu0
  %v803 = vadd.f32 0.0, %v802
  %v804 = vpop.f32.mrf.mxu0
  %v805 = vadd.f32 0.0, %v804
  %806 = vdwg.mxu0
  %s807 = scalar_lea.vmem %s1, 320
  %v808 = vld [vmem:[%s807] sm:$0xf]
  %v809 = vld [vmem:[%s807 + $0x4] sm:$0xf]
  %v810 = vld [vmem:[%s807 + $0x8] sm:$0xf]
  %v811 = vld [vmem:[%s807 + $0xc] sm:$0xf]
  %v812 = vld [vmem:[%s807 + $0x10] sm:$0xf]
  %v813 = vld [vmem:[%s807 + $0x14] sm:$0xf]
  %v814 = vld [vmem:[%s807 + $0x18] sm:$0xf]
  %v815 = vld [vmem:[%s807 + $0x1c] sm:$0xf]
  %s816 = scalar_lea.vmem %s0, 80
  %v817 = vld [vmem:[%s816] sm:$0xf]
  %v818 = vld [vmem:[%s816 + $0x4] sm:$0xf]
  %v827 = vunpack.c.l.b16 %v808
  %v828 = vunpack.c.l.b16 %v809
  %v829 = vunpack.c.l.b16 %v810
  %v830 = vunpack.c.l.b16 %v811
  %v831 = vunpack.c.l.b16 %v812
  %v832 = vunpack.c.l.b16 %v813
  %v833 = vunpack.c.l.b16 %v814
  %v834 = vunpack.c.l.b16 %v815
  %v835 = vpack.c.b16 %v828, %v827
  %v836 = vpack.c.b16 %v830, %v829
  %v837 = vpack.c.b16 %v832, %v831
  %v838 = vpack.c.b16 %v834, %v833
  %v841 = vunpack.c.l.b16 %v817
  %v842 = vunpack.c.l.b16 %v818
  %v843 = vpack.c.b16 %v842, %v841
  %v846 = vsel %vm54, %v835, 0
  %v849 = vsel %vm54, %v836, 0
  %v852 = vsel %vm54, %v837, 0
  %v855 = vsel %vm54, %v838, 0
  %857 = vmatpush.bf16.msra.mxu0 0
  %858 = vmatpush.bf16.msra.mxu0 0
  %859 = vmatpush.bf16.msra.mxu0 0
  %860 = vmatpush.bf16.msra.mxu0 0
  %861 = vmatpush.bf16.msra.mxu0 0
  %862 = vmatpush.bf16.msra.mxu0 0
  %863 = vmatpush.bf16.msra.mxu0 0
  %864 = vmatpush.bf16.msra.mxu0 %v843
  %865 = vmatmul.bf16.gmra.mxu0 %v846
  %v866 = vpop.f32.mrf.mxu0
  %v867 = vadd.f32 0.0, %v866
  %v868 = vpop.f32.mrf.mxu0
  %v869 = vadd.f32 0.0, %v868
  %870 = vmatmul.bf16.gmra.mxu0 %v849
  %v871 = vpop.f32.mrf.mxu0
  %v872 = vadd.f32 0.0, %v871
  %v873 = vpop.f32.mrf.mxu0
  %v874 = vadd.f32 0.0, %v873
  %875 = vmatmul.bf16.gmra.mxu0 %v852
  %v876 = vpop.f32.mrf.mxu0
  %v877 = vadd.f32 0.0, %v876
  %v878 = vpop.f32.mrf.mxu0
  %v879 = vadd.f32 0.0, %v878
  %880 = vmatmul.bf16.gmra.mxu0 %v855
  %v881 = vpop.f32.mrf.mxu0
  %v882 = vadd.f32 0.0, %v881
  %v883 = vpop.f32.mrf.mxu0
  %v884 = vadd.f32 0.0, %v883
  %885 = vdwg.mxu0
  %s886 = scalar_lea.vmem %s1, 352
  %v887 = vld [vmem:[%s886] sm:$0xf]
  %v888 = vld [vmem:[%s886 + $0x4] sm:$0xf]
  %v889 = vld [vmem:[%s886 + $0x8] sm:$0xf]
  %v890 = vld [vmem:[%s886 + $0xc] sm:$0xf]
  %v891 = vld [vmem:[%s886 + $0x10] sm:$0xf]
  %v892 = vld [vmem:[%s886 + $0x14] sm:$0xf]
  %v893 = vld [vmem:[%s886 + $0x18] sm:$0xf]
  %v894 = vld [vmem:[%s886 + $0x1c] sm:$0xf]
  %s895 = scalar_lea.vmem %s0, 88
  %v896 = vld [vmem:[%s895] sm:$0xf]
  %v897 = vld [vmem:[%s895 + $0x4] sm:$0xf]
  %v906 = vunpack.c.l.b16 %v887
  %v907 = vunpack.c.l.b16 %v888
  %v908 = vunpack.c.l.b16 %v889
  %v909 = vunpack.c.l.b16 %v890
  %v910 = vunpack.c.l.b16 %v891
  %v911 = vunpack.c.l.b16 %v892
  %v912 = vunpack.c.l.b16 %v893
  %v913 = vunpack.c.l.b16 %v894
  %v914 = vpack.c.b16 %v907, %v906
  %v915 = vpack.c.b16 %v909, %v908
  %v916 = vpack.c.b16 %v911, %v910
  %v917 = vpack.c.b16 %v913, %v912
  %v920 = vunpack.c.l.b16 %v896
  %v921 = vunpack.c.l.b16 %v897
  %v922 = vpack.c.b16 %v921, %v920
  %v925 = vsel %vm54, %v914, 0
  %v928 = vsel %vm54, %v915, 0
  %v931 = vsel %vm54, %v916, 0
  %v934 = vsel %vm54, %v917, 0
  %936 = vmatpush.bf16.msra.mxu0 0
  %937 = vmatpush.bf16.msra.mxu0 0
  %938 = vmatpush.bf16.msra.mxu0 0
  %939 = vmatpush.bf16.msra.mxu0 0
  %940 = vmatpush.bf16.msra.mxu0 0
  %941 = vmatpush.bf16.msra.mxu0 0
  %942 = vmatpush.bf16.msra.mxu0 0
  %943 = vmatpush.bf16.msra.mxu0 %v922
  %944 = vmatmul.bf16.gmra.mxu0 %v925
  %v945 = vpop.f32.mrf.mxu0
  %v946 = vadd.f32 0.0, %v945
  %v947 = vpop.f32.mrf.mxu0
  %v948 = vadd.f32 0.0, %v947
  %949 = vmatmul.bf16.gmra.mxu0 %v928
  %v950 = vpop.f32.mrf.mxu0
  %v951 = vadd.f32 0.0, %v950
  %v952 = vpop.f32.mrf.mxu0
  %v953 = vadd.f32 0.0, %v952
  %954 = vmatmul.bf16.gmra.mxu0 %v931
  %v955 = vpop.f32.mrf.mxu0
  %v956 = vadd.f32 0.0, %v955
  %v957 = vpop.f32.mrf.mxu0
  %v958 = vadd.f32 0.0, %v957
  %959 = vmatmul.bf16.gmra.mxu0 %v934
  %v960 = vpop.f32.mrf.mxu0
  %v961 = vadd.f32 0.0, %v960
  %v962 = vpop.f32.mrf.mxu0
  %v963 = vadd.f32 0.0, %v962
  %964 = vdwg.mxu0
  %s965 = scalar_lea.vmem %s1, 384
  %v966 = vld [vmem:[%s965] sm:$0xf]
  %v967 = vld [vmem:[%s965 + $0x4] sm:$0xf]
  %v968 = vld [vmem:[%s965 + $0x8] sm:$0xf]
  %v969 = vld [vmem:[%s965 + $0xc] sm:$0xf]
  %v970 = vld [vmem:[%s965 + $0x10] sm:$0xf]
  %v971 = vld [vmem:[%s965 + $0x14] sm:$0xf]
  %v972 = vld [vmem:[%s965 + $0x18] sm:$0xf]
  %v973 = vld [vmem:[%s965 + $0x1c] sm:$0xf]
  %s974 = scalar_lea.vmem %s0, 96
  %v975 = vld [vmem:[%s974] sm:$0xf]
  %v976 = vld [vmem:[%s974 + $0x4] sm:$0xf]
  %v985 = vunpack.c.l.b16 %v966
  %v986 = vunpack.c.l.b16 %v967
  %v987 = vunpack.c.l.b16 %v968
  %v988 = vunpack.c.l.b16 %v969
  %v989 = vunpack.c.l.b16 %v970
  %v990 = vunpack.c.l.b16 %v971
  %v991 = vunpack.c.l.b16 %v972
  %v992 = vunpack.c.l.b16 %v973
  %v993 = vpack.c.b16 %v986, %v985
  %v994 = vpack.c.b16 %v988, %v987
  %v995 = vpack.c.b16 %v990, %v989
  %v996 = vpack.c.b16 %v992, %v991
  %v999 = vunpack.c.l.b16 %v975
  %v1000 = vunpack.c.l.b16 %v976
  %v1001 = vpack.c.b16 %v1000, %v999
  %v1004 = vsel %vm54, %v993, 0
  %v1007 = vsel %vm54, %v994, 0
  %v1010 = vsel %vm54, %v995, 0
  %v1013 = vsel %vm54, %v996, 0
  %1015 = vmatpush.bf16.msra.mxu0 0
  %1016 = vmatpush.bf16.msra.mxu0 0
  %1017 = vmatpush.bf16.msra.mxu0 0
  %1018 = vmatpush.bf16.msra.mxu0 0
  %1019 = vmatpush.bf16.msra.mxu0 0
  %1020 = vmatpush.bf16.msra.mxu0 0
  %1021 = vmatpush.bf16.msra.mxu0 0
  %1022 = vmatpush.bf16.msra.mxu0 %v1001
  %1023 = vmatmul.bf16.gmra.mxu0 %v1004
  %v1024 = vpop.f32.mrf.mxu0
  %v1025 = vadd.f32 0.0, %v1024
  %v1026 = vpop.f32.mrf.mxu0
  %v1027 = vadd.f32 0.0, %v1026
  %1028 = vmatmul.bf16.gmra.mxu0 %v1007
  %v1029 = vpop.f32.mrf.mxu0
  %v1030 = vadd.f32 0.0, %v1029
  %v1031 = vpop.f32.mrf.mxu0
  %v1032 = vadd.f32 0.0, %v1031
  %1033 = vmatmul.bf16.gmra.mxu0 %v1010
  %v1034 = vpop.f32.mrf.mxu0
  %v1035 = vadd.f32 0.0, %v1034
  %v1036 = vpop.f32.mrf.mxu0
  %v1037 = vadd.f32 0.0, %v1036
  %1038 = vmatmul.bf16.gmra.mxu0 %v1013
  %v1039 = vpop.f32.mrf.mxu0
  %v1040 = vadd.f32 0.0, %v1039
  %v1041 = vpop.f32.mrf.mxu0
  %v1042 = vadd.f32 0.0, %v1041
  %1043 = vdwg.mxu0
  %s1044 = scalar_lea.vmem %s1, 416
  %v1045 = vld [vmem:[%s1044] sm:$0xf]
  %v1046 = vld [vmem:[%s1044 + $0x4] sm:$0xf]
  %v1047 = vld [vmem:[%s1044 + $0x8] sm:$0xf]
  %v1048 = vld [vmem:[%s1044 + $0xc] sm:$0xf]
  %v1049 = vld [vmem:[%s1044 + $0x10] sm:$0xf]
  %v1050 = vld [vmem:[%s1044 + $0x14] sm:$0xf]
  %v1051 = vld [vmem:[%s1044 + $0x18] sm:$0xf]
  %v1052 = vld [vmem:[%s1044 + $0x1c] sm:$0xf]
  %s1053 = scalar_lea.vmem %s0, 104
  %v1054 = vld [vmem:[%s1053] sm:$0xf]
  %v1055 = vld [vmem:[%s1053 + $0x4] sm:$0xf]
  %v1064 = vunpack.c.l.b16 %v1045
  %v1065 = vunpack.c.l.b16 %v1046
  %v1066 = vunpack.c.l.b16 %v1047
  %v1067 = vunpack.c.l.b16 %v1048
  %v1068 = vunpack.c.l.b16 %v1049
  %v1069 = vunpack.c.l.b16 %v1050
  %v1070 = vunpack.c.l.b16 %v1051
  %v1071 = vunpack.c.l.b16 %v1052
  %v1072 = vpack.c.b16 %v1065, %v1064
  %v1073 = vpack.c.b16 %v1067, %v1066
  %v1074 = vpack.c.b16 %v1069, %v1068
  %v1075 = vpack.c.b16 %v1071, %v1070
  %v1078 = vunpack.c.l.b16 %v1054
  %v1079 = vunpack.c.l.b16 %v1055
  %v1080 = vpack.c.b16 %v1079, %v1078
  %v1083 = vsel %vm54, %v1072, 0
  %v1086 = vsel %vm54, %v1073, 0
  %v1089 = vsel %vm54, %v1074, 0
  %v1092 = vsel %vm54, %v1075, 0
  %1094 = vmatpush.bf16.msra.mxu0 0
  %1095 = vmatpush.bf16.msra.mxu0 0
  %1096 = vmatpush.bf16.msra.mxu0 0
  %1097 = vmatpush.bf16.msra.mxu0 0
  %1098 = vmatpush.bf16.msra.mxu0 0
  %1099 = vmatpush.bf16.msra.mxu0 0
  %1100 = vmatpush.bf16.msra.mxu0 0
  %1101 = vmatpush.bf16.msra.mxu0 %v1080
  %1102 = vmatmul.bf16.gmra.mxu0 %v1083
  %v1103 = vpop.f32.mrf.mxu0
  %v1104 = vadd.f32 0.0, %v1103
  %v1105 = vpop.f32.mrf.mxu0
  %v1106 = vadd.f32 0.0, %v1105
  %1107 = vmatmul.bf16.gmra.mxu0 %v1086
  %v1108 = vpop.f32.mrf.mxu0
  %v1109 = vadd.f32 0.0, %v1108
  %v1110 = vpop.f32.mrf.mxu0
  %v1111 = vadd.f32 0.0, %v1110
  %1112 = vmatmul.bf16.gmra.mxu0 %v1089
  %v1113 = vpop.f32.mrf.mxu0
  %v1114 = vadd.f32 0.0, %v1113
  %v1115 = vpop.f32.mrf.mxu0
  %v1116 = vadd.f32 0.0, %v1115
  %1117 = vmatmul.bf16.gmra.mxu0 %v1092
  %v1118 = vpop.f32.mrf.mxu0
  %v1119 = vadd.f32 0.0, %v1118
  %v1120 = vpop.f32.mrf.mxu0
  %v1121 = vadd.f32 0.0, %v1120
  %1122 = vdwg.mxu0
  %s1123 = scalar_lea.vmem %s1, 448
  %v1124 = vld [vmem:[%s1123] sm:$0xf]
  %v1125 = vld [vmem:[%s1123 + $0x4] sm:$0xf]
  %v1126 = vld [vmem:[%s1123 + $0x8] sm:$0xf]
  %v1127 = vld [vmem:[%s1123 + $0xc] sm:$0xf]
  %v1128 = vld [vmem:[%s1123 + $0x10] sm:$0xf]
  %v1129 = vld [vmem:[%s1123 + $0x14] sm:$0xf]
  %v1130 = vld [vmem:[%s1123 + $0x18] sm:$0xf]
  %v1131 = vld [vmem:[%s1123 + $0x1c] sm:$0xf]
  %s1132 = scalar_lea.vmem %s0, 112
  %v1133 = vld [vmem:[%s1132] sm:$0xf]
  %v1134 = vld [vmem:[%s1132 + $0x4] sm:$0xf]
  %v1143 = vunpack.c.l.b16 %v1124
  %v1144 = vunpack.c.l.b16 %v1125
  %v1145 = vunpack.c.l.b16 %v1126
  %v1146 = vunpack.c.l.b16 %v1127
  %v1147 = vunpack.c.l.b16 %v1128
  %v1148 = vunpack.c.l.b16 %v1129
  %v1149 = vunpack.c.l.b16 %v1130
  %v1150 = vunpack.c.l.b16 %v1131
  %v1151 = vpack.c.b16 %v1144, %v1143
  %v1152 = vpack.c.b16 %v1146, %v1145
  %v1153 = vpack.c.b16 %v1148, %v1147
  %v1154 = vpack.c.b16 %v1150, %v1149
  %v1157 = vunpack.c.l.b16 %v1133
  %v1158 = vunpack.c.l.b16 %v1134
  %v1159 = vpack.c.b16 %v1158, %v1157
  %v1162 = vsel %vm54, %v1151, 0
  %v1165 = vsel %vm54, %v1152, 0
  %v1168 = vsel %vm54, %v1153, 0
  %v1171 = vsel %vm54, %v1154, 0
  %1173 = vmatpush.bf16.msra.mxu0 0
  %1174 = vmatpush.bf16.msra.mxu0 0
  %1175 = vmatpush.bf16.msra.mxu0 0
  %1176 = vmatpush.bf16.msra.mxu0 0
  %1177 = vmatpush.bf16.msra.mxu0 0
  %1178 = vmatpush.bf16.msra.mxu0 0
  %1179 = vmatpush.bf16.msra.mxu0 0
  %1180 = vmatpush.bf16.msra.mxu0 %v1159
  %1181 = vmatmul.bf16.gmra.mxu0 %v1162
  %v1182 = vpop.f32.mrf.mxu0
  %v1183 = vadd.f32 0.0, %v1182
  %v1184 = vpop.f32.mrf.mxu0
  %v1185 = vadd.f32 0.0, %v1184
  %1186 = vmatmul.bf16.gmra.mxu0 %v1165
  %v1187 = vpop.f32.mrf.mxu0
  %v1188 = vadd.f32 0.0, %v1187
  %v1189 = vpop.f32.mrf.mxu0
  %v1190 = vadd.f32 0.0, %v1189
  %1191 = vmatmul.bf16.gmra.mxu0 %v1168
  %v1192 = vpop.f32.mrf.mxu0
  %v1193 = vadd.f32 0.0, %v1192
  %v1194 = vpop.f32.mrf.mxu0
  %v1195 = vadd.f32 0.0, %v1194
  %1196 = vmatmul.bf16.gmra.mxu0 %v1171
  %v1197 = vpop.f32.mrf.mxu0
  %v1198 = vadd.f32 0.0, %v1197
  %v1199 = vpop.f32.mrf.mxu0
  %v1200 = vadd.f32 0.0, %v1199
  %1201 = vdwg.mxu0
  %s1202 = scalar_lea.vmem %s1, 480
  %v1203 = vld [vmem:[%s1202] sm:$0xf]
  %v1204 = vld [vmem:[%s1202 + $0x4] sm:$0xf]
  %v1205 = vld [vmem:[%s1202 + $0x8] sm:$0xf]
  %v1206 = vld [vmem:[%s1202 + $0xc] sm:$0xf]
  %v1207 = vld [vmem:[%s1202 + $0x10] sm:$0xf]
  %v1208 = vld [vmem:[%s1202 + $0x14] sm:$0xf]
  %v1209 = vld [vmem:[%s1202 + $0x18] sm:$0xf]
  %v1210 = vld [vmem:[%s1202 + $0x1c] sm:$0xf]
  %s1211 = scalar_lea.vmem %s0, 120
  %v1212 = vld [vmem:[%s1211] sm:$0xf]
  %v1213 = vld [vmem:[%s1211 + $0x4] sm:$0xf]
  %v1222 = vunpack.c.l.b16 %v1203
  %v1223 = vunpack.c.l.b16 %v1204
  %v1224 = vunpack.c.l.b16 %v1205
  %v1225 = vunpack.c.l.b16 %v1206
  %v1226 = vunpack.c.l.b16 %v1207
  %v1227 = vunpack.c.l.b16 %v1208
  %v1228 = vunpack.c.l.b16 %v1209
  %v1229 = vunpack.c.l.b16 %v1210
  %v1230 = vpack.c.b16 %v1223, %v1222
  %v1231 = vpack.c.b16 %v1225, %v1224
  %v1232 = vpack.c.b16 %v1227, %v1226
  %v1233 = vpack.c.b16 %v1229, %v1228
  %v1236 = vunpack.c.l.b16 %v1212
  %v1237 = vunpack.c.l.b16 %v1213
  %v1238 = vpack.c.b16 %v1237, %v1236
  %v1241 = vsel %vm54, %v1230, 0
  %v1244 = vsel %vm54, %v1231, 0
  %v1247 = vsel %vm54, %v1232, 0
  %v1250 = vsel %vm54, %v1233, 0
  %1252 = vmatpush.bf16.msra.mxu0 0
  %1253 = vmatpush.bf16.msra.mxu0 0
  %1254 = vmatpush.bf16.msra.mxu0 0
  %1255 = vmatpush.bf16.msra.mxu0 0
  %1256 = vmatpush.bf16.msra.mxu0 0
  %1257 = vmatpush.bf16.msra.mxu0 0
  %1258 = vmatpush.bf16.msra.mxu0 0
  %1259 = vmatpush.bf16.msra.mxu0 %v1238
  %1260 = vmatmul.bf16.gmra.mxu0 %v1241
  %v1261 = vpop.f32.mrf.mxu0
  %v1262 = vadd.f32 0.0, %v1261
  %v1263 = vpop.f32.mrf.mxu0
  %v1264 = vadd.f32 0.0, %v1263
  %1265 = vmatmul.bf16.gmra.mxu0 %v1244
  %v1266 = vpop.f32.mrf.mxu0
  %v1267 = vadd.f32 0.0, %v1266
  %v1268 = vpop.f32.mrf.mxu0
  %v1269 = vadd.f32 0.0, %v1268
  %1270 = vmatmul.bf16.gmra.mxu0 %v1247
  %v1271 = vpop.f32.mrf.mxu0
  %v1272 = vadd.f32 0.0, %v1271
  %v1273 = vpop.f32.mrf.mxu0
  %v1274 = vadd.f32 0.0, %v1273
  %1275 = vmatmul.bf16.gmra.mxu0 %v1250
  %v1276 = vpop.f32.mrf.mxu0
  %v1277 = vadd.f32 0.0, %v1276
  %v1278 = vpop.f32.mrf.mxu0
  %v1279 = vadd.f32 0.0, %v1278
  %1280 = vdwg.mxu0
  %v1281 = vadd.f32 %v77, %v156
  %v1282 = vadd.f32 %v79, %v158
  %v1283 = vadd.f32 %v82, %v161
  %v1284 = vadd.f32 %v84, %v163
  %v1285 = vadd.f32 %v87, %v166
  %v1286 = vadd.f32 %v89, %v168
  %v1287 = vadd.f32 %v92, %v171
  %v1288 = vadd.f32 %v94, %v173
  %v1289 = vadd.f32 %v1281, %v235
  %v1290 = vadd.f32 %v1282, %v237
  %v1291 = vadd.f32 %v1283, %v240
  %v1292 = vadd.f32 %v1284, %v242
  %v1293 = vadd.f32 %v1285, %v245
  %v1294 = vadd.f32 %v1286, %v247
  %v1295 = vadd.f32 %v1287, %v250
  %v1296 = vadd.f32 %v1288, %v252
  %v1297 = vadd.f32 %v1289, %v314
  %v1298 = vadd.f32 %v1290, %v316
  %v1299 = vadd.f32 %v1291, %v319
  %v1300 = vadd.f32 %v1292, %v321
  %v1301 = vadd.f32 %v1293, %v324
  %v1302 = vadd.f32 %v1294, %v326
  %v1303 = vadd.f32 %v1295, %v329
  %v1304 = vadd.f32 %v1296, %v331
  %v1305 = vadd.f32 %v1297, %v393
  %v1306 = vadd.f32 %v1298, %v395
  %v1307 = vadd.f32 %v1299, %v398
  %v1308 = vadd.f32 %v1300, %v400
  %v1309 = vadd.f32 %v1301, %v403
  %v1310 = vadd.f32 %v1302, %v405
  %v1311 = vadd.f32 %v1303, %v408
  %v1312 = vadd.f32 %v1304, %v410
  %v1313 = vadd.f32 %v1305, %v472
  %v1314 = vadd.f32 %v1306, %v474
  %v1315 = vadd.f32 %v1307, %v477
  %v1316 = vadd.f32 %v1308, %v479
  %v1317 = vadd.f32 %v1309, %v482
  %v1318 = vadd.f32 %v1310, %v484
  %v1319 = vadd.f32 %v1311, %v487
  %v1320 = vadd.f32 %v1312, %v489
  %v1321 = vadd.f32 %v1313, %v551
  %v1322 = vadd.f32 %v1314, %v553
  %v1323 = vadd.f32 %v1315, %v556
  %v1324 = vadd.f32 %v1316, %v558
  %v1325 = vadd.f32 %v1317, %v561
  %v1326 = vadd.f32 %v1318, %v563
  %v1327 = vadd.f32 %v1319, %v566
  %v1328 = vadd.f32 %v1320, %v568
  %v1329 = vadd.f32 %v1321, %v630
  %v1330 = vadd.f32 %v1322, %v632
  %v1331 = vadd.f32 %v1323, %v635
  %v1332 = vadd.f32 %v1324, %v637
  %v1333 = vadd.f32 %v1325, %v640
  %v1334 = vadd.f32 %v1326, %v642
  %v1335 = vadd.f32 %v1327, %v645
  %v1336 = vadd.f32 %v1328, %v647
  %v1337 = vadd.f32 %v1329, %v709
  %v1338 = vadd.f32 %v1330, %v711
  %v1339 = vadd.f32 %v1331, %v714
  %v1340 = vadd.f32 %v1332, %v716
  %v1341 = vadd.f32 %v1333, %v719
  %v1342 = vadd.f32 %v1334, %v721
  %v1343 = vadd.f32 %v1335, %v724
  %v1344 = vadd.f32 %v1336, %v726
  %v1345 = vadd.f32 %v1337, %v788
  %v1346 = vadd.f32 %v1338, %v790
  %v1347 = vadd.f32 %v1339, %v793
  %v1348 = vadd.f32 %v1340, %v795
  %v1349 = vadd.f32 %v1341, %v798
  %v1350 = vadd.f32 %v1342, %v800
  %v1351 = vadd.f32 %v1343, %v803
  %v1352 = vadd.f32 %v1344, %v805
  %v1353 = vadd.f32 %v1345, %v867
  %v1354 = vadd.f32 %v1346, %v869
  %v1355 = vadd.f32 %v1347, %v872
  %v1356 = vadd.f32 %v1348, %v874
  %v1357 = vadd.f32 %v1349, %v877
  %v1358 = vadd.f32 %v1350, %v879
  %v1359 = vadd.f32 %v1351, %v882
  %v1360 = vadd.f32 %v1352, %v884
  %v1361 = vadd.f32 %v1353, %v946
  %v1362 = vadd.f32 %v1354, %v948
  %v1363 = vadd.f32 %v1355, %v951
  %v1364 = vadd.f32 %v1356, %v953
  %v1365 = vadd.f32 %v1357, %v956
  %v1366 = vadd.f32 %v1358, %v958
  %v1367 = vadd.f32 %v1359, %v961
  %v1368 = vadd.f32 %v1360, %v963
  %v1369 = vadd.f32 %v1361, %v1025
  %v1370 = vadd.f32 %v1362, %v1027
  %v1371 = vadd.f32 %v1363, %v1030
  %v1372 = vadd.f32 %v1364, %v1032
  %v1373 = vadd.f32 %v1365, %v1035
  %v1374 = vadd.f32 %v1366, %v1037
  %v1375 = vadd.f32 %v1367, %v1040
  %v1376 = vadd.f32 %v1368, %v1042
  %v1377 = vadd.f32 %v1369, %v1104
  %v1378 = vadd.f32 %v1370, %v1106
  %v1379 = vadd.f32 %v1371, %v1109
  %v1380 = vadd.f32 %v1372, %v1111
  %v1381 = vadd.f32 %v1373, %v1114
  %v1382 = vadd.f32 %v1374, %v1116
  %v1383 = vadd.f32 %v1375, %v1119
  %v1384 = vadd.f32 %v1376, %v1121
  %v1385 = vadd.f32 %v1377, %v1183
  %v1386 = vadd.f32 %v1378, %v1185
  %v1387 = vadd.f32 %v1379, %v1188
  %v1388 = vadd.f32 %v1380, %v1190
  %v1389 = vadd.f32 %v1381, %v1193
  %v1390 = vadd.f32 %v1382, %v1195
  %v1391 = vadd.f32 %v1383, %v1198
  %v1392 = vadd.f32 %v1384, %v1200
  %v1393 = vadd.f32 %v1385, %v1262
  %v1394 = vadd.f32 %v1386, %v1264
  %v1395 = vadd.f32 %v1387, %v1267
  %v1396 = vadd.f32 %v1388, %v1269
  %v1397 = vadd.f32 %v1389, %v1272
  %v1398 = vadd.f32 %v1390, %v1274
  %v1399 = vadd.f32 %v1391, %v1277
  %v1400 = vadd.f32 %v1392, %v1279
  %vm1401 = vcmask 15360
  %v1402 = vsel %vm1401, %v1393, 0.0
  %1403 = vadd.xlane.f32.xlu0 %v1402
  %v1404 = vpop.xlane.xlu0 %1403
  %v1405 = vsel %vm1401, %v1394, 0.0
  %1406 = vadd.xlane.f32.xlu0 %v1405
  %v1407 = vpop.xlane.xlu0 %1406
  %v1408 = vsel %vm1401, %v1395, 0.0
  %1409 = vadd.xlane.f32.xlu0 %v1408
  %v1410 = vpop.xlane.xlu0 %1409
  %v1411 = vsel %vm1401, %v1396, 0.0
  %1412 = vadd.xlane.f32.xlu0 %v1411
  %v1413 = vpop.xlane.xlu0 %1412
  %v1414 = vsel %vm1401, %v1397, 0.0
  %1415 = vadd.xlane.f32.xlu0 %v1414
  %v1416 = vpop.xlane.xlu0 %1415
  %v1417 = vsel %vm1401, %v1398, 0.0
  %1418 = vadd.xlane.f32.xlu0 %v1417
  %v1419 = vpop.xlane.xlu0 %1418
  %v1420 = vsel %vm1401, %v1399, 0.0
  %1421 = vadd.xlane.f32.xlu0 %v1420
  %v1422 = vpop.xlane.xlu0 %1421
  %v1423 = vsel %vm1401, %v1400, 0.0
  %1424 = vadd.xlane.f32.xlu0 %v1423
  %v1425 = vpop.xlane.xlu0 %1424
  %v1426 = vrcp.pop 32.0
  %v1427 = vmul.f32 32.0, %v1426
  %v1428 = vsub.f32 1.0, %v1427
  %v1429 = vmul.f32 %v1426, %v1428
  %v1430 = vadd.f32 %v1426, %v1429
  %vm1431 = vweird.f32 %v1426
  %v1432 = vsel %vm1431, %v1426, %v1430
  %v1433 = vmul.f32 %v1404, %v1432
  %v1434 = vmul.f32 %v1407, %v1432
  %v1435 = vmul.f32 %v1410, %v1432
  %v1436 = vmul.f32 %v1413, %v1432
  %v1437 = vmul.f32 %v1416, %v1432
  %v1438 = vmul.f32 %v1419, %v1432
  %v1439 = vmul.f32 %v1422, %v1432
  %v1440 = vmul.f32 %v1425, %v1432
  %v1441 = vsub.f32 %v77, %v1433
  %v1442 = vsub.f32 %v79, %v1434
  %v1443 = vsub.f32 %v82, %v1435
  %v1444 = vsub.f32 %v84, %v1436
  %v1445 = vsub.f32 %v87, %v1437
  %v1446 = vsub.f32 %v89, %v1438
  %v1447 = vsub.f32 %v92, %v1439
  %v1448 = vsub.f32 %v94, %v1440
  %v1449 = vmul.f32 %v1441, %v1441
  %v1450 = vmul.f32 %v1442, %v1442
  %v1451 = vmul.f32 %v1443, %v1443
  %v1452 = vmul.f32 %v1444, %v1444
  %v1453 = vmul.f32 %v1445, %v1445
  %v1454 = vmul.f32 %v1446, %v1446
  %v1455 = vmul.f32 %v1447, %v1447
  %v1456 = vmul.f32 %v1448, %v1448
  %v1457 = vsub.f32 %v156, %v1433
  %v1458 = vsub.f32 %v158, %v1434
  %v1459 = vsub.f32 %v161, %v1435
  %v1460 = vsub.f32 %v163, %v1436
  %v1461 = vsub.f32 %v166, %v1437
  %v1462 = vsub.f32 %v168, %v1438
  %v1463 = vsub.f32 %v171, %v1439
  %v1464 = vsub.f32 %v173, %v1440
  %v1465 = vmul.f32 %v1457, %v1457
  %v1466 = vmul.f32 %v1458, %v1458
  %v1467 = vmul.f32 %v1459, %v1459
  %v1468 = vmul.f32 %v1460, %v1460
  %v1469 = vmul.f32 %v1461, %v1461
  %v1470 = vmul.f32 %v1462, %v1462
  %v1471 = vmul.f32 %v1463, %v1463
  %v1472 = vmul.f32 %v1464, %v1464
  %v1473 = vadd.f32 %v1449, %v1465
  %v1474 = vadd.f32 %v1450, %v1466
  %v1475 = vadd.f32 %v1451, %v1467
  %v1476 = vadd.f32 %v1452, %v1468
  %v1477 = vadd.f32 %v1453, %v1469
  %v1478 = vadd.f32 %v1454, %v1470
  %v1479 = vadd.f32 %v1455, %v1471
  %v1480 = vadd.f32 %v1456, %v1472
  %v1481 = vsub.f32 %v235, %v1433
  %v1482 = vsub.f32 %v237, %v1434
  %v1483 = vsub.f32 %v240, %v1435
  %v1484 = vsub.f32 %v242, %v1436
  %v1485 = vsub.f32 %v245, %v1437
  %v1486 = vsub.f32 %v247, %v1438
  %v1487 = vsub.f32 %v250, %v1439
  %v1488 = vsub.f32 %v252, %v1440
  %v1489 = vmul.f32 %v1481, %v1481
  %v1490 = vmul.f32 %v1482, %v1482
  %v1491 = vmul.f32 %v1483, %v1483
  %v1492 = vmul.f32 %v1484, %v1484
  %v1493 = vmul.f32 %v1485, %v1485
  %v1494 = vmul.f32 %v1486, %v1486
  %v1495 = vmul.f32 %v1487, %v1487
  %v1496 = vmul.f32 %v1488, %v1488
  %v1497 = vadd.f32 %v1473, %v1489
  %v1498 = vadd.f32 %v1474, %v1490
  %v1499 = vadd.f32 %v1475, %v1491
  %v1500 = vadd.f32 %v1476, %v1492
  %v1501 = vadd.f32 %v1477, %v1493
  %v1502 = vadd.f32 %v1478, %v1494
  %v1503 = vadd.f32 %v1479, %v1495
  %v1504 = vadd.f32 %v1480, %v1496
  %v1505 = vsub.f32 %v314, %v1433
  %v1506 = vsub.f32 %v316, %v1434
  %v1507 = vsub.f32 %v319, %v1435
  %v1508 = vsub.f32 %v321, %v1436
  %v1509 = vsub.f32 %v324, %v1437
  %v1510 = vsub.f32 %v326, %v1438
  %v1511 = vsub.f32 %v329, %v1439
  %v1512 = vsub.f32 %v331, %v1440
  %v1513 = vmul.f32 %v1505, %v1505
  %v1514 = vmul.f32 %v1506, %v1506
  %v1515 = vmul.f32 %v1507, %v1507
  %v1516 = vmul.f32 %v1508, %v1508
  %v1517 = vmul.f32 %v1509, %v1509
  %v1518 = vmul.f32 %v1510, %v1510
  %v1519 = vmul.f32 %v1511, %v1511
  %v1520 = vmul.f32 %v1512, %v1512
  %v1521 = vadd.f32 %v1497, %v1513
  %v1522 = vadd.f32 %v1498, %v1514
  %v1523 = vadd.f32 %v1499, %v1515
  %v1524 = vadd.f32 %v1500, %v1516
  %v1525 = vadd.f32 %v1501, %v1517
  %v1526 = vadd.f32 %v1502, %v1518
  %v1527 = vadd.f32 %v1503, %v1519
  %v1528 = vadd.f32 %v1504, %v1520
  %v1529 = vsub.f32 %v393, %v1433
  %v1530 = vsub.f32 %v395, %v1434
  %v1531 = vsub.f32 %v398, %v1435
  %v1532 = vsub.f32 %v400, %v1436
  %v1533 = vsub.f32 %v403, %v1437
  %v1534 = vsub.f32 %v405, %v1438
  %v1535 = vsub.f32 %v408, %v1439
  %v1536 = vsub.f32 %v410, %v1440
  %v1537 = vmul.f32 %v1529, %v1529
  %v1538 = vmul.f32 %v1530, %v1530
  %v1539 = vmul.f32 %v1531, %v1531
  %v1540 = vmul.f32 %v1532, %v1532
  %v1541 = vmul.f32 %v1533, %v1533
  %v1542 = vmul.f32 %v1534, %v1534
  %v1543 = vmul.f32 %v1535, %v1535
  %v1544 = vmul.f32 %v1536, %v1536
  %v1545 = vadd.f32 %v1521, %v1537
  %v1546 = vadd.f32 %v1522, %v1538
  %v1547 = vadd.f32 %v1523, %v1539
  %v1548 = vadd.f32 %v1524, %v1540
  %v1549 = vadd.f32 %v1525, %v1541
  %v1550 = vadd.f32 %v1526, %v1542
  %v1551 = vadd.f32 %v1527, %v1543
  %v1552 = vadd.f32 %v1528, %v1544
  %v1553 = vsub.f32 %v472, %v1433
  %v1554 = vsub.f32 %v474, %v1434
  %v1555 = vsub.f32 %v477, %v1435
  %v1556 = vsub.f32 %v479, %v1436
  %v1557 = vsub.f32 %v482, %v1437
  %v1558 = vsub.f32 %v484, %v1438
  %v1559 = vsub.f32 %v487, %v1439
  %v1560 = vsub.f32 %v489, %v1440
  %v1561 = vmul.f32 %v1553, %v1553
  %v1562 = vmul.f32 %v1554, %v1554
  %v1563 = vmul.f32 %v1555, %v1555
  %v1564 = vmul.f32 %v1556, %v1556
  %v1565 = vmul.f32 %v1557, %v1557
  %v1566 = vmul.f32 %v1558, %v1558
  %v1567 = vmul.f32 %v1559, %v1559
  %v1568 = vmul.f32 %v1560, %v1560
  %v1569 = vadd.f32 %v1545, %v1561
  %v1570 = vadd.f32 %v1546, %v1562
  %v1571 = vadd.f32 %v1547, %v1563
  %v1572 = vadd.f32 %v1548, %v1564
  %v1573 = vadd.f32 %v1549, %v1565
  %v1574 = vadd.f32 %v1550, %v1566
  %v1575 = vadd.f32 %v1551, %v1567
  %v1576 = vadd.f32 %v1552, %v1568
  %v1577 = vsub.f32 %v551, %v1433
  %v1578 = vsub.f32 %v553, %v1434
  %v1579 = vsub.f32 %v556, %v1435
  %v1580 = vsub.f32 %v558, %v1436
  %v1581 = vsub.f32 %v561, %v1437
  %v1582 = vsub.f32 %v563, %v1438
  %v1583 = vsub.f32 %v566, %v1439
  %v1584 = vsub.f32 %v568, %v1440
  %v1585 = vmul.f32 %v1577, %v1577
  %v1586 = vmul.f32 %v1578, %v1578
  %v1587 = vmul.f32 %v1579, %v1579
  %v1588 = vmul.f32 %v1580, %v1580
  %v1589 = vmul.f32 %v1581, %v1581
  %v1590 = vmul.f32 %v1582, %v1582
  %v1591 = vmul.f32 %v1583, %v1583
  %v1592 = vmul.f32 %v1584, %v1584
  %v1593 = vadd.f32 %v1569, %v1585
  %v1594 = vadd.f32 %v1570, %v1586
  %v1595 = vadd.f32 %v1571, %v1587
  %v1596 = vadd.f32 %v1572, %v1588
  %v1597 = vadd.f32 %v1573, %v1589
  %v1598 = vadd.f32 %v1574, %v1590
  %v1599 = vadd.f32 %v1575, %v1591
  %v1600 = vadd.f32 %v1576, %v1592
  %v1601 = vsub.f32 %v630, %v1433
  %v1602 = vsub.f32 %v632, %v1434
  %v1603 = vsub.f32 %v635, %v1435
  %v1604 = vsub.f32 %v637, %v1436
  %v1605 = vsub.f32 %v640, %v1437
  %v1606 = vsub.f32 %v642, %v1438
  %v1607 = vsub.f32 %v645, %v1439
  %v1608 = vsub.f32 %v647, %v1440
  %v1609 = vmul.f32 %v1601, %v1601
  %v1610 = vmul.f32 %v1602, %v1602
  %v1611 = vmul.f32 %v1603, %v1603
  %v1612 = vmul.f32 %v1604, %v1604
  %v1613 = vmul.f32 %v1605, %v1605
  %v1614 = vmul.f32 %v1606, %v1606
  %v1615 = vmul.f32 %v1607, %v1607
  %v1616 = vmul.f32 %v1608, %v1608
  %v1617 = vadd.f32 %v1593, %v1609
  %v1618 = vadd.f32 %v1594, %v1610
  %v1619 = vadd.f32 %v1595, %v1611
  %v1620 = vadd.f32 %v1596, %v1612
  %v1621 = vadd.f32 %v1597, %v1613
  %v1622 = vadd.f32 %v1598, %v1614
  %v1623 = vadd.f32 %v1599, %v1615
  %v1624 = vadd.f32 %v1600, %v1616
  %v1625 = vsub.f32 %v709, %v1433
  %v1626 = vsub.f32 %v711, %v1434
  %v1627 = vsub.f32 %v714, %v1435
  %v1628 = vsub.f32 %v716, %v1436
  %v1629 = vsub.f32 %v719, %v1437
  %v1630 = vsub.f32 %v721, %v1438
  %v1631 = vsub.f32 %v724, %v1439
  %v1632 = vsub.f32 %v726, %v1440
  %v1633 = vmul.f32 %v1625, %v1625
  %v1634 = vmul.f32 %v1626, %v1626
  %v1635 = vmul.f32 %v1627, %v1627
  %v1636 = vmul.f32 %v1628, %v1628
  %v1637 = vmul.f32 %v1629, %v1629
  %v1638 = vmul.f32 %v1630, %v1630
  %v1639 = vmul.f32 %v1631, %v1631
  %v1640 = vmul.f32 %v1632, %v1632
  %v1641 = vadd.f32 %v1617, %v1633
  %v1642 = vadd.f32 %v1618, %v1634
  %v1643 = vadd.f32 %v1619, %v1635
  %v1644 = vadd.f32 %v1620, %v1636
  %v1645 = vadd.f32 %v1621, %v1637
  %v1646 = vadd.f32 %v1622, %v1638
  %v1647 = vadd.f32 %v1623, %v1639
  %v1648 = vadd.f32 %v1624, %v1640
  %v1649 = vsub.f32 %v788, %v1433
  %v1650 = vsub.f32 %v790, %v1434
  %v1651 = vsub.f32 %v793, %v1435
  %v1652 = vsub.f32 %v795, %v1436
  %v1653 = vsub.f32 %v798, %v1437
  %v1654 = vsub.f32 %v800, %v1438
  %v1655 = vsub.f32 %v803, %v1439
  %v1656 = vsub.f32 %v805, %v1440
  %v1657 = vmul.f32 %v1649, %v1649
  %v1658 = vmul.f32 %v1650, %v1650
  %v1659 = vmul.f32 %v1651, %v1651
  %v1660 = vmul.f32 %v1652, %v1652
  %v1661 = vmul.f32 %v1653, %v1653
  %v1662 = vmul.f32 %v1654, %v1654
  %v1663 = vmul.f32 %v1655, %v1655
  %v1664 = vmul.f32 %v1656, %v1656
  %v1665 = vadd.f32 %v1641, %v1657
  %v1666 = vadd.f32 %v1642, %v1658
  %v1667 = vadd.f32 %v1643, %v1659
  %v1668 = vadd.f32 %v1644, %v1660
  %v1669 = vadd.f32 %v1645, %v1661
  %v1670 = vadd.f32 %v1646, %v1662
  %v1671 = vadd.f32 %v1647, %v1663
  %v1672 = vadd.f32 %v1648, %v1664
  %v1673 = vsub.f32 %v867, %v1433
  %v1674 = vsub.f32 %v869, %v1434
  %v1675 = vsub.f32 %v872, %v1435
  %v1676 = vsub.f32 %v874, %v1436
  %v1677 = vsub.f32 %v877, %v1437
  %v1678 = vsub.f32 %v879, %v1438
  %v1679 = vsub.f32 %v882, %v1439
  %v1680 = vsub.f32 %v884, %v1440
  %v1681 = vmul.f32 %v1673, %v1673
  %v1682 = vmul.f32 %v1674, %v1674
  %v1683 = vmul.f32 %v1675, %v1675
  %v1684 = vmul.f32 %v1676, %v1676
  %v1685 = vmul.f32 %v1677, %v1677
  %v1686 = vmul.f32 %v1678, %v1678
  %v1687 = vmul.f32 %v1679, %v1679
  %v1688 = vmul.f32 %v1680, %v1680
  %v1689 = vadd.f32 %v1665, %v1681
  %v1690 = vadd.f32 %v1666, %v1682
  %v1691 = vadd.f32 %v1667, %v1683
  %v1692 = vadd.f32 %v1668, %v1684
  %v1693 = vadd.f32 %v1669, %v1685
  %v1694 = vadd.f32 %v1670, %v1686
  %v1695 = vadd.f32 %v1671, %v1687
  %v1696 = vadd.f32 %v1672, %v1688
  %v1697 = vsub.f32 %v946, %v1433
  %v1698 = vsub.f32 %v948, %v1434
  %v1699 = vsub.f32 %v951, %v1435
  %v1700 = vsub.f32 %v953, %v1436
  %v1701 = vsub.f32 %v956, %v1437
  %v1702 = vsub.f32 %v958, %v1438
  %v1703 = vsub.f32 %v961, %v1439
  %v1704 = vsub.f32 %v963, %v1440
  %v1705 = vmul.f32 %v1697, %v1697
  %v1706 = vmul.f32 %v1698, %v1698
  %v1707 = vmul.f32 %v1699, %v1699
  %v1708 = vmul.f32 %v1700, %v1700
  %v1709 = vmul.f32 %v1701, %v1701
  %v1710 = vmul.f32 %v1702, %v1702
  %v1711 = vmul.f32 %v1703, %v1703
  %v1712 = vmul.f32 %v1704, %v1704
  %v1713 = vadd.f32 %v1689, %v1705
  %v1714 = vadd.f32 %v1690, %v1706
  %v1715 = vadd.f32 %v1691, %v1707
  %v1716 = vadd.f32 %v1692, %v1708
  %v1717 = vadd.f32 %v1693, %v1709
  %v1718 = vadd.f32 %v1694, %v1710
  %v1719 = vadd.f32 %v1695, %v1711
  %v1720 = vadd.f32 %v1696, %v1712
  %v1721 = vsub.f32 %v1025, %v1433
  %v1722 = vsub.f32 %v1027, %v1434
  %v1723 = vsub.f32 %v1030, %v1435
  %v1724 = vsub.f32 %v1032, %v1436
  %v1725 = vsub.f32 %v1035, %v1437
  %v1726 = vsub.f32 %v1037, %v1438
  %v1727 = vsub.f32 %v1040, %v1439
  %v1728 = vsub.f32 %v1042, %v1440
  %v1729 = vmul.f32 %v1721, %v1721
  %v1730 = vmul.f32 %v1722, %v1722
  %v1731 = vmul.f32 %v1723, %v1723
  %v1732 = vmul.f32 %v1724, %v1724
  %v1733 = vmul.f32 %v1725, %v1725
  %v1734 = vmul.f32 %v1726, %v1726
  %v1735 = vmul.f32 %v1727, %v1727
  %v1736 = vmul.f32 %v1728, %v1728
  %v1737 = vadd.f32 %v1713, %v1729
  %v1738 = vadd.f32 %v1714, %v1730
  %v1739 = vadd.f32 %v1715, %v1731
  %v1740 = vadd.f32 %v1716, %v1732
  %v1741 = vadd.f32 %v1717, %v1733
  %v1742 = vadd.f32 %v1718, %v1734
  %v1743 = vadd.f32 %v1719, %v1735
  %v1744 = vadd.f32 %v1720, %v1736
  %v1745 = vsub.f32 %v1104, %v1433
  %v1746 = vsub.f32 %v1106, %v1434
  %v1747 = vsub.f32 %v1109, %v1435
  %v1748 = vsub.f32 %v1111, %v1436
  %v1749 = vsub.f32 %v1114, %v1437
  %v1750 = vsub.f32 %v1116, %v1438
  %v1751 = vsub.f32 %v1119, %v1439
  %v1752 = vsub.f32 %v1121, %v1440
  %v1753 = vmul.f32 %v1745, %v1745
  %v1754 = vmul.f32 %v1746, %v1746
  %v1755 = vmul.f32 %v1747, %v1747
  %v1756 = vmul.f32 %v1748, %v1748
  %v1757 = vmul.f32 %v1749, %v1749
  %v1758 = vmul.f32 %v1750, %v1750
  %v1759 = vmul.f32 %v1751, %v1751
  %v1760 = vmul.f32 %v1752, %v1752
  %v1761 = vadd.f32 %v1737, %v1753
  %v1762 = vadd.f32 %v1738, %v1754
  %v1763 = vadd.f32 %v1739, %v1755
  %v1764 = vadd.f32 %v1740, %v1756
  %v1765 = vadd.f32 %v1741, %v1757
  %v1766 = vadd.f32 %v1742, %v1758
  %v1767 = vadd.f32 %v1743, %v1759
  %v1768 = vadd.f32 %v1744, %v1760
  %v1769 = vsub.f32 %v1183, %v1433
  %v1770 = vsub.f32 %v1185, %v1434
  %v1771 = vsub.f32 %v1188, %v1435
  %v1772 = vsub.f32 %v1190, %v1436
  %v1773 = vsub.f32 %v1193, %v1437
  %v1774 = vsub.f32 %v1195, %v1438
  %v1775 = vsub.f32 %v1198, %v1439
  %v1776 = vsub.f32 %v1200, %v1440
  %v1777 = vmul.f32 %v1769, %v1769
  %v1778 = vmul.f32 %v1770, %v1770
  %v1779 = vmul.f32 %v1771, %v1771
  %v1780 = vmul.f32 %v1772, %v1772
  %v1781 = vmul.f32 %v1773, %v1773
  %v1782 = vmul.f32 %v1774, %v1774
  %v1783 = vmul.f32 %v1775, %v1775
  %v1784 = vmul.f32 %v1776, %v1776
  %v1785 = vadd.f32 %v1761, %v1777
  %v1786 = vadd.f32 %v1762, %v1778
  %v1787 = vadd.f32 %v1763, %v1779
  %v1788 = vadd.f32 %v1764, %v1780
  %v1789 = vadd.f32 %v1765, %v1781
  %v1790 = vadd.f32 %v1766, %v1782
  %v1791 = vadd.f32 %v1767, %v1783
  %v1792 = vadd.f32 %v1768, %v1784
  %v1793 = vsub.f32 %v1262, %v1433
  %v1794 = vsub.f32 %v1264, %v1434
  %v1795 = vsub.f32 %v1267, %v1435
  %v1796 = vsub.f32 %v1269, %v1436
  %v1797 = vsub.f32 %v1272, %v1437
  %v1798 = vsub.f32 %v1274, %v1438
  %v1799 = vsub.f32 %v1277, %v1439
  %v1800 = vsub.f32 %v1279, %v1440
  %v1801 = vmul.f32 %v1793, %v1793
  %v1802 = vmul.f32 %v1794, %v1794
  %v1803 = vmul.f32 %v1795, %v1795
  %v1804 = vmul.f32 %v1796, %v1796
  %v1805 = vmul.f32 %v1797, %v1797
  %v1806 = vmul.f32 %v1798, %v1798
  %v1807 = vmul.f32 %v1799, %v1799
  %v1808 = vmul.f32 %v1800, %v1800
  %v1809 = vadd.f32 %v1785, %v1801
  %v1810 = vadd.f32 %v1786, %v1802
  %v1811 = vadd.f32 %v1787, %v1803
  %v1812 = vadd.f32 %v1788, %v1804
  %v1813 = vadd.f32 %v1789, %v1805
  %v1814 = vadd.f32 %v1790, %v1806
  %v1815 = vadd.f32 %v1791, %v1807
  %v1816 = vadd.f32 %v1792, %v1808
  %v1817 = vsel %vm1401, %v1809, 0.0
  %1818 = vadd.xlane.f32.xlu0 %v1817
  %v1819 = vpop.xlane.xlu0 %1818
  %v1820 = vsel %vm1401, %v1810, 0.0
  %1821 = vadd.xlane.f32.xlu0 %v1820
  %v1822 = vpop.xlane.xlu0 %1821
  %v1823 = vsel %vm1401, %v1811, 0.0
  %1824 = vadd.xlane.f32.xlu0 %v1823
  %v1825 = vpop.xlane.xlu0 %1824
  %v1826 = vsel %vm1401, %v1812, 0.0
  %1827 = vadd.xlane.f32.xlu0 %v1826
  %v1828 = vpop.xlane.xlu0 %1827
  %v1829 = vsel %vm1401, %v1813, 0.0
  %1830 = vadd.xlane.f32.xlu0 %v1829
  %v1831 = vpop.xlane.xlu0 %1830
  %v1832 = vsel %vm1401, %v1814, 0.0
  %1833 = vadd.xlane.f32.xlu0 %v1832
  %v1834 = vpop.xlane.xlu0 %1833
  %v1835 = vsel %vm1401, %v1815, 0.0
  %1836 = vadd.xlane.f32.xlu0 %v1835
  %v1837 = vpop.xlane.xlu0 %1836
  %v1838 = vsel %vm1401, %v1816, 0.0
  %1839 = vadd.xlane.f32.xlu0 %v1838
  %v1840 = vpop.xlane.xlu0 %1839
  %v1841 = vmul.f32 %v1819, %v1432
  %v1842 = vmul.f32 %v1822, %v1432
  %v1843 = vmul.f32 %v1825, %v1432
  %v1844 = vmul.f32 %v1828, %v1432
  %v1845 = vmul.f32 %v1831, %v1432
  %v1846 = vmul.f32 %v1834, %v1432
  %v1847 = vmul.f32 %v1837, %v1432
  %v1848 = vmul.f32 %v1840, %v1432
  %v1849 = vld [vmem:[%s2] sm:$0xff]
  %v1850 = vld [vmem:[%s2 + $0x8] sm:$0xff]
  %v1851 = vld [vmem:[%s2 + $0x10] sm:$0xff]
  %v1852 = vld [vmem:[%s2 + $0x18] sm:$0xff]
  %v1853 = vld [vmem:[%s2 + $0x20] sm:$0xff]
  %v1854 = vld [vmem:[%s2 + $0x28] sm:$0xff]
  %v1855 = vld [vmem:[%s2 + $0x30] sm:$0xff]
  %v1856 = vld [vmem:[%s2 + $0x38] sm:$0xff]
  %v1857 = vadd.f32 %v1841, 1e-05
  %v1858 = vadd.f32 %v1842, 1e-05
  %v1859 = vadd.f32 %v1843, 1e-05
  %v1860 = vadd.f32 %v1844, 1e-05
  %v1861 = vadd.f32 %v1845, 1e-05
  %v1862 = vadd.f32 %v1846, 1e-05
  %v1863 = vadd.f32 %v1847, 1e-05
  %v1864 = vadd.f32 %v1848, 1e-05
  %v1865 = vrsqrt.pop %v1857
  %v1866 = vmul.f32 %v1865, %v1857
  %v1867 = vmul.f32 %v1866, %v1865
  %v1868 = vmul.f32 0.5, %v1867
  %v1869 = vsub.f32 1.5, %v1868
  %v1870 = vmul.f32 %v1865, %v1869
  %vm1871 = vweird.f32 %v1857
  %vm1872 = vweird.f32 %v1865
  %vm1873 = vmor %vm1871, %vm1872
  %v1874 = vsel %vm1873, %v1865, %v1870
  %v1875 = vrsqrt.pop %v1858
  %v1876 = vmul.f32 %v1875, %v1858
  %v1877 = vmul.f32 %v1876, %v1875
  %v1878 = vmul.f32 0.5, %v1877
  %v1879 = vsub.f32 1.5, %v1878
  %v1880 = vmul.f32 %v1875, %v1879
  %vm1881 = vweird.f32 %v1858
  %vm1882 = vweird.f32 %v1875
  %vm1883 = vmor %vm1881, %vm1882
  %v1884 = vsel %vm1883, %v1875, %v1880
  %v1885 = vrsqrt.pop %v1859
  %v1886 = vmul.f32 %v1885, %v1859
  %v1887 = vmul.f32 %v1886, %v1885
  %v1888 = vmul.f32 0.5, %v1887
  %v1889 = vsub.f32 1.5, %v1888
  %v1890 = vmul.f32 %v1885, %v1889
  %vm1891 = vweird.f32 %v1859
  %vm1892 = vweird.f32 %v1885
  %vm1893 = vmor %vm1891, %vm1892
  %v1894 = vsel %vm1893, %v1885, %v1890
  %v1895 = vrsqrt.pop %v1860
  %v1896 = vmul.f32 %v1895, %v1860
  %v1897 = vmul.f32 %v1896, %v1895
  %v1898 = vmul.f32 0.5, %v1897
  %v1899 = vsub.f32 1.5, %v1898
  %v1900 = vmul.f32 %v1895, %v1899
  %vm1901 = vweird.f32 %v1860
  %vm1902 = vweird.f32 %v1895
  %vm1903 = vmor %vm1901, %vm1902
  %v1904 = vsel %vm1903, %v1895, %v1900
  %v1905 = vrsqrt.pop %v1861
  %v1906 = vmul.f32 %v1905, %v1861
  %v1907 = vmul.f32 %v1906, %v1905
  %v1908 = vmul.f32 0.5, %v1907
  %v1909 = vsub.f32 1.5, %v1908
  %v1910 = vmul.f32 %v1905, %v1909
  %vm1911 = vweird.f32 %v1861
  %vm1912 = vweird.f32 %v1905
  %vm1913 = vmor %vm1911, %vm1912
  %v1914 = vsel %vm1913, %v1905, %v1910
  %v1915 = vrsqrt.pop %v1862
  %v1916 = vmul.f32 %v1915, %v1862
  %v1917 = vmul.f32 %v1916, %v1915
  %v1918 = vmul.f32 0.5, %v1917
  %v1919 = vsub.f32 1.5, %v1918
  %v1920 = vmul.f32 %v1915, %v1919
  %vm1921 = vweird.f32 %v1862
  %vm1922 = vweird.f32 %v1915
  %vm1923 = vmor %vm1921, %vm1922
  %v1924 = vsel %vm1923, %v1915, %v1920
  %v1925 = vrsqrt.pop %v1863
  %v1926 = vmul.f32 %v1925, %v1863
  %v1927 = vmul.f32 %v1926, %v1925
  %v1928 = vmul.f32 0.5, %v1927
  %v1929 = vsub.f32 1.5, %v1928
  %v1930 = vmul.f32 %v1925, %v1929
  %vm1931 = vweird.f32 %v1863
  %vm1932 = vweird.f32 %v1925
  %vm1933 = vmor %vm1931, %vm1932
  %v1934 = vsel %vm1933, %v1925, %v1930
  %v1935 = vrsqrt.pop %v1864
  %v1936 = vmul.f32 %v1935, %v1864
  %v1937 = vmul.f32 %v1936, %v1935
  %v1938 = vmul.f32 0.5, %v1937
  %v1939 = vsub.f32 1.5, %v1938
  %v1940 = vmul.f32 %v1935, %v1939
  %vm1941 = vweird.f32 %v1864
  %vm1942 = vweird.f32 %v1935
  %vm1943 = vmor %vm1941, %vm1942
  %v1944 = vsel %vm1943, %v1935, %v1940
  %v1945 = vmul.f32 %v1849, %v1874
  %v1946 = vmul.f32 %v1850, %v1884
  %v1947 = vmul.f32 %v1851, %v1894
  %v1948 = vmul.f32 %v1852, %v1904
  %v1949 = vmul.f32 %v1853, %v1914
  %v1950 = vmul.f32 %v1854, %v1924
  %v1951 = vmul.f32 %v1855, %v1934
  %v1952 = vmul.f32 %v1856, %v1944
  %v1953 = vld [vmem:[%s3] sm:$0xff]
  %v1954 = vld [vmem:[%s3 + $0x8] sm:$0xff]
  %v1955 = vld [vmem:[%s3 + $0x10] sm:$0xff]
  %v1956 = vld [vmem:[%s3 + $0x18] sm:$0xff]
  %v1957 = vld [vmem:[%s3 + $0x20] sm:$0xff]
  %v1958 = vld [vmem:[%s3 + $0x28] sm:$0xff]
  %v1959 = vld [vmem:[%s3 + $0x30] sm:$0xff]
  %v1960 = vld [vmem:[%s3 + $0x38] sm:$0xff]
  %v1961 = vmul.f32 %v1433, %v1945
  %v1962 = vmul.f32 %v1434, %v1946
  %v1963 = vmul.f32 %v1435, %v1947
  %v1964 = vmul.f32 %v1436, %v1948
  %v1965 = vmul.f32 %v1437, %v1949
  %v1966 = vmul.f32 %v1438, %v1950
  %v1967 = vmul.f32 %v1439, %v1951
  %v1968 = vmul.f32 %v1440, %v1952
  %v1969 = vsub.f32 %v1953, %v1961
  %v1970 = vsub.f32 %v1954, %v1962
  %v1971 = vsub.f32 %v1955, %v1963
  %v1972 = vsub.f32 %v1956, %v1964
  %v1973 = vsub.f32 %v1957, %v1965
  %v1974 = vsub.f32 %v1958, %v1966
  %v1975 = vsub.f32 %v1959, %v1967
  %v1976 = vsub.f32 %v1960, %v1968
  %1978 = vset.pattern.permute.xlu0 0
  %1979 = vperm.xlu0 %1978, %v1945
  %v1980 = vpop.permute.xlu0 %1979
  %1983 = vset.pattern.permute.xlu0 0
  %1984 = vperm.xlu0 %1983, %v1946
  %v1985 = vpop.permute.xlu0 %1984
  %1988 = vset.pattern.permute.xlu0 0
  %1989 = vperm.xlu0 %1988, %v1947
  %v1990 = vpop.permute.xlu0 %1989
  %1993 = vset.pattern.permute.xlu0 0
  %1994 = vperm.xlu0 %1993, %v1948
  %v1995 = vpop.permute.xlu0 %1994
  %1998 = vset.pattern.permute.xlu0 0
  %1999 = vperm.xlu0 %1998, %v1949
  %v2000 = vpop.permute.xlu0 %1999
  %2003 = vset.pattern.permute.xlu0 0
  %2004 = vperm.xlu0 %2003, %v1950
  %v2005 = vpop.permute.xlu0 %2004
  %2008 = vset.pattern.permute.xlu0 0
  %2009 = vperm.xlu0 %2008, %v1951
  %v2010 = vpop.permute.xlu0 %2009
  %2013 = vset.pattern.permute.xlu0 0
  %2014 = vperm.xlu0 %2013, %v1952
  %v2015 = vpop.permute.xlu0 %2014
  %v2017 = vmul.f32 %v77, %v1980
  %v2018 = vmul.f32 %v79, %v1985
  %v2019 = vmul.f32 %v82, %v1990
  %v2020 = vmul.f32 %v84, %v1995
  %v2021 = vmul.f32 %v87, %v2000
  %v2022 = vmul.f32 %v89, %v2005
  %v2023 = vmul.f32 %v92, %v2010
  %v2024 = vmul.f32 %v94, %v2015
  %2026 = vset.pattern.permute.xlu0 0
  %2027 = vperm.xlu0 %2026, %v1969
  %v2028 = vpop.permute.xlu0 %2027
  %2031 = vset.pattern.permute.xlu0 0
  %2032 = vperm.xlu0 %2031, %v1970
  %v2033 = vpop.permute.xlu0 %2032
  %2036 = vset.pattern.permute.xlu0 0
  %2037 = vperm.xlu0 %2036, %v1971
  %v2038 = vpop.permute.xlu0 %2037
  %2041 = vset.pattern.permute.xlu0 0
  %2042 = vperm.xlu0 %2041, %v1972
  %v2043 = vpop.permute.xlu0 %2042
  %2046 = vset.pattern.permute.xlu0 0
  %2047 = vperm.xlu0 %2046, %v1973
  %v2048 = vpop.permute.xlu0 %2047
  %2051 = vset.pattern.permute.xlu0 0
  %2052 = vperm.xlu0 %2051, %v1974
  %v2053 = vpop.permute.xlu0 %2052
  %2056 = vset.pattern.permute.xlu0 0
  %2057 = vperm.xlu0 %2056, %v1975
  %v2058 = vpop.permute.xlu0 %2057
  %2061 = vset.pattern.permute.xlu0 0
  %2062 = vperm.xlu0 %2061, %v1976
  %v2063 = vpop.permute.xlu0 %2062
  %v2065 = vadd.f32 %v2017, %v2028
  %v2066 = vadd.f32 %v2018, %v2033
  %v2067 = vadd.f32 %v2019, %v2038
  %v2068 = vadd.f32 %v2020, %v2043
  %v2069 = vadd.f32 %v2021, %v2048
  %v2070 = vadd.f32 %v2022, %v2053
  %v2071 = vadd.f32 %v2023, %v2058
  %v2072 = vadd.f32 %v2024, %v2063
  %v2073 = vmul.f32 %v2065, 0.2
  %v2074 = vmul.f32 %v2066, 0.2
  %v2075 = vmul.f32 %v2067, 0.2
  %v2076 = vmul.f32 %v2068, 0.2
  %v2077 = vmul.f32 %v2069, 0.2
  %v2078 = vmul.f32 %v2070, 0.2
  %v2079 = vmul.f32 %v2071, 0.2
  %v2080 = vmul.f32 %v2072, 0.2
  %v2081 = vmax.f32 %v2065, %v2073
  %v2082 = vmax.f32 %v2066, %v2074
  %v2083 = vmax.f32 %v2067, %v2075
  %v2084 = vmax.f32 %v2068, %v2076
  %v2085 = vmax.f32 %v2069, %v2077
  %v2086 = vmax.f32 %v2070, %v2078
  %v2087 = vmax.f32 %v2071, %v2079
  %v2088 = vmax.f32 %v2072, %v2080
  %v2089 = vpack.c.bf16 %v2081, %v2081
  %v2090 = vpack.c.bf16 %v2082, %v2082
  %v2091 = vpack.c.bf16 %v2083, %v2083
  %v2092 = vpack.c.bf16 %v2084, %v2084
  %v2093 = vpack.c.bf16 %v2085, %v2085
  %v2094 = vpack.c.bf16 %v2086, %v2086
  %v2095 = vpack.c.bf16 %v2087, %v2087
  %v2096 = vpack.c.bf16 %v2088, %v2088
  %vm2097 = vcmask 11264
  %2098 = vst.msk [vmem:[%s4] sm:$0xf] %vm2097, %v2089
  %2099 = vst.msk [vmem:[%s4 + $0x4] sm:$0xf] %vm2097, %v2090
  %2100 = vst.msk [vmem:[%s4 + $0x8] sm:$0xf] %vm2097, %v2091
  %2101 = vst.msk [vmem:[%s4 + $0xc] sm:$0xf] %vm2097, %v2092
  %2102 = vst.msk [vmem:[%s4 + $0x10] sm:$0xf] %vm2097, %v2093
  %2103 = vst.msk [vmem:[%s4 + $0x14] sm:$0xf] %vm2097, %v2094
  %2104 = vst.msk [vmem:[%s4 + $0x18] sm:$0xf] %vm2097, %v2095
  %2105 = vst.msk [vmem:[%s4 + $0x1c] sm:$0xf] %vm2097, %v2096
  %v2106 = vmul.f32 %v156, %v1980
  %v2107 = vmul.f32 %v158, %v1985
  %v2108 = vmul.f32 %v161, %v1990
  %v2109 = vmul.f32 %v163, %v1995
  %v2110 = vmul.f32 %v166, %v2000
  %v2111 = vmul.f32 %v168, %v2005
  %v2112 = vmul.f32 %v171, %v2010
  %v2113 = vmul.f32 %v173, %v2015
  %v2114 = vadd.f32 %v2106, %v2028
  %v2115 = vadd.f32 %v2107, %v2033
  %v2116 = vadd.f32 %v2108, %v2038
  %v2117 = vadd.f32 %v2109, %v2043
  %v2118 = vadd.f32 %v2110, %v2048
  %v2119 = vadd.f32 %v2111, %v2053
  %v2120 = vadd.f32 %v2112, %v2058
  %v2121 = vadd.f32 %v2113, %v2063
  %v2122 = vmul.f32 %v2114, 0.2
  %v2123 = vmul.f32 %v2115, 0.2
  %v2124 = vmul.f32 %v2116, 0.2
  %v2125 = vmul.f32 %v2117, 0.2
  %v2126 = vmul.f32 %v2118, 0.2
  %v2127 = vmul.f32 %v2119, 0.2
  %v2128 = vmul.f32 %v2120, 0.2
  %v2129 = vmul.f32 %v2121, 0.2
  %v2130 = vmax.f32 %v2114, %v2122
  %v2131 = vmax.f32 %v2115, %v2123
  %v2132 = vmax.f32 %v2116, %v2124
  %v2133 = vmax.f32 %v2117, %v2125
  %v2134 = vmax.f32 %v2118, %v2126
  %v2135 = vmax.f32 %v2119, %v2127
  %v2136 = vmax.f32 %v2120, %v2128
  %v2137 = vmax.f32 %v2121, %v2129
  %v2138 = vpack.c.bf16 %v2130, %v2130
  %v2139 = vpack.c.bf16 %v2131, %v2131
  %v2140 = vpack.c.bf16 %v2132, %v2132
  %v2141 = vpack.c.bf16 %v2133, %v2133
  %v2142 = vpack.c.bf16 %v2134, %v2134
  %v2143 = vpack.c.bf16 %v2135, %v2135
  %v2144 = vpack.c.bf16 %v2136, %v2136
  %v2145 = vpack.c.bf16 %v2137, %v2137
  %s2146 = scalar_lea.vmem %s4, 32
  %2147 = vst.msk [vmem:[%s2146] sm:$0xf] %vm2097, %v2138
  %2148 = vst.msk [vmem:[%s2146 + $0x4] sm:$0xf] %vm2097, %v2139
  %2149 = vst.msk [vmem:[%s2146 + $0x8] sm:$0xf] %vm2097, %v2140
  %2150 = vst.msk [vmem:[%s2146 + $0xc] sm:$0xf] %vm2097, %v2141
  %2151 = vst.msk [vmem:[%s2146 + $0x10] sm:$0xf] %vm2097, %v2142
  %2152 = vst.msk [vmem:[%s2146 + $0x14] sm:$0xf] %vm2097, %v2143
  %2153 = vst.msk [vmem:[%s2146 + $0x18] sm:$0xf] %vm2097, %v2144
  %2154 = vst.msk [vmem:[%s2146 + $0x1c] sm:$0xf] %vm2097, %v2145
  %v2155 = vmul.f32 %v235, %v1980
  %v2156 = vmul.f32 %v237, %v1985
  %v2157 = vmul.f32 %v240, %v1990
  %v2158 = vmul.f32 %v242, %v1995
  %v2159 = vmul.f32 %v245, %v2000
  %v2160 = vmul.f32 %v247, %v2005
  %v2161 = vmul.f32 %v250, %v2010
  %v2162 = vmul.f32 %v252, %v2015
  %v2163 = vadd.f32 %v2155, %v2028
  %v2164 = vadd.f32 %v2156, %v2033
  %v2165 = vadd.f32 %v2157, %v2038
  %v2166 = vadd.f32 %v2158, %v2043
  %v2167 = vadd.f32 %v2159, %v2048
  %v2168 = vadd.f32 %v2160, %v2053
  %v2169 = vadd.f32 %v2161, %v2058
  %v2170 = vadd.f32 %v2162, %v2063
  %v2171 = vmul.f32 %v2163, 0.2
  %v2172 = vmul.f32 %v2164, 0.2
  %v2173 = vmul.f32 %v2165, 0.2
  %v2174 = vmul.f32 %v2166, 0.2
  %v2175 = vmul.f32 %v2167, 0.2
  %v2176 = vmul.f32 %v2168, 0.2
  %v2177 = vmul.f32 %v2169, 0.2
  %v2178 = vmul.f32 %v2170, 0.2
  %v2179 = vmax.f32 %v2163, %v2171
  %v2180 = vmax.f32 %v2164, %v2172
  %v2181 = vmax.f32 %v2165, %v2173
  %v2182 = vmax.f32 %v2166, %v2174
  %v2183 = vmax.f32 %v2167, %v2175
  %v2184 = vmax.f32 %v2168, %v2176
  %v2185 = vmax.f32 %v2169, %v2177
  %v2186 = vmax.f32 %v2170, %v2178
  %v2187 = vpack.c.bf16 %v2179, %v2179
  %v2188 = vpack.c.bf16 %v2180, %v2180
  %v2189 = vpack.c.bf16 %v2181, %v2181
  %v2190 = vpack.c.bf16 %v2182, %v2182
  %v2191 = vpack.c.bf16 %v2183, %v2183
  %v2192 = vpack.c.bf16 %v2184, %v2184
  %v2193 = vpack.c.bf16 %v2185, %v2185
  %v2194 = vpack.c.bf16 %v2186, %v2186
  %s2195 = scalar_lea.vmem %s4, 64
  %2196 = vst.msk [vmem:[%s2195] sm:$0xf] %vm2097, %v2187
  %2197 = vst.msk [vmem:[%s2195 + $0x4] sm:$0xf] %vm2097, %v2188
  %2198 = vst.msk [vmem:[%s2195 + $0x8] sm:$0xf] %vm2097, %v2189
  %2199 = vst.msk [vmem:[%s2195 + $0xc] sm:$0xf] %vm2097, %v2190
  %2200 = vst.msk [vmem:[%s2195 + $0x10] sm:$0xf] %vm2097, %v2191
  %2201 = vst.msk [vmem:[%s2195 + $0x14] sm:$0xf] %vm2097, %v2192
  %2202 = vst.msk [vmem:[%s2195 + $0x18] sm:$0xf] %vm2097, %v2193
  %2203 = vst.msk [vmem:[%s2195 + $0x1c] sm:$0xf] %vm2097, %v2194
  %v2204 = vmul.f32 %v314, %v1980
  %v2205 = vmul.f32 %v316, %v1985
  %v2206 = vmul.f32 %v319, %v1990
  %v2207 = vmul.f32 %v321, %v1995
  %v2208 = vmul.f32 %v324, %v2000
  %v2209 = vmul.f32 %v326, %v2005
  %v2210 = vmul.f32 %v329, %v2010
  %v2211 = vmul.f32 %v331, %v2015
  %v2212 = vadd.f32 %v2204, %v2028
  %v2213 = vadd.f32 %v2205, %v2033
  %v2214 = vadd.f32 %v2206, %v2038
  %v2215 = vadd.f32 %v2207, %v2043
  %v2216 = vadd.f32 %v2208, %v2048
  %v2217 = vadd.f32 %v2209, %v2053
  %v2218 = vadd.f32 %v2210, %v2058
  %v2219 = vadd.f32 %v2211, %v2063
  %v2220 = vmul.f32 %v2212, 0.2
  %v2221 = vmul.f32 %v2213, 0.2
  %v2222 = vmul.f32 %v2214, 0.2
  %v2223 = vmul.f32 %v2215, 0.2
  %v2224 = vmul.f32 %v2216, 0.2
  %v2225 = vmul.f32 %v2217, 0.2
  %v2226 = vmul.f32 %v2218, 0.2
  %v2227 = vmul.f32 %v2219, 0.2
  %v2228 = vmax.f32 %v2212, %v2220
  %v2229 = vmax.f32 %v2213, %v2221
  %v2230 = vmax.f32 %v2214, %v2222
  %v2231 = vmax.f32 %v2215, %v2223
  %v2232 = vmax.f32 %v2216, %v2224
  %v2233 = vmax.f32 %v2217, %v2225
  %v2234 = vmax.f32 %v2218, %v2226
  %v2235 = vmax.f32 %v2219, %v2227
  %v2236 = vpack.c.bf16 %v2228, %v2228
  %v2237 = vpack.c.bf16 %v2229, %v2229
  %v2238 = vpack.c.bf16 %v2230, %v2230
  %v2239 = vpack.c.bf16 %v2231, %v2231
  %v2240 = vpack.c.bf16 %v2232, %v2232
  %v2241 = vpack.c.bf16 %v2233, %v2233
  %v2242 = vpack.c.bf16 %v2234, %v2234
  %v2243 = vpack.c.bf16 %v2235, %v2235
  %s2244 = scalar_lea.vmem %s4, 96
  %2245 = vst.msk [vmem:[%s2244] sm:$0xf] %vm2097, %v2236
  %2246 = vst.msk [vmem:[%s2244 + $0x4] sm:$0xf] %vm2097, %v2237
  %2247 = vst.msk [vmem:[%s2244 + $0x8] sm:$0xf] %vm2097, %v2238
  %2248 = vst.msk [vmem:[%s2244 + $0xc] sm:$0xf] %vm2097, %v2239
  %2249 = vst.msk [vmem:[%s2244 + $0x10] sm:$0xf] %vm2097, %v2240
  %2250 = vst.msk [vmem:[%s2244 + $0x14] sm:$0xf] %vm2097, %v2241
  %2251 = vst.msk [vmem:[%s2244 + $0x18] sm:$0xf] %vm2097, %v2242
  %2252 = vst.msk [vmem:[%s2244 + $0x1c] sm:$0xf] %vm2097, %v2243
  %v2253 = vmul.f32 %v393, %v1980
  %v2254 = vmul.f32 %v395, %v1985
  %v2255 = vmul.f32 %v398, %v1990
  %v2256 = vmul.f32 %v400, %v1995
  %v2257 = vmul.f32 %v403, %v2000
  %v2258 = vmul.f32 %v405, %v2005
  %v2259 = vmul.f32 %v408, %v2010
  %v2260 = vmul.f32 %v410, %v2015
  %v2261 = vadd.f32 %v2253, %v2028
  %v2262 = vadd.f32 %v2254, %v2033
  %v2263 = vadd.f32 %v2255, %v2038
  %v2264 = vadd.f32 %v2256, %v2043
  %v2265 = vadd.f32 %v2257, %v2048
  %v2266 = vadd.f32 %v2258, %v2053
  %v2267 = vadd.f32 %v2259, %v2058
  %v2268 = vadd.f32 %v2260, %v2063
  %v2269 = vmul.f32 %v2261, 0.2
  %v2270 = vmul.f32 %v2262, 0.2
  %v2271 = vmul.f32 %v2263, 0.2
  %v2272 = vmul.f32 %v2264, 0.2
  %v2273 = vmul.f32 %v2265, 0.2
  %v2274 = vmul.f32 %v2266, 0.2
  %v2275 = vmul.f32 %v2267, 0.2
  %v2276 = vmul.f32 %v2268, 0.2
  %v2277 = vmax.f32 %v2261, %v2269
  %v2278 = vmax.f32 %v2262, %v2270
  %v2279 = vmax.f32 %v2263, %v2271
  %v2280 = vmax.f32 %v2264, %v2272
  %v2281 = vmax.f32 %v2265, %v2273
  %v2282 = vmax.f32 %v2266, %v2274
  %v2283 = vmax.f32 %v2267, %v2275
  %v2284 = vmax.f32 %v2268, %v2276
  %v2285 = vpack.c.bf16 %v2277, %v2277
  %v2286 = vpack.c.bf16 %v2278, %v2278
  %v2287 = vpack.c.bf16 %v2279, %v2279
  %v2288 = vpack.c.bf16 %v2280, %v2280
  %v2289 = vpack.c.bf16 %v2281, %v2281
  %v2290 = vpack.c.bf16 %v2282, %v2282
  %v2291 = vpack.c.bf16 %v2283, %v2283
  %v2292 = vpack.c.bf16 %v2284, %v2284
  %s2293 = scalar_lea.vmem %s4, 128
  %2294 = vst.msk [vmem:[%s2293] sm:$0xf] %vm2097, %v2285
  %2295 = vst.msk [vmem:[%s2293 + $0x4] sm:$0xf] %vm2097, %v2286
  %2296 = vst.msk [vmem:[%s2293 + $0x8] sm:$0xf] %vm2097, %v2287
  %2297 = vst.msk [vmem:[%s2293 + $0xc] sm:$0xf] %vm2097, %v2288
  %2298 = vst.msk [vmem:[%s2293 + $0x10] sm:$0xf] %vm2097, %v2289
  %2299 = vst.msk [vmem:[%s2293 + $0x14] sm:$0xf] %vm2097, %v2290
  %2300 = vst.msk [vmem:[%s2293 + $0x18] sm:$0xf] %vm2097, %v2291
  %2301 = vst.msk [vmem:[%s2293 + $0x1c] sm:$0xf] %vm2097, %v2292
  %v2302 = vmul.f32 %v472, %v1980
  %v2303 = vmul.f32 %v474, %v1985
  %v2304 = vmul.f32 %v477, %v1990
  %v2305 = vmul.f32 %v479, %v1995
  %v2306 = vmul.f32 %v482, %v2000
  %v2307 = vmul.f32 %v484, %v2005
  %v2308 = vmul.f32 %v487, %v2010
  %v2309 = vmul.f32 %v489, %v2015
  %v2310 = vadd.f32 %v2302, %v2028
  %v2311 = vadd.f32 %v2303, %v2033
  %v2312 = vadd.f32 %v2304, %v2038
  %v2313 = vadd.f32 %v2305, %v2043
  %v2314 = vadd.f32 %v2306, %v2048
  %v2315 = vadd.f32 %v2307, %v2053
  %v2316 = vadd.f32 %v2308, %v2058
  %v2317 = vadd.f32 %v2309, %v2063
  %v2318 = vmul.f32 %v2310, 0.2
  %v2319 = vmul.f32 %v2311, 0.2
  %v2320 = vmul.f32 %v2312, 0.2
  %v2321 = vmul.f32 %v2313, 0.2
  %v2322 = vmul.f32 %v2314, 0.2
  %v2323 = vmul.f32 %v2315, 0.2
  %v2324 = vmul.f32 %v2316, 0.2
  %v2325 = vmul.f32 %v2317, 0.2
  %v2326 = vmax.f32 %v2310, %v2318
  %v2327 = vmax.f32 %v2311, %v2319
  %v2328 = vmax.f32 %v2312, %v2320
  %v2329 = vmax.f32 %v2313, %v2321
  %v2330 = vmax.f32 %v2314, %v2322
  %v2331 = vmax.f32 %v2315, %v2323
  %v2332 = vmax.f32 %v2316, %v2324
  %v2333 = vmax.f32 %v2317, %v2325
  %v2334 = vpack.c.bf16 %v2326, %v2326
  %v2335 = vpack.c.bf16 %v2327, %v2327
  %v2336 = vpack.c.bf16 %v2328, %v2328
  %v2337 = vpack.c.bf16 %v2329, %v2329
  %v2338 = vpack.c.bf16 %v2330, %v2330
  %v2339 = vpack.c.bf16 %v2331, %v2331
  %v2340 = vpack.c.bf16 %v2332, %v2332
  %v2341 = vpack.c.bf16 %v2333, %v2333
  %s2342 = scalar_lea.vmem %s4, 160
  %2343 = vst.msk [vmem:[%s2342] sm:$0xf] %vm2097, %v2334
  %2344 = vst.msk [vmem:[%s2342 + $0x4] sm:$0xf] %vm2097, %v2335
  %2345 = vst.msk [vmem:[%s2342 + $0x8] sm:$0xf] %vm2097, %v2336
  %2346 = vst.msk [vmem:[%s2342 + $0xc] sm:$0xf] %vm2097, %v2337
  %2347 = vst.msk [vmem:[%s2342 + $0x10] sm:$0xf] %vm2097, %v2338
  %2348 = vst.msk [vmem:[%s2342 + $0x14] sm:$0xf] %vm2097, %v2339
  %2349 = vst.msk [vmem:[%s2342 + $0x18] sm:$0xf] %vm2097, %v2340
  %2350 = vst.msk [vmem:[%s2342 + $0x1c] sm:$0xf] %vm2097, %v2341
  %v2351 = vmul.f32 %v551, %v1980
  %v2352 = vmul.f32 %v553, %v1985
  %v2353 = vmul.f32 %v556, %v1990
  %v2354 = vmul.f32 %v558, %v1995
  %v2355 = vmul.f32 %v561, %v2000
  %v2356 = vmul.f32 %v563, %v2005
  %v2357 = vmul.f32 %v566, %v2010
  %v2358 = vmul.f32 %v568, %v2015
  %v2359 = vadd.f32 %v2351, %v2028
  %v2360 = vadd.f32 %v2352, %v2033
  %v2361 = vadd.f32 %v2353, %v2038
  %v2362 = vadd.f32 %v2354, %v2043
  %v2363 = vadd.f32 %v2355, %v2048
  %v2364 = vadd.f32 %v2356, %v2053
  %v2365 = vadd.f32 %v2357, %v2058
  %v2366 = vadd.f32 %v2358, %v2063
  %v2367 = vmul.f32 %v2359, 0.2
  %v2368 = vmul.f32 %v2360, 0.2
  %v2369 = vmul.f32 %v2361, 0.2
  %v2370 = vmul.f32 %v2362, 0.2
  %v2371 = vmul.f32 %v2363, 0.2
  %v2372 = vmul.f32 %v2364, 0.2
  %v2373 = vmul.f32 %v2365, 0.2
  %v2374 = vmul.f32 %v2366, 0.2
  %v2375 = vmax.f32 %v2359, %v2367
  %v2376 = vmax.f32 %v2360, %v2368
  %v2377 = vmax.f32 %v2361, %v2369
  %v2378 = vmax.f32 %v2362, %v2370
  %v2379 = vmax.f32 %v2363, %v2371
  %v2380 = vmax.f32 %v2364, %v2372
  %v2381 = vmax.f32 %v2365, %v2373
  %v2382 = vmax.f32 %v2366, %v2374
  %v2383 = vpack.c.bf16 %v2375, %v2375
  %v2384 = vpack.c.bf16 %v2376, %v2376
  %v2385 = vpack.c.bf16 %v2377, %v2377
  %v2386 = vpack.c.bf16 %v2378, %v2378
  %v2387 = vpack.c.bf16 %v2379, %v2379
  %v2388 = vpack.c.bf16 %v2380, %v2380
  %v2389 = vpack.c.bf16 %v2381, %v2381
  %v2390 = vpack.c.bf16 %v2382, %v2382
  %s2391 = scalar_lea.vmem %s4, 192
  %2392 = vst.msk [vmem:[%s2391] sm:$0xf] %vm2097, %v2383
  %2393 = vst.msk [vmem:[%s2391 + $0x4] sm:$0xf] %vm2097, %v2384
  %2394 = vst.msk [vmem:[%s2391 + $0x8] sm:$0xf] %vm2097, %v2385
  %2395 = vst.msk [vmem:[%s2391 + $0xc] sm:$0xf] %vm2097, %v2386
  %2396 = vst.msk [vmem:[%s2391 + $0x10] sm:$0xf] %vm2097, %v2387
  %2397 = vst.msk [vmem:[%s2391 + $0x14] sm:$0xf] %vm2097, %v2388
  %2398 = vst.msk [vmem:[%s2391 + $0x18] sm:$0xf] %vm2097, %v2389
  %2399 = vst.msk [vmem:[%s2391 + $0x1c] sm:$0xf] %vm2097, %v2390
  %v2400 = vmul.f32 %v630, %v1980
  %v2401 = vmul.f32 %v632, %v1985
  %v2402 = vmul.f32 %v635, %v1990
  %v2403 = vmul.f32 %v637, %v1995
  %v2404 = vmul.f32 %v640, %v2000
  %v2405 = vmul.f32 %v642, %v2005
  %v2406 = vmul.f32 %v645, %v2010
  %v2407 = vmul.f32 %v647, %v2015
  %v2408 = vadd.f32 %v2400, %v2028
  %v2409 = vadd.f32 %v2401, %v2033
  %v2410 = vadd.f32 %v2402, %v2038
  %v2411 = vadd.f32 %v2403, %v2043
  %v2412 = vadd.f32 %v2404, %v2048
  %v2413 = vadd.f32 %v2405, %v2053
  %v2414 = vadd.f32 %v2406, %v2058
  %v2415 = vadd.f32 %v2407, %v2063
  %v2416 = vmul.f32 %v2408, 0.2
  %v2417 = vmul.f32 %v2409, 0.2
  %v2418 = vmul.f32 %v2410, 0.2
  %v2419 = vmul.f32 %v2411, 0.2
  %v2420 = vmul.f32 %v2412, 0.2
  %v2421 = vmul.f32 %v2413, 0.2
  %v2422 = vmul.f32 %v2414, 0.2
  %v2423 = vmul.f32 %v2415, 0.2
  %v2424 = vmax.f32 %v2408, %v2416
  %v2425 = vmax.f32 %v2409, %v2417
  %v2426 = vmax.f32 %v2410, %v2418
  %v2427 = vmax.f32 %v2411, %v2419
  %v2428 = vmax.f32 %v2412, %v2420
  %v2429 = vmax.f32 %v2413, %v2421
  %v2430 = vmax.f32 %v2414, %v2422
  %v2431 = vmax.f32 %v2415, %v2423
  %v2432 = vpack.c.bf16 %v2424, %v2424
  %v2433 = vpack.c.bf16 %v2425, %v2425
  %v2434 = vpack.c.bf16 %v2426, %v2426
  %v2435 = vpack.c.bf16 %v2427, %v2427
  %v2436 = vpack.c.bf16 %v2428, %v2428
  %v2437 = vpack.c.bf16 %v2429, %v2429
  %v2438 = vpack.c.bf16 %v2430, %v2430
  %v2439 = vpack.c.bf16 %v2431, %v2431
  %s2440 = scalar_lea.vmem %s4, 224
  %2441 = vst.msk [vmem:[%s2440] sm:$0xf] %vm2097, %v2432
  %2442 = vst.msk [vmem:[%s2440 + $0x4] sm:$0xf] %vm2097, %v2433
  %2443 = vst.msk [vmem:[%s2440 + $0x8] sm:$0xf] %vm2097, %v2434
  %2444 = vst.msk [vmem:[%s2440 + $0xc] sm:$0xf] %vm2097, %v2435
  %2445 = vst.msk [vmem:[%s2440 + $0x10] sm:$0xf] %vm2097, %v2436
  %2446 = vst.msk [vmem:[%s2440 + $0x14] sm:$0xf] %vm2097, %v2437
  %2447 = vst.msk [vmem:[%s2440 + $0x18] sm:$0xf] %vm2097, %v2438
  %2448 = vst.msk [vmem:[%s2440 + $0x1c] sm:$0xf] %vm2097, %v2439
  %v2449 = vmul.f32 %v709, %v1980
  %v2450 = vmul.f32 %v711, %v1985
  %v2451 = vmul.f32 %v714, %v1990
  %v2452 = vmul.f32 %v716, %v1995
  %v2453 = vmul.f32 %v719, %v2000
  %v2454 = vmul.f32 %v721, %v2005
  %v2455 = vmul.f32 %v724, %v2010
  %v2456 = vmul.f32 %v726, %v2015
  %v2457 = vadd.f32 %v2449, %v2028
  %v2458 = vadd.f32 %v2450, %v2033
  %v2459 = vadd.f32 %v2451, %v2038
  %v2460 = vadd.f32 %v2452, %v2043
  %v2461 = vadd.f32 %v2453, %v2048
  %v2462 = vadd.f32 %v2454, %v2053
  %v2463 = vadd.f32 %v2455, %v2058
  %v2464 = vadd.f32 %v2456, %v2063
  %v2465 = vmul.f32 %v2457, 0.2
  %v2466 = vmul.f32 %v2458, 0.2
  %v2467 = vmul.f32 %v2459, 0.2
  %v2468 = vmul.f32 %v2460, 0.2
  %v2469 = vmul.f32 %v2461, 0.2
  %v2470 = vmul.f32 %v2462, 0.2
  %v2471 = vmul.f32 %v2463, 0.2
  %v2472 = vmul.f32 %v2464, 0.2
  %v2473 = vmax.f32 %v2457, %v2465
  %v2474 = vmax.f32 %v2458, %v2466
  %v2475 = vmax.f32 %v2459, %v2467
  %v2476 = vmax.f32 %v2460, %v2468
  %v2477 = vmax.f32 %v2461, %v2469
  %v2478 = vmax.f32 %v2462, %v2470
  %v2479 = vmax.f32 %v2463, %v2471
  %v2480 = vmax.f32 %v2464, %v2472
  %v2481 = vpack.c.bf16 %v2473, %v2473
  %v2482 = vpack.c.bf16 %v2474, %v2474
  %v2483 = vpack.c.bf16 %v2475, %v2475
  %v2484 = vpack.c.bf16 %v2476, %v2476
  %v2485 = vpack.c.bf16 %v2477, %v2477
  %v2486 = vpack.c.bf16 %v2478, %v2478
  %v2487 = vpack.c.bf16 %v2479, %v2479
  %v2488 = vpack.c.bf16 %v2480, %v2480
  %s2489 = scalar_lea.vmem %s4, 256
  %2490 = vst.msk [vmem:[%s2489] sm:$0xf] %vm2097, %v2481
  %2491 = vst.msk [vmem:[%s2489 + $0x4] sm:$0xf] %vm2097, %v2482
  %2492 = vst.msk [vmem:[%s2489 + $0x8] sm:$0xf] %vm2097, %v2483
  %2493 = vst.msk [vmem:[%s2489 + $0xc] sm:$0xf] %vm2097, %v2484
  %2494 = vst.msk [vmem:[%s2489 + $0x10] sm:$0xf] %vm2097, %v2485
  %2495 = vst.msk [vmem:[%s2489 + $0x14] sm:$0xf] %vm2097, %v2486
  %2496 = vst.msk [vmem:[%s2489 + $0x18] sm:$0xf] %vm2097, %v2487
  %2497 = vst.msk [vmem:[%s2489 + $0x1c] sm:$0xf] %vm2097, %v2488
  %v2498 = vmul.f32 %v788, %v1980
  %v2499 = vmul.f32 %v790, %v1985
  %v2500 = vmul.f32 %v793, %v1990
  %v2501 = vmul.f32 %v795, %v1995
  %v2502 = vmul.f32 %v798, %v2000
  %v2503 = vmul.f32 %v800, %v2005
  %v2504 = vmul.f32 %v803, %v2010
  %v2505 = vmul.f32 %v805, %v2015
  %v2506 = vadd.f32 %v2498, %v2028
  %v2507 = vadd.f32 %v2499, %v2033
  %v2508 = vadd.f32 %v2500, %v2038
  %v2509 = vadd.f32 %v2501, %v2043
  %v2510 = vadd.f32 %v2502, %v2048
  %v2511 = vadd.f32 %v2503, %v2053
  %v2512 = vadd.f32 %v2504, %v2058
  %v2513 = vadd.f32 %v2505, %v2063
  %v2514 = vmul.f32 %v2506, 0.2
  %v2515 = vmul.f32 %v2507, 0.2
  %v2516 = vmul.f32 %v2508, 0.2
  %v2517 = vmul.f32 %v2509, 0.2
  %v2518 = vmul.f32 %v2510, 0.2
  %v2519 = vmul.f32 %v2511, 0.2
  %v2520 = vmul.f32 %v2512, 0.2
  %v2521 = vmul.f32 %v2513, 0.2
  %v2522 = vmax.f32 %v2506, %v2514
  %v2523 = vmax.f32 %v2507, %v2515
  %v2524 = vmax.f32 %v2508, %v2516
  %v2525 = vmax.f32 %v2509, %v2517
  %v2526 = vmax.f32 %v2510, %v2518
  %v2527 = vmax.f32 %v2511, %v2519
  %v2528 = vmax.f32 %v2512, %v2520
  %v2529 = vmax.f32 %v2513, %v2521
  %v2530 = vpack.c.bf16 %v2522, %v2522
  %v2531 = vpack.c.bf16 %v2523, %v2523
  %v2532 = vpack.c.bf16 %v2524, %v2524
  %v2533 = vpack.c.bf16 %v2525, %v2525
  %v2534 = vpack.c.bf16 %v2526, %v2526
  %v2535 = vpack.c.bf16 %v2527, %v2527
  %v2536 = vpack.c.bf16 %v2528, %v2528
  %v2537 = vpack.c.bf16 %v2529, %v2529
  %s2538 = scalar_lea.vmem %s4, 288
  %2539 = vst.msk [vmem:[%s2538] sm:$0xf] %vm2097, %v2530
  %2540 = vst.msk [vmem:[%s2538 + $0x4] sm:$0xf] %vm2097, %v2531
  %2541 = vst.msk [vmem:[%s2538 + $0x8] sm:$0xf] %vm2097, %v2532
  %2542 = vst.msk [vmem:[%s2538 + $0xc] sm:$0xf] %vm2097, %v2533
  %2543 = vst.msk [vmem:[%s2538 + $0x10] sm:$0xf] %vm2097, %v2534
  %2544 = vst.msk [vmem:[%s2538 + $0x14] sm:$0xf] %vm2097, %v2535
  %2545 = vst.msk [vmem:[%s2538 + $0x18] sm:$0xf] %vm2097, %v2536
  %2546 = vst.msk [vmem:[%s2538 + $0x1c] sm:$0xf] %vm2097, %v2537
  %v2547 = vmul.f32 %v867, %v1980
  %v2548 = vmul.f32 %v869, %v1985
  %v2549 = vmul.f32 %v872, %v1990
  %v2550 = vmul.f32 %v874, %v1995
  %v2551 = vmul.f32 %v877, %v2000
  %v2552 = vmul.f32 %v879, %v2005
  %v2553 = vmul.f32 %v882, %v2010
  %v2554 = vmul.f32 %v884, %v2015
  %v2555 = vadd.f32 %v2547, %v2028
  %v2556 = vadd.f32 %v2548, %v2033
  %v2557 = vadd.f32 %v2549, %v2038
  %v2558 = vadd.f32 %v2550, %v2043
  %v2559 = vadd.f32 %v2551, %v2048
  %v2560 = vadd.f32 %v2552, %v2053
  %v2561 = vadd.f32 %v2553, %v2058
  %v2562 = vadd.f32 %v2554, %v2063
  %v2563 = vmul.f32 %v2555, 0.2
  %v2564 = vmul.f32 %v2556, 0.2
  %v2565 = vmul.f32 %v2557, 0.2
  %v2566 = vmul.f32 %v2558, 0.2
  %v2567 = vmul.f32 %v2559, 0.2
  %v2568 = vmul.f32 %v2560, 0.2
  %v2569 = vmul.f32 %v2561, 0.2
  %v2570 = vmul.f32 %v2562, 0.2
  %v2571 = vmax.f32 %v2555, %v2563
  %v2572 = vmax.f32 %v2556, %v2564
  %v2573 = vmax.f32 %v2557, %v2565
  %v2574 = vmax.f32 %v2558, %v2566
  %v2575 = vmax.f32 %v2559, %v2567
  %v2576 = vmax.f32 %v2560, %v2568
  %v2577 = vmax.f32 %v2561, %v2569
  %v2578 = vmax.f32 %v2562, %v2570
  %v2579 = vpack.c.bf16 %v2571, %v2571
  %v2580 = vpack.c.bf16 %v2572, %v2572
  %v2581 = vpack.c.bf16 %v2573, %v2573
  %v2582 = vpack.c.bf16 %v2574, %v2574
  %v2583 = vpack.c.bf16 %v2575, %v2575
  %v2584 = vpack.c.bf16 %v2576, %v2576
  %v2585 = vpack.c.bf16 %v2577, %v2577
  %v2586 = vpack.c.bf16 %v2578, %v2578
  %s2587 = scalar_lea.vmem %s4, 320
  %2588 = vst.msk [vmem:[%s2587] sm:$0xf] %vm2097, %v2579
  %2589 = vst.msk [vmem:[%s2587 + $0x4] sm:$0xf] %vm2097, %v2580
  %2590 = vst.msk [vmem:[%s2587 + $0x8] sm:$0xf] %vm2097, %v2581
  %2591 = vst.msk [vmem:[%s2587 + $0xc] sm:$0xf] %vm2097, %v2582
  %2592 = vst.msk [vmem:[%s2587 + $0x10] sm:$0xf] %vm2097, %v2583
  %2593 = vst.msk [vmem:[%s2587 + $0x14] sm:$0xf] %vm2097, %v2584
  %2594 = vst.msk [vmem:[%s2587 + $0x18] sm:$0xf] %vm2097, %v2585
  %2595 = vst.msk [vmem:[%s2587 + $0x1c] sm:$0xf] %vm2097, %v2586
  %v2596 = vmul.f32 %v946, %v1980
  %v2597 = vmul.f32 %v948, %v1985
  %v2598 = vmul.f32 %v951, %v1990
  %v2599 = vmul.f32 %v953, %v1995
  %v2600 = vmul.f32 %v956, %v2000
  %v2601 = vmul.f32 %v958, %v2005
  %v2602 = vmul.f32 %v961, %v2010
  %v2603 = vmul.f32 %v963, %v2015
  %v2604 = vadd.f32 %v2596, %v2028
  %v2605 = vadd.f32 %v2597, %v2033
  %v2606 = vadd.f32 %v2598, %v2038
  %v2607 = vadd.f32 %v2599, %v2043
  %v2608 = vadd.f32 %v2600, %v2048
  %v2609 = vadd.f32 %v2601, %v2053
  %v2610 = vadd.f32 %v2602, %v2058
  %v2611 = vadd.f32 %v2603, %v2063
  %v2612 = vmul.f32 %v2604, 0.2
  %v2613 = vmul.f32 %v2605, 0.2
  %v2614 = vmul.f32 %v2606, 0.2
  %v2615 = vmul.f32 %v2607, 0.2
  %v2616 = vmul.f32 %v2608, 0.2
  %v2617 = vmul.f32 %v2609, 0.2
  %v2618 = vmul.f32 %v2610, 0.2
  %v2619 = vmul.f32 %v2611, 0.2
  %v2620 = vmax.f32 %v2604, %v2612
  %v2621 = vmax.f32 %v2605, %v2613
  %v2622 = vmax.f32 %v2606, %v2614
  %v2623 = vmax.f32 %v2607, %v2615
  %v2624 = vmax.f32 %v2608, %v2616
  %v2625 = vmax.f32 %v2609, %v2617
  %v2626 = vmax.f32 %v2610, %v2618
  %v2627 = vmax.f32 %v2611, %v2619
  %v2628 = vpack.c.bf16 %v2620, %v2620
  %v2629 = vpack.c.bf16 %v2621, %v2621
  %v2630 = vpack.c.bf16 %v2622, %v2622
  %v2631 = vpack.c.bf16 %v2623, %v2623
  %v2632 = vpack.c.bf16 %v2624, %v2624
  %v2633 = vpack.c.bf16 %v2625, %v2625
  %v2634 = vpack.c.bf16 %v2626, %v2626
  %v2635 = vpack.c.bf16 %v2627, %v2627
  %s2636 = scalar_lea.vmem %s4, 352
  %2637 = vst.msk [vmem:[%s2636] sm:$0xf] %vm2097, %v2628
  %2638 = vst.msk [vmem:[%s2636 + $0x4] sm:$0xf] %vm2097, %v2629
  %2639 = vst.msk [vmem:[%s2636 + $0x8] sm:$0xf] %vm2097, %v2630
  %2640 = vst.msk [vmem:[%s2636 + $0xc] sm:$0xf] %vm2097, %v2631
  %2641 = vst.msk [vmem:[%s2636 + $0x10] sm:$0xf] %vm2097, %v2632
  %2642 = vst.msk [vmem:[%s2636 + $0x14] sm:$0xf] %vm2097, %v2633
  %2643 = vst.msk [vmem:[%s2636 + $0x18] sm:$0xf] %vm2097, %v2634
  %2644 = vst.msk [vmem:[%s2636 + $0x1c] sm:$0xf] %vm2097, %v2635
  %v2645 = vmul.f32 %v1025, %v1980
  %v2646 = vmul.f32 %v1027, %v1985
  %v2647 = vmul.f32 %v1030, %v1990
  %v2648 = vmul.f32 %v1032, %v1995
  %v2649 = vmul.f32 %v1035, %v2000
  %v2650 = vmul.f32 %v1037, %v2005
  %v2651 = vmul.f32 %v1040, %v2010
  %v2652 = vmul.f32 %v1042, %v2015
  %v2653 = vadd.f32 %v2645, %v2028
  %v2654 = vadd.f32 %v2646, %v2033
  %v2655 = vadd.f32 %v2647, %v2038
  %v2656 = vadd.f32 %v2648, %v2043
  %v2657 = vadd.f32 %v2649, %v2048
  %v2658 = vadd.f32 %v2650, %v2053
  %v2659 = vadd.f32 %v2651, %v2058
  %v2660 = vadd.f32 %v2652, %v2063
  %v2661 = vmul.f32 %v2653, 0.2
  %v2662 = vmul.f32 %v2654, 0.2
  %v2663 = vmul.f32 %v2655, 0.2
  %v2664 = vmul.f32 %v2656, 0.2
  %v2665 = vmul.f32 %v2657, 0.2
  %v2666 = vmul.f32 %v2658, 0.2
  %v2667 = vmul.f32 %v2659, 0.2
  %v2668 = vmul.f32 %v2660, 0.2
  %v2669 = vmax.f32 %v2653, %v2661
  %v2670 = vmax.f32 %v2654, %v2662
  %v2671 = vmax.f32 %v2655, %v2663
  %v2672 = vmax.f32 %v2656, %v2664
  %v2673 = vmax.f32 %v2657, %v2665
  %v2674 = vmax.f32 %v2658, %v2666
  %v2675 = vmax.f32 %v2659, %v2667
  %v2676 = vmax.f32 %v2660, %v2668
  %v2677 = vpack.c.bf16 %v2669, %v2669
  %v2678 = vpack.c.bf16 %v2670, %v2670
  %v2679 = vpack.c.bf16 %v2671, %v2671
  %v2680 = vpack.c.bf16 %v2672, %v2672
  %v2681 = vpack.c.bf16 %v2673, %v2673
  %v2682 = vpack.c.bf16 %v2674, %v2674
  %v2683 = vpack.c.bf16 %v2675, %v2675
  %v2684 = vpack.c.bf16 %v2676, %v2676
  %s2685 = scalar_lea.vmem %s4, 384
  %2686 = vst.msk [vmem:[%s2685] sm:$0xf] %vm2097, %v2677
  %2687 = vst.msk [vmem:[%s2685 + $0x4] sm:$0xf] %vm2097, %v2678
  %2688 = vst.msk [vmem:[%s2685 + $0x8] sm:$0xf] %vm2097, %v2679
  %2689 = vst.msk [vmem:[%s2685 + $0xc] sm:$0xf] %vm2097, %v2680
  %2690 = vst.msk [vmem:[%s2685 + $0x10] sm:$0xf] %vm2097, %v2681
  %2691 = vst.msk [vmem:[%s2685 + $0x14] sm:$0xf] %vm2097, %v2682
  %2692 = vst.msk [vmem:[%s2685 + $0x18] sm:$0xf] %vm2097, %v2683
  %2693 = vst.msk [vmem:[%s2685 + $0x1c] sm:$0xf] %vm2097, %v2684
  %v2694 = vmul.f32 %v1104, %v1980
  %v2695 = vmul.f32 %v1106, %v1985
  %v2696 = vmul.f32 %v1109, %v1990
  %v2697 = vmul.f32 %v1111, %v1995
  %v2698 = vmul.f32 %v1114, %v2000
  %v2699 = vmul.f32 %v1116, %v2005
  %v2700 = vmul.f32 %v1119, %v2010
  %v2701 = vmul.f32 %v1121, %v2015
  %v2702 = vadd.f32 %v2694, %v2028
  %v2703 = vadd.f32 %v2695, %v2033
  %v2704 = vadd.f32 %v2696, %v2038
  %v2705 = vadd.f32 %v2697, %v2043
  %v2706 = vadd.f32 %v2698, %v2048
  %v2707 = vadd.f32 %v2699, %v2053
  %v2708 = vadd.f32 %v2700, %v2058
  %v2709 = vadd.f32 %v2701, %v2063
  %v2710 = vmul.f32 %v2702, 0.2
  %v2711 = vmul.f32 %v2703, 0.2
  %v2712 = vmul.f32 %v2704, 0.2
  %v2713 = vmul.f32 %v2705, 0.2
  %v2714 = vmul.f32 %v2706, 0.2
  %v2715 = vmul.f32 %v2707, 0.2
  %v2716 = vmul.f32 %v2708, 0.2
  %v2717 = vmul.f32 %v2709, 0.2
  %v2718 = vmax.f32 %v2702, %v2710
  %v2719 = vmax.f32 %v2703, %v2711
  %v2720 = vmax.f32 %v2704, %v2712
  %v2721 = vmax.f32 %v2705, %v2713
  %v2722 = vmax.f32 %v2706, %v2714
  %v2723 = vmax.f32 %v2707, %v2715
  %v2724 = vmax.f32 %v2708, %v2716
  %v2725 = vmax.f32 %v2709, %v2717
  %v2726 = vpack.c.bf16 %v2718, %v2718
  %v2727 = vpack.c.bf16 %v2719, %v2719
  %v2728 = vpack.c.bf16 %v2720, %v2720
  %v2729 = vpack.c.bf16 %v2721, %v2721
  %v2730 = vpack.c.bf16 %v2722, %v2722
  %v2731 = vpack.c.bf16 %v2723, %v2723
  %v2732 = vpack.c.bf16 %v2724, %v2724
  %v2733 = vpack.c.bf16 %v2725, %v2725
  %s2734 = scalar_lea.vmem %s4, 416
  %2735 = vst.msk [vmem:[%s2734] sm:$0xf] %vm2097, %v2726
  %2736 = vst.msk [vmem:[%s2734 + $0x4] sm:$0xf] %vm2097, %v2727
  %2737 = vst.msk [vmem:[%s2734 + $0x8] sm:$0xf] %vm2097, %v2728
  %2738 = vst.msk [vmem:[%s2734 + $0xc] sm:$0xf] %vm2097, %v2729
  %2739 = vst.msk [vmem:[%s2734 + $0x10] sm:$0xf] %vm2097, %v2730
  %2740 = vst.msk [vmem:[%s2734 + $0x14] sm:$0xf] %vm2097, %v2731
  %2741 = vst.msk [vmem:[%s2734 + $0x18] sm:$0xf] %vm2097, %v2732
  %2742 = vst.msk [vmem:[%s2734 + $0x1c] sm:$0xf] %vm2097, %v2733
  %v2743 = vmul.f32 %v1183, %v1980
  %v2744 = vmul.f32 %v1185, %v1985
  %v2745 = vmul.f32 %v1188, %v1990
  %v2746 = vmul.f32 %v1190, %v1995
  %v2747 = vmul.f32 %v1193, %v2000
  %v2748 = vmul.f32 %v1195, %v2005
  %v2749 = vmul.f32 %v1198, %v2010
  %v2750 = vmul.f32 %v1200, %v2015
  %v2751 = vadd.f32 %v2743, %v2028
  %v2752 = vadd.f32 %v2744, %v2033
  %v2753 = vadd.f32 %v2745, %v2038
  %v2754 = vadd.f32 %v2746, %v2043
  %v2755 = vadd.f32 %v2747, %v2048
  %v2756 = vadd.f32 %v2748, %v2053
  %v2757 = vadd.f32 %v2749, %v2058
  %v2758 = vadd.f32 %v2750, %v2063
  %v2759 = vmul.f32 %v2751, 0.2
  %v2760 = vmul.f32 %v2752, 0.2
  %v2761 = vmul.f32 %v2753, 0.2
  %v2762 = vmul.f32 %v2754, 0.2
  %v2763 = vmul.f32 %v2755, 0.2
  %v2764 = vmul.f32 %v2756, 0.2
  %v2765 = vmul.f32 %v2757, 0.2
  %v2766 = vmul.f32 %v2758, 0.2
  %v2767 = vmax.f32 %v2751, %v2759
  %v2768 = vmax.f32 %v2752, %v2760
  %v2769 = vmax.f32 %v2753, %v2761
  %v2770 = vmax.f32 %v2754, %v2762
  %v2771 = vmax.f32 %v2755, %v2763
  %v2772 = vmax.f32 %v2756, %v2764
  %v2773 = vmax.f32 %v2757, %v2765
  %v2774 = vmax.f32 %v2758, %v2766
  %v2775 = vpack.c.bf16 %v2767, %v2767
  %v2776 = vpack.c.bf16 %v2768, %v2768
  %v2777 = vpack.c.bf16 %v2769, %v2769
  %v2778 = vpack.c.bf16 %v2770, %v2770
  %v2779 = vpack.c.bf16 %v2771, %v2771
  %v2780 = vpack.c.bf16 %v2772, %v2772
  %v2781 = vpack.c.bf16 %v2773, %v2773
  %v2782 = vpack.c.bf16 %v2774, %v2774
  %s2783 = scalar_lea.vmem %s4, 448
  %2784 = vst.msk [vmem:[%s2783] sm:$0xf] %vm2097, %v2775
  %2785 = vst.msk [vmem:[%s2783 + $0x4] sm:$0xf] %vm2097, %v2776
  %2786 = vst.msk [vmem:[%s2783 + $0x8] sm:$0xf] %vm2097, %v2777
  %2787 = vst.msk [vmem:[%s2783 + $0xc] sm:$0xf] %vm2097, %v2778
  %2788 = vst.msk [vmem:[%s2783 + $0x10] sm:$0xf] %vm2097, %v2779
  %2789 = vst.msk [vmem:[%s2783 + $0x14] sm:$0xf] %vm2097, %v2780
  %2790 = vst.msk [vmem:[%s2783 + $0x18] sm:$0xf] %vm2097, %v2781
  %2791 = vst.msk [vmem:[%s2783 + $0x1c] sm:$0xf] %vm2097, %v2782
  %v2792 = vmul.f32 %v1262, %v1980
  %v2793 = vmul.f32 %v1264, %v1985
  %v2794 = vmul.f32 %v1267, %v1990
  %v2795 = vmul.f32 %v1269, %v1995
  %v2796 = vmul.f32 %v1272, %v2000
  %v2797 = vmul.f32 %v1274, %v2005
  %v2798 = vmul.f32 %v1277, %v2010
  %v2799 = vmul.f32 %v1279, %v2015
  %v2800 = vadd.f32 %v2792, %v2028
  %v2801 = vadd.f32 %v2793, %v2033
  %v2802 = vadd.f32 %v2794, %v2038
  %v2803 = vadd.f32 %v2795, %v2043
  %v2804 = vadd.f32 %v2796, %v2048
  %v2805 = vadd.f32 %v2797, %v2053
  %v2806 = vadd.f32 %v2798, %v2058
  %v2807 = vadd.f32 %v2799, %v2063
  %v2808 = vmul.f32 %v2800, 0.2
  %v2809 = vmul.f32 %v2801, 0.2
  %v2810 = vmul.f32 %v2802, 0.2
  %v2811 = vmul.f32 %v2803, 0.2
  %v2812 = vmul.f32 %v2804, 0.2
  %v2813 = vmul.f32 %v2805, 0.2
  %v2814 = vmul.f32 %v2806, 0.2
  %v2815 = vmul.f32 %v2807, 0.2
  %v2816 = vmax.f32 %v2800, %v2808
  %v2817 = vmax.f32 %v2801, %v2809
  %v2818 = vmax.f32 %v2802, %v2810
  %v2819 = vmax.f32 %v2803, %v2811
  %v2820 = vmax.f32 %v2804, %v2812
  %v2821 = vmax.f32 %v2805, %v2813
  %v2822 = vmax.f32 %v2806, %v2814
  %v2823 = vmax.f32 %v2807, %v2815
  %v2824 = vpack.c.bf16 %v2816, %v2816
  %v2825 = vpack.c.bf16 %v2817, %v2817
  %v2826 = vpack.c.bf16 %v2818, %v2818
  %v2827 = vpack.c.bf16 %v2819, %v2819
  %v2828 = vpack.c.bf16 %v2820, %v2820
  %v2829 = vpack.c.bf16 %v2821, %v2821
  %v2830 = vpack.c.bf16 %v2822, %v2822
  %v2831 = vpack.c.bf16 %v2823, %v2823
  %s2832 = scalar_lea.vmem %s4, 480
  %2833 = vst.msk [vmem:[%s2832] sm:$0xf] %vm2097, %v2824
  %2834 = vst.msk [vmem:[%s2832 + $0x4] sm:$0xf] %vm2097, %v2825
  %2835 = vst.msk [vmem:[%s2832 + $0x8] sm:$0xf] %vm2097, %v2826
  %2836 = vst.msk [vmem:[%s2832 + $0xc] sm:$0xf] %vm2097, %v2827
  %2837 = vst.msk [vmem:[%s2832 + $0x10] sm:$0xf] %vm2097, %v2828
  %2838 = vst.msk [vmem:[%s2832 + $0x14] sm:$0xf] %vm2097, %v2829
  %2839 = vst.msk [vmem:[%s2832 + $0x18] sm:$0xf] %vm2097, %v2830
  %2840 = vst.msk [vmem:[%s2832 + $0x1c] sm:$0xf] %vm2097, %v2831
  // Predicated region
  $region18: #{generator_64_forward.5} parent=0 // pred_check
    _
  $region19: #{generator_64_forward.5} parent=0 // pred_check_branch
    %2842 = sbr.rel (0) target = $region21
  $region20: #{generator_64_forward.5} parent=0 // pred_region
    _
  $region21: #{generator_64_forward.5} parent=0 // pred_fallthru
    _
  // Predicated region
  $region22: #{generator_64_forward.5} parent=0 // pred_check
    _
  $region23: #{generator_64_forward.5} parent=0 // pred_check_branch
    %2844 = sbr.rel (0) target = $region25
  $region24: #{generator_64_forward.5} parent=0 // pred_region
    _
  $region25: #{generator_64_forward.5} parent=0 // pred_fallthru
    _

// kernel: generator_64_forward.6
$region0: #{generator_64_forward.6}
  #allocation0 [shape = 'u32[]', space=smem, size = 0x4, offset = 0x4, fixed_abs, tag = 'smem constant byte address 0x4 - core index']
  #allocation1 [shape = 'u32[72,128]{1,0:T(1,128)}', space=vmem, size = 0x9000, scoped, tag = 'internal scratch']
  %s0 = inlined_call_operand.vmem [shape: bf16[4,256,32], index: 0, kind: input, shape index: {}]
  %s1 = inlined_call_operand.vmem [shape: bf16[4,32,256], index: 1, kind: input, shape index: {}]
  %s2 = inlined_call_operand.vmem [shape: f32[32,1], index: 2, kind: input, shape index: {}]
  %s3 = inlined_call_operand.vmem [shape: f32[32,1], index: 3, kind: input, shape index: {}]
  %s4 = inlined_call_operand.vmem [shape: bf16[4,32,32], index: 4, kind: output, shape index: {}]
  %s5 = sld [smem:[#allocation0]]
  $region26: #{generator_64_forward.6} parent=0
    _
  %s7 = ssub.s32 1, %s5
  %s8 = scalar_select 0, %s7, %s5
  // Predicated region
  $region2: #{generator_64_forward.6} parent=0 // pred_check
    _
  $region3: #{generator_64_forward.6} parent=0 // pred_check_branch
    %10 = sbr.rel (0) target = $region5
  $region4: #{generator_64_forward.6} parent=0 // pred_region
    _
  $region5: #{generator_64_forward.6} parent=0 // pred_fallthru
    _
  // Predicated region
  $region6: #{generator_64_forward.6} parent=0 // pred_check
    _
  $region7: #{generator_64_forward.6} parent=0 // pred_check_branch
    %12 = sbr.rel (0) target = $region9
  $region8: #{generator_64_forward.6} parent=0 // pred_region
    _
  $region9: #{generator_64_forward.6} parent=0 // pred_fallthru
    _
  // Predicated region
  $region10: #{generator_64_forward.6} parent=0 // pred_check
    _
  $region11: #{generator_64_forward.6} parent=0 // pred_check_branch
    %14 = sbr.rel (0) target = $region13
  $region12: #{generator_64_forward.6} parent=0 // pred_region
    _
  $region13: #{generator_64_forward.6} parent=0 // pred_fallthru
    _
  // Predicated region
  $region14: #{generator_64_forward.6} parent=0 // pred_check
    _
  $region15: #{generator_64_forward.6} parent=0 // pred_check_branch
    %16 = sbr.rel (0) target = $region17
  $region16: #{generator_64_forward.6} parent=0 // pred_region
    _
  $region17: #{generator_64_forward.6} parent=0 // pred_fallthru
    _
  %v17 = vld [vmem:[%s1] sm:$0xff]
  %v18 = vld [vmem:[%s1 + $0x8] sm:$0xff]
  %v19 = vld [vmem:[%s1 + $0x10] sm:$0xff]
  %v20 = vld [vmem:[%s1 + $0x18] sm:$0xff]
  %v21 = vld [vmem:[%s0] sm:$0xf]
  %v22 = vld [vmem:[%s0 + $0x4] sm:$0xf]
  %v23 = vld [vmem:[%s0 + $0x8] sm:$0xf]
  %v24 = vld [vmem:[%s0 + $0xc] sm:$0xf]
  %v25 = vld [vmem:[%s0 + $0x10] sm:$0xf]
  %v26 = vld [vmem:[%s0 + $0x14] sm:$0xf]
  %v27 = vld [vmem:[%s0 + $0x18] sm:$0xf]
  %v28 = vld [vmem:[%s0 + $0x1c] sm:$0xf]
  %v29 = vld [vmem:[%s0 + $0x20] sm:$0xf]
  %v30 = vld [vmem:[%s0 + $0x24] sm:$0xf]
  %v31 = vld [vmem:[%s0 + $0x28] sm:$0xf]
  %v32 = vld [vmem:[%s0 + $0x2c] sm:$0xf]
  %v33 = vld [vmem:[%s0 + $0x30] sm:$0xf]
  %v34 = vld [vmem:[%s0 + $0x34] sm:$0xf]
  %v35 = vld [vmem:[%s0 + $0x38] sm:$0xf]
  %v36 = vld [vmem:[%s0 + $0x3c] sm:$0xf]
  %v37 = vld [vmem:[%s0 + $0x40] sm:$0xf]
  %v38 = vld [vmem:[%s0 + $0x44] sm:$0xf]
  %v39 = vld [vmem:[%s0 + $0x48] sm:$0xf]
  %v40 = vld [vmem:[%s0 + $0x4c] sm:$0xf]
  %v41 = vld [vmem:[%s0 + $0x50] sm:$0xf]
  %v42 = vld [vmem:[%s0 + $0x54] sm:$0xf]
  %v43 = vld [vmem:[%s0 + $0x58] sm:$0xf]
  %v44 = vld [vmem:[%s0 + $0x5c] sm:$0xf]
  %v45 = vld [vmem:[%s0 + $0x60] sm:$0xf]
  %v46 = vld [vmem:[%s0 + $0x64] sm:$0xf]
  %v47 = vld [vmem:[%s0 + $0x68] sm:$0xf]
  %v48 = vld [vmem:[%s0 + $0x6c] sm:$0xf]
  %v49 = vld [vmem:[%s0 + $0x70] sm:$0xf]
  %v50 = vld [vmem:[%s0 + $0x74] sm:$0xf]
  %v51 = vld [vmem:[%s0 + $0x78] sm:$0xf]
  %v52 = vld [vmem:[%s0 + $0x7c] sm:$0xf]
  %v57 = vunpack.c.l.b16 %v17
  %v58 = vunpack.c.h.b16 %v17
  %v59 = vunpack.c.l.b16 %v18
  %v60 = vunpack.c.h.b16 %v18
  %v61 = vunpack.c.l.b16 %v19
  %v62 = vunpack.c.h.b16 %v19
  %v63 = vunpack.c.l.b16 %v20
  %v64 = vunpack.c.h.b16 %v20
  %v65 = vpack.c.b16 %v59, %v57
  %v66 = vpack.c.b16 %v60, %v58
  %v67 = vpack.c.b16 %v63, %v61
  %v68 = vpack.c.b16 %v64, %v62
  %v105 = vunpack.c.l.b16 %v21
  %v106 = vunpack.c.l.b16 %v22
  %v107 = vunpack.c.l.b16 %v23
  %v108 = vunpack.c.l.b16 %v24
  %v109 = vunpack.c.l.b16 %v25
  %v110 = vunpack.c.l.b16 %v26
  %v111 = vunpack.c.l.b16 %v27
  %v112 = vunpack.c.l.b16 %v28
  %v113 = vunpack.c.l.b16 %v29
  %v114 = vunpack.c.l.b16 %v30
  %v115 = vunpack.c.l.b16 %v31
  %v116 = vunpack.c.l.b16 %v32
  %v117 = vunpack.c.l.b16 %v33
  %v118 = vunpack.c.l.b16 %v34
  %v119 = vunpack.c.l.b16 %v35
  %v120 = vunpack.c.l.b16 %v36
  %v121 = vunpack.c.l.b16 %v37
  %v122 = vunpack.c.l.b16 %v38
  %v123 = vunpack.c.l.b16 %v39
  %v124 = vunpack.c.l.b16 %v40
  %v125 = vunpack.c.l.b16 %v41
  %v126 = vunpack.c.l.b16 %v42
  %v127 = vunpack.c.l.b16 %v43
  %v128 = vunpack.c.l.b16 %v44
  %v129 = vunpack.c.l.b16 %v45
  %v130 = vunpack.c.l.b16 %v46
  %v131 = vunpack.c.l.b16 %v47
  %v132 = vunpack.c.l.b16 %v48
  %v133 = vunpack.c.l.b16 %v49
  %v134 = vunpack.c.l.b16 %v50
  %v135 = vunpack.c.l.b16 %v51
  %v136 = vunpack.c.l.b16 %v52
  %v137 = vpack.c.b16 %v106, %v105
  %v138 = vpack.c.b16 %v108, %v107
  %v139 = vpack.c.b16 %v110, %v109
  %v140 = vpack.c.b16 %v112, %v111
  %v141 = vpack.c.b16 %v114, %v113
  %v142 = vpack.c.b16 %v116, %v115
  %v143 = vpack.c.b16 %v118, %v117
  %v144 = vpack.c.b16 %v120, %v119
  %v145 = vpack.c.b16 %v122, %v121
  %v146 = vpack.c.b16 %v124, %v123
  %v147 = vpack.c.b16 %v126, %v125
  %v148 = vpack.c.b16 %v128, %v127
  %v149 = vpack.c.b16 %v130, %v129
  %v150 = vpack.c.b16 %v132, %v131
  %v151 = vpack.c.b16 %v134, %v133
  %v152 = vpack.c.b16 %v136, %v135
  %169 = vmatpush.bf16.msra.mxu0 %v144
  %170 = vmatpush.bf16.msra.mxu0 %v143
  %171 = vmatpush.bf16.msra.mxu0 %v142
  %172 = vmatpush.bf16.msra.mxu0 %v141
  %173 = vmatpush.bf16.msra.mxu0 %v140
  %174 = vmatpush.bf16.msra.mxu0 %v139
  %175 = vmatpush.bf16.msra.mxu0 %v138
  %176 = vmatpush.bf16.msra.mxu0 %v137
  %177 = vmatmul.bf16.gmra.mxu0 %v65
  %v178 = vpop.f32.mrf.mxu0
  %v179 = vadd.f32 0.0, %v178
  %v180 = vpop.f32.mrf.mxu0
  %v181 = vadd.f32 0.0, %v180
  %182 = vmatmul.bf16.gmra.mxu0 %v67
  %v183 = vpop.f32.mrf.mxu0
  %v184 = vadd.f32 0.0, %v183
  %v185 = vpop.f32.mrf.mxu0
  %v186 = vadd.f32 0.0, %v185
  %187 = vdwg.mxu0
  %188 = vmatpush.bf16.msra.mxu0 %v152
  %189 = vmatpush.bf16.msra.mxu0 %v151
  %190 = vmatpush.bf16.msra.mxu0 %v150
  %191 = vmatpush.bf16.msra.mxu0 %v149
  %192 = vmatpush.bf16.msra.mxu0 %v148
  %193 = vmatpush.bf16.msra.mxu0 %v147
  %194 = vmatpush.bf16.msra.mxu0 %v146
  %195 = vmatpush.bf16.msra.mxu0 %v145
  %196 = vmatmul.bf16.gmra.mxu0 %v66
  %v197 = vpop.f32.mrf.mxu0
  %v198 = vadd.f32 %v179, %v197
  %v199 = vpop.f32.mrf.mxu0
  %v200 = vadd.f32 %v181, %v199
  %201 = vmatmul.bf16.gmra.mxu0 %v68
  %v202 = vpop.f32.mrf.mxu0
  %v203 = vadd.f32 %v184, %v202
  %v204 = vpop.f32.mrf.mxu0
  %v205 = vadd.f32 %v186, %v204
  %206 = vdwg.mxu0
  %s207 = scalar_lea.vmem %s1, 32
  %v208 = vld [vmem:[%s207] sm:$0xff]
  %v209 = vld [vmem:[%s207 + $0x8] sm:$0xff]
  %v210 = vld [vmem:[%s207 + $0x10] sm:$0xff]
  %v211 = vld [vmem:[%s207 + $0x18] sm:$0xff]
  %s212 = scalar_lea.vmem %s0, 128
  %v213 = vld [vmem:[%s212] sm:$0xf]
  %v214 = vld [vmem:[%s212 + $0x4] sm:$0xf]
  %v215 = vld [vmem:[%s212 + $0x8] sm:$0xf]
  %v216 = vld [vmem:[%s212 + $0xc] sm:$0xf]
  %v217 = vld [vmem:[%s212 + $0x10] sm:$0xf]
  %v218 = vld [vmem:[%s212 + $0x14] sm:$0xf]
  %v219 = vld [vmem:[%s212 + $0x18] sm:$0xf]
  %v220 = vld [vmem:[%s212 + $0x1c] sm:$0xf]
  %v221 = vld [vmem:[%s212 + $0x20] sm:$0xf]
  %v222 = vld [vmem:[%s212 + $0x24] sm:$0xf]
  %v223 = vld [vmem:[%s212 + $0x28] sm:$0xf]
  %v224 = vld [vmem:[%s212 + $0x2c] sm:$0xf]
  %v225 = vld [vmem:[%s212 + $0x30] sm:$0xf]
  %v226 = vld [vmem:[%s212 + $0x34] sm:$0xf]
  %v227 = vld [vmem:[%s212 + $0x38] sm:$0xf]
  %v228 = vld [vmem:[%s212 + $0x3c] sm:$0xf]
  %v229 = vld [vmem:[%s212 + $0x40] sm:$0xf]
  %v230 = vld [vmem:[%s212 + $0x44] sm:$0xf]
  %v231 = vld [vmem:[%s212 + $0x48] sm:$0xf]
  %v232 = vld [vmem:[%s212 + $0x4c] sm:$0xf]
  %v233 = vld [vmem:[%s212 + $0x50] sm:$0xf]
  %v234 = vld [vmem:[%s212 + $0x54] sm:$0xf]
  %v235 = vld [vmem:[%s212 + $0x58] sm:$0xf]
  %v236 = vld [vmem:[%s212 + $0x5c] sm:$0xf]
  %v237 = vld [vmem:[%s212 + $0x60] sm:$0xf]
  %v238 = vld [vmem:[%s212 + $0x64] sm:$0xf]
  %v239 = vld [vmem:[%s212 + $0x68] sm:$0xf]
  %v240 = vld [vmem:[%s212 + $0x6c] sm:$0xf]
  %v241 = vld [vmem:[%s212 + $0x70] sm:$0xf]
  %v242 = vld [vmem:[%s212 + $0x74] sm:$0xf]
  %v243 = vld [vmem:[%s212 + $0x78] sm:$0xf]
  %v244 = vld [vmem:[%s212 + $0x7c] sm:$0xf]
  %v249 = vunpack.c.l.b16 %v208
  %v250 = vunpack.c.h.b16 %v208
  %v251 = vunpack.c.l.b16 %v209
  %v252 = vunpack.c.h.b16 %v209
  %v253 = vunpack.c.l.b16 %v210
  %v254 = vunpack.c.h.b16 %v210
  %v255 = vunpack.c.l.b16 %v211
  %v256 = vunpack.c.h.b16 %v211
  %v257 = vpack.c.b16 %v251, %v249
  %v258 = vpack.c.b16 %v252, %v250
  %v259 = vpack.c.b16 %v255, %v253
  %v260 = vpack.c.b16 %v256, %v254
  %v297 = vunpack.c.l.b16 %v213
  %v298 = vunpack.c.l.b16 %v214
  %v299 = vunpack.c.l.b16 %v215
  %v300 = vunpack.c.l.b16 %v216
  %v301 = vunpack.c.l.b16 %v217
  %v302 = vunpack.c.l.b16 %v218
  %v303 = vunpack.c.l.b16 %v219
  %v304 = vunpack.c.l.b16 %v220
  %v305 = vunpack.c.l.b16 %v221
  %v306 = vunpack.c.l.b16 %v222
  %v307 = vunpack.c.l.b16 %v223
  %v308 = vunpack.c.l.b16 %v224
  %v309 = vunpack.c.l.b16 %v225
  %v310 = vunpack.c.l.b16 %v226
  %v311 = vunpack.c.l.b16 %v227
  %v312 = vunpack.c.l.b16 %v228
  %v313 = vunpack.c.l.b16 %v229
  %v314 = vunpack.c.l.b16 %v230
  %v315 = vunpack.c.l.b16 %v231
  %v316 = vunpack.c.l.b16 %v232
  %v317 = vunpack.c.l.b16 %v233
  %v318 = vunpack.c.l.b16 %v234
  %v319 = vunpack.c.l.b16 %v235
  %v320 = vunpack.c.l.b16 %v236
  %v321 = vunpack.c.l.b16 %v237
  %v322 = vunpack.c.l.b16 %v238
  %v323 = vunpack.c.l.b16 %v239
  %v324 = vunpack.c.l.b16 %v240
  %v325 = vunpack.c.l.b16 %v241
  %v326 = vunpack.c.l.b16 %v242
  %v327 = vunpack.c.l.b16 %v243
  %v328 = vunpack.c.l.b16 %v244
  %v329 = vpack.c.b16 %v298, %v297
  %v330 = vpack.c.b16 %v300, %v299
  %v331 = vpack.c.b16 %v302, %v301
  %v332 = vpack.c.b16 %v304, %v303
  %v333 = vpack.c.b16 %v306, %v305
  %v334 = vpack.c.b16 %v308, %v307
  %v335 = vpack.c.b16 %v310, %v309
  %v336 = vpack.c.b16 %v312, %v311
  %v337 = vpack.c.b16 %v314, %v313
  %v338 = vpack.c.b16 %v316, %v315
  %v339 = vpack.c.b16 %v318, %v317
  %v340 = vpack.c.b16 %v320, %v319
  %v341 = vpack.c.b16 %v322, %v321
  %v342 = vpack.c.b16 %v324, %v323
  %v343 = vpack.c.b16 %v326, %v325
  %v344 = vpack.c.b16 %v328, %v327
  %361 = vmatpush.bf16.msra.mxu0 %v336
  %362 = vmatpush.bf16.msra.mxu0 %v335
  %363 = vmatpush.bf16.msra.mxu0 %v334
  %364 = vmatpush.bf16.msra.mxu0 %v333
  %365 = vmatpush.bf16.msra.mxu0 %v332
  %366 = vmatpush.bf16.msra.mxu0 %v331
  %367 = vmatpush.bf16.msra.mxu0 %v330
  %368 = vmatpush.bf16.msra.mxu0 %v329
  %369 = vmatmul.bf16.gmra.mxu0 %v257
  %v370 = vpop.f32.mrf.mxu0
  %v371 = vadd.f32 0.0, %v370
  %v372 = vpop.f32.mrf.mxu0
  %v373 = vadd.f32 0.0, %v372
  %374 = vmatmul.bf16.gmra.mxu0 %v259
  %v375 = vpop.f32.mrf.mxu0
  %v376 = vadd.f32 0.0, %v375
  %v377 = vpop.f32.mrf.mxu0
  %v378 = vadd.f32 0.0, %v377
  %379 = vdwg.mxu0
  %380 = vmatpush.bf16.msra.mxu0 %v344
  %381 = vmatpush.bf16.msra.mxu0 %v343
  %382 = vmatpush.bf16.msra.mxu0 %v342
  %383 = vmatpush.bf16.msra.mxu0 %v341
  %384 = vmatpush.bf16.msra.mxu0 %v340
  %385 = vmatpush.bf16.msra.mxu0 %v339
  %386 = vmatpush.bf16.msra.mxu0 %v338
  %387 = vmatpush.bf16.msra.mxu0 %v337
  %388 = vmatmul.bf16.gmra.mxu0 %v258
  %v389 = vpop.f32.mrf.mxu0
  %v390 = vadd.f32 %v371, %v389
  %v391 = vpop.f32.mrf.mxu0
  %v392 = vadd.f32 %v373, %v391
  %393 = vmatmul.bf16.gmra.mxu0 %v260
  %v394 = vpop.f32.mrf.mxu0
  %v395 = vadd.f32 %v376, %v394
  %v396 = vpop.f32.mrf.mxu0
  %v397 = vadd.f32 %v378, %v396
  %398 = vdwg.mxu0
  %s399 = scalar_lea.vmem %s1, 64
  %v400 = vld [vmem:[%s399] sm:$0xff]
  %v401 = vld [vmem:[%s399 + $0x8] sm:$0xff]
  %v402 = vld [vmem:[%s399 + $0x10] sm:$0xff]
  %v403 = vld [vmem:[%s399 + $0x18] sm:$0xff]
  %s404 = scalar_lea.vmem %s0, 256
  %v405 = vld [vmem:[%s404] sm:$0xf]
  %v406 = vld [vmem:[%s404 + $0x4] sm:$0xf]
  %v407 = vld [vmem:[%s404 + $0x8] sm:$0xf]
  %v408 = vld [vmem:[%s404 + $0xc] sm:$0xf]
  %v409 = vld [vmem:[%s404 + $0x10] sm:$0xf]
  %v410 = vld [vmem:[%s404 + $0x14] sm:$0xf]
  %v411 = vld [vmem:[%s404 + $0x18] sm:$0xf]
  %v412 = vld [vmem:[%s404 + $0x1c] sm:$0xf]
  %v413 = vld [vmem:[%s404 + $0x20] sm:$0xf]
  %v414 = vld [vmem:[%s404 + $0x24] sm:$0xf]
  %v415 = vld [vmem:[%s404 + $0x28] sm:$0xf]
  %v416 = vld [vmem:[%s404 + $0x2c] sm:$0xf]
  %v417 = vld [vmem:[%s404 + $0x30] sm:$0xf]
  %v418 = vld [vmem:[%s404 + $0x34] sm:$0xf]
  %v419 = vld [vmem:[%s404 + $0x38] sm:$0xf]
  %v420 = vld [vmem:[%s404 + $0x3c] sm:$0xf]
  %v421 = vld [vmem:[%s404 + $0x40] sm:$0xf]
  %v422 = vld [vmem:[%s404 + $0x44] sm:$0xf]
  %v423 = vld [vmem:[%s404 + $0x48] sm:$0xf]
  %v424 = vld [vmem:[%s404 + $0x4c] sm:$0xf]
  %v425 = vld [vmem:[%s404 + $0x50] sm:$0xf]
  %v426 = vld [vmem:[%s404 + $0x54] sm:$0xf]
  %v427 = vld [vmem:[%s404 + $0x58] sm:$0xf]
  %v428 = vld [vmem:[%s404 + $0x5c] sm:$0xf]
  %v429 = vld [vmem:[%s404 + $0x60] sm:$0xf]
  %v430 = vld [vmem:[%s404 + $0x64] sm:$0xf]
  %v431 = vld [vmem:[%s404 + $0x68] sm:$0xf]
  %v432 = vld [vmem:[%s404 + $0x6c] sm:$0xf]
  %v433 = vld [vmem:[%s404 + $0x70] sm:$0xf]
  %v434 = vld [vmem:[%s404 + $0x74] sm:$0xf]
  %v435 = vld [vmem:[%s404 + $0x78] sm:$0xf]
  %v436 = vld [vmem:[%s404 + $0x7c] sm:$0xf]
  %v441 = vunpack.c.l.b16 %v400
  %v442 = vunpack.c.h.b16 %v400
  %v443 = vunpack.c.l.b16 %v401
  %v444 = vunpack.c.h.b16 %v401
  %v445 = vunpack.c.l.b16 %v402
  %v446 = vunpack.c.h.b16 %v402
  %v447 = vunpack.c.l.b16 %v403
  %v448 = vunpack.c.h.b16 %v403
  %v449 = vpack.c.b16 %v443, %v441
  %v450 = vpack.c.b16 %v444, %v442
  %v451 = vpack.c.b16 %v447, %v445
  %v452 = vpack.c.b16 %v448, %v446
  %v489 = vunpack.c.l.b16 %v405
  %v490 = vunpack.c.l.b16 %v406
  %v491 = vunpack.c.l.b16 %v407
  %v492 = vunpack.c.l.b16 %v408
  %v493 = vunpack.c.l.b16 %v409
  %v494 = vunpack.c.l.b16 %v410
  %v495 = vunpack.c.l.b16 %v411
  %v496 = vunpack.c.l.b16 %v412
  %v497 = vunpack.c.l.b16 %v413
  %v498 = vunpack.c.l.b16 %v414
  %v499 = vunpack.c.l.b16 %v415
  %v500 = vunpack.c.l.b16 %v416
  %v501 = vunpack.c.l.b16 %v417
  %v502 = vunpack.c.l.b16 %v418
  %v503 = vunpack.c.l.b16 %v419
  %v504 = vunpack.c.l.b16 %v420
  %v505 = vunpack.c.l.b16 %v421
  %v506 = vunpack.c.l.b16 %v422
  %v507 = vunpack.c.l.b16 %v423
  %v508 = vunpack.c.l.b16 %v424
  %v509 = vunpack.c.l.b16 %v425
  %v510 = vunpack.c.l.b16 %v426
  %v511 = vunpack.c.l.b16 %v427
  %v512 = vunpack.c.l.b16 %v428
  %v513 = vunpack.c.l.b16 %v429
  %v514 = vunpack.c.l.b16 %v430
  %v515 = vunpack.c.l.b16 %v431
  %v516 = vunpack.c.l.b16 %v432
  %v517 = vunpack.c.l.b16 %v433
  %v518 = vunpack.c.l.b16 %v434
  %v519 = vunpack.c.l.b16 %v435
  %v520 = vunpack.c.l.b16 %v436
  %v521 = vpack.c.b16 %v490, %v489
  %v522 = vpack.c.b16 %v492, %v491
  %v523 = vpack.c.b16 %v494, %v493
  %v524 = vpack.c.b16 %v496, %v495
  %v525 = vpack.c.b16 %v498, %v497
  %v526 = vpack.c.b16 %v500, %v499
  %v527 = vpack.c.b16 %v502, %v501
  %v528 = vpack.c.b16 %v504, %v503
  %v529 = vpack.c.b16 %v506, %v505
  %v530 = vpack.c.b16 %v508, %v507
  %v531 = vpack.c.b16 %v510, %v509
  %v532 = vpack.c.b16 %v512, %v511
  %v533 = vpack.c.b16 %v514, %v513
  %v534 = vpack.c.b16 %v516, %v515
  %v535 = vpack.c.b16 %v518, %v517
  %v536 = vpack.c.b16 %v520, %v519
  %553 = vmatpush.bf16.msra.mxu0 %v528
  %554 = vmatpush.bf16.msra.mxu0 %v527
  %555 = vmatpush.bf16.msra.mxu0 %v526
  %556 = vmatpush.bf16.msra.mxu0 %v525
  %557 = vmatpush.bf16.msra.mxu0 %v524
  %558 = vmatpush.bf16.msra.mxu0 %v523
  %559 = vmatpush.bf16.msra.mxu0 %v522
  %560 = vmatpush.bf16.msra.mxu0 %v521
  %561 = vmatmul.bf16.gmra.mxu0 %v449
  %v562 = vpop.f32.mrf.mxu0
  %v563 = vadd.f32 0.0, %v562
  %v564 = vpop.f32.mrf.mxu0
  %v565 = vadd.f32 0.0, %v564
  %566 = vmatmul.bf16.gmra.mxu0 %v451
  %v567 = vpop.f32.mrf.mxu0
  %v568 = vadd.f32 0.0, %v567
  %v569 = vpop.f32.mrf.mxu0
  %v570 = vadd.f32 0.0, %v569
  %571 = vdwg.mxu0
  %572 = vmatpush.bf16.msra.mxu0 %v536
  %573 = vmatpush.bf16.msra.mxu0 %v535
  %574 = vmatpush.bf16.msra.mxu0 %v534
  %575 = vmatpush.bf16.msra.mxu0 %v533
  %576 = vmatpush.bf16.msra.mxu0 %v532
  %577 = vmatpush.bf16.msra.mxu0 %v531
  %578 = vmatpush.bf16.msra.mxu0 %v530
  %579 = vmatpush.bf16.msra.mxu0 %v529
  %580 = vmatmul.bf16.gmra.mxu0 %v450
  %v581 = vpop.f32.mrf.mxu0
  %v582 = vadd.f32 %v563, %v581
  %v583 = vpop.f32.mrf.mxu0
  %v584 = vadd.f32 %v565, %v583
  %585 = vmatmul.bf16.gmra.mxu0 %v452
  %v586 = vpop.f32.mrf.mxu0
  %v587 = vadd.f32 %v568, %v586
  %v588 = vpop.f32.mrf.mxu0
  %v589 = vadd.f32 %v570, %v588
  %590 = vdwg.mxu0
  %s591 = scalar_lea.vmem %s1, 96
  %v592 = vld [vmem:[%s591] sm:$0xff]
  %v593 = vld [vmem:[%s591 + $0x8] sm:$0xff]
  %v594 = vld [vmem:[%s591 + $0x10] sm:$0xff]
  %v595 = vld [vmem:[%s591 + $0x18] sm:$0xff]
  %s596 = scalar_lea.vmem %s0, 384
  %v597 = vld [vmem:[%s596] sm:$0xf]
  %v598 = vld [vmem:[%s596 + $0x4] sm:$0xf]
  %v599 = vld [vmem:[%s596 + $0x8] sm:$0xf]
  %v600 = vld [vmem:[%s596 + $0xc] sm:$0xf]
  %v601 = vld [vmem:[%s596 + $0x10] sm:$0xf]
  %v602 = vld [vmem:[%s596 + $0x14] sm:$0xf]
  %v603 = vld [vmem:[%s596 + $0x18] sm:$0xf]
  %v604 = vld [vmem:[%s596 + $0x1c] sm:$0xf]
  %v605 = vld [vmem:[%s596 + $0x20] sm:$0xf]
  %v606 = vld [vmem:[%s596 + $0x24] sm:$0xf]
  %v607 = vld [vmem:[%s596 + $0x28] sm:$0xf]
  %v608 = vld [vmem:[%s596 + $0x2c] sm:$0xf]
  %v609 = vld [vmem:[%s596 + $0x30] sm:$0xf]
  %v610 = vld [vmem:[%s596 + $0x34] sm:$0xf]
  %v611 = vld [vmem:[%s596 + $0x38] sm:$0xf]
  %v612 = vld [vmem:[%s596 + $0x3c] sm:$0xf]
  %v613 = vld [vmem:[%s596 + $0x40] sm:$0xf]
  %v614 = vld [vmem:[%s596 + $0x44] sm:$0xf]
  %v615 = vld [vmem:[%s596 + $0x48] sm:$0xf]
  %v616 = vld [vmem:[%s596 + $0x4c] sm:$0xf]
  %v617 = vld [vmem:[%s596 + $0x50] sm:$0xf]
  %v618 = vld [vmem:[%s596 + $0x54] sm:$0xf]
  %v619 = vld [vmem:[%s596 + $0x58] sm:$0xf]
  %v620 = vld [vmem:[%s596 + $0x5c] sm:$0xf]
  %v621 = vld [vmem:[%s596 + $0x60] sm:$0xf]
  %v622 = vld [vmem:[%s596 + $0x64] sm:$0xf]
  %v623 = vld [vmem:[%s596 + $0x68] sm:$0xf]
  %v624 = vld [vmem:[%s596 + $0x6c] sm:$0xf]
  %v625 = vld [vmem:[%s596 + $0x70] sm:$0xf]
  %v626 = vld [vmem:[%s596 + $0x74] sm:$0xf]
  %v627 = vld [vmem:[%s596 + $0x78] sm:$0xf]
  %v628 = vld [vmem:[%s596 + $0x7c] sm:$0xf]
  %v633 = vunpack.c.l.b16 %v592
  %v634 = vunpack.c.h.b16 %v592
  %v635 = vunpack.c.l.b16 %v593
  %v636 = vunpack.c.h.b16 %v593
  %v637 = vunpack.c.l.b16 %v594
  %v638 = vunpack.c.h.b16 %v594
  %v639 = vunpack.c.l.b16 %v595
  %v640 = vunpack.c.h.b16 %v595
  %v641 = vpack.c.b16 %v635, %v633
  %v642 = vpack.c.b16 %v636, %v634
  %v643 = vpack.c.b16 %v639, %v637
  %v644 = vpack.c.b16 %v640, %v638
  %v681 = vunpack.c.l.b16 %v597
  %v682 = vunpack.c.l.b16 %v598
  %v683 = vunpack.c.l.b16 %v599
  %v684 = vunpack.c.l.b16 %v600
  %v685 = vunpack.c.l.b16 %v601
  %v686 = vunpack.c.l.b16 %v602
  %v687 = vunpack.c.l.b16 %v603
  %v688 = vunpack.c.l.b16 %v604
  %v689 = vunpack.c.l.b16 %v605
  %v690 = vunpack.c.l.b16 %v606
  %v691 = vunpack.c.l.b16 %v607
  %v692 = vunpack.c.l.b16 %v608
  %v693 = vunpack.c.l.b16 %v609
  %v694 = vunpack.c.l.b16 %v610
  %v695 = vunpack.c.l.b16 %v611
  %v696 = vunpack.c.l.b16 %v612
  %v697 = vunpack.c.l.b16 %v613
  %v698 = vunpack.c.l.b16 %v614
  %v699 = vunpack.c.l.b16 %v615
  %v700 = vunpack.c.l.b16 %v616
  %v701 = vunpack.c.l.b16 %v617
  %v702 = vunpack.c.l.b16 %v618
  %v703 = vunpack.c.l.b16 %v619
  %v704 = vunpack.c.l.b16 %v620
  %v705 = vunpack.c.l.b16 %v621
  %v706 = vunpack.c.l.b16 %v622
  %v707 = vunpack.c.l.b16 %v623
  %v708 = vunpack.c.l.b16 %v624
  %v709 = vunpack.c.l.b16 %v625
  %v710 = vunpack.c.l.b16 %v626
  %v711 = vunpack.c.l.b16 %v627
  %v712 = vunpack.c.l.b16 %v628
  %v713 = vpack.c.b16 %v682, %v681
  %v714 = vpack.c.b16 %v684, %v683
  %v715 = vpack.c.b16 %v686, %v685
  %v716 = vpack.c.b16 %v688, %v687
  %v717 = vpack.c.b16 %v690, %v689
  %v718 = vpack.c.b16 %v692, %v691
  %v719 = vpack.c.b16 %v694, %v693
  %v720 = vpack.c.b16 %v696, %v695
  %v721 = vpack.c.b16 %v698, %v697
  %v722 = vpack.c.b16 %v700, %v699
  %v723 = vpack.c.b16 %v702, %v701
  %v724 = vpack.c.b16 %v704, %v703
  %v725 = vpack.c.b16 %v706, %v705
  %v726 = vpack.c.b16 %v708, %v707
  %v727 = vpack.c.b16 %v710, %v709
  %v728 = vpack.c.b16 %v712, %v711
  %745 = vmatpush.bf16.msra.mxu0 %v720
  %746 = vmatpush.bf16.msra.mxu0 %v719
  %747 = vmatpush.bf16.msra.mxu0 %v718
  %748 = vmatpush.bf16.msra.mxu0 %v717
  %749 = vmatpush.bf16.msra.mxu0 %v716
  %750 = vmatpush.bf16.msra.mxu0 %v715
  %751 = vmatpush.bf16.msra.mxu0 %v714
  %752 = vmatpush.bf16.msra.mxu0 %v713
  %753 = vmatmul.bf16.gmra.mxu0 %v641
  %v754 = vpop.f32.mrf.mxu0
  %v755 = vadd.f32 0.0, %v754
  %v756 = vpop.f32.mrf.mxu0
  %v757 = vadd.f32 0.0, %v756
  %758 = vmatmul.bf16.gmra.mxu0 %v643
  %v759 = vpop.f32.mrf.mxu0
  %v760 = vadd.f32 0.0, %v759
  %v761 = vpop.f32.mrf.mxu0
  %v762 = vadd.f32 0.0, %v761
  %763 = vdwg.mxu0
  %764 = vmatpush.bf16.msra.mxu0 %v728
  %765 = vmatpush.bf16.msra.mxu0 %v727
  %766 = vmatpush.bf16.msra.mxu0 %v726
  %767 = vmatpush.bf16.msra.mxu0 %v725
  %768 = vmatpush.bf16.msra.mxu0 %v724
  %769 = vmatpush.bf16.msra.mxu0 %v723
  %770 = vmatpush.bf16.msra.mxu0 %v722
  %771 = vmatpush.bf16.msra.mxu0 %v721
  %772 = vmatmul.bf16.gmra.mxu0 %v642
  %v773 = vpop.f32.mrf.mxu0
  %v774 = vadd.f32 %v755, %v773
  %v775 = vpop.f32.mrf.mxu0
  %v776 = vadd.f32 %v757, %v775
  %777 = vmatmul.bf16.gmra.mxu0 %v644
  %v778 = vpop.f32.mrf.mxu0
  %v779 = vadd.f32 %v760, %v778
  %v780 = vpop.f32.mrf.mxu0
  %v781 = vadd.f32 %v762, %v780
  %782 = vdwg.mxu0
  %v783 = vadd.f32 %v198, %v390
  %v784 = vadd.f32 %v200, %v392
  %v785 = vadd.f32 %v203, %v395
  %v786 = vadd.f32 %v205, %v397
  %v787 = vadd.f32 %v783, %v582
  %v788 = vadd.f32 %v784, %v584
  %v789 = vadd.f32 %v785, %v587
  %v790 = vadd.f32 %v786, %v589
  %v791 = vadd.f32 %v787, %v774
  %v792 = vadd.f32 %v788, %v776
  %v793 = vadd.f32 %v789, %v779
  %v794 = vadd.f32 %v790, %v781
  %vm795 = vcmask 261120
  %v796 = vsel %vm795, %v791, 0.0
  %797 = vadd.xlane.f32.xlu0 %v796
  %v798 = vpop.xlane.xlu0 %797
  %v799 = vsel %vm795, %v792, 0.0
  %800 = vadd.xlane.f32.xlu0 %v799
  %v801 = vpop.xlane.xlu0 %800
  %v802 = vsel %vm795, %v793, 0.0
  %803 = vadd.xlane.f32.xlu0 %v802
  %v804 = vpop.xlane.xlu0 %803
  %v805 = vsel %vm795, %v794, 0.0
  %806 = vadd.xlane.f32.xlu0 %v805
  %v807 = vpop.xlane.xlu0 %806
  %v808 = vrcp.pop 128.0
  %v809 = vmul.f32 128.0, %v808
  %v810 = vsub.f32 1.0, %v809
  %v811 = vmul.f32 %v808, %v810
  %v812 = vadd.f32 %v808, %v811
  %vm813 = vweird.f32 %v808
  %v814 = vsel %vm813, %v808, %v812
  %v815 = vmul.f32 %v798, %v814
  %v816 = vmul.f32 %v801, %v814
  %v817 = vmul.f32 %v804, %v814
  %v818 = vmul.f32 %v807, %v814
  %v819 = vsub.f32 %v198, %v815
  %v820 = vsub.f32 %v200, %v816
  %v821 = vsub.f32 %v203, %v817
  %v822 = vsub.f32 %v205, %v818
  %v823 = vmul.f32 %v819, %v819
  %v824 = vmul.f32 %v820, %v820
  %v825 = vmul.f32 %v821, %v821
  %v826 = vmul.f32 %v822, %v822
  %v827 = vsub.f32 %v390, %v815
  %v828 = vsub.f32 %v392, %v816
  %v829 = vsub.f32 %v395, %v817
  %v830 = vsub.f32 %v397, %v818
  %v831 = vmul.f32 %v827, %v827
  %v832 = vmul.f32 %v828, %v828
  %v833 = vmul.f32 %v829, %v829
  %v834 = vmul.f32 %v830, %v830
  %v835 = vadd.f32 %v823, %v831
  %v836 = vadd.f32 %v824, %v832
  %v837 = vadd.f32 %v825, %v833
  %v838 = vadd.f32 %v826, %v834
  %v839 = vsub.f32 %v582, %v815
  %v840 = vsub.f32 %v584, %v816
  %v841 = vsub.f32 %v587, %v817
  %v842 = vsub.f32 %v589, %v818
  %v843 = vmul.f32 %v839, %v839
  %v844 = vmul.f32 %v840, %v840
  %v845 = vmul.f32 %v841, %v841
  %v846 = vmul.f32 %v842, %v842
  %v847 = vadd.f32 %v835, %v843
  %v848 = vadd.f32 %v836, %v844
  %v849 = vadd.f32 %v837, %v845
  %v850 = vadd.f32 %v838, %v846
  %v851 = vsub.f32 %v774, %v815
  %v852 = vsub.f32 %v776, %v816
  %v853 = vsub.f32 %v779, %v817
  %v854 = vsub.f32 %v781, %v818
  %v855 = vmul.f32 %v851, %v851
  %v856 = vmul.f32 %v852, %v852
  %v857 = vmul.f32 %v853, %v853
  %v858 = vmul.f32 %v854, %v854
  %v859 = vadd.f32 %v847, %v855
  %v860 = vadd.f32 %v848, %v856
  %v861 = vadd.f32 %v849, %v857
  %v862 = vadd.f32 %v850, %v858
  %v863 = vsel %vm795, %v859, 0.0
  %864 = vadd.xlane.f32.xlu0 %v863
  %v865 = vpop.xlane.xlu0 %864
  %v866 = vsel %vm795, %v860, 0.0
  %867 = vadd.xlane.f32.xlu0 %v866
  %v868 = vpop.xlane.xlu0 %867
  %v869 = vsel %vm795, %v861, 0.0
  %870 = vadd.xlane.f32.xlu0 %v869
  %v871 = vpop.xlane.xlu0 %870
  %v872 = vsel %vm795, %v862, 0.0
  %873 = vadd.xlane.f32.xlu0 %v872
  %v874 = vpop.xlane.xlu0 %873
  %v875 = vmul.f32 %v865, %v814
  %v876 = vmul.f32 %v868, %v814
  %v877 = vmul.f32 %v871, %v814
  %v878 = vmul.f32 %v874, %v814
  %v879 = vld [vmem:[%s2] sm:$0xff]
  %v880 = vld [vmem:[%s2 + $0x8] sm:$0xff]
  %v881 = vld [vmem:[%s2 + $0x10] sm:$0xff]
  %v882 = vld [vmem:[%s2 + $0x18] sm:$0xff]
  %v883 = vadd.f32 %v875, 1e-05
  %v884 = vadd.f32 %v876, 1e-05
  %v885 = vadd.f32 %v877, 1e-05
  %v886 = vadd.f32 %v878, 1e-05
  %v887 = vrsqrt.pop %v883
  %v888 = vmul.f32 %v887, %v883
  %v889 = vmul.f32 %v888, %v887
  %v890 = vmul.f32 0.5, %v889
  %v891 = vsub.f32 1.5, %v890
  %v892 = vmul.f32 %v887, %v891
  %vm893 = vweird.f32 %v883
  %vm894 = vweird.f32 %v887
  %vm895 = vmor %vm893, %vm894
  %v896 = vsel %vm895, %v887, %v892
  %v897 = vrsqrt.pop %v884
  %v898 = vmul.f32 %v897, %v884
  %v899 = vmul.f32 %v898, %v897
  %v900 = vmul.f32 0.5, %v899
  %v901 = vsub.f32 1.5, %v900
  %v902 = vmul.f32 %v897, %v901
  %vm903 = vweird.f32 %v884
  %vm904 = vweird.f32 %v897
  %vm905 = vmor %vm903, %vm904
  %v906 = vsel %vm905, %v897, %v902
  %v907 = vrsqrt.pop %v885
  %v908 = vmul.f32 %v907, %v885
  %v909 = vmul.f32 %v908, %v907
  %v910 = vmul.f32 0.5, %v909
  %v911 = vsub.f32 1.5, %v910
  %v912 = vmul.f32 %v907, %v911
  %vm913 = vweird.f32 %v885
  %vm914 = vweird.f32 %v907
  %vm915 = vmor %vm913, %vm914
  %v916 = vsel %vm915, %v907, %v912
  %v917 = vrsqrt.pop %v886
  %v918 = vmul.f32 %v917, %v886
  %v919 = vmul.f32 %v918, %v917
  %v920 = vmul.f32 0.5, %v919
  %v921 = vsub.f32 1.5, %v920
  %v922 = vmul.f32 %v917, %v921
  %vm923 = vweird.f32 %v886
  %vm924 = vweird.f32 %v917
  %vm925 = vmor %vm923, %vm924
  %v926 = vsel %vm925, %v917, %v922
  %v927 = vmul.f32 %v879, %v896
  %v928 = vmul.f32 %v880, %v906
  %v929 = vmul.f32 %v881, %v916
  %v930 = vmul.f32 %v882, %v926
  %v931 = vld [vmem:[%s3] sm:$0xff]
  %v932 = vld [vmem:[%s3 + $0x8] sm:$0xff]
  %v933 = vld [vmem:[%s3 + $0x10] sm:$0xff]
  %v934 = vld [vmem:[%s3 + $0x18] sm:$0xff]
  %v935 = vmul.f32 %v815, %v927
  %v936 = vmul.f32 %v816, %v928
  %v937 = vmul.f32 %v817, %v929
  %v938 = vmul.f32 %v818, %v930
  %v939 = vsub.f32 %v931, %v935
  %v940 = vsub.f32 %v932, %v936
  %v941 = vsub.f32 %v933, %v937
  %v942 = vsub.f32 %v934, %v938
  %944 = vset.pattern.permute.xlu0 0
  %945 = vperm.xlu0 %944, %v927
  %v946 = vpop.permute.xlu0 %945
  %949 = vset.pattern.permute.xlu0 0
  %950 = vperm.xlu0 %949, %v928
  %v951 = vpop.permute.xlu0 %950
  %954 = vset.pattern.permute.xlu0 0
  %955 = vperm.xlu0 %954, %v929
  %v956 = vpop.permute.xlu0 %955
  %959 = vset.pattern.permute.xlu0 0
  %960 = vperm.xlu0 %959, %v930
  %v961 = vpop.permute.xlu0 %960
  %v963 = vmul.f32 %v198, %v946
  %v964 = vmul.f32 %v200, %v951
  %v965 = vmul.f32 %v203, %v956
  %v966 = vmul.f32 %v205, %v961
  %968 = vset.pattern.permute.xlu0 0
  %969 = vperm.xlu0 %968, %v939
  %v970 = vpop.permute.xlu0 %969
  %973 = vset.pattern.permute.xlu0 0
  %974 = vperm.xlu0 %973, %v940
  %v975 = vpop.permute.xlu0 %974
  %978 = vset.pattern.permute.xlu0 0
  %979 = vperm.xlu0 %978, %v941
  %v980 = vpop.permute.xlu0 %979
  %983 = vset.pattern.permute.xlu0 0
  %984 = vperm.xlu0 %983, %v942
  %v985 = vpop.permute.xlu0 %984
  %v987 = vadd.f32 %v963, %v970
  %v988 = vadd.f32 %v964, %v975
  %v989 = vadd.f32 %v965, %v980
  %v990 = vadd.f32 %v966, %v985
  %v991 = vmul.f32 %v987, 0.2
  %v992 = vmul.f32 %v988, 0.2
  %v993 = vmul.f32 %v989, 0.2
  %v994 = vmul.f32 %v990, 0.2
  %v995 = vmax.f32 %v987, %v991
  %v996 = vmax.f32 %v988, %v992
  %v997 = vmax.f32 %v989, %v993
  %v998 = vmax.f32 %v990, %v994
  %v999 = vpack.c.bf16 %v995, %v995
  %v1000 = vpack.c.bf16 %v996, %v996
  %v1001 = vpack.c.bf16 %v997, %v997
  %v1002 = vpack.c.bf16 %v998, %v998
  %vm1003 = vcmask 257024
  %1004 = vst.msk [vmem:[%s4] sm:$0xf] %vm1003, %v999
  %1005 = vst.msk [vmem:[%s4 + $0x4] sm:$0xf] %vm1003, %v1000
  %1006 = vst.msk [vmem:[%s4 + $0x8] sm:$0xf] %vm1003, %v1001
  %1007 = vst.msk [vmem:[%s4 + $0xc] sm:$0xf] %vm1003, %v1002
  %v1008 = vmul.f32 %v390, %v946
  %v1009 = vmul.f32 %v392, %v951
  %v1010 = vmul.f32 %v395, %v956
  %v1011 = vmul.f32 %v397, %v961
  %v1012 = vadd.f32 %v1008, %v970
  %v1013 = vadd.f32 %v1009, %v975
  %v1014 = vadd.f32 %v1010, %v980
  %v1015 = vadd.f32 %v1011, %v985
  %v1016 = vmul.f32 %v1012, 0.2
  %v1017 = vmul.f32 %v1013, 0.2
  %v1018 = vmul.f32 %v1014, 0.2
  %v1019 = vmul.f32 %v1015, 0.2
  %v1020 = vmax.f32 %v1012, %v1016
  %v1021 = vmax.f32 %v1013, %v1017
  %v1022 = vmax.f32 %v1014, %v1018
  %v1023 = vmax.f32 %v1015, %v1019
  %v1024 = vpack.c.bf16 %v1020, %v1020
  %v1025 = vpack.c.bf16 %v1021, %v1021
  %v1026 = vpack.c.bf16 %v1022, %v1022
  %v1027 = vpack.c.bf16 %v1023, %v1023
  %s1028 = scalar_lea.vmem %s4, 16
  %1029 = vst.msk [vmem:[%s1028] sm:$0xf] %vm1003, %v1024
  %1030 = vst.msk [vmem:[%s1028 + $0x4] sm:$0xf] %vm1003, %v1025
  %1031 = vst.msk [vmem:[%s1028 + $0x8] sm:$0xf] %vm1003, %v1026
  %1032 = vst.msk [vmem:[%s1028 + $0xc] sm:$0xf] %vm1003, %v1027
  %v1033 = vmul.f32 %v582, %v946
  %v1034 = vmul.f32 %v584, %v951
  %v1035 = vmul.f32 %v587, %v956
  %v1036 = vmul.f32 %v589, %v961
  %v1037 = vadd.f32 %v1033, %v970
  %v1038 = vadd.f32 %v1034, %v975
  %v1039 = vadd.f32 %v1035, %v980
  %v1040 = vadd.f32 %v1036, %v985
  %v1041 = vmul.f32 %v1037, 0.2
  %v1042 = vmul.f32 %v1038, 0.2
  %v1043 = vmul.f32 %v1039, 0.2
  %v1044 = vmul.f32 %v1040, 0.2
  %v1045 = vmax.f32 %v1037, %v1041
  %v1046 = vmax.f32 %v1038, %v1042
  %v1047 = vmax.f32 %v1039, %v1043
  %v1048 = vmax.f32 %v1040, %v1044
  %v1049 = vpack.c.bf16 %v1045, %v1045
  %v1050 = vpack.c.bf16 %v1046, %v1046
  %v1051 = vpack.c.bf16 %v1047, %v1047
  %v1052 = vpack.c.bf16 %v1048, %v1048
  %s1053 = scalar_lea.vmem %s4, 32
  %1054 = vst.msk [vmem:[%s1053] sm:$0xf] %vm1003, %v1049
  %1055 = vst.msk [vmem:[%s1053 + $0x4] sm:$0xf] %vm1003, %v1050
  %1056 = vst.msk [vmem:[%s1053 + $0x8] sm:$0xf] %vm1003, %v1051
  %1057 = vst.msk [vmem:[%s1053 + $0xc] sm:$0xf] %vm1003, %v1052
  %v1058 = vmul.f32 %v774, %v946
  %v1059 = vmul.f32 %v776, %v951
  %v1060 = vmul.f32 %v779, %v956
  %v1061 = vmul.f32 %v781, %v961
  %v1062 = vadd.f32 %v1058, %v970
  %v1063 = vadd.f32 %v1059, %v975
  %v1064 = vadd.f32 %v1060, %v980
  %v1065 = vadd.f32 %v1061, %v985
  %v1066 = vmul.f32 %v1062, 0.2
  %v1067 = vmul.f32 %v1063, 0.2
  %v1068 = vmul.f32 %v1064, 0.2
  %v1069 = vmul.f32 %v1065, 0.2
  %v1070 = vmax.f32 %v1062, %v1066
  %v1071 = vmax.f32 %v1063, %v1067
  %v1072 = vmax.f32 %v1064, %v1068
  %v1073 = vmax.f32 %v1065, %v1069
  %v1074 = vpack.c.bf16 %v1070, %v1070
  %v1075 = vpack.c.bf16 %v1071, %v1071
  %v1076 = vpack.c.bf16 %v1072, %v1072
  %v1077 = vpack.c.bf16 %v1073, %v1073
  %s1078 = scalar_lea.vmem %s4, 48
  %1079 = vst.msk [vmem:[%s1078] sm:$0xf] %vm1003, %v1074
  %1080 = vst.msk [vmem:[%s1078 + $0x4] sm:$0xf] %vm1003, %v1075
  %1081 = vst.msk [vmem:[%s1078 + $0x8] sm:$0xf] %vm1003, %v1076
  %1082 = vst.msk [vmem:[%s1078 + $0xc] sm:$0xf] %vm1003, %v1077
  // Predicated region
  $region18: #{generator_64_forward.6} parent=0 // pred_check
    _
  $region19: #{generator_64_forward.6} parent=0 // pred_check_branch
    %1084 = sbr.rel (0) target = $region21
  $region20: #{generator_64_forward.6} parent=0 // pred_region
    _
  $region21: #{generator_64_forward.6} parent=0 // pred_fallthru
    _
  // Predicated region
  $region22: #{generator_64_forward.6} parent=0 // pred_check
    _
  $region23: #{generator_64_forward.6} parent=0 // pred_check_branch
    %1086 = sbr.rel (0) target = $region25
  $region24: #{generator_64_forward.6} parent=0 // pred_region
    _
  $region25: #{generator_64_forward.6} parent=0 // pred_fallthru
    _

// kernel: generator_64_forward.7
$region0: #{generator_64_forward.7}
  #allocation0 [shape = 'u32[]', space=smem, size = 0x4, offset = 0x4, fixed_abs, tag = 'smem constant byte address 0x4 - core index']
  #allocation1 [shape = 'u32[72,128]{1,0:T(1,128)}', space=vmem, size = 0x9000, scoped, tag = 'internal scratch']
  %s0 = inlined_call_operand.vmem [shape: bf16[4,128,128], index: 0, kind: input, shape index: {}]
  %s1 = inlined_call_operand.vmem [shape: bf16[4,16,128], index: 1, kind: input, shape index: {}]
  %s2 = inlined_call_operand.vmem [shape: f32[16,1], index: 2, kind: input, shape index: {}]
  %s3 = inlined_call_operand.vmem [shape: f32[16,1], index: 3, kind: input, shape index: {}]
  %s4 = inlined_call_operand.vmem [shape: bf16[4,16,128], index: 4, kind: output, shape index: {}]
  %s5 = sld [smem:[#allocation0]]
  $region26: #{generator_64_forward.7} parent=0
    _
  %s7 = ssub.s32 1, %s5
  %s8 = scalar_select 0, %s7, %s5
  // Predicated region
  $region2: #{generator_64_forward.7} parent=0 // pred_check
    _
  $region3: #{generator_64_forward.7} parent=0 // pred_check_branch
    %10 = sbr.rel (0) target = $region5
  $region4: #{generator_64_forward.7} parent=0 // pred_region
    _
  $region5: #{generator_64_forward.7} parent=0 // pred_fallthru
    _
  // Predicated region
  $region6: #{generator_64_forward.7} parent=0 // pred_check
    _
  $region7: #{generator_64_forward.7} parent=0 // pred_check_branch
    %12 = sbr.rel (0) target = $region9
  $region8: #{generator_64_forward.7} parent=0 // pred_region
    _
  $region9: #{generator_64_forward.7} parent=0 // pred_fallthru
    _
  // Predicated region
  $region10: #{generator_64_forward.7} parent=0 // pred_check
    _
  $region11: #{generator_64_forward.7} parent=0 // pred_check_branch
    %14 = sbr.rel (0) target = $region13
  $region12: #{generator_64_forward.7} parent=0 // pred_region
    _
  $region13: #{generator_64_forward.7} parent=0 // pred_fallthru
    _
  // Predicated region
  $region14: #{generator_64_forward.7} parent=0 // pred_check
    _
  $region15: #{generator_64_forward.7} parent=0 // pred_check_branch
    %16 = sbr.rel (0) target = $region17
  $region16: #{generator_64_forward.7} parent=0 // pred_region
    _
  $region17: #{generator_64_forward.7} parent=0 // pred_fallthru
    _
  %v17 = vld [vmem:[%s1] sm:$0xf]
  %v18 = vld [vmem:[%s1 + $0x4] sm:$0xf]
  %v19 = vld [vmem:[%s0] sm:$0xf]
  %v20 = vld [vmem:[%s0 + $0x4] sm:$0xf]
  %v21 = vld [vmem:[%s0 + $0x8] sm:$0xf]
  %v22 = vld [vmem:[%s0 + $0xc] sm:$0xf]
  %v23 = vld [vmem:[%s0 + $0x10] sm:$0xf]
  %v24 = vld [vmem:[%s0 + $0x14] sm:$0xf]
  %v25 = vld [vmem:[%s0 + $0x18] sm:$0xf]
  %v26 = vld [vmem:[%s0 + $0x1c] sm:$0xf]
  %v27 = vld [vmem:[%s0 + $0x20] sm:$0xf]
  %v28 = vld [vmem:[%s0 + $0x24] sm:$0xf]
  %v29 = vld [vmem:[%s0 + $0x28] sm:$0xf]
  %v30 = vld [vmem:[%s0 + $0x2c] sm:$0xf]
  %v31 = vld [vmem:[%s0 + $0x30] sm:$0xf]
  %v32 = vld [vmem:[%s0 + $0x34] sm:$0xf]
  %v33 = vld [vmem:[%s0 + $0x38] sm:$0xf]
  %v34 = vld [vmem:[%s0 + $0x3c] sm:$0xf]
  %v37 = vunpack.c.l.b16 %v17
  %v38 = vunpack.c.l.b16 %v18
  %v39 = vpack.c.b16 %v38, %v37
  %v57 = vunpack.c.l.b16 %v19
  %v58 = vunpack.c.l.b16 %v20
  %v59 = vunpack.c.l.b16 %v21
  %v60 = vunpack.c.l.b16 %v22
  %v61 = vunpack.c.l.b16 %v23
  %v62 = vunpack.c.l.b16 %v24
  %v63 = vunpack.c.l.b16 %v25
  %v64 = vunpack.c.l.b16 %v26
  %v65 = vunpack.c.l.b16 %v27
  %v66 = vunpack.c.l.b16 %v28
  %v67 = vunpack.c.l.b16 %v29
  %v68 = vunpack.c.l.b16 %v30
  %v69 = vunpack.c.l.b16 %v31
  %v70 = vunpack.c.l.b16 %v32
  %v71 = vunpack.c.l.b16 %v33
  %v72 = vunpack.c.l.b16 %v34
  %v73 = vpack.c.b16 %v58, %v57
  %v74 = vpack.c.b16 %v60, %v59
  %v75 = vpack.c.b16 %v62, %v61
  %v76 = vpack.c.b16 %v64, %v63
  %v77 = vpack.c.b16 %v66, %v65
  %v78 = vpack.c.b16 %v68, %v67
  %v79 = vpack.c.b16 %v70, %v69
  %v80 = vpack.c.b16 %v72, %v71
  %89 = vmatpush.bf16.msra.mxu0 %v80
  %90 = vmatpush.bf16.msra.mxu0 %v79
  %91 = vmatpush.bf16.msra.mxu0 %v78
  %92 = vmatpush.bf16.msra.mxu0 %v77
  %93 = vmatpush.bf16.msra.mxu0 %v76
  %94 = vmatpush.bf16.msra.mxu0 %v75
  %95 = vmatpush.bf16.msra.mxu0 %v74
  %96 = vmatpush.bf16.msra.mxu0 %v73
  %97 = vmatmul.bf16.gmra.mxu0 %v39
  %v98 = vpop.f32.mrf.mxu0
  %v99 = vadd.f32 0.0, %v98
  %v100 = vpop.f32.mrf.mxu0
  %v101 = vadd.f32 0.0, %v100
  %102 = vdwg.mxu0
  %s103 = scalar_lea.vmem %s1, 8
  %v104 = vld [vmem:[%s103] sm:$0xf]
  %v105 = vld [vmem:[%s103 + $0x4] sm:$0xf]
  %s106 = scalar_lea.vmem %s0, 64
  %v107 = vld [vmem:[%s106] sm:$0xf]
  %v108 = vld [vmem:[%s106 + $0x4] sm:$0xf]
  %v109 = vld [vmem:[%s106 + $0x8] sm:$0xf]
  %v110 = vld [vmem:[%s106 + $0xc] sm:$0xf]
  %v111 = vld [vmem:[%s106 + $0x10] sm:$0xf]
  %v112 = vld [vmem:[%s106 + $0x14] sm:$0xf]
  %v113 = vld [vmem:[%s106 + $0x18] sm:$0xf]
  %v114 = vld [vmem:[%s106 + $0x1c] sm:$0xf]
  %v115 = vld [vmem:[%s106 + $0x20] sm:$0xf]
  %v116 = vld [vmem:[%s106 + $0x24] sm:$0xf]
  %v117 = vld [vmem:[%s106 + $0x28] sm:$0xf]
  %v118 = vld [vmem:[%s106 + $0x2c] sm:$0xf]
  %v119 = vld [vmem:[%s106 + $0x30] sm:$0xf]
  %v120 = vld [vmem:[%s106 + $0x34] sm:$0xf]
  %v121 = vld [vmem:[%s106 + $0x38] sm:$0xf]
  %v122 = vld [vmem:[%s106 + $0x3c] sm:$0xf]
  %v125 = vunpack.c.l.b16 %v104
  %v126 = vunpack.c.l.b16 %v105
  %v127 = vpack.c.b16 %v126, %v125
  %v145 = vunpack.c.l.b16 %v107
  %v146 = vunpack.c.l.b16 %v108
  %v147 = vunpack.c.l.b16 %v109
  %v148 = vunpack.c.l.b16 %v110
  %v149 = vunpack.c.l.b16 %v111
  %v150 = vunpack.c.l.b16 %v112
  %v151 = vunpack.c.l.b16 %v113
  %v152 = vunpack.c.l.b16 %v114
  %v153 = vunpack.c.l.b16 %v115
  %v154 = vunpack.c.l.b16 %v116
  %v155 = vunpack.c.l.b16 %v117
  %v156 = vunpack.c.l.b16 %v118
  %v157 = vunpack.c.l.b16 %v119
  %v158 = vunpack.c.l.b16 %v120
  %v159 = vunpack.c.l.b16 %v121
  %v160 = vunpack.c.l.b16 %v122
  %v161 = vpack.c.b16 %v146, %v145
  %v162 = vpack.c.b16 %v148, %v147
  %v163 = vpack.c.b16 %v150, %v149
  %v164 = vpack.c.b16 %v152, %v151
  %v165 = vpack.c.b16 %v154, %v153
  %v166 = vpack.c.b16 %v156, %v155
  %v167 = vpack.c.b16 %v158, %v157
  %v168 = vpack.c.b16 %v160, %v159
  %177 = vmatpush.bf16.msra.mxu0 %v168
  %178 = vmatpush.bf16.msra.mxu0 %v167
  %179 = vmatpush.bf16.msra.mxu0 %v166
  %180 = vmatpush.bf16.msra.mxu0 %v165
  %181 = vmatpush.bf16.msra.mxu0 %v164
  %182 = vmatpush.bf16.msra.mxu0 %v163
  %183 = vmatpush.bf16.msra.mxu0 %v162
  %184 = vmatpush.bf16.msra.mxu0 %v161
  %185 = vmatmul.bf16.gmra.mxu0 %v127
  %v186 = vpop.f32.mrf.mxu0
  %v187 = vadd.f32 0.0, %v186
  %v188 = vpop.f32.mrf.mxu0
  %v189 = vadd.f32 0.0, %v188
  %190 = vdwg.mxu0
  %s191 = scalar_lea.vmem %s1, 16
  %v192 = vld [vmem:[%s191] sm:$0xf]
  %v193 = vld [vmem:[%s191 + $0x4] sm:$0xf]
  %s194 = scalar_lea.vmem %s0, 128
  %v195 = vld [vmem:[%s194] sm:$0xf]
  %v196 = vld [vmem:[%s194 + $0x4] sm:$0xf]
  %v197 = vld [vmem:[%s194 + $0x8] sm:$0xf]
  %v198 = vld [vmem:[%s194 + $0xc] sm:$0xf]
  %v199 = vld [vmem:[%s194 + $0x10] sm:$0xf]
  %v200 = vld [vmem:[%s194 + $0x14] sm:$0xf]
  %v201 = vld [vmem:[%s194 + $0x18] sm:$0xf]
  %v202 = vld [vmem:[%s194 + $0x1c] sm:$0xf]
  %v203 = vld [vmem:[%s194 + $0x20] sm:$0xf]
  %v204 = vld [vmem:[%s194 + $0x24] sm:$0xf]
  %v205 = vld [vmem:[%s194 + $0x28] sm:$0xf]
  %v206 = vld [vmem:[%s194 + $0x2c] sm:$0xf]
  %v207 = vld [vmem:[%s194 + $0x30] sm:$0xf]
  %v208 = vld [vmem:[%s194 + $0x34] sm:$0xf]
  %v209 = vld [vmem:[%s194 + $0x38] sm:$0xf]
  %v210 = vld [vmem:[%s194 + $0x3c] sm:$0xf]
  %v213 = vunpack.c.l.b16 %v192
  %v214 = vunpack.c.l.b16 %v193
  %v215 = vpack.c.b16 %v214, %v213
  %v233 = vunpack.c.l.b16 %v195
  %v234 = vunpack.c.l.b16 %v196
  %v235 = vunpack.c.l.b16 %v197
  %v236 = vunpack.c.l.b16 %v198
  %v237 = vunpack.c.l.b16 %v199
  %v238 = vunpack.c.l.b16 %v200
  %v239 = vunpack.c.l.b16 %v201
  %v240 = vunpack.c.l.b16 %v202
  %v241 = vunpack.c.l.b16 %v203
  %v242 = vunpack.c.l.b16 %v204
  %v243 = vunpack.c.l.b16 %v205
  %v244 = vunpack.c.l.b16 %v206
  %v245 = vunpack.c.l.b16 %v207
  %v246 = vunpack.c.l.b16 %v208
  %v247 = vunpack.c.l.b16 %v209
  %v248 = vunpack.c.l.b16 %v210
  %v249 = vpack.c.b16 %v234, %v233
  %v250 = vpack.c.b16 %v236, %v235
  %v251 = vpack.c.b16 %v238, %v237
  %v252 = vpack.c.b16 %v240, %v239
  %v253 = vpack.c.b16 %v242, %v241
  %v254 = vpack.c.b16 %v244, %v243
  %v255 = vpack.c.b16 %v246, %v245
  %v256 = vpack.c.b16 %v248, %v247
  %265 = vmatpush.bf16.msra.mxu0 %v256
  %266 = vmatpush.bf16.msra.mxu0 %v255
  %267 = vmatpush.bf16.msra.mxu0 %v254
  %268 = vmatpush.bf16.msra.mxu0 %v253
  %269 = vmatpush.bf16.msra.mxu0 %v252
  %270 = vmatpush.bf16.msra.mxu0 %v251
  %271 = vmatpush.bf16.msra.mxu0 %v250
  %272 = vmatpush.bf16.msra.mxu0 %v249
  %273 = vmatmul.bf16.gmra.mxu0 %v215
  %v274 = vpop.f32.mrf.mxu0
  %v275 = vadd.f32 0.0, %v274
  %v276 = vpop.f32.mrf.mxu0
  %v277 = vadd.f32 0.0, %v276
  %278 = vdwg.mxu0
  %s279 = scalar_lea.vmem %s1, 24
  %v280 = vld [vmem:[%s279] sm:$0xf]
  %v281 = vld [vmem:[%s279 + $0x4] sm:$0xf]
  %s282 = scalar_lea.vmem %s0, 192
  %v283 = vld [vmem:[%s282] sm:$0xf]
  %v284 = vld [vmem:[%s282 + $0x4] sm:$0xf]
  %v285 = vld [vmem:[%s282 + $0x8] sm:$0xf]
  %v286 = vld [vmem:[%s282 + $0xc] sm:$0xf]
  %v287 = vld [vmem:[%s282 + $0x10] sm:$0xf]
  %v288 = vld [vmem:[%s282 + $0x14] sm:$0xf]
  %v289 = vld [vmem:[%s282 + $0x18] sm:$0xf]
  %v290 = vld [vmem:[%s282 + $0x1c] sm:$0xf]
  %v291 = vld [vmem:[%s282 + $0x20] sm:$0xf]
  %v292 = vld [vmem:[%s282 + $0x24] sm:$0xf]
  %v293 = vld [vmem:[%s282 + $0x28] sm:$0xf]
  %v294 = vld [vmem:[%s282 + $0x2c] sm:$0xf]
  %v295 = vld [vmem:[%s282 + $0x30] sm:$0xf]
  %v296 = vld [vmem:[%s282 + $0x34] sm:$0xf]
  %v297 = vld [vmem:[%s282 + $0x38] sm:$0xf]
  %v298 = vld [vmem:[%s282 + $0x3c] sm:$0xf]
  %v301 = vunpack.c.l.b16 %v280
  %v302 = vunpack.c.l.b16 %v281
  %v303 = vpack.c.b16 %v302, %v301
  %v321 = vunpack.c.l.b16 %v283
  %v322 = vunpack.c.l.b16 %v284
  %v323 = vunpack.c.l.b16 %v285
  %v324 = vunpack.c.l.b16 %v286
  %v325 = vunpack.c.l.b16 %v287
  %v326 = vunpack.c.l.b16 %v288
  %v327 = vunpack.c.l.b16 %v289
  %v328 = vunpack.c.l.b16 %v290
  %v329 = vunpack.c.l.b16 %v291
  %v330 = vunpack.c.l.b16 %v292
  %v331 = vunpack.c.l.b16 %v293
  %v332 = vunpack.c.l.b16 %v294
  %v333 = vunpack.c.l.b16 %v295
  %v334 = vunpack.c.l.b16 %v296
  %v335 = vunpack.c.l.b16 %v297
  %v336 = vunpack.c.l.b16 %v298
  %v337 = vpack.c.b16 %v322, %v321
  %v338 = vpack.c.b16 %v324, %v323
  %v339 = vpack.c.b16 %v326, %v325
  %v340 = vpack.c.b16 %v328, %v327
  %v341 = vpack.c.b16 %v330, %v329
  %v342 = vpack.c.b16 %v332, %v331
  %v343 = vpack.c.b16 %v334, %v333
  %v344 = vpack.c.b16 %v336, %v335
  %353 = vmatpush.bf16.msra.mxu0 %v344
  %354 = vmatpush.bf16.msra.mxu0 %v343
  %355 = vmatpush.bf16.msra.mxu0 %v342
  %356 = vmatpush.bf16.msra.mxu0 %v341
  %357 = vmatpush.bf16.msra.mxu0 %v340
  %358 = vmatpush.bf16.msra.mxu0 %v339
  %359 = vmatpush.bf16.msra.mxu0 %v338
  %360 = vmatpush.bf16.msra.mxu0 %v337
  %361 = vmatmul.bf16.gmra.mxu0 %v303
  %v362 = vpop.f32.mrf.mxu0
  %v363 = vadd.f32 0.0, %v362
  %v364 = vpop.f32.mrf.mxu0
  %v365 = vadd.f32 0.0, %v364
  %366 = vdwg.mxu0
  %v367 = vadd.f32 %v99, %v187
  %v368 = vadd.f32 %v101, %v189
  %v369 = vadd.f32 %v367, %v275
  %v370 = vadd.f32 %v368, %v277
  %v371 = vadd.f32 %v369, %v363
  %v372 = vadd.f32 %v370, %v365
  %373 = vadd.xlane.f32.xlu0 %v371
  %v374 = vpop.xlane.xlu0 %373
  %375 = vadd.xlane.f32.xlu0 %v372
  %v376 = vpop.xlane.xlu0 %375
  %v377 = vrcp.pop 512.0
  %v378 = vmul.f32 512.0, %v377
  %v379 = vsub.f32 1.0, %v378
  %v380 = vmul.f32 %v377, %v379
  %v381 = vadd.f32 %v377, %v380
  %vm382 = vweird.f32 %v377
  %v383 = vsel %vm382, %v377, %v381
  %v384 = vmul.f32 %v374, %v383
  %v385 = vmul.f32 %v376, %v383
  %v386 = vsub.f32 %v99, %v384
  %v387 = vsub.f32 %v101, %v385
  %v388 = vmul.f32 %v386, %v386
  %v389 = vmul.f32 %v387, %v387
  %v390 = vsub.f32 %v187, %v384
  %v391 = vsub.f32 %v189, %v385
  %v392 = vmul.f32 %v390, %v390
  %v393 = vmul.f32 %v391, %v391
  %v394 = vadd.f32 %v388, %v392
  %v395 = vadd.f32 %v389, %v393
  %v396 = vsub.f32 %v275, %v384
  %v397 = vsub.f32 %v277, %v385
  %v398 = vmul.f32 %v396, %v396
  %v399 = vmul.f32 %v397, %v397
  %v400 = vadd.f32 %v394, %v398
  %v401 = vadd.f32 %v395, %v399
  %v402 = vsub.f32 %v363, %v384
  %v403 = vsub.f32 %v365, %v385
  %v404 = vmul.f32 %v402, %v402
  %v405 = vmul.f32 %v403, %v403
  %v406 = vadd.f32 %v400, %v404
  %v407 = vadd.f32 %v401, %v405
  %408 = vadd.xlane.f32.xlu0 %v406
  %v409 = vpop.xlane.xlu0 %408
  %410 = vadd.xlane.f32.xlu0 %v407
  %v411 = vpop.xlane.xlu0 %410
  %v412 = vmul.f32 %v409, %v383
  %v413 = vmul.f32 %v411, %v383
  %v414 = vld [vmem:[%s2] sm:$0xff]
  %v415 = vld [vmem:[%s2 + $0x8] sm:$0xff]
  %v416 = vadd.f32 %v412, 1e-05
  %v417 = vadd.f32 %v413, 1e-05
  %v418 = vrsqrt.pop %v416
  %v419 = vmul.f32 %v418, %v416
  %v420 = vmul.f32 %v419, %v418
  %v421 = vmul.f32 0.5, %v420
  %v422 = vsub.f32 1.5, %v421
  %v423 = vmul.f32 %v418, %v422
  %vm424 = vweird.f32 %v416
  %vm425 = vweird.f32 %v418
  %vm426 = vmor %vm424, %vm425
  %v427 = vsel %vm426, %v418, %v423
  %v428 = vrsqrt.pop %v417
  %v429 = vmul.f32 %v428, %v417
  %v430 = vmul.f32 %v429, %v428
  %v431 = vmul.f32 0.5, %v430
  %v432 = vsub.f32 1.5, %v431
  %v433 = vmul.f32 %v428, %v432
  %vm434 = vweird.f32 %v417
  %vm435 = vweird.f32 %v428
  %vm436 = vmor %vm434, %vm435
  %v437 = vsel %vm436, %v428, %v433
  %v438 = vmul.f32 %v414, %v427
  %v439 = vmul.f32 %v415, %v437
  %v440 = vld [vmem:[%s3] sm:$0xff]
  %v441 = vld [vmem:[%s3 + $0x8] sm:$0xff]
  %v442 = vmul.f32 %v384, %v438
  %v443 = vmul.f32 %v385, %v439
  %v444 = vsub.f32 %v440, %v442
  %v445 = vsub.f32 %v441, %v443
  %447 = vset.pattern.permute.xlu0 0
  %448 = vperm.xlu0 %447, %v438
  %v449 = vpop.permute.xlu0 %448
  %452 = vset.pattern.permute.xlu0 0
  %453 = vperm.xlu0 %452, %v439
  %v454 = vpop.permute.xlu0 %453
  %v456 = vmul.f32 %v99, %v449
  %v457 = vmul.f32 %v101, %v454
  %459 = vset.pattern.permute.xlu0 0
  %460 = vperm.xlu0 %459, %v444
  %v461 = vpop.permute.xlu0 %460
  %464 = vset.pattern.permute.xlu0 0
  %465 = vperm.xlu0 %464, %v445
  %v466 = vpop.permute.xlu0 %465
  %v468 = vadd.f32 %v456, %v461
  %v469 = vadd.f32 %v457, %v466
  %v470 = vmul.f32 %v468, 0.2
  %v471 = vmul.f32 %v469, 0.2
  %v472 = vmax.f32 %v468, %v470
  %v473 = vmax.f32 %v469, %v471
  %v474 = vpack.c.bf16 %v472, %v472
  %v475 = vpack.c.bf16 %v473, %v473
  %476 = vst [vmem:[%s4] sm:$0xf] %v474
  %477 = vst [vmem:[%s4 + $0x4] sm:$0xf] %v475
  %v478 = vmul.f32 %v187, %v449
  %v479 = vmul.f32 %v189, %v454
  %v480 = vadd.f32 %v478, %v461
  %v481 = vadd.f32 %v479, %v466
  %v482 = vmul.f32 %v480, 0.2
  %v483 = vmul.f32 %v481, 0.2
  %v484 = vmax.f32 %v480, %v482
  %v485 = vmax.f32 %v481, %v483
  %v486 = vpack.c.bf16 %v484, %v484
  %v487 = vpack.c.bf16 %v485, %v485
  %s488 = scalar_lea.vmem %s4, 8
  %489 = vst [vmem:[%s488] sm:$0xf] %v486
  %490 = vst [vmem:[%s488 + $0x4] sm:$0xf] %v487
  %v491 = vmul.f32 %v275, %v449
  %v492 = vmul.f32 %v277, %v454
  %v493 = vadd.f32 %v491, %v461
  %v494 = vadd.f32 %v492, %v466
  %v495 = vmul.f32 %v493, 0.2
  %v496 = vmul.f32 %v494, 0.2
  %v497 = vmax.f32 %v493, %v495
  %v498 = vmax.f32 %v494, %v496
  %v499 = vpack.c.bf16 %v497, %v497
  %v500 = vpack.c.bf16 %v498, %v498
  %s501 = scalar_lea.vmem %s4, 16
  %502 = vst [vmem:[%s501] sm:$0xf] %v499
  %503 = vst [vmem:[%s501 + $0x4] sm:$0xf] %v500
  %v504 = vmul.f32 %v363, %v449
  %v505 = vmul.f32 %v365, %v454
  %v506 = vadd.f32 %v504, %v461
  %v507 = vadd.f32 %v505, %v466
  %v508 = vmul.f32 %v506, 0.2
  %v509 = vmul.f32 %v507, 0.2
  %v510 = vmax.f32 %v506, %v508
  %v511 = vmax.f32 %v507, %v509
  %v512 = vpack.c.bf16 %v510, %v510
  %v513 = vpack.c.bf16 %v511, %v511
  %s514 = scalar_lea.vmem %s4, 24
  %515 = vst [vmem:[%s514] sm:$0xf] %v512
  %516 = vst [vmem:[%s514 + $0x4] sm:$0xf] %v513
  // Predicated region
  $region18: #{generator_64_forward.7} parent=0 // pred_check
    _
  $region19: #{generator_64_forward.7} parent=0 // pred_check_branch
    %518 = sbr.rel (0) target = $region21
  $region20: #{generator_64_forward.7} parent=0 // pred_region
    _
  $region21: #{generator_64_forward.7} parent=0 // pred_fallthru
    _
  // Predicated region
  $region22: #{generator_64_forward.7} parent=0 // pred_check
    _
  $region23: #{generator_64_forward.7} parent=0 // pred_check_branch
    %520 = sbr.rel (0) target = $region25
  $region24: #{generator_64_forward.7} parent=0 // pred_region
    _
  $region25: #{generator_64_forward.7} parent=0 // pred_fallthru
    _

// kernel: generator_64_forward.8
$region0: #{generator_64_forward.8}
  #allocation0 [shape = 'u32[]', space=smem, size = 0x4, offset = 0x4, fixed_abs, tag = 'smem constant byte address 0x4 - core index']
  #allocation1 [shape = 'u32[72,128]{1,0:T(1,128)}', space=vmem, size = 0x9000, scoped, tag = 'internal scratch']
  %s0 = inlined_call_operand.vmem [shape: bf16[4,64,512], index: 0, kind: input, shape index: {}]
  %s1 = inlined_call_operand.vmem [shape: bf16[4,8,64], index: 1, kind: input, shape index: {}]
  %s2 = inlined_call_operand.vmem [shape: f32[8,1], index: 2, kind: input, shape index: {}]
  %s3 = inlined_call_operand.vmem [shape: f32[8,1], index: 3, kind: input, shape index: {}]
  %s4 = inlined_call_operand.vmem [shape: bf16[4,8,512], index: 4, kind: output, shape index: {}]
  %s5 = sld [smem:[#allocation0]]
  $region26: #{generator_64_forward.8} parent=0
    _
  %s7 = ssub.s32 1, %s5
  %s8 = scalar_select 0, %s7, %s5
  // Predicated region
  $region2: #{generator_64_forward.8} parent=0 // pred_check
    _
  $region3: #{generator_64_forward.8} parent=0 // pred_check_branch
    %10 = sbr.rel (0) target = $region5
  $region4: #{generator_64_forward.8} parent=0 // pred_region
    _
  $region5: #{generator_64_forward.8} parent=0 // pred_fallthru
    _
  // Predicated region
  $region6: #{generator_64_forward.8} parent=0 // pred_check
    _
  $region7: #{generator_64_forward.8} parent=0 // pred_check_branch
    %12 = sbr.rel (0) target = $region9
  $region8: #{generator_64_forward.8} parent=0 // pred_region
    _
  $region9: #{generator_64_forward.8} parent=0 // pred_fallthru
    _
  // Predicated region
  $region10: #{generator_64_forward.8} parent=0 // pred_check
    _
  $region11: #{generator_64_forward.8} parent=0 // pred_check_branch
    %14 = sbr.rel (0) target = $region13
  $region12: #{generator_64_forward.8} parent=0 // pred_region
    _
  $region13: #{generator_64_forward.8} parent=0 // pred_fallthru
    _
  // Predicated region
  $region14: #{generator_64_forward.8} parent=0 // pred_check
    _
  $region15: #{generator_64_forward.8} parent=0 // pred_check_branch
    %16 = sbr.rel (0) target = $region17
  $region16: #{generator_64_forward.8} parent=0 // pred_region
    _
  $region17: #{generator_64_forward.8} parent=0 // pred_fallthru
    _
  %v18 = vld [vmem:[%s1] sm:$0xf]
  %v19 = vld [vmem:[%s0] sm:$0xff]
  %v20 = vld [vmem:[%s0 + $0x8] sm:$0xff]
  %v21 = vld [vmem:[%s0 + $0x10] sm:$0xff]
  %v22 = vld [vmem:[%s0 + $0x18] sm:$0xff]
  %v23 = vld [vmem:[%s0 + $0x20] sm:$0xff]
  %v24 = vld [vmem:[%s0 + $0x28] sm:$0xff]
  %v25 = vld [vmem:[%s0 + $0x30] sm:$0xff]
  %v26 = vld [vmem:[%s0 + $0x38] sm:$0xff]
  %v27 = vld [vmem:[%s0 + $0x40] sm:$0xff]
  %v28 = vld [vmem:[%s0 + $0x48] sm:$0xff]
  %v29 = vld [vmem:[%s0 + $0x50] sm:$0xff]
  %v30 = vld [vmem:[%s0 + $0x58] sm:$0xff]
  %v31 = vld [vmem:[%s0 + $0x60] sm:$0xff]
  %v32 = vld [vmem:[%s0 + $0x68] sm:$0xff]
  %v33 = vld [vmem:[%s0 + $0x70] sm:$0xff]
  %v34 = vld [vmem:[%s0 + $0x78] sm:$0xff]
  %v51 = vunpack.c.l.b16 %v19
  %v52 = vunpack.c.h.b16 %v19
  %v53 = vunpack.c.l.b16 %v20
  %v54 = vunpack.c.h.b16 %v20
  %v55 = vunpack.c.l.b16 %v21
  %v56 = vunpack.c.h.b16 %v21
  %v57 = vunpack.c.l.b16 %v22
  %v58 = vunpack.c.h.b16 %v22
  %v59 = vunpack.c.l.b16 %v23
  %v60 = vunpack.c.h.b16 %v23
  %v61 = vunpack.c.l.b16 %v24
  %v62 = vunpack.c.h.b16 %v24
  %v63 = vunpack.c.l.b16 %v25
  %v64 = vunpack.c.h.b16 %v25
  %v65 = vunpack.c.l.b16 %v26
  %v66 = vunpack.c.h.b16 %v26
  %v67 = vunpack.c.l.b16 %v27
  %v68 = vunpack.c.h.b16 %v27
  %v69 = vunpack.c.l.b16 %v28
  %v70 = vunpack.c.h.b16 %v28
  %v71 = vunpack.c.l.b16 %v29
  %v72 = vunpack.c.h.b16 %v29
  %v73 = vunpack.c.l.b16 %v30
  %v74 = vunpack.c.h.b16 %v30
  %v75 = vunpack.c.l.b16 %v31
  %v76 = vunpack.c.h.b16 %v31
  %v77 = vunpack.c.l.b16 %v32
  %v78 = vunpack.c.h.b16 %v32
  %v79 = vunpack.c.l.b16 %v33
  %v80 = vunpack.c.h.b16 %v33
  %v81 = vunpack.c.l.b16 %v34
  %v82 = vunpack.c.h.b16 %v34
  %v83 = vpack.c.b16 %v55, %v51
  %v84 = vpack.c.b16 %v56, %v52
  %v85 = vpack.c.b16 %v57, %v53
  %v86 = vpack.c.b16 %v58, %v54
  %v87 = vpack.c.b16 %v63, %v59
  %v88 = vpack.c.b16 %v64, %v60
  %v89 = vpack.c.b16 %v65, %v61
  %v90 = vpack.c.b16 %v66, %v62
  %v91 = vpack.c.b16 %v71, %v67
  %v92 = vpack.c.b16 %v72, %v68
  %v93 = vpack.c.b16 %v73, %v69
  %v94 = vpack.c.b16 %v74, %v70
  %v95 = vpack.c.b16 %v79, %v75
  %v96 = vpack.c.b16 %v80, %v76
  %v97 = vpack.c.b16 %v81, %v77
  %v98 = vpack.c.b16 %v82, %v78
  %vm115 = vcmask 523264
  %v117 = vsel %vm115, %v18, 0
  %119 = vmatpush.bf16.msra.mxu0 0
  %120 = vmatpush.bf16.msra.mxu0 0
  %121 = vmatpush.bf16.msra.mxu0 0
  %122 = vmatpush.bf16.msra.mxu0 0
  %123 = vmatpush.bf16.msra.mxu0 %v95
  %124 = vmatpush.bf16.msra.mxu0 %v91
  %125 = vmatpush.bf16.msra.mxu0 %v87
  %126 = vmatpush.bf16.msra.mxu0 %v83
  %127 = vmatmul.bf16.gmra.mxu0 %v117
  %v128 = vpop.f32.mrf.mxu0
  %v129 = vadd.f32 0.0, %v128
  %v130 = vpop.f32.mrf.mxu0
  %131 = vdwg.mxu0
  %132 = vmatpush.bf16.msra.mxu0 0
  %133 = vmatpush.bf16.msra.mxu0 0
  %134 = vmatpush.bf16.msra.mxu0 0
  %135 = vmatpush.bf16.msra.mxu0 0
  %136 = vmatpush.bf16.msra.mxu0 %v96
  %137 = vmatpush.bf16.msra.mxu0 %v92
  %138 = vmatpush.bf16.msra.mxu0 %v88
  %139 = vmatpush.bf16.msra.mxu0 %v84
  %140 = vmatmul.bf16.gmra.mxu0 %v117
  %v141 = vpop.f32.mrf.mxu0
  %v142 = vadd.f32 0.0, %v141
  %v143 = vpop.f32.mrf.mxu0
  %144 = vdwg.mxu0
  %145 = vmatpush.bf16.msra.mxu0 0
  %146 = vmatpush.bf16.msra.mxu0 0
  %147 = vmatpush.bf16.msra.mxu0 0
  %148 = vmatpush.bf16.msra.mxu0 0
  %149 = vmatpush.bf16.msra.mxu0 %v97
  %150 = vmatpush.bf16.msra.mxu0 %v93
  %151 = vmatpush.bf16.msra.mxu0 %v89
  %152 = vmatpush.bf16.msra.mxu0 %v85
  %153 = vmatmul.bf16.gmra.mxu0 %v117
  %v154 = vpop.f32.mrf.mxu0
  %v155 = vadd.f32 0.0, %v154
  %v156 = vpop.f32.mrf.mxu0
  %157 = vdwg.mxu0
  %158 = vmatpush.bf16.msra.mxu0 0
  %159 = vmatpush.bf16.msra.mxu0 0
  %160 = vmatpush.bf16.msra.mxu0 0
  %161 = vmatpush.bf16.msra.mxu0 0
  %162 = vmatpush.bf16.msra.mxu0 %v98
  %163 = vmatpush.bf16.msra.mxu0 %v94
  %164 = vmatpush.bf16.msra.mxu0 %v90
  %165 = vmatpush.bf16.msra.mxu0 %v86
  %166 = vmatmul.bf16.gmra.mxu0 %v117
  %v167 = vpop.f32.mrf.mxu0
  %v168 = vadd.f32 0.0, %v167
  %v169 = vpop.f32.mrf.mxu0
  %170 = vdwg.mxu0
  %s171 = scalar_lea.vmem %s1, 4
  %v172 = vld [vmem:[%s171] sm:$0xf]
  %s173 = scalar_lea.vmem %s0, 128
  %v174 = vld [vmem:[%s173] sm:$0xff]
  %v175 = vld [vmem:[%s173 + $0x8] sm:$0xff]
  %v176 = vld [vmem:[%s173 + $0x10] sm:$0xff]
  %v177 = vld [vmem:[%s173 + $0x18] sm:$0xff]
  %v178 = vld [vmem:[%s173 + $0x20] sm:$0xff]
  %v179 = vld [vmem:[%s173 + $0x28] sm:$0xff]
  %v180 = vld [vmem:[%s173 + $0x30] sm:$0xff]
  %v181 = vld [vmem:[%s173 + $0x38] sm:$0xff]
  %v182 = vld [vmem:[%s173 + $0x40] sm:$0xff]
  %v183 = vld [vmem:[%s173 + $0x48] sm:$0xff]
  %v184 = vld [vmem:[%s173 + $0x50] sm:$0xff]
  %v185 = vld [vmem:[%s173 + $0x58] sm:$0xff]
  %v186 = vld [vmem:[%s173 + $0x60] sm:$0xff]
  %v187 = vld [vmem:[%s173 + $0x68] sm:$0xff]
  %v188 = vld [vmem:[%s173 + $0x70] sm:$0xff]
  %v189 = vld [vmem:[%s173 + $0x78] sm:$0xff]
  %v206 = vunpack.c.l.b16 %v174
  %v207 = vunpack.c.h.b16 %v174
  %v208 = vunpack.c.l.b16 %v175
  %v209 = vunpack.c.h.b16 %v175
  %v210 = vunpack.c.l.b16 %v176
  %v211 = vunpack.c.h.b16 %v176
  %v212 = vunpack.c.l.b16 %v177
  %v213 = vunpack.c.h.b16 %v177
  %v214 = vunpack.c.l.b16 %v178
  %v215 = vunpack.c.h.b16 %v178
  %v216 = vunpack.c.l.b16 %v179
  %v217 = vunpack.c.h.b16 %v179
  %v218 = vunpack.c.l.b16 %v180
  %v219 = vunpack.c.h.b16 %v180
  %v220 = vunpack.c.l.b16 %v181
  %v221 = vunpack.c.h.b16 %v181
  %v222 = vunpack.c.l.b16 %v182
  %v223 = vunpack.c.h.b16 %v182
  %v224 = vunpack.c.l.b16 %v183
  %v225 = vunpack.c.h.b16 %v183
  %v226 = vunpack.c.l.b16 %v184
  %v227 = vunpack.c.h.b16 %v184
  %v228 = vunpack.c.l.b16 %v185
  %v229 = vunpack.c.h.b16 %v185
  %v230 = vunpack.c.l.b16 %v186
  %v231 = vunpack.c.h.b16 %v186
  %v232 = vunpack.c.l.b16 %v187
  %v233 = vunpack.c.h.b16 %v187
  %v234 = vunpack.c.l.b16 %v188
  %v235 = vunpack.c.h.b16 %v188
  %v236 = vunpack.c.l.b16 %v189
  %v237 = vunpack.c.h.b16 %v189
  %v238 = vpack.c.b16 %v210, %v206
  %v239 = vpack.c.b16 %v211, %v207
  %v240 = vpack.c.b16 %v212, %v208
  %v241 = vpack.c.b16 %v213, %v209
  %v242 = vpack.c.b16 %v218, %v214
  %v243 = vpack.c.b16 %v219, %v215
  %v244 = vpack.c.b16 %v220, %v216
  %v245 = vpack.c.b16 %v221, %v217
  %v246 = vpack.c.b16 %v226, %v222
  %v247 = vpack.c.b16 %v227, %v223
  %v248 = vpack.c.b16 %v228, %v224
  %v249 = vpack.c.b16 %v229, %v225
  %v250 = vpack.c.b16 %v234, %v230
  %v251 = vpack.c.b16 %v235, %v231
  %v252 = vpack.c.b16 %v236, %v232
  %v253 = vpack.c.b16 %v237, %v233
  %v271 = vsel %vm115, %v172, 0
  %273 = vmatpush.bf16.msra.mxu0 0
  %274 = vmatpush.bf16.msra.mxu0 0
  %275 = vmatpush.bf16.msra.mxu0 0
  %276 = vmatpush.bf16.msra.mxu0 0
  %277 = vmatpush.bf16.msra.mxu0 %v250
  %278 = vmatpush.bf16.msra.mxu0 %v246
  %279 = vmatpush.bf16.msra.mxu0 %v242
  %280 = vmatpush.bf16.msra.mxu0 %v238
  %281 = vmatmul.bf16.gmra.mxu0 %v271
  %v282 = vpop.f32.mrf.mxu0
  %v283 = vadd.f32 0.0, %v282
  %v284 = vpop.f32.mrf.mxu0
  %285 = vdwg.mxu0
  %286 = vmatpush.bf16.msra.mxu0 0
  %287 = vmatpush.bf16.msra.mxu0 0
  %288 = vmatpush.bf16.msra.mxu0 0
  %289 = vmatpush.bf16.msra.mxu0 0
  %290 = vmatpush.bf16.msra.mxu0 %v251
  %291 = vmatpush.bf16.msra.mxu0 %v247
  %292 = vmatpush.bf16.msra.mxu0 %v243
  %293 = vmatpush.bf16.msra.mxu0 %v239
  %294 = vmatmul.bf16.gmra.mxu0 %v271
  %v295 = vpop.f32.mrf.mxu0
  %v296 = vadd.f32 0.0, %v295
  %v297 = vpop.f32.mrf.mxu0
  %298 = vdwg.mxu0
  %299 = vmatpush.bf16.msra.mxu0 0
  %300 = vmatpush.bf16.msra.mxu0 0
  %301 = vmatpush.bf16.msra.mxu0 0
  %302 = vmatpush.bf16.msra.mxu0 0
  %303 = vmatpush.bf16.msra.mxu0 %v252
  %304 = vmatpush.bf16.msra.mxu0 %v248
  %305 = vmatpush.bf16.msra.mxu0 %v244
  %306 = vmatpush.bf16.msra.mxu0 %v240
  %307 = vmatmul.bf16.gmra.mxu0 %v271
  %v308 = vpop.f32.mrf.mxu0
  %v309 = vadd.f32 0.0, %v308
  %v310 = vpop.f32.mrf.mxu0
  %311 = vdwg.mxu0
  %312 = vmatpush.bf16.msra.mxu0 0
  %313 = vmatpush.bf16.msra.mxu0 0
  %314 = vmatpush.bf16.msra.mxu0 0
  %315 = vmatpush.bf16.msra.mxu0 0
  %316 = vmatpush.bf16.msra.mxu0 %v253
  %317 = vmatpush.bf16.msra.mxu0 %v249
  %318 = vmatpush.bf16.msra.mxu0 %v245
  %319 = vmatpush.bf16.msra.mxu0 %v241
  %320 = vmatmul.bf16.gmra.mxu0 %v271
  %v321 = vpop.f32.mrf.mxu0
  %v322 = vadd.f32 0.0, %v321
  %v323 = vpop.f32.mrf.mxu0
  %324 = vdwg.mxu0
  %s325 = scalar_lea.vmem %s1, 8
  %v326 = vld [vmem:[%s325] sm:$0xf]
  %s327 = scalar_lea.vmem %s0, 256
  %v328 = vld [vmem:[%s327] sm:$0xff]
  %v329 = vld [vmem:[%s327 + $0x8] sm:$0xff]
  %v330 = vld [vmem:[%s327 + $0x10] sm:$0xff]
  %v331 = vld [vmem:[%s327 + $0x18] sm:$0xff]
  %v332 = vld [vmem:[%s327 + $0x20] sm:$0xff]
  %v333 = vld [vmem:[%s327 + $0x28] sm:$0xff]
  %v334 = vld [vmem:[%s327 + $0x30] sm:$0xff]
  %v335 = vld [vmem:[%s327 + $0x38] sm:$0xff]
  %v336 = vld [vmem:[%s327 + $0x40] sm:$0xff]
  %v337 = vld [vmem:[%s327 + $0x48] sm:$0xff]
  %v338 = vld [vmem:[%s327 + $0x50] sm:$0xff]
  %v339 = vld [vmem:[%s327 + $0x58] sm:$0xff]
  %v340 = vld [vmem:[%s327 + $0x60] sm:$0xff]
  %v341 = vld [vmem:[%s327 + $0x68] sm:$0xff]
  %v342 = vld [vmem:[%s327 + $0x70] sm:$0xff]
  %v343 = vld [vmem:[%s327 + $0x78] sm:$0xff]
  %v360 = vunpack.c.l.b16 %v328
  %v361 = vunpack.c.h.b16 %v328
  %v362 = vunpack.c.l.b16 %v329
  %v363 = vunpack.c.h.b16 %v329
  %v364 = vunpack.c.l.b16 %v330
  %v365 = vunpack.c.h.b16 %v330
  %v366 = vunpack.c.l.b16 %v331
  %v367 = vunpack.c.h.b16 %v331
  %v368 = vunpack.c.l.b16 %v332
  %v369 = vunpack.c.h.b16 %v332
  %v370 = vunpack.c.l.b16 %v333
  %v371 = vunpack.c.h.b16 %v333
  %v372 = vunpack.c.l.b16 %v334
  %v373 = vunpack.c.h.b16 %v334
  %v374 = vunpack.c.l.b16 %v335
  %v375 = vunpack.c.h.b16 %v335
  %v376 = vunpack.c.l.b16 %v336
  %v377 = vunpack.c.h.b16 %v336
  %v378 = vunpack.c.l.b16 %v337
  %v379 = vunpack.c.h.b16 %v337
  %v380 = vunpack.c.l.b16 %v338
  %v381 = vunpack.c.h.b16 %v338
  %v382 = vunpack.c.l.b16 %v339
  %v383 = vunpack.c.h.b16 %v339
  %v384 = vunpack.c.l.b16 %v340
  %v385 = vunpack.c.h.b16 %v340
  %v386 = vunpack.c.l.b16 %v341
  %v387 = vunpack.c.h.b16 %v341
  %v388 = vunpack.c.l.b16 %v342
  %v389 = vunpack.c.h.b16 %v342
  %v390 = vunpack.c.l.b16 %v343
  %v391 = vunpack.c.h.b16 %v343
  %v392 = vpack.c.b16 %v364, %v360
  %v393 = vpack.c.b16 %v365, %v361
  %v394 = vpack.c.b16 %v366, %v362
  %v395 = vpack.c.b16 %v367, %v363
  %v396 = vpack.c.b16 %v372, %v368
  %v397 = vpack.c.b16 %v373, %v369
  %v398 = vpack.c.b16 %v374, %v370
  %v399 = vpack.c.b16 %v375, %v371
  %v400 = vpack.c.b16 %v380, %v376
  %v401 = vpack.c.b16 %v381, %v377
  %v402 = vpack.c.b16 %v382, %v378
  %v403 = vpack.c.b16 %v383, %v379
  %v404 = vpack.c.b16 %v388, %v384
  %v405 = vpack.c.b16 %v389, %v385
  %v406 = vpack.c.b16 %v390, %v386
  %v407 = vpack.c.b16 %v391, %v387
  %v425 = vsel %vm115, %v326, 0
  %427 = vmatpush.bf16.msra.mxu0 0
  %428 = vmatpush.bf16.msra.mxu0 0
  %429 = vmatpush.bf16.msra.mxu0 0
  %430 = vmatpush.bf16.msra.mxu0 0
  %431 = vmatpush.bf16.msra.mxu0 %v404
  %432 = vmatpush.bf16.msra.mxu0 %v400
  %433 = vmatpush.bf16.msra.mxu0 %v396
  %434 = vmatpush.bf16.msra.mxu0 %v392
  %435 = vmatmul.bf16.gmra.mxu0 %v425
  %v436 = vpop.f32.mrf.mxu0
  %v437 = vadd.f32 0.0, %v436
  %v438 = vpop.f32.mrf.mxu0
  %439 = vdwg.mxu0
  %440 = vmatpush.bf16.msra.mxu0 0
  %441 = vmatpush.bf16.msra.mxu0 0
  %442 = vmatpush.bf16.msra.mxu0 0
  %443 = vmatpush.bf16.msra.mxu0 0
  %444 = vmatpush.bf16.msra.mxu0 %v405
  %445 = vmatpush.bf16.msra.mxu0 %v401
  %446 = vmatpush.bf16.msra.mxu0 %v397
  %447 = vmatpush.bf16.msra.mxu0 %v393
  %448 = vmatmul.bf16.gmra.mxu0 %v425
  %v449 = vpop.f32.mrf.mxu0
  %v450 = vadd.f32 0.0, %v449
  %v451 = vpop.f32.mrf.mxu0
  %452 = vdwg.mxu0
  %453 = vmatpush.bf16.msra.mxu0 0
  %454 = vmatpush.bf16.msra.mxu0 0
  %455 = vmatpush.bf16.msra.mxu0 0
  %456 = vmatpush.bf16.msra.mxu0 0
  %457 = vmatpush.bf16.msra.mxu0 %v406
  %458 = vmatpush.bf16.msra.mxu0 %v402
  %459 = vmatpush.bf16.msra.mxu0 %v398
  %460 = vmatpush.bf16.msra.mxu0 %v394
  %461 = vmatmul.bf16.gmra.mxu0 %v425
  %v462 = vpop.f32.mrf.mxu0
  %v463 = vadd.f32 0.0, %v462
  %v464 = vpop.f32.mrf.mxu0
  %465 = vdwg.mxu0
  %466 = vmatpush.bf16.msra.mxu0 0
  %467 = vmatpush.bf16.msra.mxu0 0
  %468 = vmatpush.bf16.msra.mxu0 0
  %469 = vmatpush.bf16.msra.mxu0 0
  %470 = vmatpush.bf16.msra.mxu0 %v407
  %471 = vmatpush.bf16.msra.mxu0 %v403
  %472 = vmatpush.bf16.msra.mxu0 %v399
  %473 = vmatpush.bf16.msra.mxu0 %v395
  %474 = vmatmul.bf16.gmra.mxu0 %v425
  %v475 = vpop.f32.mrf.mxu0
  %v476 = vadd.f32 0.0, %v475
  %v477 = vpop.f32.mrf.mxu0
  %478 = vdwg.mxu0
  %s479 = scalar_lea.vmem %s1, 12
  %v480 = vld [vmem:[%s479] sm:$0xf]
  %s481 = scalar_lea.vmem %s0, 384
  %v482 = vld [vmem:[%s481] sm:$0xff]
  %v483 = vld [vmem:[%s481 + $0x8] sm:$0xff]
  %v484 = vld [vmem:[%s481 + $0x10] sm:$0xff]
  %v485 = vld [vmem:[%s481 + $0x18] sm:$0xff]
  %v486 = vld [vmem:[%s481 + $0x20] sm:$0xff]
  %v487 = vld [vmem:[%s481 + $0x28] sm:$0xff]
  %v488 = vld [vmem:[%s481 + $0x30] sm:$0xff]
  %v489 = vld [vmem:[%s481 + $0x38] sm:$0xff]
  %v490 = vld [vmem:[%s481 + $0x40] sm:$0xff]
  %v491 = vld [vmem:[%s481 + $0x48] sm:$0xff]
  %v492 = vld [vmem:[%s481 + $0x50] sm:$0xff]
  %v493 = vld [vmem:[%s481 + $0x58] sm:$0xff]
  %v494 = vld [vmem:[%s481 + $0x60] sm:$0xff]
  %v495 = vld [vmem:[%s481 + $0x68] sm:$0xff]
  %v496 = vld [vmem:[%s481 + $0x70] sm:$0xff]
  %v497 = vld [vmem:[%s481 + $0x78] sm:$0xff]
  %v514 = vunpack.c.l.b16 %v482
  %v515 = vunpack.c.h.b16 %v482
  %v516 = vunpack.c.l.b16 %v483
  %v517 = vunpack.c.h.b16 %v483
  %v518 = vunpack.c.l.b16 %v484
  %v519 = vunpack.c.h.b16 %v484
  %v520 = vunpack.c.l.b16 %v485
  %v521 = vunpack.c.h.b16 %v485
  %v522 = vunpack.c.l.b16 %v486
  %v523 = vunpack.c.h.b16 %v486
  %v524 = vunpack.c.l.b16 %v487
  %v525 = vunpack.c.h.b16 %v487
  %v526 = vunpack.c.l.b16 %v488
  %v527 = vunpack.c.h.b16 %v488
  %v528 = vunpack.c.l.b16 %v489
  %v529 = vunpack.c.h.b16 %v489
  %v530 = vunpack.c.l.b16 %v490
  %v531 = vunpack.c.h.b16 %v490
  %v532 = vunpack.c.l.b16 %v491
  %v533 = vunpack.c.h.b16 %v491
  %v534 = vunpack.c.l.b16 %v492
  %v535 = vunpack.c.h.b16 %v492
  %v536 = vunpack.c.l.b16 %v493
  %v537 = vunpack.c.h.b16 %v493
  %v538 = vunpack.c.l.b16 %v494
  %v539 = vunpack.c.h.b16 %v494
  %v540 = vunpack.c.l.b16 %v495
  %v541 = vunpack.c.h.b16 %v495
  %v542 = vunpack.c.l.b16 %v496
  %v543 = vunpack.c.h.b16 %v496
  %v544 = vunpack.c.l.b16 %v497
  %v545 = vunpack.c.h.b16 %v497
  %v546 = vpack.c.b16 %v518, %v514
  %v547 = vpack.c.b16 %v519, %v515
  %v548 = vpack.c.b16 %v520, %v516
  %v549 = vpack.c.b16 %v521, %v517
  %v550 = vpack.c.b16 %v526, %v522
  %v551 = vpack.c.b16 %v527, %v523
  %v552 = vpack.c.b16 %v528, %v524
  %v553 = vpack.c.b16 %v529, %v525
  %v554 = vpack.c.b16 %v534, %v530
  %v555 = vpack.c.b16 %v535, %v531
  %v556 = vpack.c.b16 %v536, %v532
  %v557 = vpack.c.b16 %v537, %v533
  %v558 = vpack.c.b16 %v542, %v538
  %v559 = vpack.c.b16 %v543, %v539
  %v560 = vpack.c.b16 %v544, %v540
  %v561 = vpack.c.b16 %v545, %v541
  %v579 = vsel %vm115, %v480, 0
  %581 = vmatpush.bf16.msra.mxu0 0
  %582 = vmatpush.bf16.msra.mxu0 0
  %583 = vmatpush.bf16.msra.mxu0 0
  %584 = vmatpush.bf16.msra.mxu0 0
  %585 = vmatpush.bf16.msra.mxu0 %v558
  %586 = vmatpush.bf16.msra.mxu0 %v554
  %587 = vmatpush.bf16.msra.mxu0 %v550
  %588 = vmatpush.bf16.msra.mxu0 %v546
  %589 = vmatmul.bf16.gmra.mxu0 %v579
  %v590 = vpop.f32.mrf.mxu0
  %v591 = vadd.f32 0.0, %v590
  %v592 = vpop.f32.mrf.mxu0
  %593 = vdwg.mxu0
  %594 = vmatpush.bf16.msra.mxu0 0
  %595 = vmatpush.bf16.msra.mxu0 0
  %596 = vmatpush.bf16.msra.mxu0 0
  %597 = vmatpush.bf16.msra.mxu0 0
  %598 = vmatpush.bf16.msra.mxu0 %v559
  %599 = vmatpush.bf16.msra.mxu0 %v555
  %600 = vmatpush.bf16.msra.mxu0 %v551
  %601 = vmatpush.bf16.msra.mxu0 %v547
  %602 = vmatmul.bf16.gmra.mxu0 %v579
  %v603 = vpop.f32.mrf.mxu0
  %v604 = vadd.f32 0.0, %v603
  %v605 = vpop.f32.mrf.mxu0
  %606 = vdwg.mxu0
  %607 = vmatpush.bf16.msra.mxu0 0
  %608 = vmatpush.bf16.msra.mxu0 0
  %609 = vmatpush.bf16.msra.mxu0 0
  %610 = vmatpush.bf16.msra.mxu0 0
  %611 = vmatpush.bf16.msra.mxu0 %v560
  %612 = vmatpush.bf16.msra.mxu0 %v556
  %613 = vmatpush.bf16.msra.mxu0 %v552
  %614 = vmatpush.bf16.msra.mxu0 %v548
  %615 = vmatmul.bf16.gmra.mxu0 %v579
  %v616 = vpop.f32.mrf.mxu0
  %v617 = vadd.f32 0.0, %v616
  %v618 = vpop.f32.mrf.mxu0
  %619 = vdwg.mxu0
  %620 = vmatpush.bf16.msra.mxu0 0
  %621 = vmatpush.bf16.msra.mxu0 0
  %622 = vmatpush.bf16.msra.mxu0 0
  %623 = vmatpush.bf16.msra.mxu0 0
  %624 = vmatpush.bf16.msra.mxu0 %v561
  %625 = vmatpush.bf16.msra.mxu0 %v557
  %626 = vmatpush.bf16.msra.mxu0 %v553
  %627 = vmatpush.bf16.msra.mxu0 %v549
  %628 = vmatmul.bf16.gmra.mxu0 %v579
  %v629 = vpop.f32.mrf.mxu0
  %v630 = vadd.f32 0.0, %v629
  %v631 = vpop.f32.mrf.mxu0
  %632 = vdwg.mxu0
  %v633 = vadd.f32 %v129, %v283
  %v634 = vadd.f32 %v142, %v296
  %v635 = vadd.f32 %v155, %v309
  %v636 = vadd.f32 %v168, %v322
  %v637 = vadd.f32 %v633, %v437
  %v638 = vadd.f32 %v634, %v450
  %v639 = vadd.f32 %v635, %v463
  %v640 = vadd.f32 %v636, %v476
  %v641 = vadd.f32 %v637, %v591
  %v642 = vadd.f32 %v638, %v604
  %v643 = vadd.f32 %v639, %v617
  %v644 = vadd.f32 %v640, %v630
  %v645 = vadd.f32 %v641, %v642
  %v646 = vadd.f32 %v645, %v643
  %v647 = vadd.f32 %v646, %v644
  %648 = vadd.xlane.f32.xlu0 %v647
  %v649 = vpop.xlane.xlu0 %648
  %v650 = vrcp.pop 2048.0
  %v651 = vmul.f32 2048.0, %v650
  %v652 = vsub.f32 1.0, %v651
  %v653 = vmul.f32 %v650, %v652
  %v654 = vadd.f32 %v650, %v653
  %vm655 = vweird.f32 %v650
  %v656 = vsel %vm655, %v650, %v654
  %v657 = vmul.f32 %v649, %v656
  %v658 = vsub.f32 %v129, %v657
  %v659 = vsub.f32 %v142, %v657
  %v660 = vsub.f32 %v155, %v657
  %v661 = vsub.f32 %v168, %v657
  %v662 = vmul.f32 %v658, %v658
  %v663 = vmul.f32 %v659, %v659
  %v664 = vmul.f32 %v660, %v660
  %v665 = vmul.f32 %v661, %v661
  %v666 = vsub.f32 %v283, %v657
  %v667 = vsub.f32 %v296, %v657
  %v668 = vsub.f32 %v309, %v657
  %v669 = vsub.f32 %v322, %v657
  %v670 = vmul.f32 %v666, %v666
  %v671 = vmul.f32 %v667, %v667
  %v672 = vmul.f32 %v668, %v668
  %v673 = vmul.f32 %v669, %v669
  %v674 = vadd.f32 %v662, %v670
  %v675 = vadd.f32 %v663, %v671
  %v676 = vadd.f32 %v664, %v672
  %v677 = vadd.f32 %v665, %v673
  %v678 = vsub.f32 %v437, %v657
  %v679 = vsub.f32 %v450, %v657
  %v680 = vsub.f32 %v463, %v657
  %v681 = vsub.f32 %v476, %v657
  %v682 = vmul.f32 %v678, %v678
  %v683 = vmul.f32 %v679, %v679
  %v684 = vmul.f32 %v680, %v680
  %v685 = vmul.f32 %v681, %v681
  %v686 = vadd.f32 %v674, %v682
  %v687 = vadd.f32 %v675, %v683
  %v688 = vadd.f32 %v676, %v684
  %v689 = vadd.f32 %v677, %v685
  %v690 = vsub.f32 %v591, %v657
  %v691 = vsub.f32 %v604, %v657
  %v692 = vsub.f32 %v617, %v657
  %v693 = vsub.f32 %v630, %v657
  %v694 = vmul.f32 %v690, %v690
  %v695 = vmul.f32 %v691, %v691
  %v696 = vmul.f32 %v692, %v692
  %v697 = vmul.f32 %v693, %v693
  %v698 = vadd.f32 %v686, %v694
  %v699 = vadd.f32 %v687, %v695
  %v700 = vadd.f32 %v688, %v696
  %v701 = vadd.f32 %v689, %v697
  %v702 = vadd.f32 %v698, %v699
  %v703 = vadd.f32 %v702, %v700
  %v704 = vadd.f32 %v703, %v701
  %705 = vadd.xlane.f32.xlu0 %v704
  %v706 = vpop.xlane.xlu0 %705
  %v707 = vmul.f32 %v706, %v656
  %v708 = vld [vmem:[%s2] sm:$0xff]
  %v709 = vadd.f32 %v707, 1e-05
  %v710 = vrsqrt.pop %v709
  %v711 = vmul.f32 %v710, %v709
  %v712 = vmul.f32 %v711, %v710
  %v713 = vmul.f32 0.5, %v712
  %v714 = vsub.f32 1.5, %v713
  %v715 = vmul.f32 %v710, %v714
  %vm716 = vweird.f32 %v709
  %vm717 = vweird.f32 %v710
  %vm718 = vmor %vm716, %vm717
  %v719 = vsel %vm718, %v710, %v715
  %v720 = vmul.f32 %v708, %v719
  %v721 = vld [vmem:[%s3] sm:$0xff]
  %v722 = vmul.f32 %v657, %v720
  %v723 = vsub.f32 %v721, %v722
  %725 = vset.pattern.permute.xlu0 0
  %726 = vperm.xlu0 %725, %v720
  %v727 = vpop.permute.xlu0 %726
  %v729 = vmul.f32 %v129, %v727
  %v730 = vmul.f32 %v142, %v727
  %v731 = vmul.f32 %v155, %v727
  %v732 = vmul.f32 %v168, %v727
  %734 = vset.pattern.permute.xlu0 0
  %735 = vperm.xlu0 %734, %v723
  %v736 = vpop.permute.xlu0 %735
  %v738 = vadd.f32 %v729, %v736
  %v739 = vadd.f32 %v730, %v736
  %v740 = vadd.f32 %v731, %v736
  %v741 = vadd.f32 %v732, %v736
  %v742 = vmul.f32 %v738, 0.2
  %v743 = vmul.f32 %v739, 0.2
  %v744 = vmul.f32 %v740, 0.2
  %v745 = vmul.f32 %v741, 0.2
  %v746 = vmax.f32 %v738, %v742
  %v747 = vmax.f32 %v739, %v743
  %v748 = vmax.f32 %v740, %v744
  %v749 = vmax.f32 %v741, %v745
  %v750 = vpack.c.bf16 %v747, %v746
  %v751 = vpack.c.bf16 %v749, %v748
  %752 = vst [vmem:[%s4] sm:$0xff] %v750
  %753 = vst [vmem:[%s4 + $0x8] sm:$0xff] %v751
  %v754 = vmul.f32 %v283, %v727
  %v755 = vmul.f32 %v296, %v727
  %v756 = vmul.f32 %v309, %v727
  %v757 = vmul.f32 %v322, %v727
  %v758 = vadd.f32 %v754, %v736
  %v759 = vadd.f32 %v755, %v736
  %v760 = vadd.f32 %v756, %v736
  %v761 = vadd.f32 %v757, %v736
  %v762 = vmul.f32 %v758, 0.2
  %v763 = vmul.f32 %v759, 0.2
  %v764 = vmul.f32 %v760, 0.2
  %v765 = vmul.f32 %v761, 0.2
  %v766 = vmax.f32 %v758, %v762
  %v767 = vmax.f32 %v759, %v763
  %v768 = vmax.f32 %v760, %v764
  %v769 = vmax.f32 %v761, %v765
  %v770 = vpack.c.bf16 %v767, %v766
  %v771 = vpack.c.bf16 %v769, %v768
  %s772 = scalar_lea.vmem %s4, 16
  %773 = vst [vmem:[%s772] sm:$0xff] %v770
  %774 = vst [vmem:[%s772 + $0x8] sm:$0xff] %v771
  %v775 = vmul.f32 %v437, %v727
  %v776 = vmul.f32 %v450, %v727
  %v777 = vmul.f32 %v463, %v727
  %v778 = vmul.f32 %v476, %v727
  %v779 = vadd.f32 %v775, %v736
  %v780 = vadd.f32 %v776, %v736
  %v781 = vadd.f32 %v777, %v736
  %v782 = vadd.f32 %v778, %v736
  %v783 = vmul.f32 %v779, 0.2
  %v784 = vmul.f32 %v780, 0.2
  %v785 = vmul.f32 %v781, 0.2
  %v786 = vmul.f32 %v782, 0.2
  %v787 = vmax.f32 %v779, %v783
  %v788 = vmax.f32 %v780, %v784
  %v789 = vmax.f32 %v781, %v785
  %v790 = vmax.f32 %v782, %v786
  %v791 = vpack.c.bf16 %v788, %v787
  %v792 = vpack.c.bf16 %v790, %v789
  %s793 = scalar_lea.vmem %s4, 32
  %794 = vst [vmem:[%s793] sm:$0xff] %v791
  %795 = vst [vmem:[%s793 + $0x8] sm:$0xff] %v792
  %v796 = vmul.f32 %v591, %v727
  %v797 = vmul.f32 %v604, %v727
  %v798 = vmul.f32 %v617, %v727
  %v799 = vmul.f32 %v630, %v727
  %v800 = vadd.f32 %v796, %v736
  %v801 = vadd.f32 %v797, %v736
  %v802 = vadd.f32 %v798, %v736
  %v803 = vadd.f32 %v799, %v736
  %v804 = vmul.f32 %v800, 0.2
  %v805 = vmul.f32 %v801, 0.2
  %v806 = vmul.f32 %v802, 0.2
  %v807 = vmul.f32 %v803, 0.2
  %v808 = vmax.f32 %v800, %v804
  %v809 = vmax.f32 %v801, %v805
  %v810 = vmax.f32 %v802, %v806
  %v811 = vmax.f32 %v803, %v807
  %v812 = vpack.c.bf16 %v809, %v808
  %v813 = vpack.c.bf16 %v811, %v810
  %s814 = scalar_lea.vmem %s4, 48
  %815 = vst [vmem:[%s814] sm:$0xff] %v812
  %816 = vst [vmem:[%s814 + $0x8] sm:$0xff] %v813
  // Predicated region
  $region18: #{generator_64_forward.8} parent=0 // pred_check
    _
  $region19: #{generator_64_forward.8} parent=0 // pred_check_branch
    %818 = sbr.rel (0) target = $region21
  $region20: #{generator_64_forward.8} parent=0 // pred_region
    _
  $region21: #{generator_64_forward.8} parent=0 // pred_fallthru
    _
  // Predicated region
  $region22: #{generator_64_forward.8} parent=0 // pred_check
    _
  $region23: #{generator_64_forward.8} parent=0 // pred_check_branch
    %820 = sbr.rel (0) target = $region25
  $region24: #{generator_64_forward.8} parent=0 // pred_region
    _
  $region25: #{generator_64_forward.8} parent=0 // pred_fallthru
    _

// kernel: generator_64_forward.9
$region0: #{generator_64_forward.9}
  #allocation0 [shape = 'u32[]', space=smem, size = 0x4, offset = 0x4, fixed_abs, tag = 'smem constant byte address 0x4 - core index']
  #allocation1 [shape = 'u32[72,128]{1,0:T(1,128)}', space=vmem, size = 0x9000, scoped, tag = 'internal scratch']
  %s0 = inlined_call_operand.vmem [shape: bf16[4,32,2048], index: 0, kind: input, shape index: {}]
  %s1 = inlined_call_operand.vmem [shape: bf16[4,1,32], index: 1, kind: input, shape index: {}]
  %s2 = inlined_call_operand.vmem [shape: f32[4,1,2048], index: 2, kind: output, shape index: {}]
  %s3 = sld [smem:[#allocation0]]
  $region98: #{generator_64_forward.9} parent=0
    _
  %s5 = ssub.s32 1, %s3
  %s6 = scalar_select 0, %s5, %s3
  $region1: #{generator_64_forward.9} parent=0
    #allocation2 [shape = 'u8[524288]{0}', space=vmem, size = 0x80000, scoped, tag = 'input window, operand 0']
    #allocation3 [shape = 'u8[32768]{0}', space=vmem, size = 0x8000, scoped, tag = 'output window, operand 0']
    loop: start=0, step=1, limit=4
    $region2: #{generator_64_forward.9} parent=1 // loop_pre_header
      _
    $region3: #{generator_64_forward.9} parent=1 // loop_header
      %s8 = sphi 0, %s12
      %p9 = scmp.ge.s32.totalorder %s8, 4
      %s18 = sphi 0, %s20
      %s21 = sphi 0, %s18
      %s22 = sphi 0, %s21
      %s38 = sphi 0, %s22
      %s42 = sphi 0, %s42
      %s44 = sphi 0, %s42
      %s45 = sphi 0, %s44
      %s59 = sphi 0, %s45
      %s65 = sphi 0, %s67
      %s68 = sphi 0, %s65
      %s69 = sphi 0, %s68
      %s85 = sphi 0, %s69
    $region4: #{generator_64_forward.9} parent=1 // loop_header_branch
      %11 = sbr.rel (%p9) target = $region8
    $region5: #{generator_64_forward.9} parent=1 // loop_body
      %s13 = ssub.s32 %s8, 1
      %s14 = ssub.s32 %s8, 2
      %s15 = sadd.s32 %s8, 1
      %s16 = ssub.s32 %s8, %s15
      %p17 = scmp.eq.s32.totalorder %s16, 0
      %s19 = sadd.s32 %s18, 1
      %s20 = scalar_select %p17, %s18, %s19
      %p23 = pneg %p17
      %p24 = scmp.eq.s32.totalorder %s8, 1
      %p25 = por %p23, %p24
      %p26 = scmp.ne.s32.totalorder %s18, %s21
      %p27 = scmp.eq.s32.totalorder %s8, 0
      %p28 = por %p26, %p27
      %p29 = scmp.ne.s32.totalorder %s18, %s21
      %p30 = scmp.eq.s32.totalorder %s13, 1
      %p31 = por %p29, %p30
      %p32 = scmp.ne.s32.totalorder %s21, %s22
      %p33 = scmp.eq.s32.totalorder %s13, 0
      %p34 = por %p32, %p33
      %p35 = scmp.ne.s32.totalorder %s21, %s22
      %p36 = scmp.eq.s32.totalorder %s14, 1
      %p37 = por %p35, %p36
      %p39 = scmp.ne.s32.totalorder %s22, %s38
      %p40 = scmp.eq.s32.totalorder %s14, 0
      %p41 = por %p39, %p40
      %s43 = sadd.s32 %s42, 1
      %p46 = scmp.eq.s32.totalorder %s8, 1
      %p47 = scmp.ne.s32.totalorder %s42, %s44
      %p48 = scmp.eq.s32.totalorder %s8, 0
      %p49 = por %p47, %p48
      %p50 = scmp.ne.s32.totalorder %s42, %s44
      %p51 = scmp.eq.s32.totalorder %s13, 1
      %p52 = por %p50, %p51
      %p53 = scmp.ne.s32.totalorder %s44, %s45
      %p54 = scmp.eq.s32.totalorder %s13, 0
      %p55 = por %p53, %p54
      %p56 = scmp.ne.s32.totalorder %s44, %s45
      %p57 = scmp.eq.s32.totalorder %s14, 1
      %p58 = por %p56, %p57
      %p60 = scmp.ne.s32.totalorder %s45, %s59
      %p61 = scmp.eq.s32.totalorder %s14, 0
      %p62 = por %p60, %p61
      %s63 = ssub.s32 %s8, %s15
      %p64 = scmp.eq.s32.totalorder %s63, 0
      %s66 = sadd.s32 %s65, 1
      %s67 = scalar_select %p64, %s65, %s66
      %p70 = pneg %p64
      %p71 = scmp.eq.s32.totalorder %s8, 1
      %p72 = por %p70, %p71
      %p73 = scmp.ne.s32.totalorder %s65, %s68
      %p74 = scmp.eq.s32.totalorder %s8, 0
      %p75 = por %p73, %p74
      %p76 = scmp.ne.s32.totalorder %s65, %s68
      %p77 = scmp.eq.s32.totalorder %s13, 1
      %p78 = por %p76, %p77
      %p79 = scmp.ne.s32.totalorder %s68, %s69
      %p80 = scmp.eq.s32.totalorder %s13, 0
      %p81 = por %p79, %p80
      %p82 = scmp.ne.s32.totalorder %s68, %s69
      %p83 = scmp.eq.s32.totalorder %s14, 1
      %p84 = por %p82, %p83
      %p86 = scmp.ne.s32.totalorder %s69, %s85
      %p87 = scmp.eq.s32.totalorder %s14, 0
      %p88 = por %p86, %p87
      %p89 = scmp.le.s32.totalorder 1, %s8
      %p90 = scmp.lt.s32.totalorder %s8, 3
      %p91 = pnand %p89, %p90
      %p92 = pneg %p91
      // Predicated region
      $region9: #{generator_64_forward.9} parent=5 // pred_check
        _
      $region10: #{generator_64_forward.9} parent=5 // pred_check_branch
        %94 = sbr.rel (%p91) target = $region12
      $region11: #{generator_64_forward.9} parent=5 // pred_region
        %s95 = ssub.s32 %s8, 1
        // Predicated region
        $region13: #{generator_64_forward.9} parent=11 // pred_check
          %p96 = pneg %p55
        $region14: #{generator_64_forward.9} parent=11 // pred_check_branch
          %98 = sbr.rel (%p96) target = $region16
        $region15: #{generator_64_forward.9} parent=11 // pred_region
          _
        $region16: #{generator_64_forward.9} parent=11 // pred_fallthru
          _
      $region12: #{generator_64_forward.9} parent=5 // pred_fallthru
        _
      %p99 = scmp.lt.s32.totalorder %s8, 2
      // Predicated region
      $region17: #{generator_64_forward.9} parent=5 // pred_check
        %p100 = pneg %p99
      $region18: #{generator_64_forward.9} parent=5 // pred_check_branch
        %102 = sbr.rel (%p100) target = $region20
      $region19: #{generator_64_forward.9} parent=5 // pred_region
        // Predicated region
        $region21: #{generator_64_forward.9} parent=19 // pred_check
          %p103 = pneg %p28
        $region22: #{generator_64_forward.9} parent=19 // pred_check_branch
          %105 = sbr.rel (%p103) target = $region24
        $region23: #{generator_64_forward.9} parent=19 // pred_region
          %s106 = sand.u32 %s18, 1
          %s107 = sand.u32 %s18, 1
          %s108 = smul.addr %s107, 512
          %s109 = scalar_lea.vmem [#allocation2], %s108
          %s110 = smul.u32 8, %s8
          %s111 = smul.addr %s110, 4
          %s112 = scalar_lea.vmem %s0, %s111
          // Predicated region
          $region25: #{generator_64_forward.9} parent=23 // pred_check
            _
          $region26: #{generator_64_forward.9} parent=23 // pred_check_branch
            %114 = sbr.rel (0) target = $region28
          $region27: #{generator_64_forward.9} parent=23 // pred_region
            // Predicated region
            $region29: #{generator_64_forward.9} parent=27 // pred_check
              _
            $region30: #{generator_64_forward.9} parent=27 // pred_check_branch
              %116 = sbr.rel (0) target = $region32
            $region31: #{generator_64_forward.9} parent=27 // pred_region
              loop: start=0, step=1, limit=1
              $region33: #{generator_64_forward.9} parent=31 // loop_pre_header
                _
              $region34: #{generator_64_forward.9} parent=31 // loop_header
                %s118 = sphi 0, %s122
                %p119 = scmp.ge.s32.totalorder %s118, 1
                %s123 = sphi %s112, %s112
                %s124 = sphi %s109, %s109
              $region35: #{generator_64_forward.9} parent=31 // loop_header_branch
                %121 = sbr.rel (%p119) target = $region39
              $region36: #{generator_64_forward.9} parent=31 // loop_body
                %v125 = vld [vmem:[%s123] sm:$0xff]
                %126 = vst [vmem:[%s124] sm:$0xff] %v125
                %v127 = vld [vmem:[%s123 + $0x8] sm:$0xff]
                %128 = vst [vmem:[%s124 + $0x8] sm:$0xff] %v127
                %v129 = vld [vmem:[%s123 + $0x10] sm:$0xff]
                %130 = vst [vmem:[%s124 + $0x10] sm:$0xff] %v129
                %v131 = vld [vmem:[%s123 + $0x18] sm:$0xff]
                %132 = vst [vmem:[%s124 + $0x18] sm:$0xff] %v131
                %v133 = vld [vmem:[%s123 + $0x40] sm:$0xff]
                %134 = vst [vmem:[%s124 + $0x20] sm:$0xff] %v133
                %v135 = vld [vmem:[%s123 + $0x48] sm:$0xff]
                %136 = vst [vmem:[%s124 + $0x28] sm:$0xff] %v135
                %v137 = vld [vmem:[%s123 + $0x50] sm:$0xff]
                %138 = vst [vmem:[%s124 + $0x30] sm:$0xff] %v137
                %v139 = vld [vmem:[%s123 + $0x58] sm:$0xff]
                %140 = vst [vmem:[%s124 + $0x38] sm:$0xff] %v139
                %v141 = vld [vmem:[%s123 + $0x80] sm:$0xff]
                %142 = vst [vmem:[%s124 + $0x40] sm:$0xff] %v141
                %v143 = vld [vmem:[%s123 + $0x88] sm:$0xff]
                %144 = vst [vmem:[%s124 + $0x48] sm:$0xff] %v143
                %v145 = vld [vmem:[%s123 + $0x90] sm:$0xff]
                %146 = vst [vmem:[%s124 + $0x50] sm:$0xff] %v145
                %v147 = vld [vmem:[%s123 + $0x98] sm:$0xff]
                %148 = vst [vmem:[%s124 + $0x58] sm:$0xff] %v147
                %v149 = vld [vmem:[%s123 + $0xc0] sm:$0xff]
                %150 = vst [vmem:[%s124 + $0x60] sm:$0xff] %v149
                %v151 = vld [vmem:[%s123 + $0xc8] sm:$0xff]
                %152 = vst [vmem:[%s124 + $0x68] sm:$0xff] %v151
                %v153 = vld [vmem:[%s123 + $0xd0] sm:$0xff]
                %154 = vst [vmem:[%s124 + $0x70] sm:$0xff] %v153
                %v155 = vld [vmem:[%s123 + $0xd8] sm:$0xff]
                %156 = vst [vmem:[%s124 + $0x78] sm:$0xff] %v155
                %v157 = vld [vmem:[%s123 + $0x100] sm:$0xff]
                %158 = vst [vmem:[%s124 + $0x80] sm:$0xff] %v157
                %v159 = vld [vmem:[%s123 + $0x108] sm:$0xff]
                %160 = vst [vmem:[%s124 + $0x88] sm:$0xff] %v159
                %v161 = vld [vmem:[%s123 + $0x110] sm:$0xff]
                %162 = vst [vmem:[%s124 + $0x90] sm:$0xff] %v161
                %v163 = vld [vmem:[%s123 + $0x118] sm:$0xff]
                %164 = vst [vmem:[%s124 + $0x98] sm:$0xff] %v163
                %v165 = vld [vmem:[%s123 + $0x140] sm:$0xff]
                %166 = vst [vmem:[%s124 + $0xa0] sm:$0xff] %v165
                %v167 = vld [vmem:[%s123 + $0x148] sm:$0xff]
                %168 = vst [vmem:[%s124 + $0xa8] sm:$0xff] %v167
                %v169 = vld [vmem:[%s123 + $0x150] sm:$0xff]
                %170 = vst [vmem:[%s124 + $0xb0] sm:$0xff] %v169
                %v171 = vld [vmem:[%s123 + $0x158] sm:$0xff]
                %172 = vst [vmem:[%s124 + $0xb8] sm:$0xff] %v171
                %v173 = vld [vmem:[%s123 + $0x180] sm:$0xff]
                %174 = vst [vmem:[%s124 + $0xc0] sm:$0xff] %v173
                %v175 = vld [vmem:[%s123 + $0x188] sm:$0xff]
                %176 = vst [vmem:[%s124 + $0xc8] sm:$0xff] %v175
                %v177 = vld [vmem:[%s123 + $0x190] sm:$0xff]
                %178 = vst [vmem:[%s124 + $0xd0] sm:$0xff] %v177
                %v179 = vld [vmem:[%s123 + $0x198] sm:$0xff]
                %180 = vst [vmem:[%s124 + $0xd8] sm:$0xff] %v179
                %v181 = vld [vmem:[%s123 + $0x1c0] sm:$0xff]
                %182 = vst [vmem:[%s124 + $0xe0] sm:$0xff] %v181
                %v183 = vld [vmem:[%s123 + $0x1c8] sm:$0xff]
                %184 = vst [vmem:[%s124 + $0xe8] sm:$0xff] %v183
                %v185 = vld [vmem:[%s123 + $0x1d0] sm:$0xff]
                %186 = vst [vmem:[%s124 + $0xf0] sm:$0xff] %v185
                %v187 = vld [vmem:[%s123 + $0x1d8] sm:$0xff]
                %188 = vst [vmem:[%s124 + $0xf8] sm:$0xff] %v187
                %v189 = vld [vmem:[%s123 + $0x200] sm:$0xff]
                %190 = vst [vmem:[%s124 + $0x100] sm:$0xff] %v189
                %v191 = vld [vmem:[%s123 + $0x208] sm:$0xff]
                %192 = vst [vmem:[%s124 + $0x108] sm:$0xff] %v191
                %v193 = vld [vmem:[%s123 + $0x210] sm:$0xff]
                %194 = vst [vmem:[%s124 + $0x110] sm:$0xff] %v193
                %v195 = vld [vmem:[%s123 + $0x218] sm:$0xff]
                %196 = vst [vmem:[%s124 + $0x118] sm:$0xff] %v195
                %v197 = vld [vmem:[%s123 + $0x240] sm:$0xff]
                %198 = vst [vmem:[%s124 + $0x120] sm:$0xff] %v197
                %v199 = vld [vmem:[%s123 + $0x248] sm:$0xff]
                %200 = vst [vmem:[%s124 + $0x128] sm:$0xff] %v199
                %v201 = vld [vmem:[%s123 + $0x250] sm:$0xff]
                %202 = vst [vmem:[%s124 + $0x130] sm:$0xff] %v201
                %v203 = vld [vmem:[%s123 + $0x258] sm:$0xff]
                %204 = vst [vmem:[%s124 + $0x138] sm:$0xff] %v203
                %v205 = vld [vmem:[%s123 + $0x280] sm:$0xff]
                %206 = vst [vmem:[%s124 + $0x140] sm:$0xff] %v205
                %v207 = vld [vmem:[%s123 + $0x288] sm:$0xff]
                %208 = vst [vmem:[%s124 + $0x148] sm:$0xff] %v207
                %v209 = vld [vmem:[%s123 + $0x290] sm:$0xff]
                %210 = vst [vmem:[%s124 + $0x150] sm:$0xff] %v209
                %v211 = vld [vmem:[%s123 + $0x298] sm:$0xff]
                %212 = vst [vmem:[%s124 + $0x158] sm:$0xff] %v211
                %v213 = vld [vmem:[%s123 + $0x2c0] sm:$0xff]
                %214 = vst [vmem:[%s124 + $0x160] sm:$0xff] %v213
                %v215 = vld [vmem:[%s123 + $0x2c8] sm:$0xff]
                %216 = vst [vmem:[%s124 + $0x168] sm:$0xff] %v215
                %v217 = vld [vmem:[%s123 + $0x2d0] sm:$0xff]
                %218 = vst [vmem:[%s124 + $0x170] sm:$0xff] %v217
                %v219 = vld [vmem:[%s123 + $0x2d8] sm:$0xff]
                %220 = vst [vmem:[%s124 + $0x178] sm:$0xff] %v219
                %v221 = vld [vmem:[%s123 + $0x300] sm:$0xff]
                %222 = vst [vmem:[%s124 + $0x180] sm:$0xff] %v221
                %v223 = vld [vmem:[%s123 + $0x308] sm:$0xff]
                %224 = vst [vmem:[%s124 + $0x188] sm:$0xff] %v223
                %v225 = vld [vmem:[%s123 + $0x310] sm:$0xff]
                %226 = vst [vmem:[%s124 + $0x190] sm:$0xff] %v225
                %v227 = vld [vmem:[%s123 + $0x318] sm:$0xff]
                %228 = vst [vmem:[%s124 + $0x198] sm:$0xff] %v227
                %v229 = vld [vmem:[%s123 + $0x340] sm:$0xff]
                %230 = vst [vmem:[%s124 + $0x1a0] sm:$0xff] %v229
                %v231 = vld [vmem:[%s123 + $0x348] sm:$0xff]
                %232 = vst [vmem:[%s124 + $0x1a8] sm:$0xff] %v231
                %v233 = vld [vmem:[%s123 + $0x350] sm:$0xff]
                %234 = vst [vmem:[%s124 + $0x1b0] sm:$0xff] %v233
                %v235 = vld [vmem:[%s123 + $0x358] sm:$0xff]
                %236 = vst [vmem:[%s124 + $0x1b8] sm:$0xff] %v235
                %v237 = vld [vmem:[%s123 + $0x380] sm:$0xff]
                %238 = vst [vmem:[%s124 + $0x1c0] sm:$0xff] %v237
                %v239 = vld [vmem:[%s123 + $0x388] sm:$0xff]
                %240 = vst [vmem:[%s124 + $0x1c8] sm:$0xff] %v239
                %v241 = vld [vmem:[%s123 + $0x390] sm:$0xff]
                %242 = vst [vmem:[%s124 + $0x1d0] sm:$0xff] %v241
                %v243 = vld [vmem:[%s123 + $0x398] sm:$0xff]
                %244 = vst [vmem:[%s124 + $0x1d8] sm:$0xff] %v243
                %v245 = vld [vmem:[%s123 + $0x3c0] sm:$0xff]
                %246 = vst [vmem:[%s124 + $0x1e0] sm:$0xff] %v245
                %v247 = vld [vmem:[%s123 + $0x3c8] sm:$0xff]
                %248 = vst [vmem:[%s124 + $0x1e8] sm:$0xff] %v247
                %v249 = vld [vmem:[%s123 + $0x3d0] sm:$0xff]
                %250 = vst [vmem:[%s124 + $0x1f0] sm:$0xff] %v249
                %v251 = vld [vmem:[%s123 + $0x3d8] sm:$0xff]
                %252 = vst [vmem:[%s124 + $0x1f8] sm:$0xff] %v251
              $region37: #{generator_64_forward.9} parent=31 // loop_footer
                %s122 = sadd.s32 1, %s118
              $region38: #{generator_64_forward.9} parent=31 // loop_footer_branch
                %117 = sbr.rel target = $region34
              $region39: #{generator_64_forward.9} parent=31 // loop_exit
                _
            $region32: #{generator_64_forward.9} parent=27 // pred_fallthru
              _
            // Predicated region
            $region40: #{generator_64_forward.9} parent=27 // pred_check
              _
            $region41: #{generator_64_forward.9} parent=27 // pred_check_branch
              %254 = sbr.rel target = $region43
            $region42: #{generator_64_forward.9} parent=27 // pred_region
              _
            $region43: #{generator_64_forward.9} parent=27 // pred_fallthru
              _
          $region28: #{generator_64_forward.9} parent=23 // pred_fallthru
            _
          %255 = vnop
        $region24: #{generator_64_forward.9} parent=19 // pred_fallthru
          _
      $region20: #{generator_64_forward.9} parent=5 // pred_fallthru
        _
      %p256 = scmp.le.s32.totalorder 1, %s8
      %p257 = scmp.lt.s32.totalorder %s8, 3
      %p258 = pnand %p256, %p257
      %p259 = pneg %p258
      // Predicated region
      $region44: #{generator_64_forward.9} parent=5 // pred_check
        _
      $region45: #{generator_64_forward.9} parent=5 // pred_check_branch
        %261 = sbr.rel (%p258) target = $region47
      $region46: #{generator_64_forward.9} parent=5 // pred_region
        %s262 = ssub.s32 %s8, 1
        %s263 = sand.u32 %s21, 1
        %s264 = sand.u32 %s21, 1
        %s265 = smul.addr %s264, 512
        %s266 = scalar_lea.vmem [#allocation2], %s265
        // Predicated region
        $region48: #{generator_64_forward.9} parent=46 // pred_check
          %p267 = pneg %p34
        $region49: #{generator_64_forward.9} parent=46 // pred_check_branch
          %269 = sbr.rel (%p267) target = $region51
        $region50: #{generator_64_forward.9} parent=46 // pred_region
          _
        $region51: #{generator_64_forward.9} parent=46 // pred_fallthru
          _
        %s270 = sand.u32 %s21, 1
        %s271 = sand.u32 %s21, 1
        %s272 = smul.addr %s271, 512
        %s273 = scalar_lea.vmem [#allocation2], %s272
        %p274 = pneg %p34
        %p275 = pneg %p31
        %p276 = pneg %p55
        %p277 = pneg %p52
        %p278 = pneg %p81
        %p279 = pneg %p78
        %s280 = sand.u32 %s68, 1
        %s281 = sand.u32 %s68, 1
        %s282 = smul.addr %s281, 32
        %s283 = scalar_lea.vmem [#allocation3], %s282
        %s284 = smul.u32 8, %s13
        %s285 = smul.u32 8, %s13
        %v287 = vld [vmem:[%s1] sm:$0x1]
        %v288 = vld [vmem:[%s266] sm:$0xff]
        %v289 = vld [vmem:[%s266 + $0x8] sm:$0xff]
        %v290 = vld [vmem:[%s266 + $0x10] sm:$0xff]
        %v291 = vld [vmem:[%s266 + $0x18] sm:$0xff]
        %v292 = vld [vmem:[%s266 + $0x20] sm:$0xff]
        %v293 = vld [vmem:[%s266 + $0x28] sm:$0xff]
        %v294 = vld [vmem:[%s266 + $0x30] sm:$0xff]
        %v295 = vld [vmem:[%s266 + $0x38] sm:$0xff]
        %v296 = vld [vmem:[%s266 + $0x40] sm:$0xff]
        %v297 = vld [vmem:[%s266 + $0x48] sm:$0xff]
        %v298 = vld [vmem:[%s266 + $0x50] sm:$0xff]
        %v299 = vld [vmem:[%s266 + $0x58] sm:$0xff]
        %v300 = vld [vmem:[%s266 + $0x60] sm:$0xff]
        %v301 = vld [vmem:[%s266 + $0x68] sm:$0xff]
        %v302 = vld [vmem:[%s266 + $0x70] sm:$0xff]
        %v303 = vld [vmem:[%s266 + $0x78] sm:$0xff]
        %v320 = vunpack.c.l.b16 %v288
        %v321 = vunpack.c.h.b16 %v288
        %v322 = vunpack.c.l.b16 %v289
        %v323 = vunpack.c.h.b16 %v289
        %v324 = vunpack.c.l.b16 %v290
        %v325 = vunpack.c.h.b16 %v290
        %v326 = vunpack.c.l.b16 %v291
        %v327 = vunpack.c.h.b16 %v291
        %v328 = vunpack.c.l.b16 %v292
        %v329 = vunpack.c.h.b16 %v292
        %v330 = vunpack.c.l.b16 %v293
        %v331 = vunpack.c.h.b16 %v293
        %v332 = vunpack.c.l.b16 %v294
        %v333 = vunpack.c.h.b16 %v294
        %v334 = vunpack.c.l.b16 %v295
        %v335 = vunpack.c.h.b16 %v295
        %v336 = vunpack.c.l.b16 %v296
        %v337 = vunpack.c.h.b16 %v296
        %v338 = vunpack.c.l.b16 %v297
        %v339 = vunpack.c.h.b16 %v297
        %v340 = vunpack.c.l.b16 %v298
        %v341 = vunpack.c.h.b16 %v298
        %v342 = vunpack.c.l.b16 %v299
        %v343 = vunpack.c.h.b16 %v299
        %v344 = vunpack.c.l.b16 %v300
        %v345 = vunpack.c.h.b16 %v300
        %v346 = vunpack.c.l.b16 %v301
        %v347 = vunpack.c.h.b16 %v301
        %v348 = vunpack.c.l.b16 %v302
        %v349 = vunpack.c.h.b16 %v302
        %v350 = vunpack.c.l.b16 %v303
        %v351 = vunpack.c.h.b16 %v303
        %v352 = vpack.c.b16 %v328, %v320
        %v353 = vpack.c.b16 %v329, %v321
        %v354 = vpack.c.b16 %v330, %v322
        %v355 = vpack.c.b16 %v331, %v323
        %v356 = vpack.c.b16 %v332, %v324
        %v357 = vpack.c.b16 %v333, %v325
        %v358 = vpack.c.b16 %v334, %v326
        %v359 = vpack.c.b16 %v335, %v327
        %v360 = vpack.c.b16 %v344, %v336
        %v361 = vpack.c.b16 %v345, %v337
        %v362 = vpack.c.b16 %v346, %v338
        %v363 = vpack.c.b16 %v347, %v339
        %v364 = vpack.c.b16 %v348, %v340
        %v365 = vpack.c.b16 %v349, %v341
        %v366 = vpack.c.b16 %v350, %v342
        %v367 = vpack.c.b16 %v351, %v343
        %vm384 = vcmask 261120
        %v386 = vsel %vm384, %v287, 0
        %388 = vmatpush.bf16.msra.mxu0 0
        %389 = vmatpush.bf16.msra.mxu0 0
        %390 = vmatpush.bf16.msra.mxu0 0
        %391 = vmatpush.bf16.msra.mxu0 0
        %392 = vmatpush.bf16.msra.mxu0 0
        %393 = vmatpush.bf16.msra.mxu0 0
        %394 = vmatpush.bf16.msra.mxu0 %v360
        %395 = vmatpush.bf16.msra.mxu0 %v352
        %396 = vmatmul.bf16.gmra.mxu0 %v386
        %v397 = vpop.f32.mrf.mxu0
        %v398 = vadd.f32 0.0, %v397
        %v399 = vpop.f32.mrf.mxu0
        %400 = vdwg.mxu0
        %401 = vmatpush.bf16.msra.mxu0 0
        %402 = vmatpush.bf16.msra.mxu0 0
        %403 = vmatpush.bf16.msra.mxu0 0
        %404 = vmatpush.bf16.msra.mxu0 0
        %405 = vmatpush.bf16.msra.mxu0 0
        %406 = vmatpush.bf16.msra.mxu0 0
        %407 = vmatpush.bf16.msra.mxu0 %v361
        %408 = vmatpush.bf16.msra.mxu0 %v353
        %409 = vmatmul.bf16.gmra.mxu0 %v386
        %v410 = vpop.f32.mrf.mxu0
        %v411 = vadd.f32 0.0, %v410
        %v412 = vpop.f32.mrf.mxu0
        %413 = vdwg.mxu0
        %414 = vmatpush.bf16.msra.mxu0 0
        %415 = vmatpush.bf16.msra.mxu0 0
        %416 = vmatpush.bf16.msra.mxu0 0
        %417 = vmatpush.bf16.msra.mxu0 0
        %418 = vmatpush.bf16.msra.mxu0 0
        %419 = vmatpush.bf16.msra.mxu0 0
        %420 = vmatpush.bf16.msra.mxu0 %v362
        %421 = vmatpush.bf16.msra.mxu0 %v354
        %422 = vmatmul.bf16.gmra.mxu0 %v386
        %v423 = vpop.f32.mrf.mxu0
        %v424 = vadd.f32 0.0, %v423
        %v425 = vpop.f32.mrf.mxu0
        %426 = vdwg.mxu0
        %427 = vmatpush.bf16.msra.mxu0 0
        %428 = vmatpush.bf16.msra.mxu0 0
        %429 = vmatpush.bf16.msra.mxu0 0
        %430 = vmatpush.bf16.msra.mxu0 0
        %431 = vmatpush.bf16.msra.mxu0 0
        %432 = vmatpush.bf16.msra.mxu0 0
        %433 = vmatpush.bf16.msra.mxu0 %v363
        %434 = vmatpush.bf16.msra.mxu0 %v355
        %435 = vmatmul.bf16.gmra.mxu0 %v386
        %v436 = vpop.f32.mrf.mxu0
        %v437 = vadd.f32 0.0, %v436
        %v438 = vpop.f32.mrf.mxu0
        %439 = vdwg.mxu0
        %440 = vmatpush.bf16.msra.mxu0 0
        %441 = vmatpush.bf16.msra.mxu0 0
        %442 = vmatpush.bf16.msra.mxu0 0
        %443 = vmatpush.bf16.msra.mxu0 0
        %444 = vmatpush.bf16.msra.mxu0 0
        %445 = vmatpush.bf16.msra.mxu0 0
        %446 = vmatpush.bf16.msra.mxu0 %v364
        %447 = vmatpush.bf16.msra.mxu0 %v356
        %448 = vmatmul.bf16.gmra.mxu0 %v386
        %v449 = vpop.f32.mrf.mxu0
        %v450 = vadd.f32 0.0, %v449
        %v451 = vpop.f32.mrf.mxu0
        %452 = vdwg.mxu0
        %453 = vmatpush.bf16.msra.mxu0 0
        %454 = vmatpush.bf16.msra.mxu0 0
        %455 = vmatpush.bf16.msra.mxu0 0
        %456 = vmatpush.bf16.msra.mxu0 0
        %457 = vmatpush.bf16.msra.mxu0 0
        %458 = vmatpush.bf16.msra.mxu0 0
        %459 = vmatpush.bf16.msra.mxu0 %v365
        %460 = vmatpush.bf16.msra.mxu0 %v357
        %461 = vmatmul.bf16.gmra.mxu0 %v386
        %v462 = vpop.f32.mrf.mxu0
        %v463 = vadd.f32 0.0, %v462
        %v464 = vpop.f32.mrf.mxu0
        %465 = vdwg.mxu0
        %466 = vmatpush.bf16.msra.mxu0 0
        %467 = vmatpush.bf16.msra.mxu0 0
        %468 = vmatpush.bf16.msra.mxu0 0
        %469 = vmatpush.bf16.msra.mxu0 0
        %470 = vmatpush.bf16.msra.mxu0 0
        %471 = vmatpush.bf16.msra.mxu0 0
        %472 = vmatpush.bf16.msra.mxu0 %v366
        %473 = vmatpush.bf16.msra.mxu0 %v358
        %474 = vmatmul.bf16.gmra.mxu0 %v386
        %v475 = vpop.f32.mrf.mxu0
        %v476 = vadd.f32 0.0, %v475
        %v477 = vpop.f32.mrf.mxu0
        %478 = vdwg.mxu0
        %479 = vmatpush.bf16.msra.mxu0 0
        %480 = vmatpush.bf16.msra.mxu0 0
        %481 = vmatpush.bf16.msra.mxu0 0
        %482 = vmatpush.bf16.msra.mxu0 0
        %483 = vmatpush.bf16.msra.mxu0 0
        %484 = vmatpush.bf16.msra.mxu0 0
        %485 = vmatpush.bf16.msra.mxu0 %v367
        %486 = vmatpush.bf16.msra.mxu0 %v359
        %487 = vmatmul.bf16.gmra.mxu0 %v386
        %v488 = vpop.f32.mrf.mxu0
        %v489 = vadd.f32 0.0, %v488
        %v490 = vpop.f32.mrf.mxu0
        %491 = vdwg.mxu0
        %v492 = vtanh.pop %v398
        %v493 = vtanh.pop %v411
        %v494 = vtanh.pop %v424
        %v495 = vtanh.pop %v437
        %v496 = vtanh.pop %v450
        %v497 = vtanh.pop %v463
        %v498 = vtanh.pop %v476
        %v499 = vtanh.pop %v489
        %v508 = vrot.slane %v493, 7
        %v509 = vrot.slane %v494, 6
        %v510 = vrot.slane %v495, 5
        %v511 = vrot.slane %v496, 4
        %v512 = vrot.slane %v497, 3
        %v513 = vrot.slane %v498, 2
        %v514 = vrot.slane %v499, 1
        %vm515 = vcmask 1040384
        %v516 = vsel %vm515, %v492, %v508
        %vm517 = vcmask 1042434
        %v518 = vsel %vm517, %v509, %v510
        %vm519 = vcmask 1041408
        %v520 = vsel %vm519, %v516, %v518
        %vm521 = vcmask 1044484
        %v522 = vsel %vm521, %v511, %v512
        %vm523 = vcmask 1046534
        %v524 = vsel %vm523, %v513, %v514
        %vm525 = vcmask 1045508
        %v526 = vsel %vm525, %v522, %v524
        %vm527 = vcmask 1043456
        %v528 = vsel %vm527, %v520, %v526
        %530 = vst [vmem:[%s283] sm:$0xff] %v528
        %s531 = scalar_lea.vmem %s1, 1
        %v532 = vld [vmem:[%s531] sm:$0x1]
        %s533 = scalar_lea.vmem %s266, 128 [#allocation2]
        %v534 = vld [vmem:[%s533] sm:$0xff]
        %v535 = vld [vmem:[%s533 + $0x8] sm:$0xff]
        %v536 = vld [vmem:[%s533 + $0x10] sm:$0xff]
        %v537 = vld [vmem:[%s533 + $0x18] sm:$0xff]
        %v538 = vld [vmem:[%s533 + $0x20] sm:$0xff]
        %v539 = vld [vmem:[%s533 + $0x28] sm:$0xff]
        %v540 = vld [vmem:[%s533 + $0x30] sm:$0xff]
        %v541 = vld [vmem:[%s533 + $0x38] sm:$0xff]
        %v542 = vld [vmem:[%s533 + $0x40] sm:$0xff]
        %v543 = vld [vmem:[%s533 + $0x48] sm:$0xff]
        %v544 = vld [vmem:[%s533 + $0x50] sm:$0xff]
        %v545 = vld [vmem:[%s533 + $0x58] sm:$0xff]
        %v546 = vld [vmem:[%s533 + $0x60] sm:$0xff]
        %v547 = vld [vmem:[%s533 + $0x68] sm:$0xff]
        %v548 = vld [vmem:[%s533 + $0x70] sm:$0xff]
        %v549 = vld [vmem:[%s533 + $0x78] sm:$0xff]
        %v566 = vunpack.c.l.b16 %v534
        %v567 = vunpack.c.h.b16 %v534
        %v568 = vunpack.c.l.b16 %v535
        %v569 = vunpack.c.h.b16 %v535
        %v570 = vunpack.c.l.b16 %v536
        %v571 = vunpack.c.h.b16 %v536
        %v572 = vunpack.c.l.b16 %v537
        %v573 = vunpack.c.h.b16 %v537
        %v574 = vunpack.c.l.b16 %v538
        %v575 = vunpack.c.h.b16 %v538
        %v576 = vunpack.c.l.b16 %v539
        %v577 = vunpack.c.h.b16 %v539
        %v578 = vunpack.c.l.b16 %v540
        %v579 = vunpack.c.h.b16 %v540
        %v580 = vunpack.c.l.b16 %v541
        %v581 = vunpack.c.h.b16 %v541
        %v582 = vunpack.c.l.b16 %v542
        %v583 = vunpack.c.h.b16 %v542
        %v584 = vunpack.c.l.b16 %v543
        %v585 = vunpack.c.h.b16 %v543
        %v586 = vunpack.c.l.b16 %v544
        %v587 = vunpack.c.h.b16 %v544
        %v588 = vunpack.c.l.b16 %v545
        %v589 = vunpack.c.h.b16 %v545
        %v590 = vunpack.c.l.b16 %v546
        %v591 = vunpack.c.h.b16 %v546
        %v592 = vunpack.c.l.b16 %v547
        %v593 = vunpack.c.h.b16 %v547
        %v594 = vunpack.c.l.b16 %v548
        %v595 = vunpack.c.h.b16 %v548
        %v596 = vunpack.c.l.b16 %v549
        %v597 = vunpack.c.h.b16 %v549
        %v598 = vpack.c.b16 %v574, %v566
        %v599 = vpack.c.b16 %v575, %v567
        %v600 = vpack.c.b16 %v576, %v568
        %v601 = vpack.c.b16 %v577, %v569
        %v602 = vpack.c.b16 %v578, %v570
        %v603 = vpack.c.b16 %v579, %v571
        %v604 = vpack.c.b16 %v580, %v572
        %v605 = vpack.c.b16 %v581, %v573
        %v606 = vpack.c.b16 %v590, %v582
        %v607 = vpack.c.b16 %v591, %v583
        %v608 = vpack.c.b16 %v592, %v584
        %v609 = vpack.c.b16 %v593, %v585
        %v610 = vpack.c.b16 %v594, %v586
        %v611 = vpack.c.b16 %v595, %v587
        %v612 = vpack.c.b16 %v596, %v588
        %v613 = vpack.c.b16 %v597, %v589
        %v631 = vsel %vm384, %v532, 0
        %633 = vmatpush.bf16.msra.mxu0 0
        %634 = vmatpush.bf16.msra.mxu0 0
        %635 = vmatpush.bf16.msra.mxu0 0
        %636 = vmatpush.bf16.msra.mxu0 0
        %637 = vmatpush.bf16.msra.mxu0 0
        %638 = vmatpush.bf16.msra.mxu0 0
        %639 = vmatpush.bf16.msra.mxu0 %v606
        %640 = vmatpush.bf16.msra.mxu0 %v598
        %641 = vmatmul.bf16.gmra.mxu0 %v631
        %v642 = vpop.f32.mrf.mxu0
        %v643 = vadd.f32 0.0, %v642
        %v644 = vpop.f32.mrf.mxu0
        %645 = vdwg.mxu0
        %646 = vmatpush.bf16.msra.mxu0 0
        %647 = vmatpush.bf16.msra.mxu0 0
        %648 = vmatpush.bf16.msra.mxu0 0
        %649 = vmatpush.bf16.msra.mxu0 0
        %650 = vmatpush.bf16.msra.mxu0 0
        %651 = vmatpush.bf16.msra.mxu0 0
        %652 = vmatpush.bf16.msra.mxu0 %v607
        %653 = vmatpush.bf16.msra.mxu0 %v599
        %654 = vmatmul.bf16.gmra.mxu0 %v631
        %v655 = vpop.f32.mrf.mxu0
        %v656 = vadd.f32 0.0, %v655
        %v657 = vpop.f32.mrf.mxu0
        %658 = vdwg.mxu0
        %659 = vmatpush.bf16.msra.mxu0 0
        %660 = vmatpush.bf16.msra.mxu0 0
        %661 = vmatpush.bf16.msra.mxu0 0
        %662 = vmatpush.bf16.msra.mxu0 0
        %663 = vmatpush.bf16.msra.mxu0 0
        %664 = vmatpush.bf16.msra.mxu0 0
        %665 = vmatpush.bf16.msra.mxu0 %v608
        %666 = vmatpush.bf16.msra.mxu0 %v600
        %667 = vmatmul.bf16.gmra.mxu0 %v631
        %v668 = vpop.f32.mrf.mxu0
        %v669 = vadd.f32 0.0, %v668
        %v670 = vpop.f32.mrf.mxu0
        %671 = vdwg.mxu0
        %672 = vmatpush.bf16.msra.mxu0 0
        %673 = vmatpush.bf16.msra.mxu0 0
        %674 = vmatpush.bf16.msra.mxu0 0
        %675 = vmatpush.bf16.msra.mxu0 0
        %676 = vmatpush.bf16.msra.mxu0 0
        %677 = vmatpush.bf16.msra.mxu0 0
        %678 = vmatpush.bf16.msra.mxu0 %v609
        %679 = vmatpush.bf16.msra.mxu0 %v601
        %680 = vmatmul.bf16.gmra.mxu0 %v631
        %v681 = vpop.f32.mrf.mxu0
        %v682 = vadd.f32 0.0, %v681
        %v683 = vpop.f32.mrf.mxu0
        %684 = vdwg.mxu0
        %685 = vmatpush.bf16.msra.mxu0 0
        %686 = vmatpush.bf16.msra.mxu0 0
        %687 = vmatpush.bf16.msra.mxu0 0
        %688 = vmatpush.bf16.msra.mxu0 0
        %689 = vmatpush.bf16.msra.mxu0 0
        %690 = vmatpush.bf16.msra.mxu0 0
        %691 = vmatpush.bf16.msra.mxu0 %v610
        %692 = vmatpush.bf16.msra.mxu0 %v602
        %693 = vmatmul.bf16.gmra.mxu0 %v631
        %v694 = vpop.f32.mrf.mxu0
        %v695 = vadd.f32 0.0, %v694
        %v696 = vpop.f32.mrf.mxu0
        %697 = vdwg.mxu0
        %698 = vmatpush.bf16.msra.mxu0 0
        %699 = vmatpush.bf16.msra.mxu0 0
        %700 = vmatpush.bf16.msra.mxu0 0
        %701 = vmatpush.bf16.msra.mxu0 0
        %702 = vmatpush.bf16.msra.mxu0 0
        %703 = vmatpush.bf16.msra.mxu0 0
        %704 = vmatpush.bf16.msra.mxu0 %v611
        %705 = vmatpush.bf16.msra.mxu0 %v603
        %706 = vmatmul.bf16.gmra.mxu0 %v631
        %v707 = vpop.f32.mrf.mxu0
        %v708 = vadd.f32 0.0, %v707
        %v709 = vpop.f32.mrf.mxu0
        %710 = vdwg.mxu0
        %711 = vmatpush.bf16.msra.mxu0 0
        %712 = vmatpush.bf16.msra.mxu0 0
        %713 = vmatpush.bf16.msra.mxu0 0
        %714 = vmatpush.bf16.msra.mxu0 0
        %715 = vmatpush.bf16.msra.mxu0 0
        %716 = vmatpush.bf16.msra.mxu0 0
        %717 = vmatpush.bf16.msra.mxu0 %v612
        %718 = vmatpush.bf16.msra.mxu0 %v604
        %719 = vmatmul.bf16.gmra.mxu0 %v631
        %v720 = vpop.f32.mrf.mxu0
        %v721 = vadd.f32 0.0, %v720
        %v722 = vpop.f32.mrf.mxu0
        %723 = vdwg.mxu0
        %724 = vmatpush.bf16.msra.mxu0 0
        %725 = vmatpush.bf16.msra.mxu0 0
        %726 = vmatpush.bf16.msra.mxu0 0
        %727 = vmatpush.bf16.msra.mxu0 0
        %728 = vmatpush.bf16.msra.mxu0 0
        %729 = vmatpush.bf16.msra.mxu0 0
        %730 = vmatpush.bf16.msra.mxu0 %v613
        %731 = vmatpush.bf16.msra.mxu0 %v605
        %732 = vmatmul.bf16.gmra.mxu0 %v631
        %v733 = vpop.f32.mrf.mxu0
        %v734 = vadd.f32 0.0, %v733
        %v735 = vpop.f32.mrf.mxu0
        %736 = vdwg.mxu0
        %v737 = vtanh.pop %v643
        %v738 = vtanh.pop %v656
        %v739 = vtanh.pop %v669
        %v740 = vtanh.pop %v682
        %v741 = vtanh.pop %v695
        %v742 = vtanh.pop %v708
        %v743 = vtanh.pop %v721
        %v744 = vtanh.pop %v734
        %v753 = vrot.slane %v738, 7
        %v754 = vrot.slane %v739, 6
        %v755 = vrot.slane %v740, 5
        %v756 = vrot.slane %v741, 4
        %v757 = vrot.slane %v742, 3
        %v758 = vrot.slane %v743, 2
        %v759 = vrot.slane %v744, 1
        %v760 = vsel %vm515, %v737, %v753
        %v761 = vsel %vm517, %v754, %v755
        %v762 = vsel %vm519, %v760, %v761
        %v763 = vsel %vm521, %v756, %v757
        %v764 = vsel %vm523, %v758, %v759
        %v765 = vsel %vm525, %v763, %v764
        %v766 = vsel %vm527, %v762, %v765
        %s768 = scalar_lea.vmem %s283, 8 [#allocation3]
        %769 = vst [vmem:[%s768] sm:$0xff] %v766
        %s770 = scalar_lea.vmem %s1, 2
        %v771 = vld [vmem:[%s770] sm:$0x1]
        %s772 = scalar_lea.vmem %s266, 256 [#allocation2]
        %v773 = vld [vmem:[%s772] sm:$0xff]
        %v774 = vld [vmem:[%s772 + $0x8] sm:$0xff]
        %v775 = vld [vmem:[%s772 + $0x10] sm:$0xff]
        %v776 = vld [vmem:[%s772 + $0x18] sm:$0xff]
        %v777 = vld [vmem:[%s772 + $0x20] sm:$0xff]
        %v778 = vld [vmem:[%s772 + $0x28] sm:$0xff]
        %v779 = vld [vmem:[%s772 + $0x30] sm:$0xff]
        %v780 = vld [vmem:[%s772 + $0x38] sm:$0xff]
        %v781 = vld [vmem:[%s772 + $0x40] sm:$0xff]
        %v782 = vld [vmem:[%s772 + $0x48] sm:$0xff]
        %v783 = vld [vmem:[%s772 + $0x50] sm:$0xff]
        %v784 = vld [vmem:[%s772 + $0x58] sm:$0xff]
        %v785 = vld [vmem:[%s772 + $0x60] sm:$0xff]
        %v786 = vld [vmem:[%s772 + $0x68] sm:$0xff]
        %v787 = vld [vmem:[%s772 + $0x70] sm:$0xff]
        %v788 = vld [vmem:[%s772 + $0x78] sm:$0xff]
        %v805 = vunpack.c.l.b16 %v773
        %v806 = vunpack.c.h.b16 %v773
        %v807 = vunpack.c.l.b16 %v774
        %v808 = vunpack.c.h.b16 %v774
        %v809 = vunpack.c.l.b16 %v775
        %v810 = vunpack.c.h.b16 %v775
        %v811 = vunpack.c.l.b16 %v776
        %v812 = vunpack.c.h.b16 %v776
        %v813 = vunpack.c.l.b16 %v777
        %v814 = vunpack.c.h.b16 %v777
        %v815 = vunpack.c.l.b16 %v778
        %v816 = vunpack.c.h.b16 %v778
        %v817 = vunpack.c.l.b16 %v779
        %v818 = vunpack.c.h.b16 %v779
        %v819 = vunpack.c.l.b16 %v780
        %v820 = vunpack.c.h.b16 %v780
        %v821 = vunpack.c.l.b16 %v781
        %v822 = vunpack.c.h.b16 %v781
        %v823 = vunpack.c.l.b16 %v782
        %v824 = vunpack.c.h.b16 %v782
        %v825 = vunpack.c.l.b16 %v783
        %v826 = vunpack.c.h.b16 %v783
        %v827 = vunpack.c.l.b16 %v784
        %v828 = vunpack.c.h.b16 %v784
        %v829 = vunpack.c.l.b16 %v785
        %v830 = vunpack.c.h.b16 %v785
        %v831 = vunpack.c.l.b16 %v786
        %v832 = vunpack.c.h.b16 %v786
        %v833 = vunpack.c.l.b16 %v787
        %v834 = vunpack.c.h.b16 %v787
        %v835 = vunpack.c.l.b16 %v788
        %v836 = vunpack.c.h.b16 %v788
        %v837 = vpack.c.b16 %v813, %v805
        %v838 = vpack.c.b16 %v814, %v806
        %v839 = vpack.c.b16 %v815, %v807
        %v840 = vpack.c.b16 %v816, %v808
        %v841 = vpack.c.b16 %v817, %v809
        %v842 = vpack.c.b16 %v818, %v810
        %v843 = vpack.c.b16 %v819, %v811
        %v844 = vpack.c.b16 %v820, %v812
        %v845 = vpack.c.b16 %v829, %v821
        %v846 = vpack.c.b16 %v830, %v822
        %v847 = vpack.c.b16 %v831, %v823
        %v848 = vpack.c.b16 %v832, %v824
        %v849 = vpack.c.b16 %v833, %v825
        %v850 = vpack.c.b16 %v834, %v826
        %v851 = vpack.c.b16 %v835, %v827
        %v852 = vpack.c.b16 %v836, %v828
        %v870 = vsel %vm384, %v771, 0
        %872 = vmatpush.bf16.msra.mxu0 0
        %873 = vmatpush.bf16.msra.mxu0 0
        %874 = vmatpush.bf16.msra.mxu0 0
        %875 = vmatpush.bf16.msra.mxu0 0
        %876 = vmatpush.bf16.msra.mxu0 0
        %877 = vmatpush.bf16.msra.mxu0 0
        %878 = vmatpush.bf16.msra.mxu0 %v845
        %879 = vmatpush.bf16.msra.mxu0 %v837
        %880 = vmatmul.bf16.gmra.mxu0 %v870
        %v881 = vpop.f32.mrf.mxu0
        %v882 = vadd.f32 0.0, %v881
        %v883 = vpop.f32.mrf.mxu0
        %884 = vdwg.mxu0
        %885 = vmatpush.bf16.msra.mxu0 0
        %886 = vmatpush.bf16.msra.mxu0 0
        %887 = vmatpush.bf16.msra.mxu0 0
        %888 = vmatpush.bf16.msra.mxu0 0
        %889 = vmatpush.bf16.msra.mxu0 0
        %890 = vmatpush.bf16.msra.mxu0 0
        %891 = vmatpush.bf16.msra.mxu0 %v846
        %892 = vmatpush.bf16.msra.mxu0 %v838
        %893 = vmatmul.bf16.gmra.mxu0 %v870
        %v894 = vpop.f32.mrf.mxu0
        %v895 = vadd.f32 0.0, %v894
        %v896 = vpop.f32.mrf.mxu0
        %897 = vdwg.mxu0
        %898 = vmatpush.bf16.msra.mxu0 0
        %899 = vmatpush.bf16.msra.mxu0 0
        %900 = vmatpush.bf16.msra.mxu0 0
        %901 = vmatpush.bf16.msra.mxu0 0
        %902 = vmatpush.bf16.msra.mxu0 0
        %903 = vmatpush.bf16.msra.mxu0 0
        %904 = vmatpush.bf16.msra.mxu0 %v847
        %905 = vmatpush.bf16.msra.mxu0 %v839
        %906 = vmatmul.bf16.gmra.mxu0 %v870
        %v907 = vpop.f32.mrf.mxu0
        %v908 = vadd.f32 0.0, %v907
        %v909 = vpop.f32.mrf.mxu0
        %910 = vdwg.mxu0
        %911 = vmatpush.bf16.msra.mxu0 0
        %912 = vmatpush.bf16.msra.mxu0 0
        %913 = vmatpush.bf16.msra.mxu0 0
        %914 = vmatpush.bf16.msra.mxu0 0
        %915 = vmatpush.bf16.msra.mxu0 0
        %916 = vmatpush.bf16.msra.mxu0 0
        %917 = vmatpush.bf16.msra.mxu0 %v848
        %918 = vmatpush.bf16.msra.mxu0 %v840
        %919 = vmatmul.bf16.gmra.mxu0 %v870
        %v920 = vpop.f32.mrf.mxu0
        %v921 = vadd.f32 0.0, %v920
        %v922 = vpop.f32.mrf.mxu0
        %923 = vdwg.mxu0
        %924 = vmatpush.bf16.msra.mxu0 0
        %925 = vmatpush.bf16.msra.mxu0 0
        %926 = vmatpush.bf16.msra.mxu0 0
        %927 = vmatpush.bf16.msra.mxu0 0
        %928 = vmatpush.bf16.msra.mxu0 0
        %929 = vmatpush.bf16.msra.mxu0 0
        %930 = vmatpush.bf16.msra.mxu0 %v849
        %931 = vmatpush.bf16.msra.mxu0 %v841
        %932 = vmatmul.bf16.gmra.mxu0 %v870
        %v933 = vpop.f32.mrf.mxu0
        %v934 = vadd.f32 0.0, %v933
        %v935 = vpop.f32.mrf.mxu0
        %936 = vdwg.mxu0
        %937 = vmatpush.bf16.msra.mxu0 0
        %938 = vmatpush.bf16.msra.mxu0 0
        %939 = vmatpush.bf16.msra.mxu0 0
        %940 = vmatpush.bf16.msra.mxu0 0
        %941 = vmatpush.bf16.msra.mxu0 0
        %942 = vmatpush.bf16.msra.mxu0 0
        %943 = vmatpush.bf16.msra.mxu0 %v850
        %944 = vmatpush.bf16.msra.mxu0 %v842
        %945 = vmatmul.bf16.gmra.mxu0 %v870
        %v946 = vpop.f32.mrf.mxu0
        %v947 = vadd.f32 0.0, %v946
        %v948 = vpop.f32.mrf.mxu0
        %949 = vdwg.mxu0
        %950 = vmatpush.bf16.msra.mxu0 0
        %951 = vmatpush.bf16.msra.mxu0 0
        %952 = vmatpush.bf16.msra.mxu0 0
        %953 = vmatpush.bf16.msra.mxu0 0
        %954 = vmatpush.bf16.msra.mxu0 0
        %955 = vmatpush.bf16.msra.mxu0 0
        %956 = vmatpush.bf16.msra.mxu0 %v851
        %957 = vmatpush.bf16.msra.mxu0 %v843
        %958 = vmatmul.bf16.gmra.mxu0 %v870
        %v959 = vpop.f32.mrf.mxu0
        %v960 = vadd.f32 0.0, %v959
        %v961 = vpop.f32.mrf.mxu0
        %962 = vdwg.mxu0
        %963 = vmatpush.bf16.msra.mxu0 0
        %964 = vmatpush.bf16.msra.mxu0 0
        %965 = vmatpush.bf16.msra.mxu0 0
        %966 = vmatpush.bf16.msra.mxu0 0
        %967 = vmatpush.bf16.msra.mxu0 0
        %968 = vmatpush.bf16.msra.mxu0 0
        %969 = vmatpush.bf16.msra.mxu0 %v852
        %970 = vmatpush.bf16.msra.mxu0 %v844
        %971 = vmatmul.bf16.gmra.mxu0 %v870
        %v972 = vpop.f32.mrf.mxu0
        %v973 = vadd.f32 0.0, %v972
        %v974 = vpop.f32.mrf.mxu0
        %975 = vdwg.mxu0
        %v976 = vtanh.pop %v882
        %v977 = vtanh.pop %v895
        %v978 = vtanh.pop %v908
        %v979 = vtanh.pop %v921
        %v980 = vtanh.pop %v934
        %v981 = vtanh.pop %v947
        %v982 = vtanh.pop %v960
        %v983 = vtanh.pop %v973
        %v992 = vrot.slane %v977, 7
        %v993 = vrot.slane %v978, 6
        %v994 = vrot.slane %v979, 5
        %v995 = vrot.slane %v980, 4
        %v996 = vrot.slane %v981, 3
        %v997 = vrot.slane %v982, 2
        %v998 = vrot.slane %v983, 1
        %v999 = vsel %vm515, %v976, %v992
        %v1000 = vsel %vm517, %v993, %v994
        %v1001 = vsel %vm519, %v999, %v1000
        %v1002 = vsel %vm521, %v995, %v996
        %v1003 = vsel %vm523, %v997, %v998
        %v1004 = vsel %vm525, %v1002, %v1003
        %v1005 = vsel %vm527, %v1001, %v1004
        %s1007 = scalar_lea.vmem %s283, 16 [#allocation3]
        %1008 = vst [vmem:[%s1007] sm:$0xff] %v1005
        %s1009 = scalar_lea.vmem %s1, 3
        %v1010 = vld [vmem:[%s1009] sm:$0x1]
        %s1011 = scalar_lea.vmem %s266, 384 [#allocation2]
        %v1012 = vld [vmem:[%s1011] sm:$0xff]
        %v1013 = vld [vmem:[%s1011 + $0x8] sm:$0xff]
        %v1014 = vld [vmem:[%s1011 + $0x10] sm:$0xff]
        %v1015 = vld [vmem:[%s1011 + $0x18] sm:$0xff]
        %v1016 = vld [vmem:[%s1011 + $0x20] sm:$0xff]
        %v1017 = vld [vmem:[%s1011 + $0x28] sm:$0xff]
        %v1018 = vld [vmem:[%s1011 + $0x30] sm:$0xff]
        %v1019 = vld [vmem:[%s1011 + $0x38] sm:$0xff]
        %v1020 = vld [vmem:[%s1011 + $0x40] sm:$0xff]
        %v1021 = vld [vmem:[%s1011 + $0x48] sm:$0xff]
        %v1022 = vld [vmem:[%s1011 + $0x50] sm:$0xff]
        %v1023 = vld [vmem:[%s1011 + $0x58] sm:$0xff]
        %v1024 = vld [vmem:[%s1011 + $0x60] sm:$0xff]
        %v1025 = vld [vmem:[%s1011 + $0x68] sm:$0xff]
        %v1026 = vld [vmem:[%s1011 + $0x70] sm:$0xff]
        %v1027 = vld [vmem:[%s1011 + $0x78] sm:$0xff]
        %v1044 = vunpack.c.l.b16 %v1012
        %v1045 = vunpack.c.h.b16 %v1012
        %v1046 = vunpack.c.l.b16 %v1013
        %v1047 = vunpack.c.h.b16 %v1013
        %v1048 = vunpack.c.l.b16 %v1014
        %v1049 = vunpack.c.h.b16 %v1014
        %v1050 = vunpack.c.l.b16 %v1015
        %v1051 = vunpack.c.h.b16 %v1015
        %v1052 = vunpack.c.l.b16 %v1016
        %v1053 = vunpack.c.h.b16 %v1016
        %v1054 = vunpack.c.l.b16 %v1017
        %v1055 = vunpack.c.h.b16 %v1017
        %v1056 = vunpack.c.l.b16 %v1018
        %v1057 = vunpack.c.h.b16 %v1018
        %v1058 = vunpack.c.l.b16 %v1019
        %v1059 = vunpack.c.h.b16 %v1019
        %v1060 = vunpack.c.l.b16 %v1020
        %v1061 = vunpack.c.h.b16 %v1020
        %v1062 = vunpack.c.l.b16 %v1021
        %v1063 = vunpack.c.h.b16 %v1021
        %v1064 = vunpack.c.l.b16 %v1022
        %v1065 = vunpack.c.h.b16 %v1022
        %v1066 = vunpack.c.l.b16 %v1023
        %v1067 = vunpack.c.h.b16 %v1023
        %v1068 = vunpack.c.l.b16 %v1024
        %v1069 = vunpack.c.h.b16 %v1024
        %v1070 = vunpack.c.l.b16 %v1025
        %v1071 = vunpack.c.h.b16 %v1025
        %v1072 = vunpack.c.l.b16 %v1026
        %v1073 = vunpack.c.h.b16 %v1026
        %v1074 = vunpack.c.l.b16 %v1027
        %v1075 = vunpack.c.h.b16 %v1027
        %v1076 = vpack.c.b16 %v1052, %v1044
        %v1077 = vpack.c.b16 %v1053, %v1045
        %v1078 = vpack.c.b16 %v1054, %v1046
        %v1079 = vpack.c.b16 %v1055, %v1047
        %v1080 = vpack.c.b16 %v1056, %v1048
        %v1081 = vpack.c.b16 %v1057, %v1049
        %v1082 = vpack.c.b16 %v1058, %v1050
        %v1083 = vpack.c.b16 %v1059, %v1051
        %v1084 = vpack.c.b16 %v1068, %v1060
        %v1085 = vpack.c.b16 %v1069, %v1061
        %v1086 = vpack.c.b16 %v1070, %v1062
        %v1087 = vpack.c.b16 %v1071, %v1063
        %v1088 = vpack.c.b16 %v1072, %v1064
        %v1089 = vpack.c.b16 %v1073, %v1065
        %v1090 = vpack.c.b16 %v1074, %v1066
        %v1091 = vpack.c.b16 %v1075, %v1067
        %v1109 = vsel %vm384, %v1010, 0
        %1111 = vmatpush.bf16.msra.mxu0 0
        %1112 = vmatpush.bf16.msra.mxu0 0
        %1113 = vmatpush.bf16.msra.mxu0 0
        %1114 = vmatpush.bf16.msra.mxu0 0
        %1115 = vmatpush.bf16.msra.mxu0 0
        %1116 = vmatpush.bf16.msra.mxu0 0
        %1117 = vmatpush.bf16.msra.mxu0 %v1084
        %1118 = vmatpush.bf16.msra.mxu0 %v1076
        %1119 = vmatmul.bf16.gmra.mxu0 %v1109
        %v1120 = vpop.f32.mrf.mxu0
        %v1121 = vadd.f32 0.0, %v1120
        %v1122 = vpop.f32.mrf.mxu0
        %1123 = vdwg.mxu0
        %1124 = vmatpush.bf16.msra.mxu0 0
        %1125 = vmatpush.bf16.msra.mxu0 0
        %1126 = vmatpush.bf16.msra.mxu0 0
        %1127 = vmatpush.bf16.msra.mxu0 0
        %1128 = vmatpush.bf16.msra.mxu0 0
        %1129 = vmatpush.bf16.msra.mxu0 0
        %1130 = vmatpush.bf16.msra.mxu0 %v1085
        %1131 = vmatpush.bf16.msra.mxu0 %v1077
        %1132 = vmatmul.bf16.gmra.mxu0 %v1109
        %v1133 = vpop.f32.mrf.mxu0
        %v1134 = vadd.f32 0.0, %v1133
        %v1135 = vpop.f32.mrf.mxu0
        %1136 = vdwg.mxu0
        %1137 = vmatpush.bf16.msra.mxu0 0
        %1138 = vmatpush.bf16.msra.mxu0 0
        %1139 = vmatpush.bf16.msra.mxu0 0
        %1140 = vmatpush.bf16.msra.mxu0 0
        %1141 = vmatpush.bf16.msra.mxu0 0
        %1142 = vmatpush.bf16.msra.mxu0 0
        %1143 = vmatpush.bf16.msra.mxu0 %v1086
        %1144 = vmatpush.bf16.msra.mxu0 %v1078
        %1145 = vmatmul.bf16.gmra.mxu0 %v1109
        %v1146 = vpop.f32.mrf.mxu0
        %v1147 = vadd.f32 0.0, %v1146
        %v1148 = vpop.f32.mrf.mxu0
        %1149 = vdwg.mxu0
        %1150 = vmatpush.bf16.msra.mxu0 0
        %1151 = vmatpush.bf16.msra.mxu0 0
        %1152 = vmatpush.bf16.msra.mxu0 0
        %1153 = vmatpush.bf16.msra.mxu0 0
        %1154 = vmatpush.bf16.msra.mxu0 0
        %1155 = vmatpush.bf16.msra.mxu0 0
        %1156 = vmatpush.bf16.msra.mxu0 %v1087
        %1157 = vmatpush.bf16.msra.mxu0 %v1079
        %1158 = vmatmul.bf16.gmra.mxu0 %v1109
        %v1159 = vpop.f32.mrf.mxu0
        %v1160 = vadd.f32 0.0, %v1159
        %v1161 = vpop.f32.mrf.mxu0
        %1162 = vdwg.mxu0
        %1163 = vmatpush.bf16.msra.mxu0 0
        %1164 = vmatpush.bf16.msra.mxu0 0
        %1165 = vmatpush.bf16.msra.mxu0 0
        %1166 = vmatpush.bf16.msra.mxu0 0
        %1167 = vmatpush.bf16.msra.mxu0 0
        %1168 = vmatpush.bf16.msra.mxu0 0
        %1169 = vmatpush.bf16.msra.mxu0 %v1088
        %1170 = vmatpush.bf16.msra.mxu0 %v1080
        %1171 = vmatmul.bf16.gmra.mxu0 %v1109
        %v1172 = vpop.f32.mrf.mxu0
        %v1173 = vadd.f32 0.0, %v1172
        %v1174 = vpop.f32.mrf.mxu0
        %1175 = vdwg.mxu0
        %1176 = vmatpush.bf16.msra.mxu0 0
        %1177 = vmatpush.bf16.msra.mxu0 0
        %1178 = vmatpush.bf16.msra.mxu0 0
        %1179 = vmatpush.bf16.msra.mxu0 0
        %1180 = vmatpush.bf16.msra.mxu0 0
        %1181 = vmatpush.bf16.msra.mxu0 0
        %1182 = vmatpush.bf16.msra.mxu0 %v1089
        %1183 = vmatpush.bf16.msra.mxu0 %v1081
        %1184 = vmatmul.bf16.gmra.mxu0 %v1109
        %v1185 = vpop.f32.mrf.mxu0
        %v1186 = vadd.f32 0.0, %v1185
        %v1187 = vpop.f32.mrf.mxu0
        %1188 = vdwg.mxu0
        %1189 = vmatpush.bf16.msra.mxu0 0
        %1190 = vmatpush.bf16.msra.mxu0 0
        %1191 = vmatpush.bf16.msra.mxu0 0
        %1192 = vmatpush.bf16.msra.mxu0 0
        %1193 = vmatpush.bf16.msra.mxu0 0
        %1194 = vmatpush.bf16.msra.mxu0 0
        %1195 = vmatpush.bf16.msra.mxu0 %v1090
        %1196 = vmatpush.bf16.msra.mxu0 %v1082
        %1197 = vmatmul.bf16.gmra.mxu0 %v1109
        %v1198 = vpop.f32.mrf.mxu0
        %v1199 = vadd.f32 0.0, %v1198
        %v1200 = vpop.f32.mrf.mxu0
        %1201 = vdwg.mxu0
        %1202 = vmatpush.bf16.msra.mxu0 0
        %1203 = vmatpush.bf16.msra.mxu0 0
        %1204 = vmatpush.bf16.msra.mxu0 0
        %1205 = vmatpush.bf16.msra.mxu0 0
        %1206 = vmatpush.bf16.msra.mxu0 0
        %1207 = vmatpush.bf16.msra.mxu0 0
        %1208 = vmatpush.bf16.msra.mxu0 %v1091
        %1209 = vmatpush.bf16.msra.mxu0 %v1083
        %1210 = vmatmul.bf16.gmra.mxu0 %v1109
        %v1211 = vpop.f32.mrf.mxu0
        %v1212 = vadd.f32 0.0, %v1211
        %v1213 = vpop.f32.mrf.mxu0
        %1214 = vdwg.mxu0
        %v1215 = vtanh.pop %v1121
        %v1216 = vtanh.pop %v1134
        %v1217 = vtanh.pop %v1147
        %v1218 = vtanh.pop %v1160
        %v1219 = vtanh.pop %v1173
        %v1220 = vtanh.pop %v1186
        %v1221 = vtanh.pop %v1199
        %v1222 = vtanh.pop %v1212
        %v1231 = vrot.slane %v1216, 7
        %v1232 = vrot.slane %v1217, 6
        %v1233 = vrot.slane %v1218, 5
        %v1234 = vrot.slane %v1219, 4
        %v1235 = vrot.slane %v1220, 3
        %v1236 = vrot.slane %v1221, 2
        %v1237 = vrot.slane %v1222, 1
        %v1238 = vsel %vm515, %v1215, %v1231
        %v1239 = vsel %vm517, %v1232, %v1233
        %v1240 = vsel %vm519, %v1238, %v1239
        %v1241 = vsel %vm521, %v1234, %v1235
        %v1242 = vsel %vm523, %v1236, %v1237
        %v1243 = vsel %vm525, %v1241, %v1242
        %v1244 = vsel %vm527, %v1240, %v1243
        %s1246 = scalar_lea.vmem %s283, 24 [#allocation3]
        %1247 = vst [vmem:[%s1246] sm:$0xff] %v1244
        %s1248 = sand.u32 %s68, 1
        %s1249 = sand.u32 %s68, 1
        %s1250 = smul.addr %s1249, 32
        %s1251 = scalar_lea.vmem [#allocation3], %s1250
        // Predicated region
        $region52: #{generator_64_forward.9} parent=46 // pred_check
          %p1252 = pneg %p78
        $region53: #{generator_64_forward.9} parent=46 // pred_check_branch
          %1254 = sbr.rel (%p1252) target = $region55
        $region54: #{generator_64_forward.9} parent=46 // pred_region
          %s1255 = smul.u32 8, %s13
          %s1256 = scalar_lea.vmem %s2, %s1255
          // Predicated region
          $region56: #{generator_64_forward.9} parent=54 // pred_check
            _
          $region57: #{generator_64_forward.9} parent=54 // pred_check_branch
            %1258 = sbr.rel (0) target = $region59
          $region58: #{generator_64_forward.9} parent=54 // pred_region
            // Predicated region
            $region60: #{generator_64_forward.9} parent=58 // pred_check
              _
            $region61: #{generator_64_forward.9} parent=58 // pred_check_branch
              %1260 = sbr.rel (0) target = $region63
            $region62: #{generator_64_forward.9} parent=58 // pred_region
              // Predicated region
              $region75: #{generator_64_forward.9} parent=62 // pred_check
                _
              $region76: #{generator_64_forward.9} parent=62 // pred_check_branch
                %1282 = sbr.rel (0) target = $region78
              $region77: #{generator_64_forward.9} parent=62 // pred_region
                loop: start=0, step=1, limit=1
                $region79: #{generator_64_forward.9} parent=77 // loop_pre_header
                  _
                $region80: #{generator_64_forward.9} parent=77 // loop_header
                  %s1284 = sphi 0, %s1288
                  %p1285 = scmp.ge.s32.totalorder %s1284, 1
                  %s1289 = sphi %s1251, %s1251
                  %s1290 = sphi %s1256, %s1256
                $region81: #{generator_64_forward.9} parent=77 // loop_header_branch
                  %1287 = sbr.rel (%p1285) target = $region85
                $region82: #{generator_64_forward.9} parent=77 // loop_body
                  %v1291 = vld [vmem:[%s1289] sm:$0xff]
                  %1292 = vst [vmem:[%s1290] sm:$0xff] %v1291
                  %v1293 = vld [vmem:[%s1289 + $0x8] sm:$0xff]
                  %1294 = vst [vmem:[%s1290 + $0x10] sm:$0xff] %v1293
                  %v1295 = vld [vmem:[%s1289 + $0x10] sm:$0xff]
                  %1296 = vst [vmem:[%s1290 + $0x20] sm:$0xff] %v1295
                  %v1297 = vld [vmem:[%s1289 + $0x18] sm:$0xff]
                  %1298 = vst [vmem:[%s1290 + $0x30] sm:$0xff] %v1297
                $region83: #{generator_64_forward.9} parent=77 // loop_footer
                  %s1288 = sadd.s32 1, %s1284
                $region84: #{generator_64_forward.9} parent=77 // loop_footer_branch
                  %1283 = sbr.rel target = $region80
                $region85: #{generator_64_forward.9} parent=77 // loop_exit
                  _
              $region78: #{generator_64_forward.9} parent=62 // pred_fallthru
                _
              // Predicated region
              $region86: #{generator_64_forward.9} parent=62 // pred_check
                _
              $region87: #{generator_64_forward.9} parent=62 // pred_check_branch
                %1300 = sbr.rel target = $region89
              $region88: #{generator_64_forward.9} parent=62 // pred_region
                _
              $region89: #{generator_64_forward.9} parent=62 // pred_fallthru
                _
            $region63: #{generator_64_forward.9} parent=58 // pred_fallthru
              _
            // Predicated region
            $region64: #{generator_64_forward.9} parent=58 // pred_check
              _
            $region65: #{generator_64_forward.9} parent=58 // pred_check_branch
              %1262 = sbr.rel target = $region67
            $region66: #{generator_64_forward.9} parent=58 // pred_region
              %s1264 = ssub.s32 256, 1
              loop: start=0, step=1, limit=1
              $region68: #{generator_64_forward.9} parent=66 // loop_pre_header
                _
              $region69: #{generator_64_forward.9} parent=66 // loop_header
                %s1266 = sphi 0, %s1270
                %p1267 = scmp.ge.s32.totalorder %s1266, 1
                %s1271 = sphi %s1251, %s1251
                %s1272 = sphi %s1256, %s1256
              $region70: #{generator_64_forward.9} parent=66 // loop_header_branch
                %1269 = sbr.rel (%p1267) target = $region74
              $region71: #{generator_64_forward.9} parent=66 // loop_body
                %v1273 = vld [vmem:[%s1271] sm:%s1264]
                %1274 = vst [vmem:[%s1272] sm:%s1264] %v1273
                %v1275 = vld [vmem:[%s1271 + $0x8] sm:%s1264]
                %1276 = vst [vmem:[%s1272 + $0x10] sm:%s1264] %v1275
                %v1277 = vld [vmem:[%s1271 + $0x10] sm:%s1264]
                %1278 = vst [vmem:[%s1272 + $0x20] sm:%s1264] %v1277
                %v1279 = vld [vmem:[%s1271 + $0x18] sm:%s1264]
                %1280 = vst [vmem:[%s1272 + $0x30] sm:%s1264] %v1279
              $region72: #{generator_64_forward.9} parent=66 // loop_footer
                %s1270 = sadd.s32 1, %s1266
              $region73: #{generator_64_forward.9} parent=66 // loop_footer_branch
                %1265 = sbr.rel target = $region69
              $region74: #{generator_64_forward.9} parent=66 // loop_exit
                _
            $region67: #{generator_64_forward.9} parent=58 // pred_fallthru
              _
          $region59: #{generator_64_forward.9} parent=54 // pred_fallthru
            _
          %1301 = vnop
        $region55: #{generator_64_forward.9} parent=46 // pred_fallthru
          _
      $region47: #{generator_64_forward.9} parent=5 // pred_fallthru
        _
      %p1302 = scmp.le.s32.totalorder 2, %s8
      // Predicated region
      $region90: #{generator_64_forward.9} parent=5 // pred_check
        %p1303 = pneg %p1302
      $region91: #{generator_64_forward.9} parent=5 // pred_check_branch
        %1305 = sbr.rel (%p1303) target = $region93
      $region92: #{generator_64_forward.9} parent=5 // pred_region
        %s1306 = ssub.s32 %s8, 2
        // Predicated region
        $region94: #{generator_64_forward.9} parent=92 // pred_check
          %p1307 = pneg %p84
        $region95: #{generator_64_forward.9} parent=92 // pred_check_branch
          %1309 = sbr.rel (%p1307) target = $region97
        $region96: #{generator_64_forward.9} parent=92 // pred_region
          %s1310 = sand.u32 %s69, 1
          %s1311 = sand.u32 %s69, 1
          %s1312 = smul.addr %s1311, 32
          %s1313 = scalar_lea.vmem [#allocation3], %s1312
        $region97: #{generator_64_forward.9} parent=92 // pred_fallthru
          _
      $region93: #{generator_64_forward.9} parent=5 // pred_fallthru
        _
    $region6: #{generator_64_forward.9} parent=1 // loop_footer
      %s12 = sadd.s32 1, %s8
    $region7: #{generator_64_forward.9} parent=1 // loop_footer_branch
      %7 = sbr.rel target = $region3
    $region8: #{generator_64_forward.9} parent=1 // loop_exit
      _

</llo_original>
